<compile_context>
chip_gen: v5e
topology: v5e:2x2
jax: 0.10.0
libtpu: 0.0.40
codegen_flags: <defaults>
</compile_context>

<pallas_src>
import functools

import numpy as np
import jax
import jax.numpy as jnp
from jax.experimental import pallas as pl
from jax.experimental.pallas import tpu as pltpu


# ----------------------------------------------------------------------------
# Pallas kernels
# ----------------------------------------------------------------------------
def _swin_attn_kernel(xw_ref, g1_ref, be1_ref, wqkv_ref, bqkv_ref,
                      rpb_ref, mask_ref, wproj_ref, bproj_ref, o_ref,
                      *, nW, N, C, nh, hd, scale, eps):
    """Fused: LayerNorm1 -> QKV -> per-head windowed attention -> output projection.

    xw_ref   : (nW, N, C)   raw (pre-norm) tokens of one batch element, windowed
    rpb_ref  : (nh, N, N)   relative position bias
    mask_ref : (nW, N, N)   shifted-window attention mask (zeros when shift == 0)
    o_ref    : (nW, N, C)   attention branch output (residual added later, in kernel B)
    """
    # ---- LayerNorm1 (per token, over C) -------------------------------------
    x2 = xw_ref[...].reshape(nW * N, C)
    mu = jnp.mean(x2, axis=-1, keepdims=True)
    xc = x2 - mu
    var = jnp.mean(xc * xc, axis=-1, keepdims=True)
    xn = xc * jax.lax.rsqrt(var + eps) * g1_ref[...] + be1_ref[...]

    # ---- fused QKV projection: one (nW*N, C) @ (C, 3C) MXU matmul -----------
    qkv = jnp.dot(xn, wqkv_ref[...], preferred_element_type=jnp.float32) + bqkv_ref[...]
    qkv = qkv.reshape(nW, N, 3 * C)         # columns ordered (q|k|v) x head x head_dim

    mask = mask_ref[...]                    # (nW, N, N)
    heads = []
    for h in range(nh):                     # nh is small; unrolled at trace time
        q = qkv[:, :, h * hd:(h + 1) * hd] * scale
        k = qkv[:, :, C + h * hd:C + (h + 1) * hd]
        v = qkv[:, :, 2 * C + h * hd:2 * C + (h + 1) * hd]
        attn = jnp.einsum('wnd,wmd->wnm', q, k,
                          preferred_element_type=jnp.float32)        # (nW, N, N)
        attn = attn + rpb_ref[h][None, :, :] + mask
        # numerically-stable softmax over keys
        attn = attn - jnp.max(attn, axis=-1, keepdims=True)
        p = jnp.exp(attn)
        p = p / jnp.sum(p, axis=-1, keepdims=True)
        heads.append(jnp.einsum('wnm,wmd->wnd', p, v,
                                preferred_element_type=jnp.float32))  # (nW, N, hd)

    ctx = jnp.concatenate(heads, axis=-1).reshape(nW * N, C)
    y = jnp.dot(ctx, wproj_ref[...], preferred_element_type=jnp.float32) + bproj_ref[...]
    o_ref[...] = y.reshape(nW, N, C)


def _swin_mlp_kernel(x_ref, a_ref, g2_ref, be2_ref, w1_ref, b1_ref,
                     w2_ref, b2_ref, o_ref, *, eps):
    """Fused: residual-1 + LayerNorm2 + fc1 + GELU + fc2 + residual-2.

    x_ref : (tm, C) shortcut tokens, a_ref : (tm, C) attention branch output.
    """
    y1 = x_ref[...] + a_ref[...]                          # residual 1
    mu = jnp.mean(y1, axis=-1, keepdims=True)
    yc = y1 - mu
    var = jnp.mean(yc * yc, axis=-1, keepdims=True)
    yn = yc * jax.lax.rsqrt(var + eps) * g2_ref[...] + be2_ref[...]

    h = jnp.dot(yn, w1_ref[...], preferred_element_type=jnp.float32) + b1_ref[...]
    # nn.GELU (exact erf) approximated with the tanh form (erf lowering not guaranteed on Mosaic).
    h = jax.nn.gelu(h, approximate=True)
    y2 = jnp.dot(h, w2_ref[...], preferred_element_type=jnp.float32) + b2_ref[...]
    o_ref[...] = y1 + y2                                  # residual 2


# ----------------------------------------------------------------------------
# JAX glue (layout only)
# ----------------------------------------------------------------------------
def window_partition(x, ws):
    """(B, H, W, C) -> (B*nW, ws*ws, C), same ordering as the PyTorch reference."""
    B, H, W, C = x.shape
    x = x.reshape(B, H // ws, ws, W // ws, ws, C)
    return jnp.transpose(x, (0, 1, 3, 2, 4, 5)).reshape(-1, ws * ws, C)


def window_reverse(wins, ws, B, H, W):
    """(B*nW, ws*ws, C) -> (B, H, W, C)."""
    C = wins.shape[-1]
    x = wins.reshape(B, H // ws, W // ws, ws, ws, C)
    return jnp.transpose(x, (0, 1, 3, 2, 4, 5)).reshape(B, H, W, C)


def relative_position_index(ws):
    """Static (ws*ws, ws*ws) int32 index table, identical to the PyTorch buffer."""
    coords = np.stack(np.meshgrid(np.arange(ws), np.arange(ws), indexing='ij'))
    cf = coords.reshape(2, -1)
    rel = cf[:, :, None] - cf[:, None, :]
    rel = rel.transpose(1, 2, 0).astype(np.int64)
    rel[:, :, 0] += ws - 1
    rel[:, :, 1] += ws - 1
    rel[:, :, 0] *= 2 * ws - 1
    return jnp.asarray(rel.sum(-1).astype(np.int32))


def compute_attn_mask(H, W, ws, shift):
    """Shifted-window attention mask (nW, ws*ws, ws*ws), as produced by BasicLayer."""
    img = np.zeros((1, H, W, 1), np.float32)
    h_slices = (slice(0, -ws), slice(-ws, -shift), slice(-shift, None))
    w_slices = (slice(0, -ws), slice(-ws, -shift), slice(-shift, None))
    cnt = 0
    for hs in h_slices:
        for wsl in w_slices:
            img[:, hs, wsl, :] = cnt
            cnt += 1
    m = img.reshape(1, H // ws, ws, W // ws, ws, 1)
    m = m.transpose(0, 1, 3, 2, 4, 5).reshape(-1, ws * ws)
    diff = m[:, None, :] - m[:, :, None]
    return jnp.asarray(np.where(diff != 0, -100.0, 0.0).astype(np.float32))


def _pick_row_tile(m):
    # prefer >= 2 grid steps (both v7x TensorCores busy; pipelining active on all gens)
    for cand in (256, 128, 512, 1024):
        if m % cand == 0 and m // cand >= 2:
            return cand
    return m


# ----------------------------------------------------------------------------
# Forward pass
# ----------------------------------------------------------------------------
@functools.partial(jax.jit,
                   static_argnames=("H", "W", "window_size", "shift_size", "num_heads"))
def swin_block_forward(x, params, rpi, attn_mask, *,
                       H, W, window_size, shift_size, num_heads):
    """x: (B, H*W, C) float32.  attn_mask: (nW, N, N) (zeros when shift_size == 0)."""
    B, L, C = x.shape
    ws = window_size
    assert L == H * W, "input feature has wrong size"
    # TODO(synk): zero-pad path of the reference (H/W not multiples of window_size) not implemented.
    assert H % ws == 0 and W % ws == 0, "demo path requires H, W divisible by window_size"
    assert C % num_heads == 0
    nh = num_heads
    hd = C // nh
    N = ws * ws
    nW = (H // ws) * (W // ws)
    eps = 1e-5

    # ---- cyclic shift + window partition (layout-only glue) -----------------
    xs = x.reshape(B, H, W, C)
    if shift_size > 0:
        xs = jnp.roll(xs, shift=(-shift_size, -shift_size), axis=(1, 2))
    xw = window_partition(xs, ws)                       # (B*nW, N, C)

    # ---- relative position bias gather (tiny, one-shot) ---------------------
    rpb = params['rpb_table'][rpi.reshape(-1)].reshape(N, N, nh)
    rpb = jnp.transpose(rpb, (2, 0, 1)).astype(jnp.float32)   # (nh, N, N)

    # ---- kernel A: fused norm1 + windowed attention + projection ------------
    attn_kern = functools.partial(_swin_attn_kernel, nW=nW, N=N, C=C, nh=nh, hd=hd,
                                  scale=float(hd) ** -0.5, eps=eps)

    def full(shape):
        return pl.BlockSpec(shape, lambda b: (0,) * len(shape))

    attn_out = pl.pallas_call(
        attn_kern,
        out_shape=jax.ShapeDtypeStruct((B * nW, N, C), jnp.float32),
        grid=(B,),
        in_specs=[
            pl.BlockSpec((nW, N, C), lambda b: (b, 0, 0)),   # windowed tokens of batch b
            full((1, C)), full((1, C)),                      # norm1 gamma / beta
            full((C, 3 * C)), full((1, 3 * C)),              # qkv weight / bias
            full((nh, N, N)),                                # relative position bias
            full((nW, N, N)),                                # attention mask
            full((C, C)), full((1, C)),                      # proj weight / bias
        ],
        out_specs=pl.BlockSpec((nW, N, C), lambda b: (b, 0, 0)),
        compiler_params=pltpu.CompilerParams(dimension_semantics=("parallel",)),
    )(xw, params['g1'], params['be1'], params['wqkv'], params['bqkv'],
      rpb, attn_mask.astype(jnp.float32), params['wproj'], params['bproj'])

    # ---- reverse windows / shift (layout-only glue) --------------------------
    aw = window_reverse(attn_out, ws, B, H, W)
    if shift_size > 0:
        aw = jnp.roll(aw, shift=(shift_size, shift_size), axis=(1, 2))
    a_flat = aw.reshape(B * L, C)
    x_flat = x.reshape(B * L, C)

    # ---- kernel B: fused residual + norm2 + MLP + residual -------------------
    M = B * L
    tm = _pick_row_tile(M)
    hidden = params['w1'].shape[1]
    mlp_kern = functools.partial(_swin_mlp_kernel, eps=eps)

    out = pl.pallas_call(
        mlp_kern,
        out_shape=jax.ShapeDtypeStruct((M, C), jnp.float32),
        grid=(M // tm,),
        in_specs=[
            pl.BlockSpec((tm, C), lambda i: (i, 0)),         # shortcut tokens
            pl.BlockSpec((tm, C), lambda i: (i, 0)),         # attention branch
            full((1, C)), full((1, C)),                      # norm2 gamma / beta
            full((C, hidden)), full((1, hidden)),            # fc1
            full((hidden, C)), full((1, C)),                 # fc2
        ],
        out_specs=pl.BlockSpec((tm, C), lambda i: (i, 0)),
        compiler_params=pltpu.CompilerParams(dimension_semantics=("parallel",)),
    )(x_flat, a_flat, params['g2'], params['be2'],
      params['w1'], params['b1'], params['w2'], params['b2'])

    return out.reshape(B, L, C)


# ----------------------------------------------------------------------------
# Parameter construction (PyTorch layouts transposed for x @ W convention)
# ----------------------------------------------------------------------------
def init_swin_params(key, dim, num_heads, window_size, mlp_ratio=4.0):
    hidden = int(dim * mlp_ratio)
    n_bias = (2 * window_size - 1) ** 2
    ks = jax.random.split(key, 8)
    s = 0.02
    return dict(
        g1=jnp.ones((1, dim), jnp.float32),
        be1=jnp.zeros((1, dim), jnp.float32),
        wqkv=jax.random.normal(ks[0], (dim, 3 * dim), jnp.float32) * s,
        bqkv=jax.random.normal(ks[1], (1, 3 * dim), jnp.float32) * s,
        rpb_table=jax.random.normal(ks[2], (n_bias, num_heads), jnp.float32) * s,
        wproj=jax.random.normal(ks[3], (dim, dim), jnp.float32) * s,
        bproj=jax.random.normal(ks[4], (1, dim), jnp.float32) * s,
        g2=jnp.ones((1, dim), jnp.float32),
        be2=jnp.zeros((1, dim), jnp.float32),
        w1=jax.random.normal(ks[5], (dim, hidden), jnp.float32) * s,
        b1=jax.random.normal(ks[6], (1, hidden), jnp.float32) * s,
        w2=jax.random.normal(ks[7], (hidden, dim), jnp.float32) * s,
        b2=jnp.zeros((1, dim), jnp.float32),
    )


# ----------------------------------------------------------------------------
if __name__ == "__main__":
    key = jax.random.PRNGKey(0)
    kx, kp1, kp2 = jax.random.split(key, 3)

    # small, module-consistent shapes
    B, H, W = 2, 16, 16
    dim, num_heads, window_size = 32, 4, 8
    L = H * W
    N = window_size * window_size
    nW = (H // window_size) * (W // window_size)

    x = jax.random.normal(kx, (B, L, dim), jnp.float32)

    rpi = relative_position_index(window_size)
    zero_mask = jnp.zeros((nW, N, N), jnp.float32)
    shift_mask = compute_attn_mask(H, W, window_size, window_size // 2)

    params1 = init_swin_params(kp1, dim, num_heads, window_size)
    params2 = init_swin_params(kp2, dim, num_heads, window_size)

    # block 1: W-MSA (no shift), block 2: SW-MSA (shift = window_size // 2), chained
    y = swin_block_forward(x, params1, rpi, zero_mask,
                           H=H, W=W, window_size=window_size,
                           shift_size=0, num_heads=num_heads)
    y = swin_block_forward(y, params2, rpi, shift_mask,
                           H=H, W=W, window_size=window_size,
                           shift_size=window_size // 2, num_heads=num_heads)
    y = jax.block_until_ready(y)

    assert y.shape == (B, L, dim), y.shape
    assert bool(jnp.all(jnp.isfinite(y)))
    print("KERNEL_OK")
</pallas_src>

<mosaic_0001>
module attributes {stable_mosaic.version = 11 : i64} {
  func.func @_swin_attn_kernel(%arg0: i32, %arg1: memref<4x64x32xf32, #tpu.memory_space<vmem>>, %arg2: memref<1x32xf32, #tpu.memory_space<vmem>>, %arg3: memref<1x32xf32, #tpu.memory_space<vmem>>, %arg4: memref<32x96xf32, #tpu.memory_space<vmem>>, %arg5: memref<1x96xf32, #tpu.memory_space<vmem>>, %arg6: memref<4x64x64xf32, #tpu.memory_space<vmem>>, %arg7: memref<4x64x64xf32, #tpu.memory_space<vmem>>, %arg8: memref<32x32xf32, #tpu.memory_space<vmem>>, %arg9: memref<1x32xf32, #tpu.memory_space<vmem>>, %arg10: memref<4x64x32xf32, #tpu.memory_space<vmem>>) attributes {dimension_semantics = [#tpu.dimension_semantics<parallel>], iteration_bounds = array<i64: 2>, scalar_prefetch = 0 : i64, scratch_operands = 0 : i64, tpu.core_type = #tpu.core_type<tc>, window_params = [{transform_indices = @transform_0, window_bounds = array<i64: 4, 64, 32>}, {pipeline_mode = #tpu.pipeline_mode<synchronous>, transform_indices = @transform_1, window_bounds = array<i64: 1, 32>}, {pipeline_mode = #tpu.pipeline_mode<synchronous>, transform_indices = @transform_2, window_bounds = array<i64: 1, 32>}, {pipeline_mode = #tpu.pipeline_mode<synchronous>, transform_indices = @transform_3, window_bounds = array<i64: 32, 96>}, {pipeline_mode = #tpu.pipeline_mode<synchronous>, transform_indices = @transform_4, window_bounds = array<i64: 1, 96>}, {pipeline_mode = #tpu.pipeline_mode<synchronous>, transform_indices = @transform_5, window_bounds = array<i64: 4, 64, 64>}, {pipeline_mode = #tpu.pipeline_mode<synchronous>, transform_indices = @transform_6, window_bounds = array<i64: 4, 64, 64>}, {pipeline_mode = #tpu.pipeline_mode<synchronous>, transform_indices = @transform_7, window_bounds = array<i64: 32, 32>}, {pipeline_mode = #tpu.pipeline_mode<synchronous>, transform_indices = @transform_8, window_bounds = array<i64: 1, 32>}, {transform_indices = @transform_9, window_bounds = array<i64: 4, 64, 32>}]} {
    %c0 = arith.constant 0 : index
    %c0_0 = arith.constant 0 : index
    %c0_1 = arith.constant 0 : index
    %0 = vector.load %arg1[%c0, %c0_0, %c0_1] : memref<4x64x32xf32, #tpu.memory_space<vmem>>, vector<4x64x32xf32>
    %1 = vector.shape_cast %0 : vector<4x64x32xf32> to vector<256x32xf32>
    %cst = arith.constant dense<0.000000e+00> : vector<256xf32>
    %2 = vector.multi_reduction <add>, %1, %cst [1] : vector<256x32xf32> to vector<256xf32>
    %3 = vector.shape_cast %2 : vector<256xf32> to vector<256x1xf32>
    %cst_2 = arith.constant 3.200000e+01 : f32
    %4 = vector.broadcast %cst_2 : f32 to vector<256x1xf32>
    %5 = arith.divf %3, %4 : vector<256x1xf32>
    %6 = vector.broadcast %5 : vector<256x1xf32> to vector<256x32xf32>
    %7 = arith.subf %1, %6 : vector<256x32xf32>
    %8 = arith.mulf %7, %7 : vector<256x32xf32>
    %cst_3 = arith.constant dense<0.000000e+00> : vector<256xf32>
    %9 = vector.multi_reduction <add>, %8, %cst_3 [1] : vector<256x32xf32> to vector<256xf32>
    %10 = vector.shape_cast %9 : vector<256xf32> to vector<256x1xf32>
    %cst_4 = arith.constant 3.200000e+01 : f32
    %11 = vector.broadcast %cst_4 : f32 to vector<256x1xf32>
    %12 = arith.divf %10, %11 : vector<256x1xf32>
    %cst_5 = arith.constant 9.99999974E-6 : f32
    %13 = vector.broadcast %cst_5 : f32 to vector<256x1xf32>
    %14 = arith.addf %12, %13 : vector<256x1xf32>
    %15 = math.rsqrt %14 : vector<256x1xf32>
    %16 = vector.broadcast %15 : vector<256x1xf32> to vector<256x32xf32>
    %17 = arith.mulf %7, %16 : vector<256x32xf32>
    %c0_6 = arith.constant 0 : index
    %c0_7 = arith.constant 0 : index
    %18 = vector.load %arg2[%c0_6, %c0_7] : memref<1x32xf32, #tpu.memory_space<vmem>>, vector<1x32xf32>
    %19 = vector.broadcast %18 : vector<1x32xf32> to vector<256x32xf32>
    %20 = arith.mulf %17, %19 : vector<256x32xf32>
    %c0_8 = arith.constant 0 : index
    %c0_9 = arith.constant 0 : index
    %21 = vector.load %arg3[%c0_8, %c0_9] : memref<1x32xf32, #tpu.memory_space<vmem>>, vector<1x32xf32>
    %22 = vector.broadcast %21 : vector<1x32xf32> to vector<256x32xf32>
    %23 = arith.addf %20, %22 : vector<256x32xf32>
    %c0_10 = arith.constant 0 : index
    %c0_11 = arith.constant 0 : index
    %24 = vector.load %arg4[%c0_10, %c0_11] : memref<32x96xf32, #tpu.memory_space<vmem>>, vector<32x96xf32>
    %cst_12 = arith.constant dense<0.000000e+00> : vector<256x96xf32>
    %25 = tpu.matmul %23, %24, %cst_12 {dimension_numbers = #tpu.dot_dimension_numbers<[1], [0], [0], [1], [0, 0, 1, 1], [], []>} : vector<256x32xf32>, vector<32x96xf32>, vector<256x96xf32> -> vector<256x96xf32>
    %c0_13 = arith.constant 0 : index
    %c0_14 = arith.constant 0 : index
    %26 = vector.load %arg5[%c0_13, %c0_14] : memref<1x96xf32, #tpu.memory_space<vmem>>, vector<1x96xf32>
    %27 = vector.broadcast %26 : vector<1x96xf32> to vector<256x96xf32>
    %28 = arith.addf %25, %27 : vector<256x96xf32>
    %29 = vector.shape_cast %28 : vector<256x96xf32> to vector<4x64x96xf32>
    %c0_15 = arith.constant 0 : index
    %c0_16 = arith.constant 0 : index
    %c0_17 = arith.constant 0 : index
    %30 = vector.load %arg7[%c0_15, %c0_16, %c0_17] : memref<4x64x64xf32, #tpu.memory_space<vmem>>, vector<4x64x64xf32>
    %31 = vector.extract_strided_slice %29 {offsets = [0, 0, 0], sizes = [4, 64, 8], strides = [1, 1, 1]} : vector<4x64x96xf32> to vector<4x64x8xf32>
    %cst_18 = arith.constant 0.353553385 : f32
    %32 = vector.broadcast %cst_18 : f32 to vector<4x64x8xf32>
    %33 = arith.mulf %31, %32 : vector<4x64x8xf32>
    %34 = vector.extract_strided_slice %29 {offsets = [0, 0, 32], sizes = [4, 64, 8], strides = [1, 1, 1]} : vector<4x64x96xf32> to vector<4x64x8xf32>
    %35 = vector.extract_strided_slice %29 {offsets = [0, 0, 64], sizes = [4, 64, 8], strides = [1, 1, 1]} : vector<4x64x96xf32> to vector<4x64x8xf32>
    "tpu.trace_start"() <{level = 10 : i32, message = "wnd,wmd->wnm"}> : () -> ()
    %cst_19 = arith.constant dense<0.000000e+00> : vector<4x64x64xf32>
    %36 = tpu.matmul %33, %34, %cst_19 {dimension_numbers = #tpu.dot_dimension_numbers<[2], [2], [1], [1], [0, 0, 0, 1, 1, 1], [0], [0]>} : vector<4x64x8xf32>, vector<4x64x8xf32>, vector<4x64x64xf32> -> vector<4x64x64xf32>
    "tpu.trace_stop"() : () -> ()
    %c0_20 = arith.constant 0 : index
    %c0_21 = arith.constant 0 : index
    %c0_22 = arith.constant 0 : index
    %37 = vector.load %arg6[%c0_20, %c0_21, %c0_22] : memref<4x64x64xf32, #tpu.memory_space<vmem>>, vector<1x64x64xf32>
    %38 = vector.shape_cast %37 : vector<1x64x64xf32> to vector<64x64xf32>
    %39 = vector.shape_cast %38 : vector<64x64xf32> to vector<1x64x64xf32>
    %40 = vector.broadcast %39 : vector<1x64x64xf32> to vector<4x64x64xf32>
    %41 = arith.addf %36, %40 : vector<4x64x64xf32>
    %42 = arith.addf %41, %30 : vector<4x64x64xf32>
    %cst_23 = arith.constant dense<0xFF800000> : vector<4x64xf32>
    %43 = vector.multi_reduction <maximumf>, %42, %cst_23 [2] : vector<4x64x64xf32> to vector<4x64xf32>
    %44 = vector.shape_cast %43 : vector<4x64xf32> to vector<4x64x1xf32>
    %45 = vector.broadcast %44 : vector<4x64x1xf32> to vector<4x64x64xf32>
    %46 = arith.subf %42, %45 : vector<4x64x64xf32>
    %47 = math.exp %46 : vector<4x64x64xf32>
    %cst_24 = arith.constant dense<0.000000e+00> : vector<4x64xf32>
    %48 = vector.multi_reduction <add>, %47, %cst_24 [2] : vector<4x64x64xf32> to vector<4x64xf32>
    %49 = vector.shape_cast %48 : vector<4x64xf32> to vector<4x64x1xf32>
    %50 = vector.broadcast %49 : vector<4x64x1xf32> to vector<4x64x64xf32>
    %51 = arith.divf %47, %50 : vector<4x64x64xf32>
    "tpu.trace_start"() <{level = 10 : i32, message = "wnm,wmd->wnd"}> : () -> ()
    %cst_25 = arith.constant dense<0.000000e+00> : vector<4x64x8xf32>
    %52 = tpu.matmul %51, %35, %cst_25 {dimension_numbers = #tpu.dot_dimension_numbers<[2], [1], [1], [2], [0, 0, 0, 1, 1, 2], [0], [0]>} : vector<4x64x64xf32>, vector<4x64x8xf32>, vector<4x64x8xf32> -> vector<4x64x8xf32>
    "tpu.trace_stop"() : () -> ()
    %53 = vector.extract_strided_slice %29 {offsets = [0, 0, 8], sizes = [4, 64, 8], strides = [1, 1, 1]} : vector<4x64x96xf32> to vector<4x64x8xf32>
    %cst_26 = arith.constant 0.353553385 : f32
    %54 = vector.broadcast %cst_26 : f32 to vector<4x64x8xf32>
    %55 = arith.mulf %53, %54 : vector<4x64x8xf32>
    %56 = vector.extract_strided_slice %29 {offsets = [0, 0, 40], sizes = [4, 64, 8], strides = [1, 1, 1]} : vector<4x64x96xf32> to vector<4x64x8xf32>
    %57 = vector.extract_strided_slice %29 {offsets = [0, 0, 72], sizes = [4, 64, 8], strides = [1, 1, 1]} : vector<4x64x96xf32> to vector<4x64x8xf32>
    "tpu.trace_start"() <{level = 10 : i32, message = "wnd,wmd->wnm"}> : () -> ()
    %cst_27 = arith.constant dense<0.000000e+00> : vector<4x64x64xf32>
    %58 = tpu.matmul %55, %56, %cst_27 {dimension_numbers = #tpu.dot_dimension_numbers<[2], [2], [1], [1], [0, 0, 0, 1, 1, 1], [0], [0]>} : vector<4x64x8xf32>, vector<4x64x8xf32>, vector<4x64x64xf32> -> vector<4x64x64xf32>
    "tpu.trace_stop"() : () -> ()
    %c1 = arith.constant 1 : index
    %c0_28 = arith.constant 0 : index
    %c0_29 = arith.constant 0 : index
    %59 = vector.load %arg6[%c1, %c0_28, %c0_29] : memref<4x64x64xf32, #tpu.memory_space<vmem>>, vector<1x64x64xf32>
    %60 = vector.shape_cast %59 : vector<1x64x64xf32> to vector<64x64xf32>
    %61 = vector.shape_cast %60 : vector<64x64xf32> to vector<1x64x64xf32>
    %62 = vector.broadcast %61 : vector<1x64x64xf32> to vector<4x64x64xf32>
    %63 = arith.addf %58, %62 : vector<4x64x64xf32>
    %64 = arith.addf %63, %30 : vector<4x64x64xf32>
    %cst_30 = arith.constant dense<0xFF800000> : vector<4x64xf32>
    %65 = vector.multi_reduction <maximumf>, %64, %cst_30 [2] : vector<4x64x64xf32> to vector<4x64xf32>
    %66 = vector.shape_cast %65 : vector<4x64xf32> to vector<4x64x1xf32>
    %67 = vector.broadcast %66 : vector<4x64x1xf32> to vector<4x64x64xf32>
    %68 = arith.subf %64, %67 : vector<4x64x64xf32>
    %69 = math.exp %68 : vector<4x64x64xf32>
    %cst_31 = arith.constant dense<0.000000e+00> : vector<4x64xf32>
    %70 = vector.multi_reduction <add>, %69, %cst_31 [2] : vector<4x64x64xf32> to vector<4x64xf32>
    %71 = vector.shape_cast %70 : vector<4x64xf32> to vector<4x64x1xf32>
    %72 = vector.broadcast %71 : vector<4x64x1xf32> to vector<4x64x64xf32>
    %73 = arith.divf %69, %72 : vector<4x64x64xf32>
    "tpu.trace_start"() <{level = 10 : i32, message = "wnm,wmd->wnd"}> : () -> ()
    %cst_32 = arith.constant dense<0.000000e+00> : vector<4x64x8xf32>
    %74 = tpu.matmul %73, %57, %cst_32 {dimension_numbers = #tpu.dot_dimension_numbers<[2], [1], [1], [2], [0, 0, 0, 1, 1, 2], [0], [0]>} : vector<4x64x64xf32>, vector<4x64x8xf32>, vector<4x64x8xf32> -> vector<4x64x8xf32>
    "tpu.trace_stop"() : () -> ()
    %75 = vector.extract_strided_slice %29 {offsets = [0, 0, 16], sizes = [4, 64, 8], strides = [1, 1, 1]} : vector<4x64x96xf32> to vector<4x64x8xf32>
    %cst_33 = arith.constant 0.353553385 : f32
    %76 = vector.broadcast %cst_33 : f32 to vector<4x64x8xf32>
    %77 = arith.mulf %75, %76 : vector<4x64x8xf32>
    %78 = vector.extract_strided_slice %29 {offsets = [0, 0, 48], sizes = [4, 64, 8], strides = [1, 1, 1]} : vector<4x64x96xf32> to vector<4x64x8xf32>
    %79 = vector.extract_strided_slice %29 {offsets = [0, 0, 80], sizes = [4, 64, 8], strides = [1, 1, 1]} : vector<4x64x96xf32> to vector<4x64x8xf32>
    "tpu.trace_start"() <{level = 10 : i32, message = "wnd,wmd->wnm"}> : () -> ()
    %cst_34 = arith.constant dense<0.000000e+00> : vector<4x64x64xf32>
    %80 = tpu.matmul %77, %78, %cst_34 {dimension_numbers = #tpu.dot_dimension_numbers<[2], [2], [1], [1], [0, 0, 0, 1, 1, 1], [0], [0]>} : vector<4x64x8xf32>, vector<4x64x8xf32>, vector<4x64x64xf32> -> vector<4x64x64xf32>
    "tpu.trace_stop"() : () -> ()
    %c2 = arith.constant 2 : index
    %c0_35 = arith.constant 0 : index
    %c0_36 = arith.constant 0 : index
    %81 = vector.load %arg6[%c2, %c0_35, %c0_36] : memref<4x64x64xf32, #tpu.memory_space<vmem>>, vector<1x64x64xf32>
    %82 = vector.shape_cast %81 : vector<1x64x64xf32> to vector<64x64xf32>
    %83 = vector.shape_cast %82 : vector<64x64xf32> to vector<1x64x64xf32>
    %84 = vector.broadcast %83 : vector<1x64x64xf32> to vector<4x64x64xf32>
    %85 = arith.addf %80, %84 : vector<4x64x64xf32>
    %86 = arith.addf %85, %30 : vector<4x64x64xf32>
    %cst_37 = arith.constant dense<0xFF800000> : vector<4x64xf32>
    %87 = vector.multi_reduction <maximumf>, %86, %cst_37 [2] : vector<4x64x64xf32> to vector<4x64xf32>
    %88 = vector.shape_cast %87 : vector<4x64xf32> to vector<4x64x1xf32>
    %89 = vector.broadcast %88 : vector<4x64x1xf32> to vector<4x64x64xf32>
    %90 = arith.subf %86, %89 : vector<4x64x64xf32>
    %91 = math.exp %90 : vector<4x64x64xf32>
    %cst_38 = arith.constant dense<0.000000e+00> : vector<4x64xf32>
    %92 = vector.multi_reduction <add>, %91, %cst_38 [2] : vector<4x64x64xf32> to vector<4x64xf32>
    %93 = vector.shape_cast %92 : vector<4x64xf32> to vector<4x64x1xf32>
    %94 = vector.broadcast %93 : vector<4x64x1xf32> to vector<4x64x64xf32>
    %95 = arith.divf %91, %94 : vector<4x64x64xf32>
    "tpu.trace_start"() <{level = 10 : i32, message = "wnm,wmd->wnd"}> : () -> ()
    %cst_39 = arith.constant dense<0.000000e+00> : vector<4x64x8xf32>
    %96 = tpu.matmul %95, %79, %cst_39 {dimension_numbers = #tpu.dot_dimension_numbers<[2], [1], [1], [2], [0, 0, 0, 1, 1, 2], [0], [0]>} : vector<4x64x64xf32>, vector<4x64x8xf32>, vector<4x64x8xf32> -> vector<4x64x8xf32>
    "tpu.trace_stop"() : () -> ()
    %97 = vector.extract_strided_slice %29 {offsets = [0, 0, 24], sizes = [4, 64, 8], strides = [1, 1, 1]} : vector<4x64x96xf32> to vector<4x64x8xf32>
    %cst_40 = arith.constant 0.353553385 : f32
    %98 = vector.broadcast %cst_40 : f32 to vector<4x64x8xf32>
    %99 = arith.mulf %97, %98 : vector<4x64x8xf32>
    %100 = vector.extract_strided_slice %29 {offsets = [0, 0, 56], sizes = [4, 64, 8], strides = [1, 1, 1]} : vector<4x64x96xf32> to vector<4x64x8xf32>
    %101 = vector.extract_strided_slice %29 {offsets = [0, 0, 88], sizes = [4, 64, 8], strides = [1, 1, 1]} : vector<4x64x96xf32> to vector<4x64x8xf32>
    "tpu.trace_start"() <{level = 10 : i32, message = "wnd,wmd->wnm"}> : () -> ()
    %cst_41 = arith.constant dense<0.000000e+00> : vector<4x64x64xf32>
    %102 = tpu.matmul %99, %100, %cst_41 {dimension_numbers = #tpu.dot_dimension_numbers<[2], [2], [1], [1], [0, 0, 0, 1, 1, 1], [0], [0]>} : vector<4x64x8xf32>, vector<4x64x8xf32>, vector<4x64x64xf32> -> vector<4x64x64xf32>
    "tpu.trace_stop"() : () -> ()
    %c3 = arith.constant 3 : index
    %c0_42 = arith.constant 0 : index
    %c0_43 = arith.constant 0 : index
    %103 = vector.load %arg6[%c3, %c0_42, %c0_43] : memref<4x64x64xf32, #tpu.memory_space<vmem>>, vector<1x64x64xf32>
    %104 = vector.shape_cast %103 : vector<1x64x64xf32> to vector<64x64xf32>
    %105 = vector.shape_cast %104 : vector<64x64xf32> to vector<1x64x64xf32>
    %106 = vector.broadcast %105 : vector<1x64x64xf32> to vector<4x64x64xf32>
    %107 = arith.addf %102, %106 : vector<4x64x64xf32>
    %108 = arith.addf %107, %30 : vector<4x64x64xf32>
    %cst_44 = arith.constant dense<0xFF800000> : vector<4x64xf32>
    %109 = vector.multi_reduction <maximumf>, %108, %cst_44 [2] : vector<4x64x64xf32> to vector<4x64xf32>
    %110 = vector.shape_cast %109 : vector<4x64xf32> to vector<4x64x1xf32>
    %111 = vector.broadcast %110 : vector<4x64x1xf32> to vector<4x64x64xf32>
    %112 = arith.subf %108, %111 : vector<4x64x64xf32>
    %113 = math.exp %112 : vector<4x64x64xf32>
    %cst_45 = arith.constant dense<0.000000e+00> : vector<4x64xf32>
    %114 = vector.multi_reduction <add>, %113, %cst_45 [2] : vector<4x64x64xf32> to vector<4x64xf32>
    %115 = vector.shape_cast %114 : vector<4x64xf32> to vector<4x64x1xf32>
    %116 = vector.broadcast %115 : vector<4x64x1xf32> to vector<4x64x64xf32>
    %117 = arith.divf %113, %116 : vector<4x64x64xf32>
    "tpu.trace_start"() <{level = 10 : i32, message = "wnm,wmd->wnd"}> : () -> ()
    %cst_46 = arith.constant dense<0.000000e+00> : vector<4x64x8xf32>
    %118 = tpu.matmul %117, %101, %cst_46 {dimension_numbers = #tpu.dot_dimension_numbers<[2], [1], [1], [2], [0, 0, 0, 1, 1, 2], [0], [0]>} : vector<4x64x64xf32>, vector<4x64x8xf32>, vector<4x64x8xf32> -> vector<4x64x8xf32>
    "tpu.trace_stop"() : () -> ()
    %119 = tpu.concatenate %52, %74, %96, %118 in 2 : vector<4x64x8xf32>, vector<4x64x8xf32>, vector<4x64x8xf32>, vector<4x64x8xf32> -> vector<4x64x32xf32>
    %120 = vector.shape_cast %119 : vector<4x64x32xf32> to vector<256x32xf32>
    %c0_47 = arith.constant 0 : index
    %c0_48 = arith.constant 0 : index
    %121 = vector.load %arg8[%c0_47, %c0_48] : memref<32x32xf32, #tpu.memory_space<vmem>>, vector<32x32xf32>
    %cst_49 = arith.constant dense<0.000000e+00> : vector<256x32xf32>
    %122 = tpu.matmul %120, %121, %cst_49 {dimension_numbers = #tpu.dot_dimension_numbers<[1], [0], [0], [1], [0, 0, 1, 1], [], []>} : vector<256x32xf32>, vector<32x32xf32>, vector<256x32xf32> -> vector<256x32xf32>
    %c0_50 = arith.constant 0 : index
    %c0_51 = arith.constant 0 : index
    %123 = vector.load %arg9[%c0_50, %c0_51] : memref<1x32xf32, #tpu.memory_space<vmem>>, vector<1x32xf32>
    %124 = vector.broadcast %123 : vector<1x32xf32> to vector<256x32xf32>
    %125 = arith.addf %122, %124 : vector<256x32xf32>
    %126 = vector.shape_cast %125 : vector<256x32xf32> to vector<4x64x32xf32>
    %c0_52 = arith.constant 0 : index
    %c0_53 = arith.constant 0 : index
    %c0_54 = arith.constant 0 : index
    %127 = vector.load %arg10[%c0_52, %c0_53, %c0_54] : memref<4x64x32xf32, #tpu.memory_space<vmem>>, vector<4x64x32xf32>
    tpu.vector_store %arg10[%c0_52, %c0_53, %c0_54], %126 {strides = array<i32>} : memref<4x64x32xf32, #tpu.memory_space<vmem>>, vector<4x64x32xf32>,
    return
  }
  func.func @transform_0(%arg0: i32) -> (i32, i32, i32) {
    %c0_i32 = arith.constant 0 : i32
    %c0_i32_0 = arith.constant 0 : i32
    %c0_i32_1 = arith.constant 0 : i32
    return %arg0, %c0_i32, %c0_i32_0 : i32, i32, i32
  }
  func.func @transform_1(%arg0: i32) -> (i32, i32) {
    %c0_i32 = arith.constant 0 : i32
    %c0_i32_0 = arith.constant 0 : i32
    %c0_i32_1 = arith.constant 0 : i32
    return %c0_i32, %c0_i32_0 : i32, i32
  }
  func.func @transform_2(%arg0: i32) -> (i32, i32) {
    %c0_i32 = arith.constant 0 : i32
    %c0_i32_0 = arith.constant 0 : i32
    %c0_i32_1 = arith.constant 0 : i32
    return %c0_i32, %c0_i32_0 : i32, i32
  }
  func.func @transform_3(%arg0: i32) -> (i32, i32) {
    %c0_i32 = arith.constant 0 : i32
    %c0_i32_0 = arith.constant 0 : i32
    %c0_i32_1 = arith.constant 0 : i32
    return %c0_i32, %c0_i32_0 : i32, i32
  }
  func.func @transform_4(%arg0: i32) -> (i32, i32) {
    %c0_i32 = arith.constant 0 : i32
    %c0_i32_0 = arith.constant 0 : i32
    %c0_i32_1 = arith.constant 0 : i32
    return %c0_i32, %c0_i32_0 : i32, i32
  }
  func.func @transform_5(%arg0: i32) -> (i32, i32, i32) {
    %c0_i32 = arith.constant 0 : i32
    %c0_i32_0 = arith.constant 0 : i32
    %c0_i32_1 = arith.constant 0 : i32
    %c0_i32_2 = arith.constant 0 : i32
    return %c0_i32, %c0_i32_0, %c0_i32_1 : i32, i32, i32
  }
  func.func @transform_6(%arg0: i32) -> (i32, i32, i32) {
    %c0_i32 = arith.constant 0 : i32
    %c0_i32_0 = arith.constant 0 : i32
    %c0_i32_1 = arith.constant 0 : i32
    %c0_i32_2 = arith.constant 0 : i32
    return %c0_i32, %c0_i32_0, %c0_i32_1 : i32, i32, i32
  }
  func.func @transform_7(%arg0: i32) -> (i32, i32) {
    %c0_i32 = arith.constant 0 : i32
    %c0_i32_0 = arith.constant 0 : i32
    %c0_i32_1 = arith.constant 0 : i32
    return %c0_i32, %c0_i32_0 : i32, i32
  }
  func.func @transform_8(%arg0: i32) -> (i32, i32) {
    %c0_i32 = arith.constant 0 : i32
    %c0_i32_0 = arith.constant 0 : i32
    %c0_i32_1 = arith.constant 0 : i32
    return %c0_i32, %c0_i32_0 : i32, i32
  }
  func.func @transform_9(%arg0: i32) -> (i32, i32, i32) {
    %c0_i32 = arith.constant 0 : i32
    %c0_i32_0 = arith.constant 0 : i32
    %c0_i32_1 = arith.constant 0 : i32
    return %arg0, %c0_i32, %c0_i32_0 : i32, i32, i32
  }
}

module attributes {stable_mosaic.version = 11 : i64} {
  func.func @_swin_mlp_kernel(%arg0: i32, %arg1: memref<256x32xf32, #tpu.memory_space<vmem>>, %arg2: memref<256x32xf32, #tpu.memory_space<vmem>>, %arg3: memref<1x32xf32, #tpu.memory_space<vmem>>, %arg4: memref<1x32xf32, #tpu.memory_space<vmem>>, %arg5: memref<32x128xf32, #tpu.memory_space<vmem>>, %arg6: memref<1x128xf32, #tpu.memory_space<vmem>>, %arg7: memref<128x32xf32, #tpu.memory_space<vmem>>, %arg8: memref<1x32xf32, #tpu.memory_space<vmem>>, %arg9: memref<256x32xf32, #tpu.memory_space<vmem>>) attributes {dimension_semantics = [#tpu.dimension_semantics<parallel>], iteration_bounds = array<i64: 2>, scalar_prefetch = 0 : i64, scratch_operands = 0 : i64, tpu.core_type = #tpu.core_type<tc>, window_params = [{transform_indices = @transform_0, window_bounds = array<i64: 256, 32>}, {transform_indices = @transform_1, window_bounds = array<i64: 256, 32>}, {pipeline_mode = #tpu.pipeline_mode<synchronous>, transform_indices = @transform_2, window_bounds = array<i64: 1, 32>}, {pipeline_mode = #tpu.pipeline_mode<synchronous>, transform_indices = @transform_3, window_bounds = array<i64: 1, 32>}, {pipeline_mode = #tpu.pipeline_mode<synchronous>, transform_indices = @transform_4, window_bounds = array<i64: 32, 128>}, {pipeline_mode = #tpu.pipeline_mode<synchronous>, transform_indices = @transform_5, window_bounds = array<i64: 1, 128>}, {pipeline_mode = #tpu.pipeline_mode<synchronous>, transform_indices = @transform_6, window_bounds = array<i64: 128, 32>}, {pipeline_mode = #tpu.pipeline_mode<synchronous>, transform_indices = @transform_7, window_bounds = array<i64: 1, 32>}, {transform_indices = @transform_8, window_bounds = array<i64: 256, 32>}]} {
    %c0 = arith.constant 0 : index
    %c0_0 = arith.constant 0 : index
    %0 = vector.load %arg1[%c0, %c0_0] : memref<256x32xf32, #tpu.memory_space<vmem>>, vector<256x32xf32>
    %c0_1 = arith.constant 0 : index
    %c0_2 = arith.constant 0 : index
    %1 = vector.load %arg2[%c0_1, %c0_2] : memref<256x32xf32, #tpu.memory_space<vmem>>, vector<256x32xf32>
    %2 = arith.addf %0, %1 : vector<256x32xf32>
    %cst = arith.constant dense<0.000000e+00> : vector<256xf32>
    %3 = vector.multi_reduction <add>, %2, %cst [1] : vector<256x32xf32> to vector<256xf32>
    %4 = vector.shape_cast %3 : vector<256xf32> to vector<256x1xf32>
    %cst_3 = arith.constant 3.200000e+01 : f32
    %5 = vector.broadcast %cst_3 : f32 to vector<256x1xf32>
    %6 = arith.divf %4, %5 : vector<256x1xf32>
    %7 = vector.broadcast %6 : vector<256x1xf32> to vector<256x32xf32>
    %8 = arith.subf %2, %7 : vector<256x32xf32>
    %9 = arith.mulf %8, %8 : vector<256x32xf32>
    %cst_4 = arith.constant dense<0.000000e+00> : vector<256xf32>
    %10 = vector.multi_reduction <add>, %9, %cst_4 [1] : vector<256x32xf32> to vector<256xf32>
    %11 = vector.shape_cast %10 : vector<256xf32> to vector<256x1xf32>
    %cst_5 = arith.constant 3.200000e+01 : f32
    %12 = vector.broadcast %cst_5 : f32 to vector<256x1xf32>
    %13 = arith.divf %11, %12 : vector<256x1xf32>
    %cst_6 = arith.constant 9.99999974E-6 : f32
    %14 = vector.broadcast %cst_6 : f32 to vector<256x1xf32>
    %15 = arith.addf %13, %14 : vector<256x1xf32>
    %16 = math.rsqrt %15 : vector<256x1xf32>
    %17 = vector.broadcast %16 : vector<256x1xf32> to vector<256x32xf32>
    %18 = arith.mulf %8, %17 : vector<256x32xf32>
    %c0_7 = arith.constant 0 : index
    %c0_8 = arith.constant 0 : index
    %19 = vector.load %arg3[%c0_7, %c0_8] : memref<1x32xf32, #tpu.memory_space<vmem>>, vector<1x32xf32>
    %20 = vector.broadcast %19 : vector<1x32xf32> to vector<256x32xf32>
    %21 = arith.mulf %18, %20 : vector<256x32xf32>
    %c0_9 = arith.constant 0 : index
    %c0_10 = arith.constant 0 : index
    %22 = vector.load %arg4[%c0_9, %c0_10] : memref<1x32xf32, #tpu.memory_space<vmem>>, vector<1x32xf32>
    %23 = vector.broadcast %22 : vector<1x32xf32> to vector<256x32xf32>
    %24 = arith.addf %21, %23 : vector<256x32xf32>
    %c0_11 = arith.constant 0 : index
    %c0_12 = arith.constant 0 : index
    %25 = vector.load %arg5[%c0_11, %c0_12] : memref<32x128xf32, #tpu.memory_space<vmem>>, vector<32x128xf32>
    %cst_13 = arith.constant dense<0.000000e+00> : vector<256x128xf32>
    %26 = tpu.matmul %24, %25, %cst_13 {dimension_numbers = #tpu.dot_dimension_numbers<[1], [0], [0], [1], [0, 0, 1, 1], [], []>} : vector<256x32xf32>, vector<32x128xf32>, vector<256x128xf32> -> vector<256x128xf32>
    %c0_14 = arith.constant 0 : index
    %c0_15 = arith.constant 0 : index
    %27 = vector.load %arg6[%c0_14, %c0_15] : memref<1x128xf32, #tpu.memory_space<vmem>>, vector<1x128xf32>
    %28 = vector.broadcast %27 : vector<1x128xf32> to vector<256x128xf32>
    %29 = arith.addf %26, %28 : vector<256x128xf32>
    %30 = arith.mulf %29, %29 : vector<256x128xf32>
    %31 = arith.mulf %29, %30 : vector<256x128xf32>
    %cst_16 = arith.constant 4.471500e-02 : f32
    %32 = vector.broadcast %cst_16 : f32 to vector<256x128xf32>
    %33 = arith.mulf %32, %31 : vector<256x128xf32>
    %34 = arith.addf %29, %33 : vector<256x128xf32>
    %cst_17 = arith.constant 0.797884583 : f32
    %35 = vector.broadcast %cst_17 : f32 to vector<256x128xf32>
    %36 = arith.mulf %35, %34 : vector<256x128xf32>
    %37 = math.tanh %36 : vector<256x128xf32>
    %cst_18 = arith.constant 1.000000e+00 : f32
    %38 = vector.broadcast %cst_18 : f32 to vector<256x128xf32>
    %39 = arith.addf %38, %37 : vector<256x128xf32>
    %cst_19 = arith.constant 5.000000e-01 : f32
    %40 = vector.broadcast %cst_19 : f32 to vector<256x128xf32>
    %41 = arith.mulf %40, %39 : vector<256x128xf32>
    %42 = arith.mulf %29, %41 : vector<256x128xf32>
    %c0_20 = arith.constant 0 : index
    %c0_21 = arith.constant 0 : index
    %43 = vector.load %arg7[%c0_20, %c0_21] : memref<128x32xf32, #tpu.memory_space<vmem>>, vector<128x32xf32>
    %cst_22 = arith.constant dense<0.000000e+00> : vector<256x32xf32>
    %44 = tpu.matmul %42, %43, %cst_22 {dimension_numbers = #tpu.dot_dimension_numbers<[1], [0], [0], [1], [0, 0, 1, 1], [], []>} : vector<256x128xf32>, vector<128x32xf32>, vector<256x32xf32> -> vector<256x32xf32>
    %c0_23 = arith.constant 0 : index
    %c0_24 = arith.constant 0 : index
    %45 = vector.load %arg8[%c0_23, %c0_24] : memref<1x32xf32, #tpu.memory_space<vmem>>, vector<1x32xf32>
    %46 = vector.broadcast %45 : vector<1x32xf32> to vector<256x32xf32>
    %47 = arith.addf %44, %46 : vector<256x32xf32>
    %48 = arith.addf %2, %47 : vector<256x32xf32>
    %c0_25 = arith.constant 0 : index
    %c0_26 = arith.constant 0 : index
    %49 = vector.load %arg9[%c0_25, %c0_26] : memref<256x32xf32, #tpu.memory_space<vmem>>, vector<256x32xf32>
    tpu.vector_store %arg9[%c0_25, %c0_26], %48 {strides = array<i32>} : memref<256x32xf32, #tpu.memory_space<vmem>>, vector<256x32xf32>,
    return
  }
  func.func @transform_0(%arg0: i32) -> (i32, i32) {
    %c0_i32 = arith.constant 0 : i32
    %c0_i32_0 = arith.constant 0 : i32
    return %arg0, %c0_i32 : i32, i32
  }
  func.func @transform_1(%arg0: i32) -> (i32, i32) {
    %c0_i32 = arith.constant 0 : i32
    %c0_i32_0 = arith.constant 0 : i32
    return %arg0, %c0_i32 : i32, i32
  }
  func.func @transform_2(%arg0: i32) -> (i32, i32) {
    %c0_i32 = arith.constant 0 : i32
    %c0_i32_0 = arith.constant 0 : i32
    %c0_i32_1 = arith.constant 0 : i32
    return %c0_i32, %c0_i32_0 : i32, i32
  }
  func.func @transform_3(%arg0: i32) -> (i32, i32) {
    %c0_i32 = arith.constant 0 : i32
    %c0_i32_0 = arith.constant 0 : i32
    %c0_i32_1 = arith.constant 0 : i32
    return %c0_i32, %c0_i32_0 : i32, i32
  }
  func.func @transform_4(%arg0: i32) -> (i32, i32) {
    %c0_i32 = arith.constant 0 : i32
    %c0_i32_0 = arith.constant 0 : i32
    %c0_i32_1 = arith.constant 0 : i32
    return %c0_i32, %c0_i32_0 : i32, i32
  }
  func.func @transform_5(%arg0: i32) -> (i32, i32) {
    %c0_i32 = arith.constant 0 : i32
    %c0_i32_0 = arith.constant 0 : i32
    %c0_i32_1 = arith.constant 0 : i32
    return %c0_i32, %c0_i32_0 : i32, i32
  }
  func.func @transform_6(%arg0: i32) -> (i32, i32) {
    %c0_i32 = arith.constant 0 : i32
    %c0_i32_0 = arith.constant 0 : i32
    %c0_i32_1 = arith.constant 0 : i32
    return %c0_i32, %c0_i32_0 : i32, i32
  }
  func.func @transform_7(%arg0: i32) -> (i32, i32) {
    %c0_i32 = arith.constant 0 : i32
    %c0_i32_0 = arith.constant 0 : i32
    %c0_i32_1 = arith.constant 0 : i32
    return %c0_i32, %c0_i32_0 : i32, i32
  }
  func.func @transform_8(%arg0: i32) -> (i32, i32) {
    %c0_i32 = arith.constant 0 : i32
    %c0_i32_0 = arith.constant 0 : i32
    return %arg0, %c0_i32 : i32, i32
  }
}

</mosaic_0001>

<llo_original>
// kernel: swin_block_forward.3
$region0: #{swin_block_forward.3}
  #allocation0 [shape = 'u32[]', space=smem, size = 0x4, offset = 0x4, fixed_abs, tag = 'smem constant byte address 0x4 - core index']
  #allocation1 [shape = 'u32[72,128]{1,0:T(1,128)}', space=vmem, size = 0x9000, scoped, tag = 'internal scratch']
  %s0 = inlined_call_operand.vmem [shape: f32[512,32], index: 0, kind: input, shape index: {}]
  %s1 = inlined_call_operand.vmem [shape: f32[512,32], index: 1, kind: input, shape index: {}]
  %s2 = inlined_call_operand.vmem [shape: f32[1,32], index: 2, kind: input, shape index: {}]
  %s3 = inlined_call_operand.vmem [shape: f32[1,32], index: 3, kind: input, shape index: {}]
  %s4 = inlined_call_operand.vmem [shape: f32[32,128], index: 4, kind: input, shape index: {}]
  %s5 = inlined_call_operand.vmem [shape: f32[1,128], index: 5, kind: input, shape index: {}]
  %s6 = inlined_call_operand.vmem [shape: f32[128,32], index: 6, kind: input, shape index: {}]
  %s7 = inlined_call_operand.vmem [shape: f32[1,32], index: 7, kind: input, shape index: {}]
  %s8 = inlined_call_operand.vmem [shape: f32[512,32], index: 8, kind: output, shape index: {}]
  %s9 = sld [smem:[#allocation0]]
  $region65: #{swin_block_forward.3} parent=0
    _
  %s11 = ssub.s32 1, %s9
  %s12 = scalar_select 0, %s11, %s9
  loop: start=0, step=1, limit=4
  $region2: #{swin_block_forward.3} parent=0 // loop_pre_header
    _
  $region3: #{swin_block_forward.3} parent=0 // loop_header
    %s14 = sphi 0, %s18
    %p15 = scmp.ge.s32.totalorder %s14, 4
    %s24 = sphi 0, %s26
    %s27 = sphi 0, %s24
    %s28 = sphi 0, %s27
    %s44 = sphi 0, %s28
    %s50 = sphi 0, %s52
    %s53 = sphi 0, %s50
    %s54 = sphi 0, %s53
    %s70 = sphi 0, %s54
    %s74 = sphi 0, %s74
    %s76 = sphi 0, %s74
    %s77 = sphi 0, %s76
    %s91 = sphi 0, %s77
    %s95 = sphi 0, %s95
    %s97 = sphi 0, %s95
    %s98 = sphi 0, %s97
    %s112 = sphi 0, %s98
    %s116 = sphi 0, %s116
    %s118 = sphi 0, %s116
    %s119 = sphi 0, %s118
    %s133 = sphi 0, %s119
    %s137 = sphi 0, %s137
    %s139 = sphi 0, %s137
    %s140 = sphi 0, %s139
    %s154 = sphi 0, %s140
    %s158 = sphi 0, %s158
    %s160 = sphi 0, %s158
    %s161 = sphi 0, %s160
    %s175 = sphi 0, %s161
    %s179 = sphi 0, %s179
    %s181 = sphi 0, %s179
    %s182 = sphi 0, %s181
    %s196 = sphi 0, %s182
    %s202 = sphi 0, %s204
    %s205 = sphi 0, %s202
    %s206 = sphi 0, %s205
    %s222 = sphi 0, %s206
  $region4: #{swin_block_forward.3} parent=0 // loop_header_branch
    %17 = sbr.rel (%p15) target = $region8
  $region5: #{swin_block_forward.3} parent=0 // loop_body
    %s19 = ssub.s32 %s14, 1
    %s20 = ssub.s32 %s14, 2
    %s21 = sadd.s32 %s14, 1
    %s22 = ssub.s32 %s14, %s21
    %p23 = scmp.eq.s32.totalorder %s22, 0
    %s25 = sadd.s32 %s24, 1
    %s26 = scalar_select %p23, %s24, %s25
    %p29 = pneg %p23
    %p30 = scmp.eq.s32.totalorder %s14, 1
    %p31 = por %p29, %p30
    %p32 = scmp.ne.s32.totalorder %s24, %s27
    %p33 = scmp.eq.s32.totalorder %s14, 0
    %p34 = por %p32, %p33
    %p35 = scmp.ne.s32.totalorder %s24, %s27
    %p36 = scmp.eq.s32.totalorder %s19, 1
    %p37 = por %p35, %p36
    %p38 = scmp.ne.s32.totalorder %s27, %s28
    %p39 = scmp.eq.s32.totalorder %s19, 0
    %p40 = por %p38, %p39
    %p41 = scmp.ne.s32.totalorder %s27, %s28
    %p42 = scmp.eq.s32.totalorder %s20, 1
    %p43 = por %p41, %p42
    %p45 = scmp.ne.s32.totalorder %s28, %s44
    %p46 = scmp.eq.s32.totalorder %s20, 0
    %p47 = por %p45, %p46
    %s48 = ssub.s32 %s14, %s21
    %p49 = scmp.eq.s32.totalorder %s48, 0
    %s51 = sadd.s32 %s50, 1
    %s52 = scalar_select %p49, %s50, %s51
    %p55 = pneg %p49
    %p56 = scmp.eq.s32.totalorder %s14, 1
    %p57 = por %p55, %p56
    %p58 = scmp.ne.s32.totalorder %s50, %s53
    %p59 = scmp.eq.s32.totalorder %s14, 0
    %p60 = por %p58, %p59
    %p61 = scmp.ne.s32.totalorder %s50, %s53
    %p62 = scmp.eq.s32.totalorder %s19, 1
    %p63 = por %p61, %p62
    %p64 = scmp.ne.s32.totalorder %s53, %s54
    %p65 = scmp.eq.s32.totalorder %s19, 0
    %p66 = por %p64, %p65
    %p67 = scmp.ne.s32.totalorder %s53, %s54
    %p68 = scmp.eq.s32.totalorder %s20, 1
    %p69 = por %p67, %p68
    %p71 = scmp.ne.s32.totalorder %s54, %s70
    %p72 = scmp.eq.s32.totalorder %s20, 0
    %p73 = por %p71, %p72
    %s75 = sadd.s32 %s74, 1
    %p78 = scmp.eq.s32.totalorder %s14, 1
    %p79 = scmp.ne.s32.totalorder %s74, %s76
    %p80 = scmp.eq.s32.totalorder %s14, 0
    %p81 = por %p79, %p80
    %p82 = scmp.ne.s32.totalorder %s74, %s76
    %p83 = scmp.eq.s32.totalorder %s19, 1
    %p84 = por %p82, %p83
    %p85 = scmp.ne.s32.totalorder %s76, %s77
    %p86 = scmp.eq.s32.totalorder %s19, 0
    %p87 = por %p85, %p86
    %p88 = scmp.ne.s32.totalorder %s76, %s77
    %p89 = scmp.eq.s32.totalorder %s20, 1
    %p90 = por %p88, %p89
    %p92 = scmp.ne.s32.totalorder %s77, %s91
    %p93 = scmp.eq.s32.totalorder %s20, 0
    %p94 = por %p92, %p93
    %s96 = sadd.s32 %s95, 1
    %p99 = scmp.eq.s32.totalorder %s14, 1
    %p100 = scmp.ne.s32.totalorder %s95, %s97
    %p101 = scmp.eq.s32.totalorder %s14, 0
    %p102 = por %p100, %p101
    %p103 = scmp.ne.s32.totalorder %s95, %s97
    %p104 = scmp.eq.s32.totalorder %s19, 1
    %p105 = por %p103, %p104
    %p106 = scmp.ne.s32.totalorder %s97, %s98
    %p107 = scmp.eq.s32.totalorder %s19, 0
    %p108 = por %p106, %p107
    %p109 = scmp.ne.s32.totalorder %s97, %s98
    %p110 = scmp.eq.s32.totalorder %s20, 1
    %p111 = por %p109, %p110
    %p113 = scmp.ne.s32.totalorder %s98, %s112
    %p114 = scmp.eq.s32.totalorder %s20, 0
    %p115 = por %p113, %p114
    %s117 = sadd.s32 %s116, 1
    %p120 = scmp.eq.s32.totalorder %s14, 1
    %p121 = scmp.ne.s32.totalorder %s116, %s118
    %p122 = scmp.eq.s32.totalorder %s14, 0
    %p123 = por %p121, %p122
    %p124 = scmp.ne.s32.totalorder %s116, %s118
    %p125 = scmp.eq.s32.totalorder %s19, 1
    %p126 = por %p124, %p125
    %p127 = scmp.ne.s32.totalorder %s118, %s119
    %p128 = scmp.eq.s32.totalorder %s19, 0
    %p129 = por %p127, %p128
    %p130 = scmp.ne.s32.totalorder %s118, %s119
    %p131 = scmp.eq.s32.totalorder %s20, 1
    %p132 = por %p130, %p131
    %p134 = scmp.ne.s32.totalorder %s119, %s133
    %p135 = scmp.eq.s32.totalorder %s20, 0
    %p136 = por %p134, %p135
    %s138 = sadd.s32 %s137, 1
    %p141 = scmp.eq.s32.totalorder %s14, 1
    %p142 = scmp.ne.s32.totalorder %s137, %s139
    %p143 = scmp.eq.s32.totalorder %s14, 0
    %p144 = por %p142, %p143
    %p145 = scmp.ne.s32.totalorder %s137, %s139
    %p146 = scmp.eq.s32.totalorder %s19, 1
    %p147 = por %p145, %p146
    %p148 = scmp.ne.s32.totalorder %s139, %s140
    %p149 = scmp.eq.s32.totalorder %s19, 0
    %p150 = por %p148, %p149
    %p151 = scmp.ne.s32.totalorder %s139, %s140
    %p152 = scmp.eq.s32.totalorder %s20, 1
    %p153 = por %p151, %p152
    %p155 = scmp.ne.s32.totalorder %s140, %s154
    %p156 = scmp.eq.s32.totalorder %s20, 0
    %p157 = por %p155, %p156
    %s159 = sadd.s32 %s158, 1
    %p162 = scmp.eq.s32.totalorder %s14, 1
    %p163 = scmp.ne.s32.totalorder %s158, %s160
    %p164 = scmp.eq.s32.totalorder %s14, 0
    %p165 = por %p163, %p164
    %p166 = scmp.ne.s32.totalorder %s158, %s160
    %p167 = scmp.eq.s32.totalorder %s19, 1
    %p168 = por %p166, %p167
    %p169 = scmp.ne.s32.totalorder %s160, %s161
    %p170 = scmp.eq.s32.totalorder %s19, 0
    %p171 = por %p169, %p170
    %p172 = scmp.ne.s32.totalorder %s160, %s161
    %p173 = scmp.eq.s32.totalorder %s20, 1
    %p174 = por %p172, %p173
    %p176 = scmp.ne.s32.totalorder %s161, %s175
    %p177 = scmp.eq.s32.totalorder %s20, 0
    %p178 = por %p176, %p177
    %s180 = sadd.s32 %s179, 1
    %p183 = scmp.eq.s32.totalorder %s14, 1
    %p184 = scmp.ne.s32.totalorder %s179, %s181
    %p185 = scmp.eq.s32.totalorder %s14, 0
    %p186 = por %p184, %p185
    %p187 = scmp.ne.s32.totalorder %s179, %s181
    %p188 = scmp.eq.s32.totalorder %s19, 1
    %p189 = por %p187, %p188
    %p190 = scmp.ne.s32.totalorder %s181, %s182
    %p191 = scmp.eq.s32.totalorder %s19, 0
    %p192 = por %p190, %p191
    %p193 = scmp.ne.s32.totalorder %s181, %s182
    %p194 = scmp.eq.s32.totalorder %s20, 1
    %p195 = por %p193, %p194
    %p197 = scmp.ne.s32.totalorder %s182, %s196
    %p198 = scmp.eq.s32.totalorder %s20, 0
    %p199 = por %p197, %p198
    %s200 = ssub.s32 %s14, %s21
    %p201 = scmp.eq.s32.totalorder %s200, 0
    %s203 = sadd.s32 %s202, 1
    %s204 = scalar_select %p201, %s202, %s203
    %p207 = pneg %p201
    %p208 = scmp.eq.s32.totalorder %s14, 1
    %p209 = por %p207, %p208
    %p210 = scmp.ne.s32.totalorder %s202, %s205
    %p211 = scmp.eq.s32.totalorder %s14, 0
    %p212 = por %p210, %p211
    %p213 = scmp.ne.s32.totalorder %s202, %s205
    %p214 = scmp.eq.s32.totalorder %s19, 1
    %p215 = por %p213, %p214
    %p216 = scmp.ne.s32.totalorder %s205, %s206
    %p217 = scmp.eq.s32.totalorder %s19, 0
    %p218 = por %p216, %p217
    %p219 = scmp.ne.s32.totalorder %s205, %s206
    %p220 = scmp.eq.s32.totalorder %s20, 1
    %p221 = por %p219, %p220
    %p223 = scmp.ne.s32.totalorder %s206, %s222
    %p224 = scmp.eq.s32.totalorder %s20, 0
    %p225 = por %p223, %p224
    %p226 = scmp.le.s32.totalorder 1, %s14
    %p227 = scmp.lt.s32.totalorder %s14, 3
    %p228 = pnand %p226, %p227
    %p229 = pneg %p228
    // Predicated region
    $region9: #{swin_block_forward.3} parent=5 // pred_check
      _
    $region10: #{swin_block_forward.3} parent=5 // pred_check_branch
      %231 = sbr.rel (%p228) target = $region12
    $region11: #{swin_block_forward.3} parent=5 // pred_region
      %s232 = ssub.s32 %s14, 1
      // Predicated region
      $region13: #{swin_block_forward.3} parent=11 // pred_check
        %p233 = pneg %p87
      $region14: #{swin_block_forward.3} parent=11 // pred_check_branch
        %235 = sbr.rel (%p233) target = $region16
      $region15: #{swin_block_forward.3} parent=11 // pred_region
        _
      $region16: #{swin_block_forward.3} parent=11 // pred_fallthru
        _
      // Predicated region
      $region17: #{swin_block_forward.3} parent=11 // pred_check
        %p236 = pneg %p108
      $region18: #{swin_block_forward.3} parent=11 // pred_check_branch
        %238 = sbr.rel (%p236) target = $region20
      $region19: #{swin_block_forward.3} parent=11 // pred_region
        _
      $region20: #{swin_block_forward.3} parent=11 // pred_fallthru
        _
      // Predicated region
      $region21: #{swin_block_forward.3} parent=11 // pred_check
        %p239 = pneg %p129
      $region22: #{swin_block_forward.3} parent=11 // pred_check_branch
        %241 = sbr.rel (%p239) target = $region24
      $region23: #{swin_block_forward.3} parent=11 // pred_region
        _
      $region24: #{swin_block_forward.3} parent=11 // pred_fallthru
        _
      // Predicated region
      $region25: #{swin_block_forward.3} parent=11 // pred_check
        %p242 = pneg %p150
      $region26: #{swin_block_forward.3} parent=11 // pred_check_branch
        %244 = sbr.rel (%p242) target = $region28
      $region27: #{swin_block_forward.3} parent=11 // pred_region
        _
      $region28: #{swin_block_forward.3} parent=11 // pred_fallthru
        _
      // Predicated region
      $region29: #{swin_block_forward.3} parent=11 // pred_check
        %p245 = pneg %p171
      $region30: #{swin_block_forward.3} parent=11 // pred_check_branch
        %247 = sbr.rel (%p245) target = $region32
      $region31: #{swin_block_forward.3} parent=11 // pred_region
        _
      $region32: #{swin_block_forward.3} parent=11 // pred_fallthru
        _
      // Predicated region
      $region33: #{swin_block_forward.3} parent=11 // pred_check
        %p248 = pneg %p192
      $region34: #{swin_block_forward.3} parent=11 // pred_check_branch
        %250 = sbr.rel (%p248) target = $region36
      $region35: #{swin_block_forward.3} parent=11 // pred_region
        _
      $region36: #{swin_block_forward.3} parent=11 // pred_fallthru
        _
    $region12: #{swin_block_forward.3} parent=5 // pred_fallthru
      _
    %p251 = scmp.lt.s32.totalorder %s14, 2
    // Predicated region
    $region37: #{swin_block_forward.3} parent=5 // pred_check
      %p252 = pneg %p251
    $region38: #{swin_block_forward.3} parent=5 // pred_check_branch
      %254 = sbr.rel (%p252) target = $region40
    $region39: #{swin_block_forward.3} parent=5 // pred_region
      // Predicated region
      $region41: #{swin_block_forward.3} parent=39 // pred_check
        %p255 = pneg %p34
      $region42: #{swin_block_forward.3} parent=39 // pred_check_branch
        %257 = sbr.rel (%p255) target = $region44
      $region43: #{swin_block_forward.3} parent=39 // pred_region
        %s258 = smul.u32 32, %s14
        %p259 = scmp.lt.s32.totalorder %s258, 63
        %s260 = scalar_select %p259, %s258, 63
        %s261 = smul.addr %s260, 8
        %s262 = scalar_lea.vmem %s0, %s261
        %s263 = smul.u32 32, %s14
      $region44: #{swin_block_forward.3} parent=39 // pred_fallthru
        _
      // Predicated region
      $region45: #{swin_block_forward.3} parent=39 // pred_check
        %p264 = pneg %p60
      $region46: #{swin_block_forward.3} parent=39 // pred_check_branch
        %266 = sbr.rel (%p264) target = $region48
      $region47: #{swin_block_forward.3} parent=39 // pred_region
        %s267 = smul.u32 32, %s14
        %p268 = scmp.lt.s32.totalorder %s267, 63
        %s269 = scalar_select %p268, %s267, 63
        %s270 = smul.addr %s269, 8
        %s271 = scalar_lea.vmem %s1, %s270
        %s272 = smul.u32 32, %s14
      $region48: #{swin_block_forward.3} parent=39 // pred_fallthru
        _
    $region40: #{swin_block_forward.3} parent=5 // pred_fallthru
      _
    %p273 = scmp.le.s32.totalorder 1, %s14
    %p274 = scmp.lt.s32.totalorder %s14, 3
    %p275 = pnand %p273, %p274
    %p276 = pneg %p275
    // Predicated region
    $region49: #{swin_block_forward.3} parent=5 // pred_check
      _
    $region50: #{swin_block_forward.3} parent=5 // pred_check_branch
      %278 = sbr.rel (%p275) target = $region52
    $region51: #{swin_block_forward.3} parent=5 // pred_region
      %s279 = ssub.s32 %s14, 1
      %s280 = smul.u32 32, %s19
      %p281 = scmp.lt.s32.totalorder %s280, 63
      %s282 = scalar_select %p281, %s280, 63
      %s283 = smul.addr %s282, 8
      %s284 = scalar_lea.vmem %s0, %s283
      %p285 = pneg %p40
      %p286 = pneg %p37
      %s287 = smul.u32 32, %s19
      %p288 = scmp.lt.s32.totalorder %s287, 63
      %s289 = scalar_select %p288, %s287, 63
      %s290 = smul.addr %s289, 8
      %s291 = scalar_lea.vmem %s1, %s290
      %p292 = pneg %p66
      %p293 = pneg %p63
      %p294 = pneg %p87
      %p295 = pneg %p84
      %p296 = pneg %p108
      %p297 = pneg %p105
      %p298 = pneg %p129
      %p299 = pneg %p126
      %p300 = pneg %p150
      %p301 = pneg %p147
      %p302 = pneg %p171
      %p303 = pneg %p168
      %p304 = pneg %p192
      %p305 = pneg %p189
      %p306 = pneg %p218
      %p307 = pneg %p215
      %s308 = smul.u32 32, %s19
      %p309 = scmp.lt.s32.totalorder %s308, 63
      %s310 = scalar_select %p309, %s308, 63
      %s311 = smul.addr %s310, 8
      %s312 = scalar_lea.vmem %s8, %s311
      %s313 = smul.u32 32, %s19
      %p314 = scmp.lt.s32.totalorder %s313, 63
      %s315 = scalar_select %p314, %s313, 63
      %s316 = smul.addr %s315, 8
      %s317 = scalar_lea.vmem %s0, %s316
      %s318 = smul.u32 32, %s19
      %s319 = smul.u32 32, %s19
      %p320 = scmp.lt.s32.totalorder %s319, 63
      %s321 = scalar_select %p320, %s319, 63
      %s322 = smul.addr %s321, 8
      %s323 = scalar_lea.vmem %s1, %s322
      %s324 = smul.u32 32, %s19
      %s325 = smul.u32 32, %s19
      %p326 = scmp.lt.s32.totalorder %s325, 63
      %s327 = scalar_select %p326, %s325, 63
      %s328 = smul.addr %s327, 8
      %s329 = scalar_lea.vmem %s8, %s328
      %s330 = smul.u32 32, %s19
      %v331 = vld [vmem:[%s317] sm:$0xff]
      %v332 = vld [vmem:[%s317 + $0x8] sm:$0xff]
      %v333 = vld [vmem:[%s317 + $0x10] sm:$0xff]
      %v334 = vld [vmem:[%s317 + $0x18] sm:$0xff]
      %v335 = vld [vmem:[%s317 + $0x20] sm:$0xff]
      %v336 = vld [vmem:[%s317 + $0x28] sm:$0xff]
      %v337 = vld [vmem:[%s317 + $0x30] sm:$0xff]
      %v338 = vld [vmem:[%s317 + $0x38] sm:$0xff]
      %v339 = vld [vmem:[%s317 + $0x40] sm:$0xff]
      %v340 = vld [vmem:[%s317 + $0x48] sm:$0xff]
      %v341 = vld [vmem:[%s317 + $0x50] sm:$0xff]
      %v342 = vld [vmem:[%s317 + $0x58] sm:$0xff]
      %v343 = vld [vmem:[%s317 + $0x60] sm:$0xff]
      %v344 = vld [vmem:[%s317 + $0x68] sm:$0xff]
      %v345 = vld [vmem:[%s317 + $0x70] sm:$0xff]
      %v346 = vld [vmem:[%s317 + $0x78] sm:$0xff]
      %v347 = vld [vmem:[%s317 + $0x80] sm:$0xff]
      %v348 = vld [vmem:[%s317 + $0x88] sm:$0xff]
      %v349 = vld [vmem:[%s317 + $0x90] sm:$0xff]
      %v350 = vld [vmem:[%s317 + $0x98] sm:$0xff]
      %v351 = vld [vmem:[%s317 + $0xa0] sm:$0xff]
      %v352 = vld [vmem:[%s317 + $0xa8] sm:$0xff]
      %v353 = vld [vmem:[%s317 + $0xb0] sm:$0xff]
      %v354 = vld [vmem:[%s317 + $0xb8] sm:$0xff]
      %v355 = vld [vmem:[%s317 + $0xc0] sm:$0xff]
      %v356 = vld [vmem:[%s317 + $0xc8] sm:$0xff]
      %v357 = vld [vmem:[%s317 + $0xd0] sm:$0xff]
      %v358 = vld [vmem:[%s317 + $0xd8] sm:$0xff]
      %v359 = vld [vmem:[%s317 + $0xe0] sm:$0xff]
      %v360 = vld [vmem:[%s317 + $0xe8] sm:$0xff]
      %v361 = vld [vmem:[%s317 + $0xf0] sm:$0xff]
      %v362 = vld [vmem:[%s317 + $0xf8] sm:$0xff]
      %v363 = vld [vmem:[%s323] sm:$0xff]
      %v364 = vld [vmem:[%s323 + $0x8] sm:$0xff]
      %v365 = vld [vmem:[%s323 + $0x10] sm:$0xff]
      %v366 = vld [vmem:[%s323 + $0x18] sm:$0xff]
      %v367 = vld [vmem:[%s323 + $0x20] sm:$0xff]
      %v368 = vld [vmem:[%s323 + $0x28] sm:$0xff]
      %v369 = vld [vmem:[%s323 + $0x30] sm:$0xff]
      %v370 = vld [vmem:[%s323 + $0x38] sm:$0xff]
      %v371 = vld [vmem:[%s323 + $0x40] sm:$0xff]
      %v372 = vld [vmem:[%s323 + $0x48] sm:$0xff]
      %v373 = vld [vmem:[%s323 + $0x50] sm:$0xff]
      %v374 = vld [vmem:[%s323 + $0x58] sm:$0xff]
      %v375 = vld [vmem:[%s323 + $0x60] sm:$0xff]
      %v376 = vld [vmem:[%s323 + $0x68] sm:$0xff]
      %v377 = vld [vmem:[%s323 + $0x70] sm:$0xff]
      %v378 = vld [vmem:[%s323 + $0x78] sm:$0xff]
      %v379 = vld [vmem:[%s323 + $0x80] sm:$0xff]
      %v380 = vld [vmem:[%s323 + $0x88] sm:$0xff]
      %v381 = vld [vmem:[%s323 + $0x90] sm:$0xff]
      %v382 = vld [vmem:[%s323 + $0x98] sm:$0xff]
      %v383 = vld [vmem:[%s323 + $0xa0] sm:$0xff]
      %v384 = vld [vmem:[%s323 + $0xa8] sm:$0xff]
      %v385 = vld [vmem:[%s323 + $0xb0] sm:$0xff]
      %v386 = vld [vmem:[%s323 + $0xb8] sm:$0xff]
      %v387 = vld [vmem:[%s323 + $0xc0] sm:$0xff]
      %v388 = vld [vmem:[%s323 + $0xc8] sm:$0xff]
      %v389 = vld [vmem:[%s323 + $0xd0] sm:$0xff]
      %v390 = vld [vmem:[%s323 + $0xd8] sm:$0xff]
      %v391 = vld [vmem:[%s323 + $0xe0] sm:$0xff]
      %v392 = vld [vmem:[%s323 + $0xe8] sm:$0xff]
      %v393 = vld [vmem:[%s323 + $0xf0] sm:$0xff]
      %v394 = vld [vmem:[%s323 + $0xf8] sm:$0xff]
      %v395 = vadd.f32 %v331, %v363
      %v396 = vadd.f32 %v332, %v364
      %v397 = vadd.f32 %v333, %v365
      %v398 = vadd.f32 %v334, %v366
      %v399 = vadd.f32 %v335, %v367
      %v400 = vadd.f32 %v336, %v368
      %v401 = vadd.f32 %v337, %v369
      %v402 = vadd.f32 %v338, %v370
      %v403 = vadd.f32 %v339, %v371
      %v404 = vadd.f32 %v340, %v372
      %v405 = vadd.f32 %v341, %v373
      %v406 = vadd.f32 %v342, %v374
      %v407 = vadd.f32 %v343, %v375
      %v408 = vadd.f32 %v344, %v376
      %v409 = vadd.f32 %v345, %v377
      %v410 = vadd.f32 %v346, %v378
      %v411 = vadd.f32 %v347, %v379
      %v412 = vadd.f32 %v348, %v380
      %v413 = vadd.f32 %v349, %v381
      %v414 = vadd.f32 %v350, %v382
      %v415 = vadd.f32 %v351, %v383
      %v416 = vadd.f32 %v352, %v384
      %v417 = vadd.f32 %v353, %v385
      %v418 = vadd.f32 %v354, %v386
      %v419 = vadd.f32 %v355, %v387
      %v420 = vadd.f32 %v356, %v388
      %v421 = vadd.f32 %v357, %v389
      %v422 = vadd.f32 %v358, %v390
      %v423 = vadd.f32 %v359, %v391
      %v424 = vadd.f32 %v360, %v392
      %v425 = vadd.f32 %v361, %v393
      %v426 = vadd.f32 %v362, %v394
      %vm427 = vcmask 261120
      %v428 = vsel %vm427, %v395, 0.0
      %429 = vadd.xlane.f32.xlu0 %v428
      %v430 = vpop.xlane.xlu0 %429
      %v431 = vsel %vm427, %v396, 0.0
      %432 = vadd.xlane.f32.xlu0 %v431
      %v433 = vpop.xlane.xlu0 %432
      %v434 = vsel %vm427, %v397, 0.0
      %435 = vadd.xlane.f32.xlu0 %v434
      %v436 = vpop.xlane.xlu0 %435
      %v437 = vsel %vm427, %v398, 0.0
      %438 = vadd.xlane.f32.xlu0 %v437
      %v439 = vpop.xlane.xlu0 %438
      %v440 = vsel %vm427, %v399, 0.0
      %441 = vadd.xlane.f32.xlu0 %v440
      %v442 = vpop.xlane.xlu0 %441
      %v443 = vsel %vm427, %v400, 0.0
      %444 = vadd.xlane.f32.xlu0 %v443
      %v445 = vpop.xlane.xlu0 %444
      %v446 = vsel %vm427, %v401, 0.0
      %447 = vadd.xlane.f32.xlu0 %v446
      %v448 = vpop.xlane.xlu0 %447
      %v449 = vsel %vm427, %v402, 0.0
      %450 = vadd.xlane.f32.xlu0 %v449
      %v451 = vpop.xlane.xlu0 %450
      %v452 = vsel %vm427, %v403, 0.0
      %453 = vadd.xlane.f32.xlu0 %v452
      %v454 = vpop.xlane.xlu0 %453
      %v455 = vsel %vm427, %v404, 0.0
      %456 = vadd.xlane.f32.xlu0 %v455
      %v457 = vpop.xlane.xlu0 %456
      %v458 = vsel %vm427, %v405, 0.0
      %459 = vadd.xlane.f32.xlu0 %v458
      %v460 = vpop.xlane.xlu0 %459
      %v461 = vsel %vm427, %v406, 0.0
      %462 = vadd.xlane.f32.xlu0 %v461
      %v463 = vpop.xlane.xlu0 %462
      %v464 = vsel %vm427, %v407, 0.0
      %465 = vadd.xlane.f32.xlu0 %v464
      %v466 = vpop.xlane.xlu0 %465
      %v467 = vsel %vm427, %v408, 0.0
      %468 = vadd.xlane.f32.xlu0 %v467
      %v469 = vpop.xlane.xlu0 %468
      %v470 = vsel %vm427, %v409, 0.0
      %471 = vadd.xlane.f32.xlu0 %v470
      %v472 = vpop.xlane.xlu0 %471
      %v473 = vsel %vm427, %v410, 0.0
      %474 = vadd.xlane.f32.xlu0 %v473
      %v475 = vpop.xlane.xlu0 %474
      %v476 = vsel %vm427, %v411, 0.0
      %477 = vadd.xlane.f32.xlu0 %v476
      %v478 = vpop.xlane.xlu0 %477
      %v479 = vsel %vm427, %v412, 0.0
      %480 = vadd.xlane.f32.xlu0 %v479
      %v481 = vpop.xlane.xlu0 %480
      %v482 = vsel %vm427, %v413, 0.0
      %483 = vadd.xlane.f32.xlu0 %v482
      %v484 = vpop.xlane.xlu0 %483
      %v485 = vsel %vm427, %v414, 0.0
      %486 = vadd.xlane.f32.xlu0 %v485
      %v487 = vpop.xlane.xlu0 %486
      %v488 = vsel %vm427, %v415, 0.0
      %489 = vadd.xlane.f32.xlu0 %v488
      %v490 = vpop.xlane.xlu0 %489
      %v491 = vsel %vm427, %v416, 0.0
      %492 = vadd.xlane.f32.xlu0 %v491
      %v493 = vpop.xlane.xlu0 %492
      %v494 = vsel %vm427, %v417, 0.0
      %495 = vadd.xlane.f32.xlu0 %v494
      %v496 = vpop.xlane.xlu0 %495
      %v497 = vsel %vm427, %v418, 0.0
      %498 = vadd.xlane.f32.xlu0 %v497
      %v499 = vpop.xlane.xlu0 %498
      %v500 = vsel %vm427, %v419, 0.0
      %501 = vadd.xlane.f32.xlu0 %v500
      %v502 = vpop.xlane.xlu0 %501
      %v503 = vsel %vm427, %v420, 0.0
      %504 = vadd.xlane.f32.xlu0 %v503
      %v505 = vpop.xlane.xlu0 %504
      %v506 = vsel %vm427, %v421, 0.0
      %507 = vadd.xlane.f32.xlu0 %v506
      %v508 = vpop.xlane.xlu0 %507
      %v509 = vsel %vm427, %v422, 0.0
      %510 = vadd.xlane.f32.xlu0 %v509
      %v511 = vpop.xlane.xlu0 %510
      %v512 = vsel %vm427, %v423, 0.0
      %513 = vadd.xlane.f32.xlu0 %v512
      %v514 = vpop.xlane.xlu0 %513
      %v515 = vsel %vm427, %v424, 0.0
      %516 = vadd.xlane.f32.xlu0 %v515
      %v517 = vpop.xlane.xlu0 %516
      %v518 = vsel %vm427, %v425, 0.0
      %519 = vadd.xlane.f32.xlu0 %v518
      %v520 = vpop.xlane.xlu0 %519
      %v521 = vsel %vm427, %v426, 0.0
      %522 = vadd.xlane.f32.xlu0 %v521
      %v523 = vpop.xlane.xlu0 %522
      %v524 = vrcp.pop 32.0
      %v525 = vmul.f32 32.0, %v524
      %v526 = vsub.f32 1.0, %v525
      %v527 = vmul.f32 %v524, %v526
      %v528 = vadd.f32 %v524, %v527
      %vm529 = vweird.f32 %v524
      %v530 = vsel %vm529, %v524, %v528
      %v531 = vmul.f32 %v430, %v530
      %v532 = vmul.f32 %v433, %v530
      %v533 = vmul.f32 %v436, %v530
      %v534 = vmul.f32 %v439, %v530
      %v535 = vmul.f32 %v442, %v530
      %v536 = vmul.f32 %v445, %v530
      %v537 = vmul.f32 %v448, %v530
      %v538 = vmul.f32 %v451, %v530
      %v539 = vmul.f32 %v454, %v530
      %v540 = vmul.f32 %v457, %v530
      %v541 = vmul.f32 %v460, %v530
      %v542 = vmul.f32 %v463, %v530
      %v543 = vmul.f32 %v466, %v530
      %v544 = vmul.f32 %v469, %v530
      %v545 = vmul.f32 %v472, %v530
      %v546 = vmul.f32 %v475, %v530
      %v547 = vmul.f32 %v478, %v530
      %v548 = vmul.f32 %v481, %v530
      %v549 = vmul.f32 %v484, %v530
      %v550 = vmul.f32 %v487, %v530
      %v551 = vmul.f32 %v490, %v530
      %v552 = vmul.f32 %v493, %v530
      %v553 = vmul.f32 %v496, %v530
      %v554 = vmul.f32 %v499, %v530
      %v555 = vmul.f32 %v502, %v530
      %v556 = vmul.f32 %v505, %v530
      %v557 = vmul.f32 %v508, %v530
      %v558 = vmul.f32 %v511, %v530
      %v559 = vmul.f32 %v514, %v530
      %v560 = vmul.f32 %v517, %v530
      %v561 = vmul.f32 %v520, %v530
      %v562 = vmul.f32 %v523, %v530
      %v563 = vsub.f32 %v395, %v531
      %v564 = vsub.f32 %v396, %v532
      %v565 = vsub.f32 %v397, %v533
      %v566 = vsub.f32 %v398, %v534
      %v567 = vsub.f32 %v399, %v535
      %v568 = vsub.f32 %v400, %v536
      %v569 = vsub.f32 %v401, %v537
      %v570 = vsub.f32 %v402, %v538
      %v571 = vsub.f32 %v403, %v539
      %v572 = vsub.f32 %v404, %v540
      %v573 = vsub.f32 %v405, %v541
      %v574 = vsub.f32 %v406, %v542
      %v575 = vsub.f32 %v407, %v543
      %v576 = vsub.f32 %v408, %v544
      %v577 = vsub.f32 %v409, %v545
      %v578 = vsub.f32 %v410, %v546
      %v579 = vsub.f32 %v411, %v547
      %v580 = vsub.f32 %v412, %v548
      %v581 = vsub.f32 %v413, %v549
      %v582 = vsub.f32 %v414, %v550
      %v583 = vsub.f32 %v415, %v551
      %v584 = vsub.f32 %v416, %v552
      %v585 = vsub.f32 %v417, %v553
      %v586 = vsub.f32 %v418, %v554
      %v587 = vsub.f32 %v419, %v555
      %v588 = vsub.f32 %v420, %v556
      %v589 = vsub.f32 %v421, %v557
      %v590 = vsub.f32 %v422, %v558
      %v591 = vsub.f32 %v423, %v559
      %v592 = vsub.f32 %v424, %v560
      %v593 = vsub.f32 %v425, %v561
      %v594 = vsub.f32 %v426, %v562
      %v595 = vmul.f32 %v563, %v563
      %v596 = vmul.f32 %v564, %v564
      %v597 = vmul.f32 %v565, %v565
      %v598 = vmul.f32 %v566, %v566
      %v599 = vmul.f32 %v567, %v567
      %v600 = vmul.f32 %v568, %v568
      %v601 = vmul.f32 %v569, %v569
      %v602 = vmul.f32 %v570, %v570
      %v603 = vmul.f32 %v571, %v571
      %v604 = vmul.f32 %v572, %v572
      %v605 = vmul.f32 %v573, %v573
      %v606 = vmul.f32 %v574, %v574
      %v607 = vmul.f32 %v575, %v575
      %v608 = vmul.f32 %v576, %v576
      %v609 = vmul.f32 %v577, %v577
      %v610 = vmul.f32 %v578, %v578
      %v611 = vmul.f32 %v579, %v579
      %v612 = vmul.f32 %v580, %v580
      %v613 = vmul.f32 %v581, %v581
      %v614 = vmul.f32 %v582, %v582
      %v615 = vmul.f32 %v583, %v583
      %v616 = vmul.f32 %v584, %v584
      %v617 = vmul.f32 %v585, %v585
      %v618 = vmul.f32 %v586, %v586
      %v619 = vmul.f32 %v587, %v587
      %v620 = vmul.f32 %v588, %v588
      %v621 = vmul.f32 %v589, %v589
      %v622 = vmul.f32 %v590, %v590
      %v623 = vmul.f32 %v591, %v591
      %v624 = vmul.f32 %v592, %v592
      %v625 = vmul.f32 %v593, %v593
      %v626 = vmul.f32 %v594, %v594
      %v627 = vsel %vm427, %v595, 0.0
      %628 = vadd.xlane.f32.xlu0 %v627
      %v629 = vpop.xlane.xlu0 %628
      %v630 = vsel %vm427, %v596, 0.0
      %631 = vadd.xlane.f32.xlu0 %v630
      %v632 = vpop.xlane.xlu0 %631
      %v633 = vsel %vm427, %v597, 0.0
      %634 = vadd.xlane.f32.xlu0 %v633
      %v635 = vpop.xlane.xlu0 %634
      %v636 = vsel %vm427, %v598, 0.0
      %637 = vadd.xlane.f32.xlu0 %v636
      %v638 = vpop.xlane.xlu0 %637
      %v639 = vsel %vm427, %v599, 0.0
      %640 = vadd.xlane.f32.xlu0 %v639
      %v641 = vpop.xlane.xlu0 %640
      %v642 = vsel %vm427, %v600, 0.0
      %643 = vadd.xlane.f32.xlu0 %v642
      %v644 = vpop.xlane.xlu0 %643
      %v645 = vsel %vm427, %v601, 0.0
      %646 = vadd.xlane.f32.xlu0 %v645
      %v647 = vpop.xlane.xlu0 %646
      %v648 = vsel %vm427, %v602, 0.0
      %649 = vadd.xlane.f32.xlu0 %v648
      %v650 = vpop.xlane.xlu0 %649
      %v651 = vsel %vm427, %v603, 0.0
      %652 = vadd.xlane.f32.xlu0 %v651
      %v653 = vpop.xlane.xlu0 %652
      %v654 = vsel %vm427, %v604, 0.0
      %655 = vadd.xlane.f32.xlu0 %v654
      %v656 = vpop.xlane.xlu0 %655
      %v657 = vsel %vm427, %v605, 0.0
      %658 = vadd.xlane.f32.xlu0 %v657
      %v659 = vpop.xlane.xlu0 %658
      %v660 = vsel %vm427, %v606, 0.0
      %661 = vadd.xlane.f32.xlu0 %v660
      %v662 = vpop.xlane.xlu0 %661
      %v663 = vsel %vm427, %v607, 0.0
      %664 = vadd.xlane.f32.xlu0 %v663
      %v665 = vpop.xlane.xlu0 %664
      %v666 = vsel %vm427, %v608, 0.0
      %667 = vadd.xlane.f32.xlu0 %v666
      %v668 = vpop.xlane.xlu0 %667
      %v669 = vsel %vm427, %v609, 0.0
      %670 = vadd.xlane.f32.xlu0 %v669
      %v671 = vpop.xlane.xlu0 %670
      %v672 = vsel %vm427, %v610, 0.0
      %673 = vadd.xlane.f32.xlu0 %v672
      %v674 = vpop.xlane.xlu0 %673
      %v675 = vsel %vm427, %v611, 0.0
      %676 = vadd.xlane.f32.xlu0 %v675
      %v677 = vpop.xlane.xlu0 %676
      %v678 = vsel %vm427, %v612, 0.0
      %679 = vadd.xlane.f32.xlu0 %v678
      %v680 = vpop.xlane.xlu0 %679
      %v681 = vsel %vm427, %v613, 0.0
      %682 = vadd.xlane.f32.xlu0 %v681
      %v683 = vpop.xlane.xlu0 %682
      %v684 = vsel %vm427, %v614, 0.0
      %685 = vadd.xlane.f32.xlu0 %v684
      %v686 = vpop.xlane.xlu0 %685
      %v687 = vsel %vm427, %v615, 0.0
      %688 = vadd.xlane.f32.xlu0 %v687
      %v689 = vpop.xlane.xlu0 %688
      %v690 = vsel %vm427, %v616, 0.0
      %691 = vadd.xlane.f32.xlu0 %v690
      %v692 = vpop.xlane.xlu0 %691
      %v693 = vsel %vm427, %v617, 0.0
      %694 = vadd.xlane.f32.xlu0 %v693
      %v695 = vpop.xlane.xlu0 %694
      %v696 = vsel %vm427, %v618, 0.0
      %697 = vadd.xlane.f32.xlu0 %v696
      %v698 = vpop.xlane.xlu0 %697
      %v699 = vsel %vm427, %v619, 0.0
      %700 = vadd.xlane.f32.xlu0 %v699
      %v701 = vpop.xlane.xlu0 %700
      %v702 = vsel %vm427, %v620, 0.0
      %703 = vadd.xlane.f32.xlu0 %v702
      %v704 = vpop.xlane.xlu0 %703
      %v705 = vsel %vm427, %v621, 0.0
      %706 = vadd.xlane.f32.xlu0 %v705
      %v707 = vpop.xlane.xlu0 %706
      %v708 = vsel %vm427, %v622, 0.0
      %709 = vadd.xlane.f32.xlu0 %v708
      %v710 = vpop.xlane.xlu0 %709
      %v711 = vsel %vm427, %v623, 0.0
      %712 = vadd.xlane.f32.xlu0 %v711
      %v713 = vpop.xlane.xlu0 %712
      %v714 = vsel %vm427, %v624, 0.0
      %715 = vadd.xlane.f32.xlu0 %v714
      %v716 = vpop.xlane.xlu0 %715
      %v717 = vsel %vm427, %v625, 0.0
      %718 = vadd.xlane.f32.xlu0 %v717
      %v719 = vpop.xlane.xlu0 %718
      %v720 = vsel %vm427, %v626, 0.0
      %721 = vadd.xlane.f32.xlu0 %v720
      %v722 = vpop.xlane.xlu0 %721
      %v723 = vmul.f32 %v629, %v530
      %v724 = vmul.f32 %v632, %v530
      %v725 = vmul.f32 %v635, %v530
      %v726 = vmul.f32 %v638, %v530
      %v727 = vmul.f32 %v641, %v530
      %v728 = vmul.f32 %v644, %v530
      %v729 = vmul.f32 %v647, %v530
      %v730 = vmul.f32 %v650, %v530
      %v731 = vmul.f32 %v653, %v530
      %v732 = vmul.f32 %v656, %v530
      %v733 = vmul.f32 %v659, %v530
      %v734 = vmul.f32 %v662, %v530
      %v735 = vmul.f32 %v665, %v530
      %v736 = vmul.f32 %v668, %v530
      %v737 = vmul.f32 %v671, %v530
      %v738 = vmul.f32 %v674, %v530
      %v739 = vmul.f32 %v677, %v530
      %v740 = vmul.f32 %v680, %v530
      %v741 = vmul.f32 %v683, %v530
      %v742 = vmul.f32 %v686, %v530
      %v743 = vmul.f32 %v689, %v530
      %v744 = vmul.f32 %v692, %v530
      %v745 = vmul.f32 %v695, %v530
      %v746 = vmul.f32 %v698, %v530
      %v747 = vmul.f32 %v701, %v530
      %v748 = vmul.f32 %v704, %v530
      %v749 = vmul.f32 %v707, %v530
      %v750 = vmul.f32 %v710, %v530
      %v751 = vmul.f32 %v713, %v530
      %v752 = vmul.f32 %v716, %v530
      %v753 = vmul.f32 %v719, %v530
      %v754 = vmul.f32 %v722, %v530
      %v755 = vadd.f32 %v723, 1e-05
      %v756 = vadd.f32 %v724, 1e-05
      %v757 = vadd.f32 %v725, 1e-05
      %v758 = vadd.f32 %v726, 1e-05
      %v759 = vadd.f32 %v727, 1e-05
      %v760 = vadd.f32 %v728, 1e-05
      %v761 = vadd.f32 %v729, 1e-05
      %v762 = vadd.f32 %v730, 1e-05
      %v763 = vadd.f32 %v731, 1e-05
      %v764 = vadd.f32 %v732, 1e-05
      %v765 = vadd.f32 %v733, 1e-05
      %v766 = vadd.f32 %v734, 1e-05
      %v767 = vadd.f32 %v735, 1e-05
      %v768 = vadd.f32 %v736, 1e-05
      %v769 = vadd.f32 %v737, 1e-05
      %v770 = vadd.f32 %v738, 1e-05
      %v771 = vadd.f32 %v739, 1e-05
      %v772 = vadd.f32 %v740, 1e-05
      %v773 = vadd.f32 %v741, 1e-05
      %v774 = vadd.f32 %v742, 1e-05
      %v775 = vadd.f32 %v743, 1e-05
      %v776 = vadd.f32 %v744, 1e-05
      %v777 = vadd.f32 %v745, 1e-05
      %v778 = vadd.f32 %v746, 1e-05
      %v779 = vadd.f32 %v747, 1e-05
      %v780 = vadd.f32 %v748, 1e-05
      %v781 = vadd.f32 %v749, 1e-05
      %v782 = vadd.f32 %v750, 1e-05
      %v783 = vadd.f32 %v751, 1e-05
      %v784 = vadd.f32 %v752, 1e-05
      %v785 = vadd.f32 %v753, 1e-05
      %v786 = vadd.f32 %v754, 1e-05
      %v787 = vrsqrt.pop %v755
      %v788 = vmul.f32 %v787, %v755
      %v789 = vmul.f32 %v788, %v787
      %v790 = vmul.f32 0.5, %v789
      %v791 = vsub.f32 1.5, %v790
      %v792 = vmul.f32 %v787, %v791
      %vm793 = vweird.f32 %v755
      %vm794 = vweird.f32 %v787
      %vm795 = vmor %vm793, %vm794
      %v796 = vsel %vm795, %v787, %v792
      %v797 = vrsqrt.pop %v756
      %v798 = vmul.f32 %v797, %v756
      %v799 = vmul.f32 %v798, %v797
      %v800 = vmul.f32 0.5, %v799
      %v801 = vsub.f32 1.5, %v800
      %v802 = vmul.f32 %v797, %v801
      %vm803 = vweird.f32 %v756
      %vm804 = vweird.f32 %v797
      %vm805 = vmor %vm803, %vm804
      %v806 = vsel %vm805, %v797, %v802
      %v807 = vrsqrt.pop %v757
      %v808 = vmul.f32 %v807, %v757
      %v809 = vmul.f32 %v808, %v807
      %v810 = vmul.f32 0.5, %v809
      %v811 = vsub.f32 1.5, %v810
      %v812 = vmul.f32 %v807, %v811
      %vm813 = vweird.f32 %v757
      %vm814 = vweird.f32 %v807
      %vm815 = vmor %vm813, %vm814
      %v816 = vsel %vm815, %v807, %v812
      %v817 = vrsqrt.pop %v758
      %v818 = vmul.f32 %v817, %v758
      %v819 = vmul.f32 %v818, %v817
      %v820 = vmul.f32 0.5, %v819
      %v821 = vsub.f32 1.5, %v820
      %v822 = vmul.f32 %v817, %v821
      %vm823 = vweird.f32 %v758
      %vm824 = vweird.f32 %v817
      %vm825 = vmor %vm823, %vm824
      %v826 = vsel %vm825, %v817, %v822
      %v827 = vrsqrt.pop %v759
      %v828 = vmul.f32 %v827, %v759
      %v829 = vmul.f32 %v828, %v827
      %v830 = vmul.f32 0.5, %v829
      %v831 = vsub.f32 1.5, %v830
      %v832 = vmul.f32 %v827, %v831
      %vm833 = vweird.f32 %v759
      %vm834 = vweird.f32 %v827
      %vm835 = vmor %vm833, %vm834
      %v836 = vsel %vm835, %v827, %v832
      %v837 = vrsqrt.pop %v760
      %v838 = vmul.f32 %v837, %v760
      %v839 = vmul.f32 %v838, %v837
      %v840 = vmul.f32 0.5, %v839
      %v841 = vsub.f32 1.5, %v840
      %v842 = vmul.f32 %v837, %v841
      %vm843 = vweird.f32 %v760
      %vm844 = vweird.f32 %v837
      %vm845 = vmor %vm843, %vm844
      %v846 = vsel %vm845, %v837, %v842
      %v847 = vrsqrt.pop %v761
      %v848 = vmul.f32 %v847, %v761
      %v849 = vmul.f32 %v848, %v847
      %v850 = vmul.f32 0.5, %v849
      %v851 = vsub.f32 1.5, %v850
      %v852 = vmul.f32 %v847, %v851
      %vm853 = vweird.f32 %v761
      %vm854 = vweird.f32 %v847
      %vm855 = vmor %vm853, %vm854
      %v856 = vsel %vm855, %v847, %v852
      %v857 = vrsqrt.pop %v762
      %v858 = vmul.f32 %v857, %v762
      %v859 = vmul.f32 %v858, %v857
      %v860 = vmul.f32 0.5, %v859
      %v861 = vsub.f32 1.5, %v860
      %v862 = vmul.f32 %v857, %v861
      %vm863 = vweird.f32 %v762
      %vm864 = vweird.f32 %v857
      %vm865 = vmor %vm863, %vm864
      %v866 = vsel %vm865, %v857, %v862
      %v867 = vrsqrt.pop %v763
      %v868 = vmul.f32 %v867, %v763
      %v869 = vmul.f32 %v868, %v867
      %v870 = vmul.f32 0.5, %v869
      %v871 = vsub.f32 1.5, %v870
      %v872 = vmul.f32 %v867, %v871
      %vm873 = vweird.f32 %v763
      %vm874 = vweird.f32 %v867
      %vm875 = vmor %vm873, %vm874
      %v876 = vsel %vm875, %v867, %v872
      %v877 = vrsqrt.pop %v764
      %v878 = vmul.f32 %v877, %v764
      %v879 = vmul.f32 %v878, %v877
      %v880 = vmul.f32 0.5, %v879
      %v881 = vsub.f32 1.5, %v880
      %v882 = vmul.f32 %v877, %v881
      %vm883 = vweird.f32 %v764
      %vm884 = vweird.f32 %v877
      %vm885 = vmor %vm883, %vm884
      %v886 = vsel %vm885, %v877, %v882
      %v887 = vrsqrt.pop %v765
      %v888 = vmul.f32 %v887, %v765
      %v889 = vmul.f32 %v888, %v887
      %v890 = vmul.f32 0.5, %v889
      %v891 = vsub.f32 1.5, %v890
      %v892 = vmul.f32 %v887, %v891
      %vm893 = vweird.f32 %v765
      %vm894 = vweird.f32 %v887
      %vm895 = vmor %vm893, %vm894
      %v896 = vsel %vm895, %v887, %v892
      %v897 = vrsqrt.pop %v766
      %v898 = vmul.f32 %v897, %v766
      %v899 = vmul.f32 %v898, %v897
      %v900 = vmul.f32 0.5, %v899
      %v901 = vsub.f32 1.5, %v900
      %v902 = vmul.f32 %v897, %v901
      %vm903 = vweird.f32 %v766
      %vm904 = vweird.f32 %v897
      %vm905 = vmor %vm903, %vm904
      %v906 = vsel %vm905, %v897, %v902
      %v907 = vrsqrt.pop %v767
      %v908 = vmul.f32 %v907, %v767
      %v909 = vmul.f32 %v908, %v907
      %v910 = vmul.f32 0.5, %v909
      %v911 = vsub.f32 1.5, %v910
      %v912 = vmul.f32 %v907, %v911
      %vm913 = vweird.f32 %v767
      %vm914 = vweird.f32 %v907
      %vm915 = vmor %vm913, %vm914
      %v916 = vsel %vm915, %v907, %v912
      %v917 = vrsqrt.pop %v768
      %v918 = vmul.f32 %v917, %v768
      %v919 = vmul.f32 %v918, %v917
      %v920 = vmul.f32 0.5, %v919
      %v921 = vsub.f32 1.5, %v920
      %v922 = vmul.f32 %v917, %v921
      %vm923 = vweird.f32 %v768
      %vm924 = vweird.f32 %v917
      %vm925 = vmor %vm923, %vm924
      %v926 = vsel %vm925, %v917, %v922
      %v927 = vrsqrt.pop %v769
      %v928 = vmul.f32 %v927, %v769
      %v929 = vmul.f32 %v928, %v927
      %v930 = vmul.f32 0.5, %v929
      %v931 = vsub.f32 1.5, %v930
      %v932 = vmul.f32 %v927, %v931
      %vm933 = vweird.f32 %v769
      %vm934 = vweird.f32 %v927
      %vm935 = vmor %vm933, %vm934
      %v936 = vsel %vm935, %v927, %v932
      %v937 = vrsqrt.pop %v770
      %v938 = vmul.f32 %v937, %v770
      %v939 = vmul.f32 %v938, %v937
      %v940 = vmul.f32 0.5, %v939
      %v941 = vsub.f32 1.5, %v940
      %v942 = vmul.f32 %v937, %v941
      %vm943 = vweird.f32 %v770
      %vm944 = vweird.f32 %v937
      %vm945 = vmor %vm943, %vm944
      %v946 = vsel %vm945, %v937, %v942
      %v947 = vrsqrt.pop %v771
      %v948 = vmul.f32 %v947, %v771
      %v949 = vmul.f32 %v948, %v947
      %v950 = vmul.f32 0.5, %v949
      %v951 = vsub.f32 1.5, %v950
      %v952 = vmul.f32 %v947, %v951
      %vm953 = vweird.f32 %v771
      %vm954 = vweird.f32 %v947
      %vm955 = vmor %vm953, %vm954
      %v956 = vsel %vm955, %v947, %v952
      %v957 = vrsqrt.pop %v772
      %v958 = vmul.f32 %v957, %v772
      %v959 = vmul.f32 %v958, %v957
      %v960 = vmul.f32 0.5, %v959
      %v961 = vsub.f32 1.5, %v960
      %v962 = vmul.f32 %v957, %v961
      %vm963 = vweird.f32 %v772
      %vm964 = vweird.f32 %v957
      %vm965 = vmor %vm963, %vm964
      %v966 = vsel %vm965, %v957, %v962
      %v967 = vrsqrt.pop %v773
      %v968 = vmul.f32 %v967, %v773
      %v969 = vmul.f32 %v968, %v967
      %v970 = vmul.f32 0.5, %v969
      %v971 = vsub.f32 1.5, %v970
      %v972 = vmul.f32 %v967, %v971
      %vm973 = vweird.f32 %v773
      %vm974 = vweird.f32 %v967
      %vm975 = vmor %vm973, %vm974
      %v976 = vsel %vm975, %v967, %v972
      %v977 = vrsqrt.pop %v774
      %v978 = vmul.f32 %v977, %v774
      %v979 = vmul.f32 %v978, %v977
      %v980 = vmul.f32 0.5, %v979
      %v981 = vsub.f32 1.5, %v980
      %v982 = vmul.f32 %v977, %v981
      %vm983 = vweird.f32 %v774
      %vm984 = vweird.f32 %v977
      %vm985 = vmor %vm983, %vm984
      %v986 = vsel %vm985, %v977, %v982
      %v987 = vrsqrt.pop %v775
      %v988 = vmul.f32 %v987, %v775
      %v989 = vmul.f32 %v988, %v987
      %v990 = vmul.f32 0.5, %v989
      %v991 = vsub.f32 1.5, %v990
      %v992 = vmul.f32 %v987, %v991
      %vm993 = vweird.f32 %v775
      %vm994 = vweird.f32 %v987
      %vm995 = vmor %vm993, %vm994
      %v996 = vsel %vm995, %v987, %v992
      %v997 = vrsqrt.pop %v776
      %v998 = vmul.f32 %v997, %v776
      %v999 = vmul.f32 %v998, %v997
      %v1000 = vmul.f32 0.5, %v999
      %v1001 = vsub.f32 1.5, %v1000
      %v1002 = vmul.f32 %v997, %v1001
      %vm1003 = vweird.f32 %v776
      %vm1004 = vweird.f32 %v997
      %vm1005 = vmor %vm1003, %vm1004
      %v1006 = vsel %vm1005, %v997, %v1002
      %v1007 = vrsqrt.pop %v777
      %v1008 = vmul.f32 %v1007, %v777
      %v1009 = vmul.f32 %v1008, %v1007
      %v1010 = vmul.f32 0.5, %v1009
      %v1011 = vsub.f32 1.5, %v1010
      %v1012 = vmul.f32 %v1007, %v1011
      %vm1013 = vweird.f32 %v777
      %vm1014 = vweird.f32 %v1007
      %vm1015 = vmor %vm1013, %vm1014
      %v1016 = vsel %vm1015, %v1007, %v1012
      %v1017 = vrsqrt.pop %v778
      %v1018 = vmul.f32 %v1017, %v778
      %v1019 = vmul.f32 %v1018, %v1017
      %v1020 = vmul.f32 0.5, %v1019
      %v1021 = vsub.f32 1.5, %v1020
      %v1022 = vmul.f32 %v1017, %v1021
      %vm1023 = vweird.f32 %v778
      %vm1024 = vweird.f32 %v1017
      %vm1025 = vmor %vm1023, %vm1024
      %v1026 = vsel %vm1025, %v1017, %v1022
      %v1027 = vrsqrt.pop %v779
      %v1028 = vmul.f32 %v1027, %v779
      %v1029 = vmul.f32 %v1028, %v1027
      %v1030 = vmul.f32 0.5, %v1029
      %v1031 = vsub.f32 1.5, %v1030
      %v1032 = vmul.f32 %v1027, %v1031
      %vm1033 = vweird.f32 %v779
      %vm1034 = vweird.f32 %v1027
      %vm1035 = vmor %vm1033, %vm1034
      %v1036 = vsel %vm1035, %v1027, %v1032
      %v1037 = vrsqrt.pop %v780
      %v1038 = vmul.f32 %v1037, %v780
      %v1039 = vmul.f32 %v1038, %v1037
      %v1040 = vmul.f32 0.5, %v1039
      %v1041 = vsub.f32 1.5, %v1040
      %v1042 = vmul.f32 %v1037, %v1041
      %vm1043 = vweird.f32 %v780
      %vm1044 = vweird.f32 %v1037
      %vm1045 = vmor %vm1043, %vm1044
      %v1046 = vsel %vm1045, %v1037, %v1042
      %v1047 = vrsqrt.pop %v781
      %v1048 = vmul.f32 %v1047, %v781
      %v1049 = vmul.f32 %v1048, %v1047
      %v1050 = vmul.f32 0.5, %v1049
      %v1051 = vsub.f32 1.5, %v1050
      %v1052 = vmul.f32 %v1047, %v1051
      %vm1053 = vweird.f32 %v781
      %vm1054 = vweird.f32 %v1047
      %vm1055 = vmor %vm1053, %vm1054
      %v1056 = vsel %vm1055, %v1047, %v1052
      %v1057 = vrsqrt.pop %v782
      %v1058 = vmul.f32 %v1057, %v782
      %v1059 = vmul.f32 %v1058, %v1057
      %v1060 = vmul.f32 0.5, %v1059
      %v1061 = vsub.f32 1.5, %v1060
      %v1062 = vmul.f32 %v1057, %v1061
      %vm1063 = vweird.f32 %v782
      %vm1064 = vweird.f32 %v1057
      %vm1065 = vmor %vm1063, %vm1064
      %v1066 = vsel %vm1065, %v1057, %v1062
      %v1067 = vrsqrt.pop %v783
      %v1068 = vmul.f32 %v1067, %v783
      %v1069 = vmul.f32 %v1068, %v1067
      %v1070 = vmul.f32 0.5, %v1069
      %v1071 = vsub.f32 1.5, %v1070
      %v1072 = vmul.f32 %v1067, %v1071
      %vm1073 = vweird.f32 %v783
      %vm1074 = vweird.f32 %v1067
      %vm1075 = vmor %vm1073, %vm1074
      %v1076 = vsel %vm1075, %v1067, %v1072
      %v1077 = vrsqrt.pop %v784
      %v1078 = vmul.f32 %v1077, %v784
      %v1079 = vmul.f32 %v1078, %v1077
      %v1080 = vmul.f32 0.5, %v1079
      %v1081 = vsub.f32 1.5, %v1080
      %v1082 = vmul.f32 %v1077, %v1081
      %vm1083 = vweird.f32 %v784
      %vm1084 = vweird.f32 %v1077
      %vm1085 = vmor %vm1083, %vm1084
      %v1086 = vsel %vm1085, %v1077, %v1082
      %v1087 = vrsqrt.pop %v785
      %v1088 = vmul.f32 %v1087, %v785
      %v1089 = vmul.f32 %v1088, %v1087
      %v1090 = vmul.f32 0.5, %v1089
      %v1091 = vsub.f32 1.5, %v1090
      %v1092 = vmul.f32 %v1087, %v1091
      %vm1093 = vweird.f32 %v785
      %vm1094 = vweird.f32 %v1087
      %vm1095 = vmor %vm1093, %vm1094
      %v1096 = vsel %vm1095, %v1087, %v1092
      %v1097 = vrsqrt.pop %v786
      %v1098 = vmul.f32 %v1097, %v786
      %v1099 = vmul.f32 %v1098, %v1097
      %v1100 = vmul.f32 0.5, %v1099
      %v1101 = vsub.f32 1.5, %v1100
      %v1102 = vmul.f32 %v1097, %v1101
      %vm1103 = vweird.f32 %v786
      %vm1104 = vweird.f32 %v1097
      %vm1105 = vmor %vm1103, %vm1104
      %v1106 = vsel %vm1105, %v1097, %v1102
      %v1107 = vmul.f32 %v563, %v796
      %v1108 = vmul.f32 %v564, %v806
      %v1109 = vmul.f32 %v565, %v816
      %v1110 = vmul.f32 %v566, %v826
      %v1111 = vmul.f32 %v567, %v836
      %v1112 = vmul.f32 %v568, %v846
      %v1113 = vmul.f32 %v569, %v856
      %v1114 = vmul.f32 %v570, %v866
      %v1115 = vmul.f32 %v571, %v876
      %v1116 = vmul.f32 %v572, %v886
      %v1117 = vmul.f32 %v573, %v896
      %v1118 = vmul.f32 %v574, %v906
      %v1119 = vmul.f32 %v575, %v916
      %v1120 = vmul.f32 %v576, %v926
      %v1121 = vmul.f32 %v577, %v936
      %v1122 = vmul.f32 %v578, %v946
      %v1123 = vmul.f32 %v579, %v956
      %v1124 = vmul.f32 %v580, %v966
      %v1125 = vmul.f32 %v581, %v976
      %v1126 = vmul.f32 %v582, %v986
      %v1127 = vmul.f32 %v583, %v996
      %v1128 = vmul.f32 %v584, %v1006
      %v1129 = vmul.f32 %v585, %v1016
      %v1130 = vmul.f32 %v586, %v1026
      %v1131 = vmul.f32 %v587, %v1036
      %v1132 = vmul.f32 %v588, %v1046
      %v1133 = vmul.f32 %v589, %v1056
      %v1134 = vmul.f32 %v590, %v1066
      %v1135 = vmul.f32 %v591, %v1076
      %v1136 = vmul.f32 %v592, %v1086
      %v1137 = vmul.f32 %v593, %v1096
      %v1138 = vmul.f32 %v594, %v1106
      %v1139 = vld [vmem:[%s2] sm:$0x1]
      %v1141 = vperm.slane %v1139, 0
      %v1143 = vmul.f32 %v1107, %v1141
      %v1144 = vmul.f32 %v1108, %v1141
      %v1145 = vmul.f32 %v1109, %v1141
      %v1146 = vmul.f32 %v1110, %v1141
      %v1147 = vmul.f32 %v1111, %v1141
      %v1148 = vmul.f32 %v1112, %v1141
      %v1149 = vmul.f32 %v1113, %v1141
      %v1150 = vmul.f32 %v1114, %v1141
      %v1151 = vmul.f32 %v1115, %v1141
      %v1152 = vmul.f32 %v1116, %v1141
      %v1153 = vmul.f32 %v1117, %v1141
      %v1154 = vmul.f32 %v1118, %v1141
      %v1155 = vmul.f32 %v1119, %v1141
      %v1156 = vmul.f32 %v1120, %v1141
      %v1157 = vmul.f32 %v1121, %v1141
      %v1158 = vmul.f32 %v1122, %v1141
      %v1159 = vmul.f32 %v1123, %v1141
      %v1160 = vmul.f32 %v1124, %v1141
      %v1161 = vmul.f32 %v1125, %v1141
      %v1162 = vmul.f32 %v1126, %v1141
      %v1163 = vmul.f32 %v1127, %v1141
      %v1164 = vmul.f32 %v1128, %v1141
      %v1165 = vmul.f32 %v1129, %v1141
      %v1166 = vmul.f32 %v1130, %v1141
      %v1167 = vmul.f32 %v1131, %v1141
      %v1168 = vmul.f32 %v1132, %v1141
      %v1169 = vmul.f32 %v1133, %v1141
      %v1170 = vmul.f32 %v1134, %v1141
      %v1171 = vmul.f32 %v1135, %v1141
      %v1172 = vmul.f32 %v1136, %v1141
      %v1173 = vmul.f32 %v1137, %v1141
      %v1174 = vmul.f32 %v1138, %v1141
      %v1175 = vld [vmem:[%s3] sm:$0x1]
      %v1177 = vperm.slane %v1175, 0
      %v1179 = vadd.f32 %v1143, %v1177
      %v1180 = vadd.f32 %v1144, %v1177
      %v1181 = vadd.f32 %v1145, %v1177
      %v1182 = vadd.f32 %v1146, %v1177
      %v1183 = vadd.f32 %v1147, %v1177
      %v1184 = vadd.f32 %v1148, %v1177
      %v1185 = vadd.f32 %v1149, %v1177
      %v1186 = vadd.f32 %v1150, %v1177
      %v1187 = vadd.f32 %v1151, %v1177
      %v1188 = vadd.f32 %v1152, %v1177
      %v1189 = vadd.f32 %v1153, %v1177
      %v1190 = vadd.f32 %v1154, %v1177
      %v1191 = vadd.f32 %v1155, %v1177
      %v1192 = vadd.f32 %v1156, %v1177
      %v1193 = vadd.f32 %v1157, %v1177
      %v1194 = vadd.f32 %v1158, %v1177
      %v1195 = vadd.f32 %v1159, %v1177
      %v1196 = vadd.f32 %v1160, %v1177
      %v1197 = vadd.f32 %v1161, %v1177
      %v1198 = vadd.f32 %v1162, %v1177
      %v1199 = vadd.f32 %v1163, %v1177
      %v1200 = vadd.f32 %v1164, %v1177
      %v1201 = vadd.f32 %v1165, %v1177
      %v1202 = vadd.f32 %v1166, %v1177
      %v1203 = vadd.f32 %v1167, %v1177
      %v1204 = vadd.f32 %v1168, %v1177
      %v1205 = vadd.f32 %v1169, %v1177
      %v1206 = vadd.f32 %v1170, %v1177
      %v1207 = vadd.f32 %v1171, %v1177
      %v1208 = vadd.f32 %v1172, %v1177
      %v1209 = vadd.f32 %v1173, %v1177
      %v1210 = vadd.f32 %v1174, %v1177
      %v1211 = vld [vmem:[%s4] sm:$0xff]
      %v1212 = vld [vmem:[%s4 + $0x8] sm:$0xff]
      %v1213 = vld [vmem:[%s4 + $0x10] sm:$0xff]
      %v1214 = vld [vmem:[%s4 + $0x18] sm:$0xff]
      %v1215 = vld [vmem:[%s5] sm:$0x1]
      %v1217 = vperm.slane %v1215, 0
      %v1220 = vsel %vm427, %v1179, 0
      %v1223 = vsel %vm427, %v1180, 0
      %v1226 = vsel %vm427, %v1181, 0
      %v1229 = vsel %vm427, %v1182, 0
      %v1232 = vsel %vm427, %v1183, 0
      %v1235 = vsel %vm427, %v1184, 0
      %v1238 = vsel %vm427, %v1185, 0
      %v1241 = vsel %vm427, %v1186, 0
      %v1244 = vsel %vm427, %v1187, 0
      %v1247 = vsel %vm427, %v1188, 0
      %v1250 = vsel %vm427, %v1189, 0
      %v1253 = vsel %vm427, %v1190, 0
      %v1256 = vsel %vm427, %v1191, 0
      %v1259 = vsel %vm427, %v1192, 0
      %v1262 = vsel %vm427, %v1193, 0
      %v1265 = vsel %vm427, %v1194, 0
      %v1268 = vsel %vm427, %v1195, 0
      %v1271 = vsel %vm427, %v1196, 0
      %v1274 = vsel %vm427, %v1197, 0
      %v1277 = vsel %vm427, %v1198, 0
      %v1280 = vsel %vm427, %v1199, 0
      %v1283 = vsel %vm427, %v1200, 0
      %v1286 = vsel %vm427, %v1201, 0
      %v1289 = vsel %vm427, %v1202, 0
      %v1292 = vsel %vm427, %v1203, 0
      %v1295 = vsel %vm427, %v1204, 0
      %v1298 = vsel %vm427, %v1205, 0
      %v1301 = vsel %vm427, %v1206, 0
      %v1304 = vsel %vm427, %v1207, 0
      %v1307 = vsel %vm427, %v1208, 0
      %v1310 = vsel %vm427, %v1209, 0
      %v1313 = vsel %vm427, %v1210, 0
      %1315 = vmatpush.msra.mxu0 0.0
      %1316 = vmatpush.msra.mxu0 0.0
      %1317 = vmatpush.msra.mxu0 0.0
      %1318 = vmatpush.msra.mxu0 0.0
      %1319 = vmatpush.msra.mxu0 0.0
      %1320 = vmatpush.msra.mxu0 0.0
      %1321 = vmatpush.msra.mxu0 0.0
      %1322 = vmatpush.msra.mxu0 0.0
      %1323 = vmatpush.msra.mxu0 0.0
      %1324 = vmatpush.msra.mxu0 0.0
      %1325 = vmatpush.msra.mxu0 0.0
      %1326 = vmatpush.msra.mxu0 0.0
      %1327 = vmatpush.msra.mxu0 %v1214
      %1328 = vmatpush.msra.mxu0 %v1213
      %1329 = vmatpush.msra.mxu0 %v1212
      %1330 = vmatpush.msra.mxu0 %v1211
      %1331 = vmatmul.f32.gmra.mxu0 %v1220
      %v1332 = vpop.f32.mrf.mxu0
      %v1333 = vadd.f32 %v1217, %v1332
      %1334 = vmatmul.f32.gmra.mxu0 %v1223
      %v1335 = vpop.f32.mrf.mxu0
      %v1336 = vadd.f32 %v1217, %v1335
      %1337 = vmatmul.f32.gmra.mxu0 %v1226
      %v1338 = vpop.f32.mrf.mxu0
      %v1339 = vadd.f32 %v1217, %v1338
      %1340 = vmatmul.f32.gmra.mxu0 %v1229
      %v1341 = vpop.f32.mrf.mxu0
      %v1342 = vadd.f32 %v1217, %v1341
      %1343 = vmatmul.f32.gmra.mxu0 %v1232
      %v1344 = vpop.f32.mrf.mxu0
      %v1345 = vadd.f32 %v1217, %v1344
      %1346 = vmatmul.f32.gmra.mxu0 %v1235
      %v1347 = vpop.f32.mrf.mxu0
      %v1348 = vadd.f32 %v1217, %v1347
      %1349 = vmatmul.f32.gmra.mxu0 %v1238
      %v1350 = vpop.f32.mrf.mxu0
      %v1351 = vadd.f32 %v1217, %v1350
      %1352 = vmatmul.f32.gmra.mxu0 %v1241
      %v1353 = vpop.f32.mrf.mxu0
      %v1354 = vadd.f32 %v1217, %v1353
      %1355 = vmatmul.f32.gmra.mxu0 %v1244
      %v1356 = vpop.f32.mrf.mxu0
      %v1357 = vadd.f32 %v1217, %v1356
      %1358 = vmatmul.f32.gmra.mxu0 %v1247
      %v1359 = vpop.f32.mrf.mxu0
      %v1360 = vadd.f32 %v1217, %v1359
      %1361 = vmatmul.f32.gmra.mxu0 %v1250
      %v1362 = vpop.f32.mrf.mxu0
      %v1363 = vadd.f32 %v1217, %v1362
      %1364 = vmatmul.f32.gmra.mxu0 %v1253
      %v1365 = vpop.f32.mrf.mxu0
      %v1366 = vadd.f32 %v1217, %v1365
      %1367 = vmatmul.f32.gmra.mxu0 %v1256
      %v1368 = vpop.f32.mrf.mxu0
      %v1369 = vadd.f32 %v1217, %v1368
      %1370 = vmatmul.f32.gmra.mxu0 %v1259
      %v1371 = vpop.f32.mrf.mxu0
      %v1372 = vadd.f32 %v1217, %v1371
      %1373 = vmatmul.f32.gmra.mxu0 %v1262
      %v1374 = vpop.f32.mrf.mxu0
      %v1375 = vadd.f32 %v1217, %v1374
      %1376 = vmatmul.f32.gmra.mxu0 %v1265
      %v1377 = vpop.f32.mrf.mxu0
      %v1378 = vadd.f32 %v1217, %v1377
      %1379 = vmatmul.f32.gmra.mxu0 %v1268
      %v1380 = vpop.f32.mrf.mxu0
      %v1381 = vadd.f32 %v1217, %v1380
      %1382 = vmatmul.f32.gmra.mxu0 %v1271
      %v1383 = vpop.f32.mrf.mxu0
      %v1384 = vadd.f32 %v1217, %v1383
      %1385 = vmatmul.f32.gmra.mxu0 %v1274
      %v1386 = vpop.f32.mrf.mxu0
      %v1387 = vadd.f32 %v1217, %v1386
      %1388 = vmatmul.f32.gmra.mxu0 %v1277
      %v1389 = vpop.f32.mrf.mxu0
      %v1390 = vadd.f32 %v1217, %v1389
      %1391 = vmatmul.f32.gmra.mxu0 %v1280
      %v1392 = vpop.f32.mrf.mxu0
      %v1393 = vadd.f32 %v1217, %v1392
      %1394 = vmatmul.f32.gmra.mxu0 %v1283
      %v1395 = vpop.f32.mrf.mxu0
      %v1396 = vadd.f32 %v1217, %v1395
      %1397 = vmatmul.f32.gmra.mxu0 %v1286
      %v1398 = vpop.f32.mrf.mxu0
      %v1399 = vadd.f32 %v1217, %v1398
      %1400 = vmatmul.f32.gmra.mxu0 %v1289
      %v1401 = vpop.f32.mrf.mxu0
      %v1402 = vadd.f32 %v1217, %v1401
      %1403 = vmatmul.f32.gmra.mxu0 %v1292
      %v1404 = vpop.f32.mrf.mxu0
      %v1405 = vadd.f32 %v1217, %v1404
      %1406 = vmatmul.f32.gmra.mxu0 %v1295
      %v1407 = vpop.f32.mrf.mxu0
      %v1408 = vadd.f32 %v1217, %v1407
      %1409 = vmatmul.f32.gmra.mxu0 %v1298
      %v1410 = vpop.f32.mrf.mxu0
      %v1411 = vadd.f32 %v1217, %v1410
      %1412 = vmatmul.f32.gmra.mxu0 %v1301
      %v1413 = vpop.f32.mrf.mxu0
      %v1414 = vadd.f32 %v1217, %v1413
      %1415 = vmatmul.f32.gmra.mxu0 %v1304
      %v1416 = vpop.f32.mrf.mxu0
      %v1417 = vadd.f32 %v1217, %v1416
      %1418 = vmatmul.f32.gmra.mxu0 %v1307
      %v1419 = vpop.f32.mrf.mxu0
      %v1420 = vadd.f32 %v1217, %v1419
      %1421 = vmatmul.f32.gmra.mxu0 %v1310
      %v1422 = vpop.f32.mrf.mxu0
      %v1423 = vadd.f32 %v1217, %v1422
      %1424 = vmatmul.f32.gmra.mxu0 %v1313
      %v1425 = vpop.f32.mrf.mxu0
      %v1426 = vadd.f32 %v1217, %v1425
      %1427 = vdwg.mxu0
      %v1428 = vmul.f32 %v1333, %v1333
      %v1429 = vmul.f32 %v1336, %v1336
      %v1430 = vmul.f32 %v1339, %v1339
      %v1431 = vmul.f32 %v1342, %v1342
      %v1432 = vmul.f32 %v1345, %v1345
      %v1433 = vmul.f32 %v1348, %v1348
      %v1434 = vmul.f32 %v1351, %v1351
      %v1435 = vmul.f32 %v1354, %v1354
      %v1436 = vmul.f32 %v1357, %v1357
      %v1437 = vmul.f32 %v1360, %v1360
      %v1438 = vmul.f32 %v1363, %v1363
      %v1439 = vmul.f32 %v1366, %v1366
      %v1440 = vmul.f32 %v1369, %v1369
      %v1441 = vmul.f32 %v1372, %v1372
      %v1442 = vmul.f32 %v1375, %v1375
      %v1443 = vmul.f32 %v1378, %v1378
      %v1444 = vmul.f32 %v1381, %v1381
      %v1445 = vmul.f32 %v1384, %v1384
      %v1446 = vmul.f32 %v1387, %v1387
      %v1447 = vmul.f32 %v1390, %v1390
      %v1448 = vmul.f32 %v1393, %v1393
      %v1449 = vmul.f32 %v1396, %v1396
      %v1450 = vmul.f32 %v1399, %v1399
      %v1451 = vmul.f32 %v1402, %v1402
      %v1452 = vmul.f32 %v1405, %v1405
      %v1453 = vmul.f32 %v1408, %v1408
      %v1454 = vmul.f32 %v1411, %v1411
      %v1455 = vmul.f32 %v1414, %v1414
      %v1456 = vmul.f32 %v1417, %v1417
      %v1457 = vmul.f32 %v1420, %v1420
      %v1458 = vmul.f32 %v1423, %v1423
      %v1459 = vmul.f32 %v1426, %v1426
      %v1460 = vmul.f32 %v1333, %v1428
      %v1461 = vmul.f32 %v1336, %v1429
      %v1462 = vmul.f32 %v1339, %v1430
      %v1463 = vmul.f32 %v1342, %v1431
      %v1464 = vmul.f32 %v1345, %v1432
      %v1465 = vmul.f32 %v1348, %v1433
      %v1466 = vmul.f32 %v1351, %v1434
      %v1467 = vmul.f32 %v1354, %v1435
      %v1468 = vmul.f32 %v1357, %v1436
      %v1469 = vmul.f32 %v1360, %v1437
      %v1470 = vmul.f32 %v1363, %v1438
      %v1471 = vmul.f32 %v1366, %v1439
      %v1472 = vmul.f32 %v1369, %v1440
      %v1473 = vmul.f32 %v1372, %v1441
      %v1474 = vmul.f32 %v1375, %v1442
      %v1475 = vmul.f32 %v1378, %v1443
      %v1476 = vmul.f32 %v1381, %v1444
      %v1477 = vmul.f32 %v1384, %v1445
      %v1478 = vmul.f32 %v1387, %v1446
      %v1479 = vmul.f32 %v1390, %v1447
      %v1480 = vmul.f32 %v1393, %v1448
      %v1481 = vmul.f32 %v1396, %v1449
      %v1482 = vmul.f32 %v1399, %v1450
      %v1483 = vmul.f32 %v1402, %v1451
      %v1484 = vmul.f32 %v1405, %v1452
      %v1485 = vmul.f32 %v1408, %v1453
      %v1486 = vmul.f32 %v1411, %v1454
      %v1487 = vmul.f32 %v1414, %v1455
      %v1488 = vmul.f32 %v1417, %v1456
      %v1489 = vmul.f32 %v1420, %v1457
      %v1490 = vmul.f32 %v1423, %v1458
      %v1491 = vmul.f32 %v1426, %v1459
      %v1492 = vmul.f32 %v1460, 0.044715
      %v1493 = vmul.f32 %v1461, 0.044715
      %v1494 = vmul.f32 %v1462, 0.044715
      %v1495 = vmul.f32 %v1463, 0.044715
      %v1496 = vmul.f32 %v1464, 0.044715
      %v1497 = vmul.f32 %v1465, 0.044715
      %v1498 = vmul.f32 %v1466, 0.044715
      %v1499 = vmul.f32 %v1467, 0.044715
      %v1500 = vmul.f32 %v1468, 0.044715
      %v1501 = vmul.f32 %v1469, 0.044715
      %v1502 = vmul.f32 %v1470, 0.044715
      %v1503 = vmul.f32 %v1471, 0.044715
      %v1504 = vmul.f32 %v1472, 0.044715
      %v1505 = vmul.f32 %v1473, 0.044715
      %v1506 = vmul.f32 %v1474, 0.044715
      %v1507 = vmul.f32 %v1475, 0.044715
      %v1508 = vmul.f32 %v1476, 0.044715
      %v1509 = vmul.f32 %v1477, 0.044715
      %v1510 = vmul.f32 %v1478, 0.044715
      %v1511 = vmul.f32 %v1479, 0.044715
      %v1512 = vmul.f32 %v1480, 0.044715
      %v1513 = vmul.f32 %v1481, 0.044715
      %v1514 = vmul.f32 %v1482, 0.044715
      %v1515 = vmul.f32 %v1483, 0.044715
      %v1516 = vmul.f32 %v1484, 0.044715
      %v1517 = vmul.f32 %v1485, 0.044715
      %v1518 = vmul.f32 %v1486, 0.044715
      %v1519 = vmul.f32 %v1487, 0.044715
      %v1520 = vmul.f32 %v1488, 0.044715
      %v1521 = vmul.f32 %v1489, 0.044715
      %v1522 = vmul.f32 %v1490, 0.044715
      %v1523 = vmul.f32 %v1491, 0.044715
      %v1524 = vadd.f32 %v1333, %v1492
      %v1525 = vadd.f32 %v1336, %v1493
      %v1526 = vadd.f32 %v1339, %v1494
      %v1527 = vadd.f32 %v1342, %v1495
      %v1528 = vadd.f32 %v1345, %v1496
      %v1529 = vadd.f32 %v1348, %v1497
      %v1530 = vadd.f32 %v1351, %v1498
      %v1531 = vadd.f32 %v1354, %v1499
      %v1532 = vadd.f32 %v1357, %v1500
      %v1533 = vadd.f32 %v1360, %v1501
      %v1534 = vadd.f32 %v1363, %v1502
      %v1535 = vadd.f32 %v1366, %v1503
      %v1536 = vadd.f32 %v1369, %v1504
      %v1537 = vadd.f32 %v1372, %v1505
      %v1538 = vadd.f32 %v1375, %v1506
      %v1539 = vadd.f32 %v1378, %v1507
      %v1540 = vadd.f32 %v1381, %v1508
      %v1541 = vadd.f32 %v1384, %v1509
      %v1542 = vadd.f32 %v1387, %v1510
      %v1543 = vadd.f32 %v1390, %v1511
      %v1544 = vadd.f32 %v1393, %v1512
      %v1545 = vadd.f32 %v1396, %v1513
      %v1546 = vadd.f32 %v1399, %v1514
      %v1547 = vadd.f32 %v1402, %v1515
      %v1548 = vadd.f32 %v1405, %v1516
      %v1549 = vadd.f32 %v1408, %v1517
      %v1550 = vadd.f32 %v1411, %v1518
      %v1551 = vadd.f32 %v1414, %v1519
      %v1552 = vadd.f32 %v1417, %v1520
      %v1553 = vadd.f32 %v1420, %v1521
      %v1554 = vadd.f32 %v1423, %v1522
      %v1555 = vadd.f32 %v1426, %v1523
      %v1556 = vmul.f32 %v1524, 0.7978846
      %v1557 = vmul.f32 %v1525, 0.7978846
      %v1558 = vmul.f32 %v1526, 0.7978846
      %v1559 = vmul.f32 %v1527, 0.7978846
      %v1560 = vmul.f32 %v1528, 0.7978846
      %v1561 = vmul.f32 %v1529, 0.7978846
      %v1562 = vmul.f32 %v1530, 0.7978846
      %v1563 = vmul.f32 %v1531, 0.7978846
      %v1564 = vmul.f32 %v1532, 0.7978846
      %v1565 = vmul.f32 %v1533, 0.7978846
      %v1566 = vmul.f32 %v1534, 0.7978846
      %v1567 = vmul.f32 %v1535, 0.7978846
      %v1568 = vmul.f32 %v1536, 0.7978846
      %v1569 = vmul.f32 %v1537, 0.7978846
      %v1570 = vmul.f32 %v1538, 0.7978846
      %v1571 = vmul.f32 %v1539, 0.7978846
      %v1572 = vmul.f32 %v1540, 0.7978846
      %v1573 = vmul.f32 %v1541, 0.7978846
      %v1574 = vmul.f32 %v1542, 0.7978846
      %v1575 = vmul.f32 %v1543, 0.7978846
      %v1576 = vmul.f32 %v1544, 0.7978846
      %v1577 = vmul.f32 %v1545, 0.7978846
      %v1578 = vmul.f32 %v1546, 0.7978846
      %v1579 = vmul.f32 %v1547, 0.7978846
      %v1580 = vmul.f32 %v1548, 0.7978846
      %v1581 = vmul.f32 %v1549, 0.7978846
      %v1582 = vmul.f32 %v1550, 0.7978846
      %v1583 = vmul.f32 %v1551, 0.7978846
      %v1584 = vmul.f32 %v1552, 0.7978846
      %v1585 = vmul.f32 %v1553, 0.7978846
      %v1586 = vmul.f32 %v1554, 0.7978846
      %v1587 = vmul.f32 %v1555, 0.7978846
      %v1588 = vtanh.pop %v1556
      %v1589 = vtanh.pop %v1557
      %v1590 = vtanh.pop %v1558
      %v1591 = vtanh.pop %v1559
      %v1592 = vtanh.pop %v1560
      %v1593 = vtanh.pop %v1561
      %v1594 = vtanh.pop %v1562
      %v1595 = vtanh.pop %v1563
      %v1596 = vtanh.pop %v1564
      %v1597 = vtanh.pop %v1565
      %v1598 = vtanh.pop %v1566
      %v1599 = vtanh.pop %v1567
      %v1600 = vtanh.pop %v1568
      %v1601 = vtanh.pop %v1569
      %v1602 = vtanh.pop %v1570
      %v1603 = vtanh.pop %v1571
      %v1604 = vtanh.pop %v1572
      %v1605 = vtanh.pop %v1573
      %v1606 = vtanh.pop %v1574
      %v1607 = vtanh.pop %v1575
      %v1608 = vtanh.pop %v1576
      %v1609 = vtanh.pop %v1577
      %v1610 = vtanh.pop %v1578
      %v1611 = vtanh.pop %v1579
      %v1612 = vtanh.pop %v1580
      %v1613 = vtanh.pop %v1581
      %v1614 = vtanh.pop %v1582
      %v1615 = vtanh.pop %v1583
      %v1616 = vtanh.pop %v1584
      %v1617 = vtanh.pop %v1585
      %v1618 = vtanh.pop %v1586
      %v1619 = vtanh.pop %v1587
      %v1620 = vadd.f32 %v1588, 1.0
      %v1621 = vadd.f32 %v1589, 1.0
      %v1622 = vadd.f32 %v1590, 1.0
      %v1623 = vadd.f32 %v1591, 1.0
      %v1624 = vadd.f32 %v1592, 1.0
      %v1625 = vadd.f32 %v1593, 1.0
      %v1626 = vadd.f32 %v1594, 1.0
      %v1627 = vadd.f32 %v1595, 1.0
      %v1628 = vadd.f32 %v1596, 1.0
      %v1629 = vadd.f32 %v1597, 1.0
      %v1630 = vadd.f32 %v1598, 1.0
      %v1631 = vadd.f32 %v1599, 1.0
      %v1632 = vadd.f32 %v1600, 1.0
      %v1633 = vadd.f32 %v1601, 1.0
      %v1634 = vadd.f32 %v1602, 1.0
      %v1635 = vadd.f32 %v1603, 1.0
      %v1636 = vadd.f32 %v1604, 1.0
      %v1637 = vadd.f32 %v1605, 1.0
      %v1638 = vadd.f32 %v1606, 1.0
      %v1639 = vadd.f32 %v1607, 1.0
      %v1640 = vadd.f32 %v1608, 1.0
      %v1641 = vadd.f32 %v1609, 1.0
      %v1642 = vadd.f32 %v1610, 1.0
      %v1643 = vadd.f32 %v1611, 1.0
      %v1644 = vadd.f32 %v1612, 1.0
      %v1645 = vadd.f32 %v1613, 1.0
      %v1646 = vadd.f32 %v1614, 1.0
      %v1647 = vadd.f32 %v1615, 1.0
      %v1648 = vadd.f32 %v1616, 1.0
      %v1649 = vadd.f32 %v1617, 1.0
      %v1650 = vadd.f32 %v1618, 1.0
      %v1651 = vadd.f32 %v1619, 1.0
      %v1652 = vmul.f32 %v1620, 0.5
      %v1653 = vmul.f32 %v1621, 0.5
      %v1654 = vmul.f32 %v1622, 0.5
      %v1655 = vmul.f32 %v1623, 0.5
      %v1656 = vmul.f32 %v1624, 0.5
      %v1657 = vmul.f32 %v1625, 0.5
      %v1658 = vmul.f32 %v1626, 0.5
      %v1659 = vmul.f32 %v1627, 0.5
      %v1660 = vmul.f32 %v1628, 0.5
      %v1661 = vmul.f32 %v1629, 0.5
      %v1662 = vmul.f32 %v1630, 0.5
      %v1663 = vmul.f32 %v1631, 0.5
      %v1664 = vmul.f32 %v1632, 0.5
      %v1665 = vmul.f32 %v1633, 0.5
      %v1666 = vmul.f32 %v1634, 0.5
      %v1667 = vmul.f32 %v1635, 0.5
      %v1668 = vmul.f32 %v1636, 0.5
      %v1669 = vmul.f32 %v1637, 0.5
      %v1670 = vmul.f32 %v1638, 0.5
      %v1671 = vmul.f32 %v1639, 0.5
      %v1672 = vmul.f32 %v1640, 0.5
      %v1673 = vmul.f32 %v1641, 0.5
      %v1674 = vmul.f32 %v1642, 0.5
      %v1675 = vmul.f32 %v1643, 0.5
      %v1676 = vmul.f32 %v1644, 0.5
      %v1677 = vmul.f32 %v1645, 0.5
      %v1678 = vmul.f32 %v1646, 0.5
      %v1679 = vmul.f32 %v1647, 0.5
      %v1680 = vmul.f32 %v1648, 0.5
      %v1681 = vmul.f32 %v1649, 0.5
      %v1682 = vmul.f32 %v1650, 0.5
      %v1683 = vmul.f32 %v1651, 0.5
      %v1684 = vmul.f32 %v1333, %v1652
      %v1685 = vmul.f32 %v1336, %v1653
      %v1686 = vmul.f32 %v1339, %v1654
      %v1687 = vmul.f32 %v1342, %v1655
      %v1688 = vmul.f32 %v1345, %v1656
      %v1689 = vmul.f32 %v1348, %v1657
      %v1690 = vmul.f32 %v1351, %v1658
      %v1691 = vmul.f32 %v1354, %v1659
      %v1692 = vmul.f32 %v1357, %v1660
      %v1693 = vmul.f32 %v1360, %v1661
      %v1694 = vmul.f32 %v1363, %v1662
      %v1695 = vmul.f32 %v1366, %v1663
      %v1696 = vmul.f32 %v1369, %v1664
      %v1697 = vmul.f32 %v1372, %v1665
      %v1698 = vmul.f32 %v1375, %v1666
      %v1699 = vmul.f32 %v1378, %v1667
      %v1700 = vmul.f32 %v1381, %v1668
      %v1701 = vmul.f32 %v1384, %v1669
      %v1702 = vmul.f32 %v1387, %v1670
      %v1703 = vmul.f32 %v1390, %v1671
      %v1704 = vmul.f32 %v1393, %v1672
      %v1705 = vmul.f32 %v1396, %v1673
      %v1706 = vmul.f32 %v1399, %v1674
      %v1707 = vmul.f32 %v1402, %v1675
      %v1708 = vmul.f32 %v1405, %v1676
      %v1709 = vmul.f32 %v1408, %v1677
      %v1710 = vmul.f32 %v1411, %v1678
      %v1711 = vmul.f32 %v1414, %v1679
      %v1712 = vmul.f32 %v1417, %v1680
      %v1713 = vmul.f32 %v1420, %v1681
      %v1714 = vmul.f32 %v1423, %v1682
      %v1715 = vmul.f32 %v1426, %v1683
      %v1716 = vld [vmem:[%s6] sm:$0xff]
      %v1717 = vld [vmem:[%s6 + $0x8] sm:$0xff]
      %v1718 = vld [vmem:[%s6 + $0x10] sm:$0xff]
      %v1719 = vld [vmem:[%s6 + $0x18] sm:$0xff]
      %v1720 = vld [vmem:[%s6 + $0x20] sm:$0xff]
      %v1721 = vld [vmem:[%s6 + $0x28] sm:$0xff]
      %v1722 = vld [vmem:[%s6 + $0x30] sm:$0xff]
      %v1723 = vld [vmem:[%s6 + $0x38] sm:$0xff]
      %v1724 = vld [vmem:[%s6 + $0x40] sm:$0xff]
      %v1725 = vld [vmem:[%s6 + $0x48] sm:$0xff]
      %v1726 = vld [vmem:[%s6 + $0x50] sm:$0xff]
      %v1727 = vld [vmem:[%s6 + $0x58] sm:$0xff]
      %v1728 = vld [vmem:[%s6 + $0x60] sm:$0xff]
      %v1729 = vld [vmem:[%s6 + $0x68] sm:$0xff]
      %v1730 = vld [vmem:[%s6 + $0x70] sm:$0xff]
      %v1731 = vld [vmem:[%s6 + $0x78] sm:$0xff]
      %v1732 = vld [vmem:[%s7] sm:$0x1]
      %v1734 = vperm.slane %v1732, 0
      %1736 = vmatpush.msra.mxu0 %v1731
      %1737 = vmatpush.msra.mxu0 %v1730
      %1738 = vmatpush.msra.mxu0 %v1729
      %1739 = vmatpush.msra.mxu0 %v1728
      %1740 = vmatpush.msra.mxu0 %v1727
      %1741 = vmatpush.msra.mxu0 %v1726
      %1742 = vmatpush.msra.mxu0 %v1725
      %1743 = vmatpush.msra.mxu0 %v1724
      %1744 = vmatpush.msra.mxu0 %v1723
      %1745 = vmatpush.msra.mxu0 %v1722
      %1746 = vmatpush.msra.mxu0 %v1721
      %1747 = vmatpush.msra.mxu0 %v1720
      %1748 = vmatpush.msra.mxu0 %v1719
      %1749 = vmatpush.msra.mxu0 %v1718
      %1750 = vmatpush.msra.mxu0 %v1717
      %1751 = vmatpush.msra.mxu0 %v1716
      %1752 = vmatmul.f32.gmra.mxu0 %v1684
      %v1753 = vpop.f32.mrf.mxu0
      %v1754 = vadd.f32 %v1734, %v1753
      %1755 = vmatmul.f32.gmra.mxu0 %v1685
      %v1756 = vpop.f32.mrf.mxu0
      %v1757 = vadd.f32 %v1734, %v1756
      %1758 = vmatmul.f32.gmra.mxu0 %v1686
      %v1759 = vpop.f32.mrf.mxu0
      %v1760 = vadd.f32 %v1734, %v1759
      %1761 = vmatmul.f32.gmra.mxu0 %v1687
      %v1762 = vpop.f32.mrf.mxu0
      %v1763 = vadd.f32 %v1734, %v1762
      %1764 = vmatmul.f32.gmra.mxu0 %v1688
      %v1765 = vpop.f32.mrf.mxu0
      %v1766 = vadd.f32 %v1734, %v1765
      %1767 = vmatmul.f32.gmra.mxu0 %v1689
      %v1768 = vpop.f32.mrf.mxu0
      %v1769 = vadd.f32 %v1734, %v1768
      %1770 = vmatmul.f32.gmra.mxu0 %v1690
      %v1771 = vpop.f32.mrf.mxu0
      %v1772 = vadd.f32 %v1734, %v1771
      %1773 = vmatmul.f32.gmra.mxu0 %v1691
      %v1774 = vpop.f32.mrf.mxu0
      %v1775 = vadd.f32 %v1734, %v1774
      %1776 = vmatmul.f32.gmra.mxu0 %v1692
      %v1777 = vpop.f32.mrf.mxu0
      %v1778 = vadd.f32 %v1734, %v1777
      %1779 = vmatmul.f32.gmra.mxu0 %v1693
      %v1780 = vpop.f32.mrf.mxu0
      %v1781 = vadd.f32 %v1734, %v1780
      %1782 = vmatmul.f32.gmra.mxu0 %v1694
      %v1783 = vpop.f32.mrf.mxu0
      %v1784 = vadd.f32 %v1734, %v1783
      %1785 = vmatmul.f32.gmra.mxu0 %v1695
      %v1786 = vpop.f32.mrf.mxu0
      %v1787 = vadd.f32 %v1734, %v1786
      %1788 = vmatmul.f32.gmra.mxu0 %v1696
      %v1789 = vpop.f32.mrf.mxu0
      %v1790 = vadd.f32 %v1734, %v1789
      %1791 = vmatmul.f32.gmra.mxu0 %v1697
      %v1792 = vpop.f32.mrf.mxu0
      %v1793 = vadd.f32 %v1734, %v1792
      %1794 = vmatmul.f32.gmra.mxu0 %v1698
      %v1795 = vpop.f32.mrf.mxu0
      %v1796 = vadd.f32 %v1734, %v1795
      %1797 = vmatmul.f32.gmra.mxu0 %v1699
      %v1798 = vpop.f32.mrf.mxu0
      %v1799 = vadd.f32 %v1734, %v1798
      %1800 = vmatmul.f32.gmra.mxu0 %v1700
      %v1801 = vpop.f32.mrf.mxu0
      %v1802 = vadd.f32 %v1734, %v1801
      %1803 = vmatmul.f32.gmra.mxu0 %v1701
      %v1804 = vpop.f32.mrf.mxu0
      %v1805 = vadd.f32 %v1734, %v1804
      %1806 = vmatmul.f32.gmra.mxu0 %v1702
      %v1807 = vpop.f32.mrf.mxu0
      %v1808 = vadd.f32 %v1734, %v1807
      %1809 = vmatmul.f32.gmra.mxu0 %v1703
      %v1810 = vpop.f32.mrf.mxu0
      %v1811 = vadd.f32 %v1734, %v1810
      %1812 = vmatmul.f32.gmra.mxu0 %v1704
      %v1813 = vpop.f32.mrf.mxu0
      %v1814 = vadd.f32 %v1734, %v1813
      %1815 = vmatmul.f32.gmra.mxu0 %v1705
      %v1816 = vpop.f32.mrf.mxu0
      %v1817 = vadd.f32 %v1734, %v1816
      %1818 = vmatmul.f32.gmra.mxu0 %v1706
      %v1819 = vpop.f32.mrf.mxu0
      %v1820 = vadd.f32 %v1734, %v1819
      %1821 = vmatmul.f32.gmra.mxu0 %v1707
      %v1822 = vpop.f32.mrf.mxu0
      %v1823 = vadd.f32 %v1734, %v1822
      %1824 = vmatmul.f32.gmra.mxu0 %v1708
      %v1825 = vpop.f32.mrf.mxu0
      %v1826 = vadd.f32 %v1734, %v1825
      %1827 = vmatmul.f32.gmra.mxu0 %v1709
      %v1828 = vpop.f32.mrf.mxu0
      %v1829 = vadd.f32 %v1734, %v1828
      %1830 = vmatmul.f32.gmra.mxu0 %v1710
      %v1831 = vpop.f32.mrf.mxu0
      %v1832 = vadd.f32 %v1734, %v1831
      %1833 = vmatmul.f32.gmra.mxu0 %v1711
      %v1834 = vpop.f32.mrf.mxu0
      %v1835 = vadd.f32 %v1734, %v1834
      %1836 = vmatmul.f32.gmra.mxu0 %v1712
      %v1837 = vpop.f32.mrf.mxu0
      %v1838 = vadd.f32 %v1734, %v1837
      %1839 = vmatmul.f32.gmra.mxu0 %v1713
      %v1840 = vpop.f32.mrf.mxu0
      %v1841 = vadd.f32 %v1734, %v1840
      %1842 = vmatmul.f32.gmra.mxu0 %v1714
      %v1843 = vpop.f32.mrf.mxu0
      %v1844 = vadd.f32 %v1734, %v1843
      %1845 = vmatmul.f32.gmra.mxu0 %v1715
      %v1846 = vpop.f32.mrf.mxu0
      %v1847 = vadd.f32 %v1734, %v1846
      %1848 = vdwg.mxu0
      %v1849 = vadd.f32 %v395, %v1754
      %v1850 = vadd.f32 %v396, %v1757
      %v1851 = vadd.f32 %v397, %v1760
      %v1852 = vadd.f32 %v398, %v1763
      %v1853 = vadd.f32 %v399, %v1766
      %v1854 = vadd.f32 %v400, %v1769
      %v1855 = vadd.f32 %v401, %v1772
      %v1856 = vadd.f32 %v402, %v1775
      %v1857 = vadd.f32 %v403, %v1778
      %v1858 = vadd.f32 %v404, %v1781
      %v1859 = vadd.f32 %v405, %v1784
      %v1860 = vadd.f32 %v406, %v1787
      %v1861 = vadd.f32 %v407, %v1790
      %v1862 = vadd.f32 %v408, %v1793
      %v1863 = vadd.f32 %v409, %v1796
      %v1864 = vadd.f32 %v410, %v1799
      %v1865 = vadd.f32 %v411, %v1802
      %v1866 = vadd.f32 %v412, %v1805
      %v1867 = vadd.f32 %v413, %v1808
      %v1868 = vadd.f32 %v414, %v1811
      %v1869 = vadd.f32 %v415, %v1814
      %v1870 = vadd.f32 %v416, %v1817
      %v1871 = vadd.f32 %v417, %v1820
      %v1872 = vadd.f32 %v418, %v1823
      %v1873 = vadd.f32 %v419, %v1826
      %v1874 = vadd.f32 %v420, %v1829
      %v1875 = vadd.f32 %v421, %v1832
      %v1876 = vadd.f32 %v422, %v1835
      %v1877 = vadd.f32 %v423, %v1838
      %v1878 = vadd.f32 %v424, %v1841
      %v1879 = vadd.f32 %v425, %v1844
      %v1880 = vadd.f32 %v426, %v1847
      %1881 = vst.msk [vmem:[%s329] sm:$0xff] %vm427, %v1849
      %1882 = vst.msk [vmem:[%s329 + $0x8] sm:$0xff] %vm427, %v1850
      %1883 = vst.msk [vmem:[%s329 + $0x10] sm:$0xff] %vm427, %v1851
      %1884 = vst.msk [vmem:[%s329 + $0x18] sm:$0xff] %vm427, %v1852
      %1885 = vst.msk [vmem:[%s329 + $0x20] sm:$0xff] %vm427, %v1853
      %1886 = vst.msk [vmem:[%s329 + $0x28] sm:$0xff] %vm427, %v1854
      %1887 = vst.msk [vmem:[%s329 + $0x30] sm:$0xff] %vm427, %v1855
      %1888 = vst.msk [vmem:[%s329 + $0x38] sm:$0xff] %vm427, %v1856
      %1889 = vst.msk [vmem:[%s329 + $0x40] sm:$0xff] %vm427, %v1857
      %1890 = vst.msk [vmem:[%s329 + $0x48] sm:$0xff] %vm427, %v1858
      %1891 = vst.msk [vmem:[%s329 + $0x50] sm:$0xff] %vm427, %v1859
      %1892 = vst.msk [vmem:[%s329 + $0x58] sm:$0xff] %vm427, %v1860
      %1893 = vst.msk [vmem:[%s329 + $0x60] sm:$0xff] %vm427, %v1861
      %1894 = vst.msk [vmem:[%s329 + $0x68] sm:$0xff] %vm427, %v1862
      %1895 = vst.msk [vmem:[%s329 + $0x70] sm:$0xff] %vm427, %v1863
      %1896 = vst.msk [vmem:[%s329 + $0x78] sm:$0xff] %vm427, %v1864
      %1897 = vst.msk [vmem:[%s329 + $0x80] sm:$0xff] %vm427, %v1865
      %1898 = vst.msk [vmem:[%s329 + $0x88] sm:$0xff] %vm427, %v1866
      %1899 = vst.msk [vmem:[%s329 + $0x90] sm:$0xff] %vm427, %v1867
      %1900 = vst.msk [vmem:[%s329 + $0x98] sm:$0xff] %vm427, %v1868
      %1901 = vst.msk [vmem:[%s329 + $0xa0] sm:$0xff] %vm427, %v1869
      %1902 = vst.msk [vmem:[%s329 + $0xa8] sm:$0xff] %vm427, %v1870
      %1903 = vst.msk [vmem:[%s329 + $0xb0] sm:$0xff] %vm427, %v1871
      %1904 = vst.msk [vmem:[%s329 + $0xb8] sm:$0xff] %vm427, %v1872
      %1905 = vst.msk [vmem:[%s329 + $0xc0] sm:$0xff] %vm427, %v1873
      %1906 = vst.msk [vmem:[%s329 + $0xc8] sm:$0xff] %vm427, %v1874
      %1907 = vst.msk [vmem:[%s329 + $0xd0] sm:$0xff] %vm427, %v1875
      %1908 = vst.msk [vmem:[%s329 + $0xd8] sm:$0xff] %vm427, %v1876
      %1909 = vst.msk [vmem:[%s329 + $0xe0] sm:$0xff] %vm427, %v1877
      %1910 = vst.msk [vmem:[%s329 + $0xe8] sm:$0xff] %vm427, %v1878
      %1911 = vst.msk [vmem:[%s329 + $0xf0] sm:$0xff] %vm427, %v1879
      %1912 = vst.msk [vmem:[%s329 + $0xf8] sm:$0xff] %vm427, %v1880
      %s1913 = smul.u32 32, %s19
      %p1914 = scmp.lt.s32.totalorder %s1913, 63
      %s1915 = scalar_select %p1914, %s1913, 63
      %s1916 = smul.addr %s1915, 8
      %s1917 = scalar_lea.vmem %s8, %s1916
      // Predicated region
      $region53: #{swin_block_forward.3} parent=51 // pred_check
        %p1918 = pneg %p215
      $region54: #{swin_block_forward.3} parent=51 // pred_check_branch
        %1920 = sbr.rel (%p1918) target = $region56
      $region55: #{swin_block_forward.3} parent=51 // pred_region
        %s1921 = smul.u32 32, %s19
      $region56: #{swin_block_forward.3} parent=51 // pred_fallthru
        _
    $region52: #{swin_block_forward.3} parent=5 // pred_fallthru
      _
    %p1922 = scmp.le.s32.totalorder 2, %s14
    // Predicated region
    $region57: #{swin_block_forward.3} parent=5 // pred_check
      %p1923 = pneg %p1922
    $region58: #{swin_block_forward.3} parent=5 // pred_check_branch
      %1925 = sbr.rel (%p1923) target = $region60
    $region59: #{swin_block_forward.3} parent=5 // pred_region
      %s1926 = ssub.s32 %s14, 2
      // Predicated region
      $region61: #{swin_block_forward.3} parent=59 // pred_check
        %p1927 = pneg %p221
      $region62: #{swin_block_forward.3} parent=59 // pred_check_branch
        %1929 = sbr.rel (%p1927) target = $region64
      $region63: #{swin_block_forward.3} parent=59 // pred_region
        %s1930 = smul.u32 32, %s20
        %p1931 = scmp.lt.s32.totalorder %s1930, 63
        %s1932 = scalar_select %p1931, %s1930, 63
        %s1933 = smul.addr %s1932, 8
        %s1934 = scalar_lea.vmem %s8, %s1933
      $region64: #{swin_block_forward.3} parent=59 // pred_fallthru
        _
    $region60: #{swin_block_forward.3} parent=5 // pred_fallthru
      _
  $region6: #{swin_block_forward.3} parent=0 // loop_footer
    %s18 = sadd.s32 1, %s14
  $region7: #{swin_block_forward.3} parent=0 // loop_footer_branch
    %13 = sbr.rel target = $region3
  $region8: #{swin_block_forward.3} parent=0 // loop_exit
    _

// kernel: swin_block_forward.2
$region0: #{swin_block_forward.2}
  #allocation0 [shape = 'u32[]', space=smem, size = 0x4, offset = 0x4, fixed_abs, tag = 'smem constant byte address 0x4 - core index']
  #allocation1 [shape = 'u32[72,128]{1,0:T(1,128)}', space=vmem, size = 0x9000, scoped, tag = 'internal scratch']
  %s0 = inlined_call_operand.vmem [shape: f32[8,64,32], index: 0, kind: input, shape index: {}]
  %s1 = inlined_call_operand.vmem [shape: f32[1,32], index: 1, kind: input, shape index: {}]
  %s2 = inlined_call_operand.vmem [shape: f32[1,32], index: 2, kind: input, shape index: {}]
  %s3 = inlined_call_operand.vmem [shape: f32[32,96], index: 3, kind: input, shape index: {}]
  %s4 = inlined_call_operand.vmem [shape: f32[1,96], index: 4, kind: input, shape index: {}]
  %s5 = inlined_call_operand.vmem [shape: f32[4,64,64], index: 5, kind: input, shape index: {}]
  %s6 = inlined_call_operand.vmem [shape: f32[4,64,64], index: 6, kind: input, shape index: {}]
  %s7 = inlined_call_operand.vmem [shape: f32[32,32], index: 7, kind: input, shape index: {}]
  %s8 = inlined_call_operand.vmem [shape: f32[1,32], index: 8, kind: input, shape index: {}]
  %s9 = inlined_call_operand.vmem [shape: f32[8,64,32], index: 9, kind: output, shape index: {}]
  %s10 = sld [smem:[#allocation0]]
  $region69: #{swin_block_forward.2} parent=0
    _
  %s12 = ssub.s32 1, %s10
  %s13 = scalar_select 0, %s12, %s10
  loop: start=0, step=1, limit=4
  $region2: #{swin_block_forward.2} parent=0 // loop_pre_header
    _
  $region3: #{swin_block_forward.2} parent=0 // loop_header
    %s15 = sphi 0, %s19
    %p16 = scmp.ge.s32.totalorder %s15, 4
    %s25 = sphi 0, %s27
    %s28 = sphi 0, %s25
    %s29 = sphi 0, %s28
    %s45 = sphi 0, %s29
    %s49 = sphi 0, %s49
    %s51 = sphi 0, %s49
    %s52 = sphi 0, %s51
    %s66 = sphi 0, %s52
    %s70 = sphi 0, %s70
    %s72 = sphi 0, %s70
    %s73 = sphi 0, %s72
    %s87 = sphi 0, %s73
    %s91 = sphi 0, %s91
    %s93 = sphi 0, %s91
    %s94 = sphi 0, %s93
    %s108 = sphi 0, %s94
    %s112 = sphi 0, %s112
    %s114 = sphi 0, %s112
    %s115 = sphi 0, %s114
    %s129 = sphi 0, %s115
    %s133 = sphi 0, %s133
    %s135 = sphi 0, %s133
    %s136 = sphi 0, %s135
    %s150 = sphi 0, %s136
    %s154 = sphi 0, %s154
    %s156 = sphi 0, %s154
    %s157 = sphi 0, %s156
    %s171 = sphi 0, %s157
    %s175 = sphi 0, %s175
    %s177 = sphi 0, %s175
    %s178 = sphi 0, %s177
    %s192 = sphi 0, %s178
    %s196 = sphi 0, %s196
    %s198 = sphi 0, %s196
    %s199 = sphi 0, %s198
    %s213 = sphi 0, %s199
    %s219 = sphi 0, %s221
    %s222 = sphi 0, %s219
    %s223 = sphi 0, %s222
    %s239 = sphi 0, %s223
  $region4: #{swin_block_forward.2} parent=0 // loop_header_branch
    %18 = sbr.rel (%p16) target = $region8
  $region5: #{swin_block_forward.2} parent=0 // loop_body
    %s20 = ssub.s32 %s15, 1
    %s21 = ssub.s32 %s15, 2
    %s22 = sadd.s32 %s15, 1
    %s23 = ssub.s32 %s15, %s22
    %p24 = scmp.eq.s32.totalorder %s23, 0
    %s26 = sadd.s32 %s25, 1
    %s27 = scalar_select %p24, %s25, %s26
    %p30 = pneg %p24
    %p31 = scmp.eq.s32.totalorder %s15, 1
    %p32 = por %p30, %p31
    %p33 = scmp.ne.s32.totalorder %s25, %s28
    %p34 = scmp.eq.s32.totalorder %s15, 0
    %p35 = por %p33, %p34
    %p36 = scmp.ne.s32.totalorder %s25, %s28
    %p37 = scmp.eq.s32.totalorder %s20, 1
    %p38 = por %p36, %p37
    %p39 = scmp.ne.s32.totalorder %s28, %s29
    %p40 = scmp.eq.s32.totalorder %s20, 0
    %p41 = por %p39, %p40
    %p42 = scmp.ne.s32.totalorder %s28, %s29
    %p43 = scmp.eq.s32.totalorder %s21, 1
    %p44 = por %p42, %p43
    %p46 = scmp.ne.s32.totalorder %s29, %s45
    %p47 = scmp.eq.s32.totalorder %s21, 0
    %p48 = por %p46, %p47
    %s50 = sadd.s32 %s49, 1
    %p53 = scmp.eq.s32.totalorder %s15, 1
    %p54 = scmp.ne.s32.totalorder %s49, %s51
    %p55 = scmp.eq.s32.totalorder %s15, 0
    %p56 = por %p54, %p55
    %p57 = scmp.ne.s32.totalorder %s49, %s51
    %p58 = scmp.eq.s32.totalorder %s20, 1
    %p59 = por %p57, %p58
    %p60 = scmp.ne.s32.totalorder %s51, %s52
    %p61 = scmp.eq.s32.totalorder %s20, 0
    %p62 = por %p60, %p61
    %p63 = scmp.ne.s32.totalorder %s51, %s52
    %p64 = scmp.eq.s32.totalorder %s21, 1
    %p65 = por %p63, %p64
    %p67 = scmp.ne.s32.totalorder %s52, %s66
    %p68 = scmp.eq.s32.totalorder %s21, 0
    %p69 = por %p67, %p68
    %s71 = sadd.s32 %s70, 1
    %p74 = scmp.eq.s32.totalorder %s15, 1
    %p75 = scmp.ne.s32.totalorder %s70, %s72
    %p76 = scmp.eq.s32.totalorder %s15, 0
    %p77 = por %p75, %p76
    %p78 = scmp.ne.s32.totalorder %s70, %s72
    %p79 = scmp.eq.s32.totalorder %s20, 1
    %p80 = por %p78, %p79
    %p81 = scmp.ne.s32.totalorder %s72, %s73
    %p82 = scmp.eq.s32.totalorder %s20, 0
    %p83 = por %p81, %p82
    %p84 = scmp.ne.s32.totalorder %s72, %s73
    %p85 = scmp.eq.s32.totalorder %s21, 1
    %p86 = por %p84, %p85
    %p88 = scmp.ne.s32.totalorder %s73, %s87
    %p89 = scmp.eq.s32.totalorder %s21, 0
    %p90 = por %p88, %p89
    %s92 = sadd.s32 %s91, 1
    %p95 = scmp.eq.s32.totalorder %s15, 1
    %p96 = scmp.ne.s32.totalorder %s91, %s93
    %p97 = scmp.eq.s32.totalorder %s15, 0
    %p98 = por %p96, %p97
    %p99 = scmp.ne.s32.totalorder %s91, %s93
    %p100 = scmp.eq.s32.totalorder %s20, 1
    %p101 = por %p99, %p100
    %p102 = scmp.ne.s32.totalorder %s93, %s94
    %p103 = scmp.eq.s32.totalorder %s20, 0
    %p104 = por %p102, %p103
    %p105 = scmp.ne.s32.totalorder %s93, %s94
    %p106 = scmp.eq.s32.totalorder %s21, 1
    %p107 = por %p105, %p106
    %p109 = scmp.ne.s32.totalorder %s94, %s108
    %p110 = scmp.eq.s32.totalorder %s21, 0
    %p111 = por %p109, %p110
    %s113 = sadd.s32 %s112, 1
    %p116 = scmp.eq.s32.totalorder %s15, 1
    %p117 = scmp.ne.s32.totalorder %s112, %s114
    %p118 = scmp.eq.s32.totalorder %s15, 0
    %p119 = por %p117, %p118
    %p120 = scmp.ne.s32.totalorder %s112, %s114
    %p121 = scmp.eq.s32.totalorder %s20, 1
    %p122 = por %p120, %p121
    %p123 = scmp.ne.s32.totalorder %s114, %s115
    %p124 = scmp.eq.s32.totalorder %s20, 0
    %p125 = por %p123, %p124
    %p126 = scmp.ne.s32.totalorder %s114, %s115
    %p127 = scmp.eq.s32.totalorder %s21, 1
    %p128 = por %p126, %p127
    %p130 = scmp.ne.s32.totalorder %s115, %s129
    %p131 = scmp.eq.s32.totalorder %s21, 0
    %p132 = por %p130, %p131
    %s134 = sadd.s32 %s133, 1
    %p137 = scmp.eq.s32.totalorder %s15, 1
    %p138 = scmp.ne.s32.totalorder %s133, %s135
    %p139 = scmp.eq.s32.totalorder %s15, 0
    %p140 = por %p138, %p139
    %p141 = scmp.ne.s32.totalorder %s133, %s135
    %p142 = scmp.eq.s32.totalorder %s20, 1
    %p143 = por %p141, %p142
    %p144 = scmp.ne.s32.totalorder %s135, %s136
    %p145 = scmp.eq.s32.totalorder %s20, 0
    %p146 = por %p144, %p145
    %p147 = scmp.ne.s32.totalorder %s135, %s136
    %p148 = scmp.eq.s32.totalorder %s21, 1
    %p149 = por %p147, %p148
    %p151 = scmp.ne.s32.totalorder %s136, %s150
    %p152 = scmp.eq.s32.totalorder %s21, 0
    %p153 = por %p151, %p152
    %s155 = sadd.s32 %s154, 1
    %p158 = scmp.eq.s32.totalorder %s15, 1
    %p159 = scmp.ne.s32.totalorder %s154, %s156
    %p160 = scmp.eq.s32.totalorder %s15, 0
    %p161 = por %p159, %p160
    %p162 = scmp.ne.s32.totalorder %s154, %s156
    %p163 = scmp.eq.s32.totalorder %s20, 1
    %p164 = por %p162, %p163
    %p165 = scmp.ne.s32.totalorder %s156, %s157
    %p166 = scmp.eq.s32.totalorder %s20, 0
    %p167 = por %p165, %p166
    %p168 = scmp.ne.s32.totalorder %s156, %s157
    %p169 = scmp.eq.s32.totalorder %s21, 1
    %p170 = por %p168, %p169
    %p172 = scmp.ne.s32.totalorder %s157, %s171
    %p173 = scmp.eq.s32.totalorder %s21, 0
    %p174 = por %p172, %p173
    %s176 = sadd.s32 %s175, 1
    %p179 = scmp.eq.s32.totalorder %s15, 1
    %p180 = scmp.ne.s32.totalorder %s175, %s177
    %p181 = scmp.eq.s32.totalorder %s15, 0
    %p182 = por %p180, %p181
    %p183 = scmp.ne.s32.totalorder %s175, %s177
    %p184 = scmp.eq.s32.totalorder %s20, 1
    %p185 = por %p183, %p184
    %p186 = scmp.ne.s32.totalorder %s177, %s178
    %p187 = scmp.eq.s32.totalorder %s20, 0
    %p188 = por %p186, %p187
    %p189 = scmp.ne.s32.totalorder %s177, %s178
    %p190 = scmp.eq.s32.totalorder %s21, 1
    %p191 = por %p189, %p190
    %p193 = scmp.ne.s32.totalorder %s178, %s192
    %p194 = scmp.eq.s32.totalorder %s21, 0
    %p195 = por %p193, %p194
    %s197 = sadd.s32 %s196, 1
    %p200 = scmp.eq.s32.totalorder %s15, 1
    %p201 = scmp.ne.s32.totalorder %s196, %s198
    %p202 = scmp.eq.s32.totalorder %s15, 0
    %p203 = por %p201, %p202
    %p204 = scmp.ne.s32.totalorder %s196, %s198
    %p205 = scmp.eq.s32.totalorder %s20, 1
    %p206 = por %p204, %p205
    %p207 = scmp.ne.s32.totalorder %s198, %s199
    %p208 = scmp.eq.s32.totalorder %s20, 0
    %p209 = por %p207, %p208
    %p210 = scmp.ne.s32.totalorder %s198, %s199
    %p211 = scmp.eq.s32.totalorder %s21, 1
    %p212 = por %p210, %p211
    %p214 = scmp.ne.s32.totalorder %s199, %s213
    %p215 = scmp.eq.s32.totalorder %s21, 0
    %p216 = por %p214, %p215
    %s217 = ssub.s32 %s15, %s22
    %p218 = scmp.eq.s32.totalorder %s217, 0
    %s220 = sadd.s32 %s219, 1
    %s221 = scalar_select %p218, %s219, %s220
    %p224 = pneg %p218
    %p225 = scmp.eq.s32.totalorder %s15, 1
    %p226 = por %p224, %p225
    %p227 = scmp.ne.s32.totalorder %s219, %s222
    %p228 = scmp.eq.s32.totalorder %s15, 0
    %p229 = por %p227, %p228
    %p230 = scmp.ne.s32.totalorder %s219, %s222
    %p231 = scmp.eq.s32.totalorder %s20, 1
    %p232 = por %p230, %p231
    %p233 = scmp.ne.s32.totalorder %s222, %s223
    %p234 = scmp.eq.s32.totalorder %s20, 0
    %p235 = por %p233, %p234
    %p236 = scmp.ne.s32.totalorder %s222, %s223
    %p237 = scmp.eq.s32.totalorder %s21, 1
    %p238 = por %p236, %p237
    %p240 = scmp.ne.s32.totalorder %s223, %s239
    %p241 = scmp.eq.s32.totalorder %s21, 0
    %p242 = por %p240, %p241
    %p243 = scmp.le.s32.totalorder 1, %s15
    %p244 = scmp.lt.s32.totalorder %s15, 3
    %p245 = pnand %p243, %p244
    %p246 = pneg %p245
    // Predicated region
    $region9: #{swin_block_forward.2} parent=5 // pred_check
      _
    $region10: #{swin_block_forward.2} parent=5 // pred_check_branch
      %248 = sbr.rel (%p245) target = $region12
    $region11: #{swin_block_forward.2} parent=5 // pred_region
      %s249 = ssub.s32 %s15, 1
      // Predicated region
      $region13: #{swin_block_forward.2} parent=11 // pred_check
        %p250 = pneg %p62
      $region14: #{swin_block_forward.2} parent=11 // pred_check_branch
        %252 = sbr.rel (%p250) target = $region16
      $region15: #{swin_block_forward.2} parent=11 // pred_region
        _
      $region16: #{swin_block_forward.2} parent=11 // pred_fallthru
        _
      // Predicated region
      $region17: #{swin_block_forward.2} parent=11 // pred_check
        %p253 = pneg %p83
      $region18: #{swin_block_forward.2} parent=11 // pred_check_branch
        %255 = sbr.rel (%p253) target = $region20
      $region19: #{swin_block_forward.2} parent=11 // pred_region
        _
      $region20: #{swin_block_forward.2} parent=11 // pred_fallthru
        _
      // Predicated region
      $region21: #{swin_block_forward.2} parent=11 // pred_check
        %p256 = pneg %p104
      $region22: #{swin_block_forward.2} parent=11 // pred_check_branch
        %258 = sbr.rel (%p256) target = $region24
      $region23: #{swin_block_forward.2} parent=11 // pred_region
        _
      $region24: #{swin_block_forward.2} parent=11 // pred_fallthru
        _
      // Predicated region
      $region25: #{swin_block_forward.2} parent=11 // pred_check
        %p259 = pneg %p125
      $region26: #{swin_block_forward.2} parent=11 // pred_check_branch
        %261 = sbr.rel (%p259) target = $region28
      $region27: #{swin_block_forward.2} parent=11 // pred_region
        _
      $region28: #{swin_block_forward.2} parent=11 // pred_fallthru
        _
      // Predicated region
      $region29: #{swin_block_forward.2} parent=11 // pred_check
        %p262 = pneg %p146
      $region30: #{swin_block_forward.2} parent=11 // pred_check_branch
        %264 = sbr.rel (%p262) target = $region32
      $region31: #{swin_block_forward.2} parent=11 // pred_region
        _
      $region32: #{swin_block_forward.2} parent=11 // pred_fallthru
        _
      // Predicated region
      $region33: #{swin_block_forward.2} parent=11 // pred_check
        %p265 = pneg %p167
      $region34: #{swin_block_forward.2} parent=11 // pred_check_branch
        %267 = sbr.rel (%p265) target = $region36
      $region35: #{swin_block_forward.2} parent=11 // pred_region
        _
      $region36: #{swin_block_forward.2} parent=11 // pred_fallthru
        _
      // Predicated region
      $region37: #{swin_block_forward.2} parent=11 // pred_check
        %p268 = pneg %p188
      $region38: #{swin_block_forward.2} parent=11 // pred_check_branch
        %270 = sbr.rel (%p268) target = $region40
      $region39: #{swin_block_forward.2} parent=11 // pred_region
        _
      $region40: #{swin_block_forward.2} parent=11 // pred_fallthru
        _
      // Predicated region
      $region41: #{swin_block_forward.2} parent=11 // pred_check
        %p271 = pneg %p209
      $region42: #{swin_block_forward.2} parent=11 // pred_check_branch
        %273 = sbr.rel (%p271) target = $region44
      $region43: #{swin_block_forward.2} parent=11 // pred_region
        _
      $region44: #{swin_block_forward.2} parent=11 // pred_fallthru
        _
    $region12: #{swin_block_forward.2} parent=5 // pred_fallthru
      _
    %p274 = scmp.lt.s32.totalorder %s15, 2
    // Predicated region
    $region45: #{swin_block_forward.2} parent=5 // pred_check
      %p275 = pneg %p274
    $region46: #{swin_block_forward.2} parent=5 // pred_check_branch
      %277 = sbr.rel (%p275) target = $region48
    $region47: #{swin_block_forward.2} parent=5 // pred_region
      // Predicated region
      $region49: #{swin_block_forward.2} parent=47 // pred_check
        %p278 = pneg %p35
      $region50: #{swin_block_forward.2} parent=47 // pred_check_branch
        %280 = sbr.rel (%p278) target = $region52
      $region51: #{swin_block_forward.2} parent=47 // pred_region
        %s281 = smul.u32 4, %s15
        %p282 = scmp.lt.s32.totalorder %s281, 7
        %s283 = scalar_select %p282, %s281, 7
        %s284 = smul.addr %s283, 8
        %s285 = smul.addr %s284, 8
        %s286 = scalar_lea.vmem %s0, %s285
        %s287 = smul.u32 4, %s15
      $region52: #{swin_block_forward.2} parent=47 // pred_fallthru
        _
    $region48: #{swin_block_forward.2} parent=5 // pred_fallthru
      _
    %p288 = scmp.le.s32.totalorder 1, %s15
    %p289 = scmp.lt.s32.totalorder %s15, 3
    %p290 = pnand %p288, %p289
    %p291 = pneg %p290
    // Predicated region
    $region53: #{swin_block_forward.2} parent=5 // pred_check
      _
    $region54: #{swin_block_forward.2} parent=5 // pred_check_branch
      %293 = sbr.rel (%p290) target = $region56
    $region55: #{swin_block_forward.2} parent=5 // pred_region
      %s294 = ssub.s32 %s15, 1
      %s295 = smul.u32 4, %s20
      %p296 = scmp.lt.s32.totalorder %s295, 7
      %s297 = scalar_select %p296, %s295, 7
      %s298 = smul.addr %s297, 8
      %s299 = smul.addr %s298, 8
      %s300 = scalar_lea.vmem %s0, %s299
      %p301 = pneg %p41
      %p302 = pneg %p38
      %p303 = pneg %p62
      %p304 = pneg %p59
      %p305 = pneg %p83
      %p306 = pneg %p80
      %p307 = pneg %p104
      %p308 = pneg %p101
      %p309 = pneg %p125
      %p310 = pneg %p122
      %p311 = pneg %p146
      %p312 = pneg %p143
      %p313 = pneg %p167
      %p314 = pneg %p164
      %p315 = pneg %p188
      %p316 = pneg %p185
      %p317 = pneg %p209
      %p318 = pneg %p206
      %p319 = pneg %p235
      %p320 = pneg %p232
      %s321 = smul.u32 4, %s20
      %p322 = scmp.lt.s32.totalorder %s321, 7
      %s323 = scalar_select %p322, %s321, 7
      %s324 = smul.addr %s323, 8
      %s325 = smul.addr %s324, 8
      %s326 = scalar_lea.vmem %s9, %s325
      %s327 = smul.u32 4, %s20
      %p328 = scmp.lt.s32.totalorder %s327, 7
      %s329 = scalar_select %p328, %s327, 7
      %s330 = smul.addr %s329, 8
      %s331 = smul.addr %s330, 8
      %s332 = scalar_lea.vmem %s0, %s331
      %s333 = smul.u32 4, %s20
      %s334 = smul.u32 4, %s20
      %p335 = scmp.lt.s32.totalorder %s334, 7
      %s336 = scalar_select %p335, %s334, 7
      %s337 = smul.addr %s336, 8
      %s338 = smul.addr %s337, 8
      %s339 = scalar_lea.vmem %s9, %s338
      %s340 = smul.u32 4, %s20
      %v341 = vld [vmem:[%s332] sm:$0xff]
      %v342 = vld [vmem:[%s332 + $0x8] sm:$0xff]
      %v343 = vld [vmem:[%s332 + $0x10] sm:$0xff]
      %v344 = vld [vmem:[%s332 + $0x18] sm:$0xff]
      %v345 = vld [vmem:[%s332 + $0x20] sm:$0xff]
      %v346 = vld [vmem:[%s332 + $0x28] sm:$0xff]
      %v347 = vld [vmem:[%s332 + $0x30] sm:$0xff]
      %v348 = vld [vmem:[%s332 + $0x38] sm:$0xff]
      %v349 = vld [vmem:[%s332 + $0x40] sm:$0xff]
      %v350 = vld [vmem:[%s332 + $0x48] sm:$0xff]
      %v351 = vld [vmem:[%s332 + $0x50] sm:$0xff]
      %v352 = vld [vmem:[%s332 + $0x58] sm:$0xff]
      %v353 = vld [vmem:[%s332 + $0x60] sm:$0xff]
      %v354 = vld [vmem:[%s332 + $0x68] sm:$0xff]
      %v355 = vld [vmem:[%s332 + $0x70] sm:$0xff]
      %v356 = vld [vmem:[%s332 + $0x78] sm:$0xff]
      %v357 = vld [vmem:[%s332 + $0x80] sm:$0xff]
      %v358 = vld [vmem:[%s332 + $0x88] sm:$0xff]
      %v359 = vld [vmem:[%s332 + $0x90] sm:$0xff]
      %v360 = vld [vmem:[%s332 + $0x98] sm:$0xff]
      %v361 = vld [vmem:[%s332 + $0xa0] sm:$0xff]
      %v362 = vld [vmem:[%s332 + $0xa8] sm:$0xff]
      %v363 = vld [vmem:[%s332 + $0xb0] sm:$0xff]
      %v364 = vld [vmem:[%s332 + $0xb8] sm:$0xff]
      %v365 = vld [vmem:[%s332 + $0xc0] sm:$0xff]
      %v366 = vld [vmem:[%s332 + $0xc8] sm:$0xff]
      %v367 = vld [vmem:[%s332 + $0xd0] sm:$0xff]
      %v368 = vld [vmem:[%s332 + $0xd8] sm:$0xff]
      %v369 = vld [vmem:[%s332 + $0xe0] sm:$0xff]
      %v370 = vld [vmem:[%s332 + $0xe8] sm:$0xff]
      %v371 = vld [vmem:[%s332 + $0xf0] sm:$0xff]
      %v372 = vld [vmem:[%s332 + $0xf8] sm:$0xff]
      %vm373 = vcmask 261120
      %v374 = vsel %vm373, %v341, 0.0
      %375 = vadd.xlane.f32.xlu0 %v374
      %v376 = vpop.xlane.xlu0 %375
      %v377 = vsel %vm373, %v342, 0.0
      %378 = vadd.xlane.f32.xlu0 %v377
      %v379 = vpop.xlane.xlu0 %378
      %v380 = vsel %vm373, %v343, 0.0
      %381 = vadd.xlane.f32.xlu0 %v380
      %v382 = vpop.xlane.xlu0 %381
      %v383 = vsel %vm373, %v344, 0.0
      %384 = vadd.xlane.f32.xlu0 %v383
      %v385 = vpop.xlane.xlu0 %384
      %v386 = vsel %vm373, %v345, 0.0
      %387 = vadd.xlane.f32.xlu0 %v386
      %v388 = vpop.xlane.xlu0 %387
      %v389 = vsel %vm373, %v346, 0.0
      %390 = vadd.xlane.f32.xlu0 %v389
      %v391 = vpop.xlane.xlu0 %390
      %v392 = vsel %vm373, %v347, 0.0
      %393 = vadd.xlane.f32.xlu0 %v392
      %v394 = vpop.xlane.xlu0 %393
      %v395 = vsel %vm373, %v348, 0.0
      %396 = vadd.xlane.f32.xlu0 %v395
      %v397 = vpop.xlane.xlu0 %396
      %v398 = vsel %vm373, %v349, 0.0
      %399 = vadd.xlane.f32.xlu0 %v398
      %v400 = vpop.xlane.xlu0 %399
      %v401 = vsel %vm373, %v350, 0.0
      %402 = vadd.xlane.f32.xlu0 %v401
      %v403 = vpop.xlane.xlu0 %402
      %v404 = vsel %vm373, %v351, 0.0
      %405 = vadd.xlane.f32.xlu0 %v404
      %v406 = vpop.xlane.xlu0 %405
      %v407 = vsel %vm373, %v352, 0.0
      %408 = vadd.xlane.f32.xlu0 %v407
      %v409 = vpop.xlane.xlu0 %408
      %v410 = vsel %vm373, %v353, 0.0
      %411 = vadd.xlane.f32.xlu0 %v410
      %v412 = vpop.xlane.xlu0 %411
      %v413 = vsel %vm373, %v354, 0.0
      %414 = vadd.xlane.f32.xlu0 %v413
      %v415 = vpop.xlane.xlu0 %414
      %v416 = vsel %vm373, %v355, 0.0
      %417 = vadd.xlane.f32.xlu0 %v416
      %v418 = vpop.xlane.xlu0 %417
      %v419 = vsel %vm373, %v356, 0.0
      %420 = vadd.xlane.f32.xlu0 %v419
      %v421 = vpop.xlane.xlu0 %420
      %v422 = vsel %vm373, %v357, 0.0
      %423 = vadd.xlane.f32.xlu0 %v422
      %v424 = vpop.xlane.xlu0 %423
      %v425 = vsel %vm373, %v358, 0.0
      %426 = vadd.xlane.f32.xlu0 %v425
      %v427 = vpop.xlane.xlu0 %426
      %v428 = vsel %vm373, %v359, 0.0
      %429 = vadd.xlane.f32.xlu0 %v428
      %v430 = vpop.xlane.xlu0 %429
      %v431 = vsel %vm373, %v360, 0.0
      %432 = vadd.xlane.f32.xlu0 %v431
      %v433 = vpop.xlane.xlu0 %432
      %v434 = vsel %vm373, %v361, 0.0
      %435 = vadd.xlane.f32.xlu0 %v434
      %v436 = vpop.xlane.xlu0 %435
      %v437 = vsel %vm373, %v362, 0.0
      %438 = vadd.xlane.f32.xlu0 %v437
      %v439 = vpop.xlane.xlu0 %438
      %v440 = vsel %vm373, %v363, 0.0
      %441 = vadd.xlane.f32.xlu0 %v440
      %v442 = vpop.xlane.xlu0 %441
      %v443 = vsel %vm373, %v364, 0.0
      %444 = vadd.xlane.f32.xlu0 %v443
      %v445 = vpop.xlane.xlu0 %444
      %v446 = vsel %vm373, %v365, 0.0
      %447 = vadd.xlane.f32.xlu0 %v446
      %v448 = vpop.xlane.xlu0 %447
      %v449 = vsel %vm373, %v366, 0.0
      %450 = vadd.xlane.f32.xlu0 %v449
      %v451 = vpop.xlane.xlu0 %450
      %v452 = vsel %vm373, %v367, 0.0
      %453 = vadd.xlane.f32.xlu0 %v452
      %v454 = vpop.xlane.xlu0 %453
      %v455 = vsel %vm373, %v368, 0.0
      %456 = vadd.xlane.f32.xlu0 %v455
      %v457 = vpop.xlane.xlu0 %456
      %v458 = vsel %vm373, %v369, 0.0
      %459 = vadd.xlane.f32.xlu0 %v458
      %v460 = vpop.xlane.xlu0 %459
      %v461 = vsel %vm373, %v370, 0.0
      %462 = vadd.xlane.f32.xlu0 %v461
      %v463 = vpop.xlane.xlu0 %462
      %v464 = vsel %vm373, %v371, 0.0
      %465 = vadd.xlane.f32.xlu0 %v464
      %v466 = vpop.xlane.xlu0 %465
      %v467 = vsel %vm373, %v372, 0.0
      %468 = vadd.xlane.f32.xlu0 %v467
      %v469 = vpop.xlane.xlu0 %468
      %v470 = vrcp.pop 32.0
      %v471 = vmul.f32 32.0, %v470
      %v472 = vsub.f32 1.0, %v471
      %v473 = vmul.f32 %v470, %v472
      %v474 = vadd.f32 %v470, %v473
      %vm475 = vweird.f32 %v470
      %v476 = vsel %vm475, %v470, %v474
      %v477 = vmul.f32 %v376, %v476
      %v478 = vmul.f32 %v379, %v476
      %v479 = vmul.f32 %v382, %v476
      %v480 = vmul.f32 %v385, %v476
      %v481 = vmul.f32 %v388, %v476
      %v482 = vmul.f32 %v391, %v476
      %v483 = vmul.f32 %v394, %v476
      %v484 = vmul.f32 %v397, %v476
      %v485 = vmul.f32 %v400, %v476
      %v486 = vmul.f32 %v403, %v476
      %v487 = vmul.f32 %v406, %v476
      %v488 = vmul.f32 %v409, %v476
      %v489 = vmul.f32 %v412, %v476
      %v490 = vmul.f32 %v415, %v476
      %v491 = vmul.f32 %v418, %v476
      %v492 = vmul.f32 %v421, %v476
      %v493 = vmul.f32 %v424, %v476
      %v494 = vmul.f32 %v427, %v476
      %v495 = vmul.f32 %v430, %v476
      %v496 = vmul.f32 %v433, %v476
      %v497 = vmul.f32 %v436, %v476
      %v498 = vmul.f32 %v439, %v476
      %v499 = vmul.f32 %v442, %v476
      %v500 = vmul.f32 %v445, %v476
      %v501 = vmul.f32 %v448, %v476
      %v502 = vmul.f32 %v451, %v476
      %v503 = vmul.f32 %v454, %v476
      %v504 = vmul.f32 %v457, %v476
      %v505 = vmul.f32 %v460, %v476
      %v506 = vmul.f32 %v463, %v476
      %v507 = vmul.f32 %v466, %v476
      %v508 = vmul.f32 %v469, %v476
      %v509 = vsub.f32 %v341, %v477
      %v510 = vsub.f32 %v342, %v478
      %v511 = vsub.f32 %v343, %v479
      %v512 = vsub.f32 %v344, %v480
      %v513 = vsub.f32 %v345, %v481
      %v514 = vsub.f32 %v346, %v482
      %v515 = vsub.f32 %v347, %v483
      %v516 = vsub.f32 %v348, %v484
      %v517 = vsub.f32 %v349, %v485
      %v518 = vsub.f32 %v350, %v486
      %v519 = vsub.f32 %v351, %v487
      %v520 = vsub.f32 %v352, %v488
      %v521 = vsub.f32 %v353, %v489
      %v522 = vsub.f32 %v354, %v490
      %v523 = vsub.f32 %v355, %v491
      %v524 = vsub.f32 %v356, %v492
      %v525 = vsub.f32 %v357, %v493
      %v526 = vsub.f32 %v358, %v494
      %v527 = vsub.f32 %v359, %v495
      %v528 = vsub.f32 %v360, %v496
      %v529 = vsub.f32 %v361, %v497
      %v530 = vsub.f32 %v362, %v498
      %v531 = vsub.f32 %v363, %v499
      %v532 = vsub.f32 %v364, %v500
      %v533 = vsub.f32 %v365, %v501
      %v534 = vsub.f32 %v366, %v502
      %v535 = vsub.f32 %v367, %v503
      %v536 = vsub.f32 %v368, %v504
      %v537 = vsub.f32 %v369, %v505
      %v538 = vsub.f32 %v370, %v506
      %v539 = vsub.f32 %v371, %v507
      %v540 = vsub.f32 %v372, %v508
      %v541 = vmul.f32 %v509, %v509
      %v542 = vmul.f32 %v510, %v510
      %v543 = vmul.f32 %v511, %v511
      %v544 = vmul.f32 %v512, %v512
      %v545 = vmul.f32 %v513, %v513
      %v546 = vmul.f32 %v514, %v514
      %v547 = vmul.f32 %v515, %v515
      %v548 = vmul.f32 %v516, %v516
      %v549 = vmul.f32 %v517, %v517
      %v550 = vmul.f32 %v518, %v518
      %v551 = vmul.f32 %v519, %v519
      %v552 = vmul.f32 %v520, %v520
      %v553 = vmul.f32 %v521, %v521
      %v554 = vmul.f32 %v522, %v522
      %v555 = vmul.f32 %v523, %v523
      %v556 = vmul.f32 %v524, %v524
      %v557 = vmul.f32 %v525, %v525
      %v558 = vmul.f32 %v526, %v526
      %v559 = vmul.f32 %v527, %v527
      %v560 = vmul.f32 %v528, %v528
      %v561 = vmul.f32 %v529, %v529
      %v562 = vmul.f32 %v530, %v530
      %v563 = vmul.f32 %v531, %v531
      %v564 = vmul.f32 %v532, %v532
      %v565 = vmul.f32 %v533, %v533
      %v566 = vmul.f32 %v534, %v534
      %v567 = vmul.f32 %v535, %v535
      %v568 = vmul.f32 %v536, %v536
      %v569 = vmul.f32 %v537, %v537
      %v570 = vmul.f32 %v538, %v538
      %v571 = vmul.f32 %v539, %v539
      %v572 = vmul.f32 %v540, %v540
      %v573 = vsel %vm373, %v541, 0.0
      %574 = vadd.xlane.f32.xlu0 %v573
      %v575 = vpop.xlane.xlu0 %574
      %v576 = vsel %vm373, %v542, 0.0
      %577 = vadd.xlane.f32.xlu0 %v576
      %v578 = vpop.xlane.xlu0 %577
      %v579 = vsel %vm373, %v543, 0.0
      %580 = vadd.xlane.f32.xlu0 %v579
      %v581 = vpop.xlane.xlu0 %580
      %v582 = vsel %vm373, %v544, 0.0
      %583 = vadd.xlane.f32.xlu0 %v582
      %v584 = vpop.xlane.xlu0 %583
      %v585 = vsel %vm373, %v545, 0.0
      %586 = vadd.xlane.f32.xlu0 %v585
      %v587 = vpop.xlane.xlu0 %586
      %v588 = vsel %vm373, %v546, 0.0
      %589 = vadd.xlane.f32.xlu0 %v588
      %v590 = vpop.xlane.xlu0 %589
      %v591 = vsel %vm373, %v547, 0.0
      %592 = vadd.xlane.f32.xlu0 %v591
      %v593 = vpop.xlane.xlu0 %592
      %v594 = vsel %vm373, %v548, 0.0
      %595 = vadd.xlane.f32.xlu0 %v594
      %v596 = vpop.xlane.xlu0 %595
      %v597 = vsel %vm373, %v549, 0.0
      %598 = vadd.xlane.f32.xlu0 %v597
      %v599 = vpop.xlane.xlu0 %598
      %v600 = vsel %vm373, %v550, 0.0
      %601 = vadd.xlane.f32.xlu0 %v600
      %v602 = vpop.xlane.xlu0 %601
      %v603 = vsel %vm373, %v551, 0.0
      %604 = vadd.xlane.f32.xlu0 %v603
      %v605 = vpop.xlane.xlu0 %604
      %v606 = vsel %vm373, %v552, 0.0
      %607 = vadd.xlane.f32.xlu0 %v606
      %v608 = vpop.xlane.xlu0 %607
      %v609 = vsel %vm373, %v553, 0.0
      %610 = vadd.xlane.f32.xlu0 %v609
      %v611 = vpop.xlane.xlu0 %610
      %v612 = vsel %vm373, %v554, 0.0
      %613 = vadd.xlane.f32.xlu0 %v612
      %v614 = vpop.xlane.xlu0 %613
      %v615 = vsel %vm373, %v555, 0.0
      %616 = vadd.xlane.f32.xlu0 %v615
      %v617 = vpop.xlane.xlu0 %616
      %v618 = vsel %vm373, %v556, 0.0
      %619 = vadd.xlane.f32.xlu0 %v618
      %v620 = vpop.xlane.xlu0 %619
      %v621 = vsel %vm373, %v557, 0.0
      %622 = vadd.xlane.f32.xlu0 %v621
      %v623 = vpop.xlane.xlu0 %622
      %v624 = vsel %vm373, %v558, 0.0
      %625 = vadd.xlane.f32.xlu0 %v624
      %v626 = vpop.xlane.xlu0 %625
      %v627 = vsel %vm373, %v559, 0.0
      %628 = vadd.xlane.f32.xlu0 %v627
      %v629 = vpop.xlane.xlu0 %628
      %v630 = vsel %vm373, %v560, 0.0
      %631 = vadd.xlane.f32.xlu0 %v630
      %v632 = vpop.xlane.xlu0 %631
      %v633 = vsel %vm373, %v561, 0.0
      %634 = vadd.xlane.f32.xlu0 %v633
      %v635 = vpop.xlane.xlu0 %634
      %v636 = vsel %vm373, %v562, 0.0
      %637 = vadd.xlane.f32.xlu0 %v636
      %v638 = vpop.xlane.xlu0 %637
      %v639 = vsel %vm373, %v563, 0.0
      %640 = vadd.xlane.f32.xlu0 %v639
      %v641 = vpop.xlane.xlu0 %640
      %v642 = vsel %vm373, %v564, 0.0
      %643 = vadd.xlane.f32.xlu0 %v642
      %v644 = vpop.xlane.xlu0 %643
      %v645 = vsel %vm373, %v565, 0.0
      %646 = vadd.xlane.f32.xlu0 %v645
      %v647 = vpop.xlane.xlu0 %646
      %v648 = vsel %vm373, %v566, 0.0
      %649 = vadd.xlane.f32.xlu0 %v648
      %v650 = vpop.xlane.xlu0 %649
      %v651 = vsel %vm373, %v567, 0.0
      %652 = vadd.xlane.f32.xlu0 %v651
      %v653 = vpop.xlane.xlu0 %652
      %v654 = vsel %vm373, %v568, 0.0
      %655 = vadd.xlane.f32.xlu0 %v654
      %v656 = vpop.xlane.xlu0 %655
      %v657 = vsel %vm373, %v569, 0.0
      %658 = vadd.xlane.f32.xlu0 %v657
      %v659 = vpop.xlane.xlu0 %658
      %v660 = vsel %vm373, %v570, 0.0
      %661 = vadd.xlane.f32.xlu0 %v660
      %v662 = vpop.xlane.xlu0 %661
      %v663 = vsel %vm373, %v571, 0.0
      %664 = vadd.xlane.f32.xlu0 %v663
      %v665 = vpop.xlane.xlu0 %664
      %v666 = vsel %vm373, %v572, 0.0
      %667 = vadd.xlane.f32.xlu0 %v666
      %v668 = vpop.xlane.xlu0 %667
      %v669 = vmul.f32 %v575, %v476
      %v670 = vmul.f32 %v578, %v476
      %v671 = vmul.f32 %v581, %v476
      %v672 = vmul.f32 %v584, %v476
      %v673 = vmul.f32 %v587, %v476
      %v674 = vmul.f32 %v590, %v476
      %v675 = vmul.f32 %v593, %v476
      %v676 = vmul.f32 %v596, %v476
      %v677 = vmul.f32 %v599, %v476
      %v678 = vmul.f32 %v602, %v476
      %v679 = vmul.f32 %v605, %v476
      %v680 = vmul.f32 %v608, %v476
      %v681 = vmul.f32 %v611, %v476
      %v682 = vmul.f32 %v614, %v476
      %v683 = vmul.f32 %v617, %v476
      %v684 = vmul.f32 %v620, %v476
      %v685 = vmul.f32 %v623, %v476
      %v686 = vmul.f32 %v626, %v476
      %v687 = vmul.f32 %v629, %v476
      %v688 = vmul.f32 %v632, %v476
      %v689 = vmul.f32 %v635, %v476
      %v690 = vmul.f32 %v638, %v476
      %v691 = vmul.f32 %v641, %v476
      %v692 = vmul.f32 %v644, %v476
      %v693 = vmul.f32 %v647, %v476
      %v694 = vmul.f32 %v650, %v476
      %v695 = vmul.f32 %v653, %v476
      %v696 = vmul.f32 %v656, %v476
      %v697 = vmul.f32 %v659, %v476
      %v698 = vmul.f32 %v662, %v476
      %v699 = vmul.f32 %v665, %v476
      %v700 = vmul.f32 %v668, %v476
      %v701 = vadd.f32 %v669, 1e-05
      %v702 = vadd.f32 %v670, 1e-05
      %v703 = vadd.f32 %v671, 1e-05
      %v704 = vadd.f32 %v672, 1e-05
      %v705 = vadd.f32 %v673, 1e-05
      %v706 = vadd.f32 %v674, 1e-05
      %v707 = vadd.f32 %v675, 1e-05
      %v708 = vadd.f32 %v676, 1e-05
      %v709 = vadd.f32 %v677, 1e-05
      %v710 = vadd.f32 %v678, 1e-05
      %v711 = vadd.f32 %v679, 1e-05
      %v712 = vadd.f32 %v680, 1e-05
      %v713 = vadd.f32 %v681, 1e-05
      %v714 = vadd.f32 %v682, 1e-05
      %v715 = vadd.f32 %v683, 1e-05
      %v716 = vadd.f32 %v684, 1e-05
      %v717 = vadd.f32 %v685, 1e-05
      %v718 = vadd.f32 %v686, 1e-05
      %v719 = vadd.f32 %v687, 1e-05
      %v720 = vadd.f32 %v688, 1e-05
      %v721 = vadd.f32 %v689, 1e-05
      %v722 = vadd.f32 %v690, 1e-05
      %v723 = vadd.f32 %v691, 1e-05
      %v724 = vadd.f32 %v692, 1e-05
      %v725 = vadd.f32 %v693, 1e-05
      %v726 = vadd.f32 %v694, 1e-05
      %v727 = vadd.f32 %v695, 1e-05
      %v728 = vadd.f32 %v696, 1e-05
      %v729 = vadd.f32 %v697, 1e-05
      %v730 = vadd.f32 %v698, 1e-05
      %v731 = vadd.f32 %v699, 1e-05
      %v732 = vadd.f32 %v700, 1e-05
      %v733 = vrsqrt.pop %v701
      %v734 = vmul.f32 %v733, %v701
      %v735 = vmul.f32 %v734, %v733
      %v736 = vmul.f32 0.5, %v735
      %v737 = vsub.f32 1.5, %v736
      %v738 = vmul.f32 %v733, %v737
      %vm739 = vweird.f32 %v701
      %vm740 = vweird.f32 %v733
      %vm741 = vmor %vm739, %vm740
      %v742 = vsel %vm741, %v733, %v738
      %v743 = vrsqrt.pop %v702
      %v744 = vmul.f32 %v743, %v702
      %v745 = vmul.f32 %v744, %v743
      %v746 = vmul.f32 0.5, %v745
      %v747 = vsub.f32 1.5, %v746
      %v748 = vmul.f32 %v743, %v747
      %vm749 = vweird.f32 %v702
      %vm750 = vweird.f32 %v743
      %vm751 = vmor %vm749, %vm750
      %v752 = vsel %vm751, %v743, %v748
      %v753 = vrsqrt.pop %v703
      %v754 = vmul.f32 %v753, %v703
      %v755 = vmul.f32 %v754, %v753
      %v756 = vmul.f32 0.5, %v755
      %v757 = vsub.f32 1.5, %v756
      %v758 = vmul.f32 %v753, %v757
      %vm759 = vweird.f32 %v703
      %vm760 = vweird.f32 %v753
      %vm761 = vmor %vm759, %vm760
      %v762 = vsel %vm761, %v753, %v758
      %v763 = vrsqrt.pop %v704
      %v764 = vmul.f32 %v763, %v704
      %v765 = vmul.f32 %v764, %v763
      %v766 = vmul.f32 0.5, %v765
      %v767 = vsub.f32 1.5, %v766
      %v768 = vmul.f32 %v763, %v767
      %vm769 = vweird.f32 %v704
      %vm770 = vweird.f32 %v763
      %vm771 = vmor %vm769, %vm770
      %v772 = vsel %vm771, %v763, %v768
      %v773 = vrsqrt.pop %v705
      %v774 = vmul.f32 %v773, %v705
      %v775 = vmul.f32 %v774, %v773
      %v776 = vmul.f32 0.5, %v775
      %v777 = vsub.f32 1.5, %v776
      %v778 = vmul.f32 %v773, %v777
      %vm779 = vweird.f32 %v705
      %vm780 = vweird.f32 %v773
      %vm781 = vmor %vm779, %vm780
      %v782 = vsel %vm781, %v773, %v778
      %v783 = vrsqrt.pop %v706
      %v784 = vmul.f32 %v783, %v706
      %v785 = vmul.f32 %v784, %v783
      %v786 = vmul.f32 0.5, %v785
      %v787 = vsub.f32 1.5, %v786
      %v788 = vmul.f32 %v783, %v787
      %vm789 = vweird.f32 %v706
      %vm790 = vweird.f32 %v783
      %vm791 = vmor %vm789, %vm790
      %v792 = vsel %vm791, %v783, %v788
      %v793 = vrsqrt.pop %v707
      %v794 = vmul.f32 %v793, %v707
      %v795 = vmul.f32 %v794, %v793
      %v796 = vmul.f32 0.5, %v795
      %v797 = vsub.f32 1.5, %v796
      %v798 = vmul.f32 %v793, %v797
      %vm799 = vweird.f32 %v707
      %vm800 = vweird.f32 %v793
      %vm801 = vmor %vm799, %vm800
      %v802 = vsel %vm801, %v793, %v798
      %v803 = vrsqrt.pop %v708
      %v804 = vmul.f32 %v803, %v708
      %v805 = vmul.f32 %v804, %v803
      %v806 = vmul.f32 0.5, %v805
      %v807 = vsub.f32 1.5, %v806
      %v808 = vmul.f32 %v803, %v807
      %vm809 = vweird.f32 %v708
      %vm810 = vweird.f32 %v803
      %vm811 = vmor %vm809, %vm810
      %v812 = vsel %vm811, %v803, %v808
      %v813 = vrsqrt.pop %v709
      %v814 = vmul.f32 %v813, %v709
      %v815 = vmul.f32 %v814, %v813
      %v816 = vmul.f32 0.5, %v815
      %v817 = vsub.f32 1.5, %v816
      %v818 = vmul.f32 %v813, %v817
      %vm819 = vweird.f32 %v709
      %vm820 = vweird.f32 %v813
      %vm821 = vmor %vm819, %vm820
      %v822 = vsel %vm821, %v813, %v818
      %v823 = vrsqrt.pop %v710
      %v824 = vmul.f32 %v823, %v710
      %v825 = vmul.f32 %v824, %v823
      %v826 = vmul.f32 0.5, %v825
      %v827 = vsub.f32 1.5, %v826
      %v828 = vmul.f32 %v823, %v827
      %vm829 = vweird.f32 %v710
      %vm830 = vweird.f32 %v823
      %vm831 = vmor %vm829, %vm830
      %v832 = vsel %vm831, %v823, %v828
      %v833 = vrsqrt.pop %v711
      %v834 = vmul.f32 %v833, %v711
      %v835 = vmul.f32 %v834, %v833
      %v836 = vmul.f32 0.5, %v835
      %v837 = vsub.f32 1.5, %v836
      %v838 = vmul.f32 %v833, %v837
      %vm839 = vweird.f32 %v711
      %vm840 = vweird.f32 %v833
      %vm841 = vmor %vm839, %vm840
      %v842 = vsel %vm841, %v833, %v838
      %v843 = vrsqrt.pop %v712
      %v844 = vmul.f32 %v843, %v712
      %v845 = vmul.f32 %v844, %v843
      %v846 = vmul.f32 0.5, %v845
      %v847 = vsub.f32 1.5, %v846
      %v848 = vmul.f32 %v843, %v847
      %vm849 = vweird.f32 %v712
      %vm850 = vweird.f32 %v843
      %vm851 = vmor %vm849, %vm850
      %v852 = vsel %vm851, %v843, %v848
      %v853 = vrsqrt.pop %v713
      %v854 = vmul.f32 %v853, %v713
      %v855 = vmul.f32 %v854, %v853
      %v856 = vmul.f32 0.5, %v855
      %v857 = vsub.f32 1.5, %v856
      %v858 = vmul.f32 %v853, %v857
      %vm859 = vweird.f32 %v713
      %vm860 = vweird.f32 %v853
      %vm861 = vmor %vm859, %vm860
      %v862 = vsel %vm861, %v853, %v858
      %v863 = vrsqrt.pop %v714
      %v864 = vmul.f32 %v863, %v714
      %v865 = vmul.f32 %v864, %v863
      %v866 = vmul.f32 0.5, %v865
      %v867 = vsub.f32 1.5, %v866
      %v868 = vmul.f32 %v863, %v867
      %vm869 = vweird.f32 %v714
      %vm870 = vweird.f32 %v863
      %vm871 = vmor %vm869, %vm870
      %v872 = vsel %vm871, %v863, %v868
      %v873 = vrsqrt.pop %v715
      %v874 = vmul.f32 %v873, %v715
      %v875 = vmul.f32 %v874, %v873
      %v876 = vmul.f32 0.5, %v875
      %v877 = vsub.f32 1.5, %v876
      %v878 = vmul.f32 %v873, %v877
      %vm879 = vweird.f32 %v715
      %vm880 = vweird.f32 %v873
      %vm881 = vmor %vm879, %vm880
      %v882 = vsel %vm881, %v873, %v878
      %v883 = vrsqrt.pop %v716
      %v884 = vmul.f32 %v883, %v716
      %v885 = vmul.f32 %v884, %v883
      %v886 = vmul.f32 0.5, %v885
      %v887 = vsub.f32 1.5, %v886
      %v888 = vmul.f32 %v883, %v887
      %vm889 = vweird.f32 %v716
      %vm890 = vweird.f32 %v883
      %vm891 = vmor %vm889, %vm890
      %v892 = vsel %vm891, %v883, %v888
      %v893 = vrsqrt.pop %v717
      %v894 = vmul.f32 %v893, %v717
      %v895 = vmul.f32 %v894, %v893
      %v896 = vmul.f32 0.5, %v895
      %v897 = vsub.f32 1.5, %v896
      %v898 = vmul.f32 %v893, %v897
      %vm899 = vweird.f32 %v717
      %vm900 = vweird.f32 %v893
      %vm901 = vmor %vm899, %vm900
      %v902 = vsel %vm901, %v893, %v898
      %v903 = vrsqrt.pop %v718
      %v904 = vmul.f32 %v903, %v718
      %v905 = vmul.f32 %v904, %v903
      %v906 = vmul.f32 0.5, %v905
      %v907 = vsub.f32 1.5, %v906
      %v908 = vmul.f32 %v903, %v907
      %vm909 = vweird.f32 %v718
      %vm910 = vweird.f32 %v903
      %vm911 = vmor %vm909, %vm910
      %v912 = vsel %vm911, %v903, %v908
      %v913 = vrsqrt.pop %v719
      %v914 = vmul.f32 %v913, %v719
      %v915 = vmul.f32 %v914, %v913
      %v916 = vmul.f32 0.5, %v915
      %v917 = vsub.f32 1.5, %v916
      %v918 = vmul.f32 %v913, %v917
      %vm919 = vweird.f32 %v719
      %vm920 = vweird.f32 %v913
      %vm921 = vmor %vm919, %vm920
      %v922 = vsel %vm921, %v913, %v918
      %v923 = vrsqrt.pop %v720
      %v924 = vmul.f32 %v923, %v720
      %v925 = vmul.f32 %v924, %v923
      %v926 = vmul.f32 0.5, %v925
      %v927 = vsub.f32 1.5, %v926
      %v928 = vmul.f32 %v923, %v927
      %vm929 = vweird.f32 %v720
      %vm930 = vweird.f32 %v923
      %vm931 = vmor %vm929, %vm930
      %v932 = vsel %vm931, %v923, %v928
      %v933 = vrsqrt.pop %v721
      %v934 = vmul.f32 %v933, %v721
      %v935 = vmul.f32 %v934, %v933
      %v936 = vmul.f32 0.5, %v935
      %v937 = vsub.f32 1.5, %v936
      %v938 = vmul.f32 %v933, %v937
      %vm939 = vweird.f32 %v721
      %vm940 = vweird.f32 %v933
      %vm941 = vmor %vm939, %vm940
      %v942 = vsel %vm941, %v933, %v938
      %v943 = vrsqrt.pop %v722
      %v944 = vmul.f32 %v943, %v722
      %v945 = vmul.f32 %v944, %v943
      %v946 = vmul.f32 0.5, %v945
      %v947 = vsub.f32 1.5, %v946
      %v948 = vmul.f32 %v943, %v947
      %vm949 = vweird.f32 %v722
      %vm950 = vweird.f32 %v943
      %vm951 = vmor %vm949, %vm950
      %v952 = vsel %vm951, %v943, %v948
      %v953 = vrsqrt.pop %v723
      %v954 = vmul.f32 %v953, %v723
      %v955 = vmul.f32 %v954, %v953
      %v956 = vmul.f32 0.5, %v955
      %v957 = vsub.f32 1.5, %v956
      %v958 = vmul.f32 %v953, %v957
      %vm959 = vweird.f32 %v723
      %vm960 = vweird.f32 %v953
      %vm961 = vmor %vm959, %vm960
      %v962 = vsel %vm961, %v953, %v958
      %v963 = vrsqrt.pop %v724
      %v964 = vmul.f32 %v963, %v724
      %v965 = vmul.f32 %v964, %v963
      %v966 = vmul.f32 0.5, %v965
      %v967 = vsub.f32 1.5, %v966
      %v968 = vmul.f32 %v963, %v967
      %vm969 = vweird.f32 %v724
      %vm970 = vweird.f32 %v963
      %vm971 = vmor %vm969, %vm970
      %v972 = vsel %vm971, %v963, %v968
      %v973 = vrsqrt.pop %v725
      %v974 = vmul.f32 %v973, %v725
      %v975 = vmul.f32 %v974, %v973
      %v976 = vmul.f32 0.5, %v975
      %v977 = vsub.f32 1.5, %v976
      %v978 = vmul.f32 %v973, %v977
      %vm979 = vweird.f32 %v725
      %vm980 = vweird.f32 %v973
      %vm981 = vmor %vm979, %vm980
      %v982 = vsel %vm981, %v973, %v978
      %v983 = vrsqrt.pop %v726
      %v984 = vmul.f32 %v983, %v726
      %v985 = vmul.f32 %v984, %v983
      %v986 = vmul.f32 0.5, %v985
      %v987 = vsub.f32 1.5, %v986
      %v988 = vmul.f32 %v983, %v987
      %vm989 = vweird.f32 %v726
      %vm990 = vweird.f32 %v983
      %vm991 = vmor %vm989, %vm990
      %v992 = vsel %vm991, %v983, %v988
      %v993 = vrsqrt.pop %v727
      %v994 = vmul.f32 %v993, %v727
      %v995 = vmul.f32 %v994, %v993
      %v996 = vmul.f32 0.5, %v995
      %v997 = vsub.f32 1.5, %v996
      %v998 = vmul.f32 %v993, %v997
      %vm999 = vweird.f32 %v727
      %vm1000 = vweird.f32 %v993
      %vm1001 = vmor %vm999, %vm1000
      %v1002 = vsel %vm1001, %v993, %v998
      %v1003 = vrsqrt.pop %v728
      %v1004 = vmul.f32 %v1003, %v728
      %v1005 = vmul.f32 %v1004, %v1003
      %v1006 = vmul.f32 0.5, %v1005
      %v1007 = vsub.f32 1.5, %v1006
      %v1008 = vmul.f32 %v1003, %v1007
      %vm1009 = vweird.f32 %v728
      %vm1010 = vweird.f32 %v1003
      %vm1011 = vmor %vm1009, %vm1010
      %v1012 = vsel %vm1011, %v1003, %v1008
      %v1013 = vrsqrt.pop %v729
      %v1014 = vmul.f32 %v1013, %v729
      %v1015 = vmul.f32 %v1014, %v1013
      %v1016 = vmul.f32 0.5, %v1015
      %v1017 = vsub.f32 1.5, %v1016
      %v1018 = vmul.f32 %v1013, %v1017
      %vm1019 = vweird.f32 %v729
      %vm1020 = vweird.f32 %v1013
      %vm1021 = vmor %vm1019, %vm1020
      %v1022 = vsel %vm1021, %v1013, %v1018
      %v1023 = vrsqrt.pop %v730
      %v1024 = vmul.f32 %v1023, %v730
      %v1025 = vmul.f32 %v1024, %v1023
      %v1026 = vmul.f32 0.5, %v1025
      %v1027 = vsub.f32 1.5, %v1026
      %v1028 = vmul.f32 %v1023, %v1027
      %vm1029 = vweird.f32 %v730
      %vm1030 = vweird.f32 %v1023
      %vm1031 = vmor %vm1029, %vm1030
      %v1032 = vsel %vm1031, %v1023, %v1028
      %v1033 = vrsqrt.pop %v731
      %v1034 = vmul.f32 %v1033, %v731
      %v1035 = vmul.f32 %v1034, %v1033
      %v1036 = vmul.f32 0.5, %v1035
      %v1037 = vsub.f32 1.5, %v1036
      %v1038 = vmul.f32 %v1033, %v1037
      %vm1039 = vweird.f32 %v731
      %vm1040 = vweird.f32 %v1033
      %vm1041 = vmor %vm1039, %vm1040
      %v1042 = vsel %vm1041, %v1033, %v1038
      %v1043 = vrsqrt.pop %v732
      %v1044 = vmul.f32 %v1043, %v732
      %v1045 = vmul.f32 %v1044, %v1043
      %v1046 = vmul.f32 0.5, %v1045
      %v1047 = vsub.f32 1.5, %v1046
      %v1048 = vmul.f32 %v1043, %v1047
      %vm1049 = vweird.f32 %v732
      %vm1050 = vweird.f32 %v1043
      %vm1051 = vmor %vm1049, %vm1050
      %v1052 = vsel %vm1051, %v1043, %v1048
      %v1053 = vmul.f32 %v509, %v742
      %v1054 = vmul.f32 %v510, %v752
      %v1055 = vmul.f32 %v511, %v762
      %v1056 = vmul.f32 %v512, %v772
      %v1057 = vmul.f32 %v513, %v782
      %v1058 = vmul.f32 %v514, %v792
      %v1059 = vmul.f32 %v515, %v802
      %v1060 = vmul.f32 %v516, %v812
      %v1061 = vmul.f32 %v517, %v822
      %v1062 = vmul.f32 %v518, %v832
      %v1063 = vmul.f32 %v519, %v842
      %v1064 = vmul.f32 %v520, %v852
      %v1065 = vmul.f32 %v521, %v862
      %v1066 = vmul.f32 %v522, %v872
      %v1067 = vmul.f32 %v523, %v882
      %v1068 = vmul.f32 %v524, %v892
      %v1069 = vmul.f32 %v525, %v902
      %v1070 = vmul.f32 %v526, %v912
      %v1071 = vmul.f32 %v527, %v922
      %v1072 = vmul.f32 %v528, %v932
      %v1073 = vmul.f32 %v529, %v942
      %v1074 = vmul.f32 %v530, %v952
      %v1075 = vmul.f32 %v531, %v962
      %v1076 = vmul.f32 %v532, %v972
      %v1077 = vmul.f32 %v533, %v982
      %v1078 = vmul.f32 %v534, %v992
      %v1079 = vmul.f32 %v535, %v1002
      %v1080 = vmul.f32 %v536, %v1012
      %v1081 = vmul.f32 %v537, %v1022
      %v1082 = vmul.f32 %v538, %v1032
      %v1083 = vmul.f32 %v539, %v1042
      %v1084 = vmul.f32 %v540, %v1052
      %v1085 = vld [vmem:[%s1] sm:$0x1]
      %v1087 = vperm.slane %v1085, 0
      %v1089 = vmul.f32 %v1053, %v1087
      %v1090 = vmul.f32 %v1054, %v1087
      %v1091 = vmul.f32 %v1055, %v1087
      %v1092 = vmul.f32 %v1056, %v1087
      %v1093 = vmul.f32 %v1057, %v1087
      %v1094 = vmul.f32 %v1058, %v1087
      %v1095 = vmul.f32 %v1059, %v1087
      %v1096 = vmul.f32 %v1060, %v1087
      %v1097 = vmul.f32 %v1061, %v1087
      %v1098 = vmul.f32 %v1062, %v1087
      %v1099 = vmul.f32 %v1063, %v1087
      %v1100 = vmul.f32 %v1064, %v1087
      %v1101 = vmul.f32 %v1065, %v1087
      %v1102 = vmul.f32 %v1066, %v1087
      %v1103 = vmul.f32 %v1067, %v1087
      %v1104 = vmul.f32 %v1068, %v1087
      %v1105 = vmul.f32 %v1069, %v1087
      %v1106 = vmul.f32 %v1070, %v1087
      %v1107 = vmul.f32 %v1071, %v1087
      %v1108 = vmul.f32 %v1072, %v1087
      %v1109 = vmul.f32 %v1073, %v1087
      %v1110 = vmul.f32 %v1074, %v1087
      %v1111 = vmul.f32 %v1075, %v1087
      %v1112 = vmul.f32 %v1076, %v1087
      %v1113 = vmul.f32 %v1077, %v1087
      %v1114 = vmul.f32 %v1078, %v1087
      %v1115 = vmul.f32 %v1079, %v1087
      %v1116 = vmul.f32 %v1080, %v1087
      %v1117 = vmul.f32 %v1081, %v1087
      %v1118 = vmul.f32 %v1082, %v1087
      %v1119 = vmul.f32 %v1083, %v1087
      %v1120 = vmul.f32 %v1084, %v1087
      %v1121 = vld [vmem:[%s2] sm:$0x1]
      %v1123 = vperm.slane %v1121, 0
      %v1125 = vadd.f32 %v1089, %v1123
      %v1126 = vadd.f32 %v1090, %v1123
      %v1127 = vadd.f32 %v1091, %v1123
      %v1128 = vadd.f32 %v1092, %v1123
      %v1129 = vadd.f32 %v1093, %v1123
      %v1130 = vadd.f32 %v1094, %v1123
      %v1131 = vadd.f32 %v1095, %v1123
      %v1132 = vadd.f32 %v1096, %v1123
      %v1133 = vadd.f32 %v1097, %v1123
      %v1134 = vadd.f32 %v1098, %v1123
      %v1135 = vadd.f32 %v1099, %v1123
      %v1136 = vadd.f32 %v1100, %v1123
      %v1137 = vadd.f32 %v1101, %v1123
      %v1138 = vadd.f32 %v1102, %v1123
      %v1139 = vadd.f32 %v1103, %v1123
      %v1140 = vadd.f32 %v1104, %v1123
      %v1141 = vadd.f32 %v1105, %v1123
      %v1142 = vadd.f32 %v1106, %v1123
      %v1143 = vadd.f32 %v1107, %v1123
      %v1144 = vadd.f32 %v1108, %v1123
      %v1145 = vadd.f32 %v1109, %v1123
      %v1146 = vadd.f32 %v1110, %v1123
      %v1147 = vadd.f32 %v1111, %v1123
      %v1148 = vadd.f32 %v1112, %v1123
      %v1149 = vadd.f32 %v1113, %v1123
      %v1150 = vadd.f32 %v1114, %v1123
      %v1151 = vadd.f32 %v1115, %v1123
      %v1152 = vadd.f32 %v1116, %v1123
      %v1153 = vadd.f32 %v1117, %v1123
      %v1154 = vadd.f32 %v1118, %v1123
      %v1155 = vadd.f32 %v1119, %v1123
      %v1156 = vadd.f32 %v1120, %v1123
      %v1157 = vld [vmem:[%s3] sm:$0xff]
      %v1158 = vld [vmem:[%s3 + $0x8] sm:$0xff]
      %v1159 = vld [vmem:[%s3 + $0x10] sm:$0xff]
      %v1160 = vld [vmem:[%s3 + $0x18] sm:$0xff]
      %v1161 = vld [vmem:[%s4] sm:$0x1]
      %v1163 = vperm.slane %v1161, 0
      %v1166 = vsel %vm373, %v1125, 0
      %v1169 = vsel %vm373, %v1126, 0
      %v1172 = vsel %vm373, %v1127, 0
      %v1175 = vsel %vm373, %v1128, 0
      %v1178 = vsel %vm373, %v1129, 0
      %v1181 = vsel %vm373, %v1130, 0
      %v1184 = vsel %vm373, %v1131, 0
      %v1187 = vsel %vm373, %v1132, 0
      %v1190 = vsel %vm373, %v1133, 0
      %v1193 = vsel %vm373, %v1134, 0
      %v1196 = vsel %vm373, %v1135, 0
      %v1199 = vsel %vm373, %v1136, 0
      %v1202 = vsel %vm373, %v1137, 0
      %v1205 = vsel %vm373, %v1138, 0
      %v1208 = vsel %vm373, %v1139, 0
      %v1211 = vsel %vm373, %v1140, 0
      %v1214 = vsel %vm373, %v1141, 0
      %v1217 = vsel %vm373, %v1142, 0
      %v1220 = vsel %vm373, %v1143, 0
      %v1223 = vsel %vm373, %v1144, 0
      %v1226 = vsel %vm373, %v1145, 0
      %v1229 = vsel %vm373, %v1146, 0
      %v1232 = vsel %vm373, %v1147, 0
      %v1235 = vsel %vm373, %v1148, 0
      %v1238 = vsel %vm373, %v1149, 0
      %v1241 = vsel %vm373, %v1150, 0
      %v1244 = vsel %vm373, %v1151, 0
      %v1247 = vsel %vm373, %v1152, 0
      %v1250 = vsel %vm373, %v1153, 0
      %v1253 = vsel %vm373, %v1154, 0
      %v1256 = vsel %vm373, %v1155, 0
      %v1259 = vsel %vm373, %v1156, 0
      %1261 = vmatpush.msra.mxu0 0.0
      %1262 = vmatpush.msra.mxu0 0.0
      %1263 = vmatpush.msra.mxu0 0.0
      %1264 = vmatpush.msra.mxu0 0.0
      %1265 = vmatpush.msra.mxu0 0.0
      %1266 = vmatpush.msra.mxu0 0.0
      %1267 = vmatpush.msra.mxu0 0.0
      %1268 = vmatpush.msra.mxu0 0.0
      %1269 = vmatpush.msra.mxu0 0.0
      %1270 = vmatpush.msra.mxu0 0.0
      %1271 = vmatpush.msra.mxu0 0.0
      %1272 = vmatpush.msra.mxu0 0.0
      %1273 = vmatpush.msra.mxu0 %v1160
      %1274 = vmatpush.msra.mxu0 %v1159
      %1275 = vmatpush.msra.mxu0 %v1158
      %1276 = vmatpush.msra.mxu0 %v1157
      %1277 = vmatmul.f32.gmra.mxu0 %v1166
      %v1278 = vpop.f32.mrf.mxu0
      %v1279 = vadd.f32 %v1163, %v1278
      %1280 = vmatmul.f32.gmra.mxu0 %v1169
      %v1281 = vpop.f32.mrf.mxu0
      %v1282 = vadd.f32 %v1163, %v1281
      %1283 = vmatmul.f32.gmra.mxu0 %v1172
      %v1284 = vpop.f32.mrf.mxu0
      %v1285 = vadd.f32 %v1163, %v1284
      %1286 = vmatmul.f32.gmra.mxu0 %v1175
      %v1287 = vpop.f32.mrf.mxu0
      %v1288 = vadd.f32 %v1163, %v1287
      %1289 = vmatmul.f32.gmra.mxu0 %v1178
      %v1290 = vpop.f32.mrf.mxu0
      %v1291 = vadd.f32 %v1163, %v1290
      %1292 = vmatmul.f32.gmra.mxu0 %v1181
      %v1293 = vpop.f32.mrf.mxu0
      %v1294 = vadd.f32 %v1163, %v1293
      %1295 = vmatmul.f32.gmra.mxu0 %v1184
      %v1296 = vpop.f32.mrf.mxu0
      %v1297 = vadd.f32 %v1163, %v1296
      %1298 = vmatmul.f32.gmra.mxu0 %v1187
      %v1299 = vpop.f32.mrf.mxu0
      %v1300 = vadd.f32 %v1163, %v1299
      %1301 = vmatmul.f32.gmra.mxu0 %v1190
      %v1302 = vpop.f32.mrf.mxu0
      %v1303 = vadd.f32 %v1163, %v1302
      %1304 = vmatmul.f32.gmra.mxu0 %v1193
      %v1305 = vpop.f32.mrf.mxu0
      %v1306 = vadd.f32 %v1163, %v1305
      %1307 = vmatmul.f32.gmra.mxu0 %v1196
      %v1308 = vpop.f32.mrf.mxu0
      %v1309 = vadd.f32 %v1163, %v1308
      %1310 = vmatmul.f32.gmra.mxu0 %v1199
      %v1311 = vpop.f32.mrf.mxu0
      %v1312 = vadd.f32 %v1163, %v1311
      %1313 = vmatmul.f32.gmra.mxu0 %v1202
      %v1314 = vpop.f32.mrf.mxu0
      %v1315 = vadd.f32 %v1163, %v1314
      %1316 = vmatmul.f32.gmra.mxu0 %v1205
      %v1317 = vpop.f32.mrf.mxu0
      %v1318 = vadd.f32 %v1163, %v1317
      %1319 = vmatmul.f32.gmra.mxu0 %v1208
      %v1320 = vpop.f32.mrf.mxu0
      %v1321 = vadd.f32 %v1163, %v1320
      %1322 = vmatmul.f32.gmra.mxu0 %v1211
      %v1323 = vpop.f32.mrf.mxu0
      %v1324 = vadd.f32 %v1163, %v1323
      %1325 = vmatmul.f32.gmra.mxu0 %v1214
      %v1326 = vpop.f32.mrf.mxu0
      %v1327 = vadd.f32 %v1163, %v1326
      %1328 = vmatmul.f32.gmra.mxu0 %v1217
      %v1329 = vpop.f32.mrf.mxu0
      %v1330 = vadd.f32 %v1163, %v1329
      %1331 = vmatmul.f32.gmra.mxu0 %v1220
      %v1332 = vpop.f32.mrf.mxu0
      %v1333 = vadd.f32 %v1163, %v1332
      %1334 = vmatmul.f32.gmra.mxu0 %v1223
      %v1335 = vpop.f32.mrf.mxu0
      %v1336 = vadd.f32 %v1163, %v1335
      %1337 = vmatmul.f32.gmra.mxu0 %v1226
      %v1338 = vpop.f32.mrf.mxu0
      %v1339 = vadd.f32 %v1163, %v1338
      %1340 = vmatmul.f32.gmra.mxu0 %v1229
      %v1341 = vpop.f32.mrf.mxu0
      %v1342 = vadd.f32 %v1163, %v1341
      %1343 = vmatmul.f32.gmra.mxu0 %v1232
      %v1344 = vpop.f32.mrf.mxu0
      %v1345 = vadd.f32 %v1163, %v1344
      %1346 = vmatmul.f32.gmra.mxu0 %v1235
      %v1347 = vpop.f32.mrf.mxu0
      %v1348 = vadd.f32 %v1163, %v1347
      %1349 = vmatmul.f32.gmra.mxu0 %v1238
      %v1350 = vpop.f32.mrf.mxu0
      %v1351 = vadd.f32 %v1163, %v1350
      %1352 = vmatmul.f32.gmra.mxu0 %v1241
      %v1353 = vpop.f32.mrf.mxu0
      %v1354 = vadd.f32 %v1163, %v1353
      %1355 = vmatmul.f32.gmra.mxu0 %v1244
      %v1356 = vpop.f32.mrf.mxu0
      %v1357 = vadd.f32 %v1163, %v1356
      %1358 = vmatmul.f32.gmra.mxu0 %v1247
      %v1359 = vpop.f32.mrf.mxu0
      %v1360 = vadd.f32 %v1163, %v1359
      %1361 = vmatmul.f32.gmra.mxu0 %v1250
      %v1362 = vpop.f32.mrf.mxu0
      %v1363 = vadd.f32 %v1163, %v1362
      %1364 = vmatmul.f32.gmra.mxu0 %v1253
      %v1365 = vpop.f32.mrf.mxu0
      %v1366 = vadd.f32 %v1163, %v1365
      %1367 = vmatmul.f32.gmra.mxu0 %v1256
      %v1368 = vpop.f32.mrf.mxu0
      %v1369 = vadd.f32 %v1163, %v1368
      %1370 = vmatmul.f32.gmra.mxu0 %v1259
      %v1371 = vpop.f32.mrf.mxu0
      %v1372 = vadd.f32 %v1163, %v1371
      %1373 = vdwg.mxu0
      %v1374 = vld [vmem:[%s6] sm:$0xff]
      %v1375 = vld [vmem:[%s6 + $0x8] sm:$0xff]
      %v1376 = vld [vmem:[%s6 + $0x10] sm:$0xff]
      %v1377 = vld [vmem:[%s6 + $0x18] sm:$0xff]
      %v1378 = vld [vmem:[%s6 + $0x20] sm:$0xff]
      %v1379 = vld [vmem:[%s6 + $0x28] sm:$0xff]
      %v1380 = vld [vmem:[%s6 + $0x30] sm:$0xff]
      %v1381 = vld [vmem:[%s6 + $0x38] sm:$0xff]
      %v1382 = vld [vmem:[%s6 + $0x40] sm:$0xff]
      %v1383 = vld [vmem:[%s6 + $0x48] sm:$0xff]
      %v1384 = vld [vmem:[%s6 + $0x50] sm:$0xff]
      %v1385 = vld [vmem:[%s6 + $0x58] sm:$0xff]
      %v1386 = vld [vmem:[%s6 + $0x60] sm:$0xff]
      %v1387 = vld [vmem:[%s6 + $0x68] sm:$0xff]
      %v1388 = vld [vmem:[%s6 + $0x70] sm:$0xff]
      %v1389 = vld [vmem:[%s6 + $0x78] sm:$0xff]
      %v1390 = vld [vmem:[%s6 + $0x80] sm:$0xff]
      %v1391 = vld [vmem:[%s6 + $0x88] sm:$0xff]
      %v1392 = vld [vmem:[%s6 + $0x90] sm:$0xff]
      %v1393 = vld [vmem:[%s6 + $0x98] sm:$0xff]
      %v1394 = vld [vmem:[%s6 + $0xa0] sm:$0xff]
      %v1395 = vld [vmem:[%s6 + $0xa8] sm:$0xff]
      %v1396 = vld [vmem:[%s6 + $0xb0] sm:$0xff]
      %v1397 = vld [vmem:[%s6 + $0xb8] sm:$0xff]
      %v1398 = vld [vmem:[%s6 + $0xc0] sm:$0xff]
      %v1399 = vld [vmem:[%s6 + $0xc8] sm:$0xff]
      %v1400 = vld [vmem:[%s6 + $0xd0] sm:$0xff]
      %v1401 = vld [vmem:[%s6 + $0xd8] sm:$0xff]
      %v1402 = vld [vmem:[%s6 + $0xe0] sm:$0xff]
      %v1403 = vld [vmem:[%s6 + $0xe8] sm:$0xff]
      %v1404 = vld [vmem:[%s6 + $0xf0] sm:$0xff]
      %v1405 = vld [vmem:[%s6 + $0xf8] sm:$0xff]
      %v1406 = vmul.f32 %v1279, 0.35355338
      %v1407 = vmul.f32 %v1282, 0.35355338
      %v1408 = vmul.f32 %v1285, 0.35355338
      %v1409 = vmul.f32 %v1288, 0.35355338
      %v1410 = vmul.f32 %v1291, 0.35355338
      %v1411 = vmul.f32 %v1294, 0.35355338
      %v1412 = vmul.f32 %v1297, 0.35355338
      %v1413 = vmul.f32 %v1300, 0.35355338
      %v1414 = vmul.f32 %v1303, 0.35355338
      %v1415 = vmul.f32 %v1306, 0.35355338
      %v1416 = vmul.f32 %v1309, 0.35355338
      %v1417 = vmul.f32 %v1312, 0.35355338
      %v1418 = vmul.f32 %v1315, 0.35355338
      %v1419 = vmul.f32 %v1318, 0.35355338
      %v1420 = vmul.f32 %v1321, 0.35355338
      %v1421 = vmul.f32 %v1324, 0.35355338
      %v1422 = vmul.f32 %v1327, 0.35355338
      %v1423 = vmul.f32 %v1330, 0.35355338
      %v1424 = vmul.f32 %v1333, 0.35355338
      %v1425 = vmul.f32 %v1336, 0.35355338
      %v1426 = vmul.f32 %v1339, 0.35355338
      %v1427 = vmul.f32 %v1342, 0.35355338
      %v1428 = vmul.f32 %v1345, 0.35355338
      %v1429 = vmul.f32 %v1348, 0.35355338
      %v1430 = vmul.f32 %v1351, 0.35355338
      %v1431 = vmul.f32 %v1354, 0.35355338
      %v1432 = vmul.f32 %v1357, 0.35355338
      %v1433 = vmul.f32 %v1360, 0.35355338
      %v1434 = vmul.f32 %v1363, 0.35355338
      %v1435 = vmul.f32 %v1366, 0.35355338
      %v1436 = vmul.f32 %v1369, 0.35355338
      %v1437 = vmul.f32 %v1372, 0.35355338
      %v1438 = vld [vmem:[%s5] sm:$0xff]
      %v1439 = vld [vmem:[%s5 + $0x8] sm:$0xff]
      %v1440 = vld [vmem:[%s5 + $0x10] sm:$0xff]
      %v1441 = vld [vmem:[%s5 + $0x18] sm:$0xff]
      %v1442 = vld [vmem:[%s5 + $0x20] sm:$0xff]
      %v1443 = vld [vmem:[%s5 + $0x28] sm:$0xff]
      %v1444 = vld [vmem:[%s5 + $0x30] sm:$0xff]
      %v1445 = vld [vmem:[%s5 + $0x38] sm:$0xff]
      %1454 = vrot.lane.b32.xlu0 %v1279, 96
      %v1455 = vpop.permute.xlu0 %1454
      %1456 = vrot.lane.b32.xlu0 %v1282, 96
      %v1457 = vpop.permute.xlu0 %1456
      %1458 = vrot.lane.b32.xlu0 %v1285, 96
      %v1459 = vpop.permute.xlu0 %1458
      %1460 = vrot.lane.b32.xlu0 %v1288, 96
      %v1461 = vpop.permute.xlu0 %1460
      %1462 = vrot.lane.b32.xlu0 %v1291, 96
      %v1463 = vpop.permute.xlu0 %1462
      %1464 = vrot.lane.b32.xlu0 %v1294, 96
      %v1465 = vpop.permute.xlu0 %1464
      %1466 = vrot.lane.b32.xlu0 %v1297, 96
      %v1467 = vpop.permute.xlu0 %1466
      %1468 = vrot.lane.b32.xlu0 %v1300, 96
      %v1469 = vpop.permute.xlu0 %1468
      %vm1470 = vcmask 64512
      %v1472 = vsel %vm1470, %v1406, 0
      %v1475 = vsel %vm1470, %v1407, 0
      %v1478 = vsel %vm1470, %v1408, 0
      %v1481 = vsel %vm1470, %v1409, 0
      %v1484 = vsel %vm1470, %v1410, 0
      %v1487 = vsel %vm1470, %v1411, 0
      %v1490 = vsel %vm1470, %v1412, 0
      %v1493 = vsel %vm1470, %v1413, 0
      %v1495 = vsel %vm1470, %v1455, 0
      %v1497 = vsel %vm1470, %v1457, 0
      %v1499 = vsel %vm1470, %v1459, 0
      %v1501 = vsel %vm1470, %v1461, 0
      %v1503 = vsel %vm1470, %v1463, 0
      %v1505 = vsel %vm1470, %v1465, 0
      %v1507 = vsel %vm1470, %v1467, 0
      %v1509 = vsel %vm1470, %v1469, 0
      %1511 = vmatpush.xpose.msra.mxu0 0.0
      %1512 = vmatpush.xpose.msra.mxu0 0.0
      %1513 = vmatpush.xpose.msra.mxu0 0.0
      %1514 = vmatpush.xpose.msra.mxu0 0.0
      %1515 = vmatpush.xpose.msra.mxu0 0.0
      %1516 = vmatpush.xpose.msra.mxu0 0.0
      %1517 = vmatpush.xpose.msra.mxu0 0.0
      %1518 = vmatpush.xpose.msra.mxu0 0.0
      %1519 = vmatpush.xpose.msra.mxu0 %v1509
      %1520 = vmatpush.xpose.msra.mxu0 %v1507
      %1521 = vmatpush.xpose.msra.mxu0 %v1505
      %1522 = vmatpush.xpose.msra.mxu0 %v1503
      %1523 = vmatpush.xpose.msra.mxu0 %v1501
      %1524 = vmatpush.xpose.msra.mxu0 %v1499
      %1525 = vmatpush.xpose.msra.mxu0 %v1497
      %1526 = vmatpush.xpose.msra.mxu0 %v1495
      %1527 = vmatmul.f32.gmra.mxu0 %v1472
      %v1528 = vpop.f32.mrf.mxu0
      %v1529 = vadd.f32 %v1438, %v1528
      %1530 = vmatmul.f32.gmra.mxu0 %v1475
      %v1531 = vpop.f32.mrf.mxu0
      %v1532 = vadd.f32 %v1439, %v1531
      %1533 = vmatmul.f32.gmra.mxu0 %v1478
      %v1534 = vpop.f32.mrf.mxu0
      %v1535 = vadd.f32 %v1440, %v1534
      %1536 = vmatmul.f32.gmra.mxu0 %v1481
      %v1537 = vpop.f32.mrf.mxu0
      %v1538 = vadd.f32 %v1441, %v1537
      %1539 = vmatmul.f32.gmra.mxu0 %v1484
      %v1540 = vpop.f32.mrf.mxu0
      %v1541 = vadd.f32 %v1442, %v1540
      %1542 = vmatmul.f32.gmra.mxu0 %v1487
      %v1543 = vpop.f32.mrf.mxu0
      %v1544 = vadd.f32 %v1443, %v1543
      %1545 = vmatmul.f32.gmra.mxu0 %v1490
      %v1546 = vpop.f32.mrf.mxu0
      %v1547 = vadd.f32 %v1444, %v1546
      %1548 = vmatmul.f32.gmra.mxu0 %v1493
      %v1549 = vpop.f32.mrf.mxu0
      %v1550 = vadd.f32 %v1445, %v1549
      %1551 = vdwg.mxu0
      %1560 = vrot.lane.b32.xlu0 %v1303, 96
      %v1561 = vpop.permute.xlu0 %1560
      %1562 = vrot.lane.b32.xlu0 %v1306, 96
      %v1563 = vpop.permute.xlu0 %1562
      %1564 = vrot.lane.b32.xlu0 %v1309, 96
      %v1565 = vpop.permute.xlu0 %1564
      %1566 = vrot.lane.b32.xlu0 %v1312, 96
      %v1567 = vpop.permute.xlu0 %1566
      %1568 = vrot.lane.b32.xlu0 %v1315, 96
      %v1569 = vpop.permute.xlu0 %1568
      %1570 = vrot.lane.b32.xlu0 %v1318, 96
      %v1571 = vpop.permute.xlu0 %1570
      %1572 = vrot.lane.b32.xlu0 %v1321, 96
      %v1573 = vpop.permute.xlu0 %1572
      %1574 = vrot.lane.b32.xlu0 %v1324, 96
      %v1575 = vpop.permute.xlu0 %1574
      %v1577 = vsel %vm1470, %v1414, 0
      %v1580 = vsel %vm1470, %v1415, 0
      %v1583 = vsel %vm1470, %v1416, 0
      %v1586 = vsel %vm1470, %v1417, 0
      %v1589 = vsel %vm1470, %v1418, 0
      %v1592 = vsel %vm1470, %v1419, 0
      %v1595 = vsel %vm1470, %v1420, 0
      %v1598 = vsel %vm1470, %v1421, 0
      %v1600 = vsel %vm1470, %v1561, 0
      %v1602 = vsel %vm1470, %v1563, 0
      %v1604 = vsel %vm1470, %v1565, 0
      %v1606 = vsel %vm1470, %v1567, 0
      %v1608 = vsel %vm1470, %v1569, 0
      %v1610 = vsel %vm1470, %v1571, 0
      %v1612 = vsel %vm1470, %v1573, 0
      %v1614 = vsel %vm1470, %v1575, 0
      %1616 = vmatpush.xpose.msra.mxu0 0.0
      %1617 = vmatpush.xpose.msra.mxu0 0.0
      %1618 = vmatpush.xpose.msra.mxu0 0.0
      %1619 = vmatpush.xpose.msra.mxu0 0.0
      %1620 = vmatpush.xpose.msra.mxu0 0.0
      %1621 = vmatpush.xpose.msra.mxu0 0.0
      %1622 = vmatpush.xpose.msra.mxu0 0.0
      %1623 = vmatpush.xpose.msra.mxu0 0.0
      %1624 = vmatpush.xpose.msra.mxu0 %v1614
      %1625 = vmatpush.xpose.msra.mxu0 %v1612
      %1626 = vmatpush.xpose.msra.mxu0 %v1610
      %1627 = vmatpush.xpose.msra.mxu0 %v1608
      %1628 = vmatpush.xpose.msra.mxu0 %v1606
      %1629 = vmatpush.xpose.msra.mxu0 %v1604
      %1630 = vmatpush.xpose.msra.mxu0 %v1602
      %1631 = vmatpush.xpose.msra.mxu0 %v1600
      %1632 = vmatmul.f32.gmra.mxu0 %v1577
      %v1633 = vpop.f32.mrf.mxu0
      %v1634 = vadd.f32 %v1438, %v1633
      %1635 = vmatmul.f32.gmra.mxu0 %v1580
      %v1636 = vpop.f32.mrf.mxu0
      %v1637 = vadd.f32 %v1439, %v1636
      %1638 = vmatmul.f32.gmra.mxu0 %v1583
      %v1639 = vpop.f32.mrf.mxu0
      %v1640 = vadd.f32 %v1440, %v1639
      %1641 = vmatmul.f32.gmra.mxu0 %v1586
      %v1642 = vpop.f32.mrf.mxu0
      %v1643 = vadd.f32 %v1441, %v1642
      %1644 = vmatmul.f32.gmra.mxu0 %v1589
      %v1645 = vpop.f32.mrf.mxu0
      %v1646 = vadd.f32 %v1442, %v1645
      %1647 = vmatmul.f32.gmra.mxu0 %v1592
      %v1648 = vpop.f32.mrf.mxu0
      %v1649 = vadd.f32 %v1443, %v1648
      %1650 = vmatmul.f32.gmra.mxu0 %v1595
      %v1651 = vpop.f32.mrf.mxu0
      %v1652 = vadd.f32 %v1444, %v1651
      %1653 = vmatmul.f32.gmra.mxu0 %v1598
      %v1654 = vpop.f32.mrf.mxu0
      %v1655 = vadd.f32 %v1445, %v1654
      %1656 = vdwg.mxu0
      %1665 = vrot.lane.b32.xlu0 %v1327, 96
      %v1666 = vpop.permute.xlu0 %1665
      %1667 = vrot.lane.b32.xlu0 %v1330, 96
      %v1668 = vpop.permute.xlu0 %1667
      %1669 = vrot.lane.b32.xlu0 %v1333, 96
      %v1670 = vpop.permute.xlu0 %1669
      %1671 = vrot.lane.b32.xlu0 %v1336, 96
      %v1672 = vpop.permute.xlu0 %1671
      %1673 = vrot.lane.b32.xlu0 %v1339, 96
      %v1674 = vpop.permute.xlu0 %1673
      %1675 = vrot.lane.b32.xlu0 %v1342, 96
      %v1676 = vpop.permute.xlu0 %1675
      %1677 = vrot.lane.b32.xlu0 %v1345, 96
      %v1678 = vpop.permute.xlu0 %1677
      %1679 = vrot.lane.b32.xlu0 %v1348, 96
      %v1680 = vpop.permute.xlu0 %1679
      %v1682 = vsel %vm1470, %v1422, 0
      %v1685 = vsel %vm1470, %v1423, 0
      %v1688 = vsel %vm1470, %v1424, 0
      %v1691 = vsel %vm1470, %v1425, 0
      %v1694 = vsel %vm1470, %v1426, 0
      %v1697 = vsel %vm1470, %v1427, 0
      %v1700 = vsel %vm1470, %v1428, 0
      %v1703 = vsel %vm1470, %v1429, 0
      %v1705 = vsel %vm1470, %v1666, 0
      %v1707 = vsel %vm1470, %v1668, 0
      %v1709 = vsel %vm1470, %v1670, 0
      %v1711 = vsel %vm1470, %v1672, 0
      %v1713 = vsel %vm1470, %v1674, 0
      %v1715 = vsel %vm1470, %v1676, 0
      %v1717 = vsel %vm1470, %v1678, 0
      %v1719 = vsel %vm1470, %v1680, 0
      %1721 = vmatpush.xpose.msra.mxu0 0.0
      %1722 = vmatpush.xpose.msra.mxu0 0.0
      %1723 = vmatpush.xpose.msra.mxu0 0.0
      %1724 = vmatpush.xpose.msra.mxu0 0.0
      %1725 = vmatpush.xpose.msra.mxu0 0.0
      %1726 = vmatpush.xpose.msra.mxu0 0.0
      %1727 = vmatpush.xpose.msra.mxu0 0.0
      %1728 = vmatpush.xpose.msra.mxu0 0.0
      %1729 = vmatpush.xpose.msra.mxu0 %v1719
      %1730 = vmatpush.xpose.msra.mxu0 %v1717
      %1731 = vmatpush.xpose.msra.mxu0 %v1715
      %1732 = vmatpush.xpose.msra.mxu0 %v1713
      %1733 = vmatpush.xpose.msra.mxu0 %v1711
      %1734 = vmatpush.xpose.msra.mxu0 %v1709
      %1735 = vmatpush.xpose.msra.mxu0 %v1707
      %1736 = vmatpush.xpose.msra.mxu0 %v1705
      %1737 = vmatmul.f32.gmra.mxu0 %v1682
      %v1738 = vpop.f32.mrf.mxu0
      %v1739 = vadd.f32 %v1438, %v1738
      %1740 = vmatmul.f32.gmra.mxu0 %v1685
      %v1741 = vpop.f32.mrf.mxu0
      %v1742 = vadd.f32 %v1439, %v1741
      %1743 = vmatmul.f32.gmra.mxu0 %v1688
      %v1744 = vpop.f32.mrf.mxu0
      %v1745 = vadd.f32 %v1440, %v1744
      %1746 = vmatmul.f32.gmra.mxu0 %v1691
      %v1747 = vpop.f32.mrf.mxu0
      %v1748 = vadd.f32 %v1441, %v1747
      %1749 = vmatmul.f32.gmra.mxu0 %v1694
      %v1750 = vpop.f32.mrf.mxu0
      %v1751 = vadd.f32 %v1442, %v1750
      %1752 = vmatmul.f32.gmra.mxu0 %v1697
      %v1753 = vpop.f32.mrf.mxu0
      %v1754 = vadd.f32 %v1443, %v1753
      %1755 = vmatmul.f32.gmra.mxu0 %v1700
      %v1756 = vpop.f32.mrf.mxu0
      %v1757 = vadd.f32 %v1444, %v1756
      %1758 = vmatmul.f32.gmra.mxu0 %v1703
      %v1759 = vpop.f32.mrf.mxu0
      %v1760 = vadd.f32 %v1445, %v1759
      %1761 = vdwg.mxu0
      %1770 = vrot.lane.b32.xlu0 %v1351, 96
      %v1771 = vpop.permute.xlu0 %1770
      %1772 = vrot.lane.b32.xlu0 %v1354, 96
      %v1773 = vpop.permute.xlu0 %1772
      %1774 = vrot.lane.b32.xlu0 %v1357, 96
      %v1775 = vpop.permute.xlu0 %1774
      %1776 = vrot.lane.b32.xlu0 %v1360, 96
      %v1777 = vpop.permute.xlu0 %1776
      %1778 = vrot.lane.b32.xlu0 %v1363, 96
      %v1779 = vpop.permute.xlu0 %1778
      %1780 = vrot.lane.b32.xlu0 %v1366, 96
      %v1781 = vpop.permute.xlu0 %1780
      %1782 = vrot.lane.b32.xlu0 %v1369, 96
      %v1783 = vpop.permute.xlu0 %1782
      %1784 = vrot.lane.b32.xlu0 %v1372, 96
      %v1785 = vpop.permute.xlu0 %1784
      %v1787 = vsel %vm1470, %v1430, 0
      %v1790 = vsel %vm1470, %v1431, 0
      %v1793 = vsel %vm1470, %v1432, 0
      %v1796 = vsel %vm1470, %v1433, 0
      %v1799 = vsel %vm1470, %v1434, 0
      %v1802 = vsel %vm1470, %v1435, 0
      %v1805 = vsel %vm1470, %v1436, 0
      %v1808 = vsel %vm1470, %v1437, 0
      %v1810 = vsel %vm1470, %v1771, 0
      %v1812 = vsel %vm1470, %v1773, 0
      %v1814 = vsel %vm1470, %v1775, 0
      %v1816 = vsel %vm1470, %v1777, 0
      %v1818 = vsel %vm1470, %v1779, 0
      %v1820 = vsel %vm1470, %v1781, 0
      %v1822 = vsel %vm1470, %v1783, 0
      %v1824 = vsel %vm1470, %v1785, 0
      %1826 = vmatpush.xpose.msra.mxu0 0.0
      %1827 = vmatpush.xpose.msra.mxu0 0.0
      %1828 = vmatpush.xpose.msra.mxu0 0.0
      %1829 = vmatpush.xpose.msra.mxu0 0.0
      %1830 = vmatpush.xpose.msra.mxu0 0.0
      %1831 = vmatpush.xpose.msra.mxu0 0.0
      %1832 = vmatpush.xpose.msra.mxu0 0.0
      %1833 = vmatpush.xpose.msra.mxu0 0.0
      %1834 = vmatpush.xpose.msra.mxu0 %v1824
      %1835 = vmatpush.xpose.msra.mxu0 %v1822
      %1836 = vmatpush.xpose.msra.mxu0 %v1820
      %1837 = vmatpush.xpose.msra.mxu0 %v1818
      %1838 = vmatpush.xpose.msra.mxu0 %v1816
      %1839 = vmatpush.xpose.msra.mxu0 %v1814
      %1840 = vmatpush.xpose.msra.mxu0 %v1812
      %1841 = vmatpush.xpose.msra.mxu0 %v1810
      %1842 = vmatmul.f32.gmra.mxu0 %v1787
      %v1843 = vpop.f32.mrf.mxu0
      %v1844 = vadd.f32 %v1438, %v1843
      %1845 = vmatmul.f32.gmra.mxu0 %v1790
      %v1846 = vpop.f32.mrf.mxu0
      %v1847 = vadd.f32 %v1439, %v1846
      %1848 = vmatmul.f32.gmra.mxu0 %v1793
      %v1849 = vpop.f32.mrf.mxu0
      %v1850 = vadd.f32 %v1440, %v1849
      %1851 = vmatmul.f32.gmra.mxu0 %v1796
      %v1852 = vpop.f32.mrf.mxu0
      %v1853 = vadd.f32 %v1441, %v1852
      %1854 = vmatmul.f32.gmra.mxu0 %v1799
      %v1855 = vpop.f32.mrf.mxu0
      %v1856 = vadd.f32 %v1442, %v1855
      %1857 = vmatmul.f32.gmra.mxu0 %v1802
      %v1858 = vpop.f32.mrf.mxu0
      %v1859 = vadd.f32 %v1443, %v1858
      %1860 = vmatmul.f32.gmra.mxu0 %v1805
      %v1861 = vpop.f32.mrf.mxu0
      %v1862 = vadd.f32 %v1444, %v1861
      %1863 = vmatmul.f32.gmra.mxu0 %v1808
      %v1864 = vpop.f32.mrf.mxu0
      %v1865 = vadd.f32 %v1445, %v1864
      %1866 = vdwg.mxu0
      %v1867 = vadd.f32 %v1529, %v1374
      %v1868 = vadd.f32 %v1532, %v1375
      %v1869 = vadd.f32 %v1535, %v1376
      %v1870 = vadd.f32 %v1538, %v1377
      %v1871 = vadd.f32 %v1541, %v1378
      %v1872 = vadd.f32 %v1544, %v1379
      %v1873 = vadd.f32 %v1547, %v1380
      %v1874 = vadd.f32 %v1550, %v1381
      %v1875 = vadd.f32 %v1634, %v1382
      %v1876 = vadd.f32 %v1637, %v1383
      %v1877 = vadd.f32 %v1640, %v1384
      %v1878 = vadd.f32 %v1643, %v1385
      %v1879 = vadd.f32 %v1646, %v1386
      %v1880 = vadd.f32 %v1649, %v1387
      %v1881 = vadd.f32 %v1652, %v1388
      %v1882 = vadd.f32 %v1655, %v1389
      %v1883 = vadd.f32 %v1739, %v1390
      %v1884 = vadd.f32 %v1742, %v1391
      %v1885 = vadd.f32 %v1745, %v1392
      %v1886 = vadd.f32 %v1748, %v1393
      %v1887 = vadd.f32 %v1751, %v1394
      %v1888 = vadd.f32 %v1754, %v1395
      %v1889 = vadd.f32 %v1757, %v1396
      %v1890 = vadd.f32 %v1760, %v1397
      %v1891 = vadd.f32 %v1844, %v1398
      %v1892 = vadd.f32 %v1847, %v1399
      %v1893 = vadd.f32 %v1850, %v1400
      %v1894 = vadd.f32 %v1853, %v1401
      %v1895 = vadd.f32 %v1856, %v1402
      %v1896 = vadd.f32 %v1859, %v1403
      %v1897 = vadd.f32 %v1862, %v1404
      %v1898 = vadd.f32 %v1865, %v1405
      %vm1899 = vcmask 523264
      %v1900 = vsel %vm1899, %v1867, -inf
      %1901 = vmax.xlane.f32.xlu0 %v1900
      %v1902 = vpop.xlane.xlu0 %1901
      %v1903 = vsel %vm1899, %v1868, -inf
      %1904 = vmax.xlane.f32.xlu0 %v1903
      %v1905 = vpop.xlane.xlu0 %1904
      %v1906 = vsel %vm1899, %v1869, -inf
      %1907 = vmax.xlane.f32.xlu0 %v1906
      %v1908 = vpop.xlane.xlu0 %1907
      %v1909 = vsel %vm1899, %v1870, -inf
      %1910 = vmax.xlane.f32.xlu0 %v1909
      %v1911 = vpop.xlane.xlu0 %1910
      %v1912 = vsel %vm1899, %v1871, -inf
      %1913 = vmax.xlane.f32.xlu0 %v1912
      %v1914 = vpop.xlane.xlu0 %1913
      %v1915 = vsel %vm1899, %v1872, -inf
      %1916 = vmax.xlane.f32.xlu0 %v1915
      %v1917 = vpop.xlane.xlu0 %1916
      %v1918 = vsel %vm1899, %v1873, -inf
      %1919 = vmax.xlane.f32.xlu0 %v1918
      %v1920 = vpop.xlane.xlu0 %1919
      %v1921 = vsel %vm1899, %v1874, -inf
      %1922 = vmax.xlane.f32.xlu0 %v1921
      %v1923 = vpop.xlane.xlu0 %1922
      %v1924 = vsel %vm1899, %v1875, -inf
      %1925 = vmax.xlane.f32.xlu0 %v1924
      %v1926 = vpop.xlane.xlu0 %1925
      %v1927 = vsel %vm1899, %v1876, -inf
      %1928 = vmax.xlane.f32.xlu0 %v1927
      %v1929 = vpop.xlane.xlu0 %1928
      %v1930 = vsel %vm1899, %v1877, -inf
      %1931 = vmax.xlane.f32.xlu0 %v1930
      %v1932 = vpop.xlane.xlu0 %1931
      %v1933 = vsel %vm1899, %v1878, -inf
      %1934 = vmax.xlane.f32.xlu0 %v1933
      %v1935 = vpop.xlane.xlu0 %1934
      %v1936 = vsel %vm1899, %v1879, -inf
      %1937 = vmax.xlane.f32.xlu0 %v1936
      %v1938 = vpop.xlane.xlu0 %1937
      %v1939 = vsel %vm1899, %v1880, -inf
      %1940 = vmax.xlane.f32.xlu0 %v1939
      %v1941 = vpop.xlane.xlu0 %1940
      %v1942 = vsel %vm1899, %v1881, -inf
      %1943 = vmax.xlane.f32.xlu0 %v1942
      %v1944 = vpop.xlane.xlu0 %1943
      %v1945 = vsel %vm1899, %v1882, -inf
      %1946 = vmax.xlane.f32.xlu0 %v1945
      %v1947 = vpop.xlane.xlu0 %1946
      %v1948 = vsel %vm1899, %v1883, -inf
      %1949 = vmax.xlane.f32.xlu0 %v1948
      %v1950 = vpop.xlane.xlu0 %1949
      %v1951 = vsel %vm1899, %v1884, -inf
      %1952 = vmax.xlane.f32.xlu0 %v1951
      %v1953 = vpop.xlane.xlu0 %1952
      %v1954 = vsel %vm1899, %v1885, -inf
      %1955 = vmax.xlane.f32.xlu0 %v1954
      %v1956 = vpop.xlane.xlu0 %1955
      %v1957 = vsel %vm1899, %v1886, -inf
      %1958 = vmax.xlane.f32.xlu0 %v1957
      %v1959 = vpop.xlane.xlu0 %1958
      %v1960 = vsel %vm1899, %v1887, -inf
      %1961 = vmax.xlane.f32.xlu0 %v1960
      %v1962 = vpop.xlane.xlu0 %1961
      %v1963 = vsel %vm1899, %v1888, -inf
      %1964 = vmax.xlane.f32.xlu0 %v1963
      %v1965 = vpop.xlane.xlu0 %1964
      %v1966 = vsel %vm1899, %v1889, -inf
      %1967 = vmax.xlane.f32.xlu0 %v1966
      %v1968 = vpop.xlane.xlu0 %1967
      %v1969 = vsel %vm1899, %v1890, -inf
      %1970 = vmax.xlane.f32.xlu0 %v1969
      %v1971 = vpop.xlane.xlu0 %1970
      %v1972 = vsel %vm1899, %v1891, -inf
      %1973 = vmax.xlane.f32.xlu0 %v1972
      %v1974 = vpop.xlane.xlu0 %1973
      %v1975 = vsel %vm1899, %v1892, -inf
      %1976 = vmax.xlane.f32.xlu0 %v1975
      %v1977 = vpop.xlane.xlu0 %1976
      %v1978 = vsel %vm1899, %v1893, -inf
      %1979 = vmax.xlane.f32.xlu0 %v1978
      %v1980 = vpop.xlane.xlu0 %1979
      %v1981 = vsel %vm1899, %v1894, -inf
      %1982 = vmax.xlane.f32.xlu0 %v1981
      %v1983 = vpop.xlane.xlu0 %1982
      %v1984 = vsel %vm1899, %v1895, -inf
      %1985 = vmax.xlane.f32.xlu0 %v1984
      %v1986 = vpop.xlane.xlu0 %1985
      %v1987 = vsel %vm1899, %v1896, -inf
      %1988 = vmax.xlane.f32.xlu0 %v1987
      %v1989 = vpop.xlane.xlu0 %1988
      %v1990 = vsel %vm1899, %v1897, -inf
      %1991 = vmax.xlane.f32.xlu0 %v1990
      %v1992 = vpop.xlane.xlu0 %1991
      %v1993 = vsel %vm1899, %v1898, -inf
      %1994 = vmax.xlane.f32.xlu0 %v1993
      %v1995 = vpop.xlane.xlu0 %1994
      %v1996 = vsub.f32 %v1867, %v1902
      %v1997 = vsub.f32 %v1868, %v1905
      %v1998 = vsub.f32 %v1869, %v1908
      %v1999 = vsub.f32 %v1870, %v1911
      %v2000 = vsub.f32 %v1871, %v1914
      %v2001 = vsub.f32 %v1872, %v1917
      %v2002 = vsub.f32 %v1873, %v1920
      %v2003 = vsub.f32 %v1874, %v1923
      %v2004 = vsub.f32 %v1875, %v1926
      %v2005 = vsub.f32 %v1876, %v1929
      %v2006 = vsub.f32 %v1877, %v1932
      %v2007 = vsub.f32 %v1878, %v1935
      %v2008 = vsub.f32 %v1879, %v1938
      %v2009 = vsub.f32 %v1880, %v1941
      %v2010 = vsub.f32 %v1881, %v1944
      %v2011 = vsub.f32 %v1882, %v1947
      %v2012 = vsub.f32 %v1883, %v1950
      %v2013 = vsub.f32 %v1884, %v1953
      %v2014 = vsub.f32 %v1885, %v1956
      %v2015 = vsub.f32 %v1886, %v1959
      %v2016 = vsub.f32 %v1887, %v1962
      %v2017 = vsub.f32 %v1888, %v1965
      %v2018 = vsub.f32 %v1889, %v1968
      %v2019 = vsub.f32 %v1890, %v1971
      %v2020 = vsub.f32 %v1891, %v1974
      %v2021 = vsub.f32 %v1892, %v1977
      %v2022 = vsub.f32 %v1893, %v1980
      %v2023 = vsub.f32 %v1894, %v1983
      %v2024 = vsub.f32 %v1895, %v1986
      %v2025 = vsub.f32 %v1896, %v1989
      %v2026 = vsub.f32 %v1897, %v1992
      %v2027 = vsub.f32 %v1898, %v1995
      %v2028 = vmul.f32 %v1996, 1.442695
      %v2029 = vpow.pop %v2028
      %v2030 = vmul.f32 %v1997, 1.442695
      %v2031 = vpow.pop %v2030
      %v2032 = vmul.f32 %v1998, 1.442695
      %v2033 = vpow.pop %v2032
      %v2034 = vmul.f32 %v1999, 1.442695
      %v2035 = vpow.pop %v2034
      %v2036 = vmul.f32 %v2000, 1.442695
      %v2037 = vpow.pop %v2036
      %v2038 = vmul.f32 %v2001, 1.442695
      %v2039 = vpow.pop %v2038
      %v2040 = vmul.f32 %v2002, 1.442695
      %v2041 = vpow.pop %v2040
      %v2042 = vmul.f32 %v2003, 1.442695
      %v2043 = vpow.pop %v2042
      %v2044 = vmul.f32 %v2004, 1.442695
      %v2045 = vpow.pop %v2044
      %v2046 = vmul.f32 %v2005, 1.442695
      %v2047 = vpow.pop %v2046
      %v2048 = vmul.f32 %v2006, 1.442695
      %v2049 = vpow.pop %v2048
      %v2050 = vmul.f32 %v2007, 1.442695
      %v2051 = vpow.pop %v2050
      %v2052 = vmul.f32 %v2008, 1.442695
      %v2053 = vpow.pop %v2052
      %v2054 = vmul.f32 %v2009, 1.442695
      %v2055 = vpow.pop %v2054
      %v2056 = vmul.f32 %v2010, 1.442695
      %v2057 = vpow.pop %v2056
      %v2058 = vmul.f32 %v2011, 1.442695
      %v2059 = vpow.pop %v2058
      %v2060 = vmul.f32 %v2012, 1.442695
      %v2061 = vpow.pop %v2060
      %v2062 = vmul.f32 %v2013, 1.442695
      %v2063 = vpow.pop %v2062
      %v2064 = vmul.f32 %v2014, 1.442695
      %v2065 = vpow.pop %v2064
      %v2066 = vmul.f32 %v2015, 1.442695
      %v2067 = vpow.pop %v2066
      %v2068 = vmul.f32 %v2016, 1.442695
      %v2069 = vpow.pop %v2068
      %v2070 = vmul.f32 %v2017, 1.442695
      %v2071 = vpow.pop %v2070
      %v2072 = vmul.f32 %v2018, 1.442695
      %v2073 = vpow.pop %v2072
      %v2074 = vmul.f32 %v2019, 1.442695
      %v2075 = vpow.pop %v2074
      %v2076 = vmul.f32 %v2020, 1.442695
      %v2077 = vpow.pop %v2076
      %v2078 = vmul.f32 %v2021, 1.442695
      %v2079 = vpow.pop %v2078
      %v2080 = vmul.f32 %v2022, 1.442695
      %v2081 = vpow.pop %v2080
      %v2082 = vmul.f32 %v2023, 1.442695
      %v2083 = vpow.pop %v2082
      %v2084 = vmul.f32 %v2024, 1.442695
      %v2085 = vpow.pop %v2084
      %v2086 = vmul.f32 %v2025, 1.442695
      %v2087 = vpow.pop %v2086
      %v2088 = vmul.f32 %v2026, 1.442695
      %v2089 = vpow.pop %v2088
      %v2090 = vmul.f32 %v2027, 1.442695
      %v2091 = vpow.pop %v2090
      %v2092 = vsel %vm1899, %v2029, 0.0
      %2093 = vadd.xlane.f32.xlu0 %v2092
      %v2094 = vpop.xlane.xlu0 %2093
      %v2095 = vsel %vm1899, %v2031, 0.0
      %2096 = vadd.xlane.f32.xlu0 %v2095
      %v2097 = vpop.xlane.xlu0 %2096
      %v2098 = vsel %vm1899, %v2033, 0.0
      %2099 = vadd.xlane.f32.xlu0 %v2098
      %v2100 = vpop.xlane.xlu0 %2099
      %v2101 = vsel %vm1899, %v2035, 0.0
      %2102 = vadd.xlane.f32.xlu0 %v2101
      %v2103 = vpop.xlane.xlu0 %2102
      %v2104 = vsel %vm1899, %v2037, 0.0
      %2105 = vadd.xlane.f32.xlu0 %v2104
      %v2106 = vpop.xlane.xlu0 %2105
      %v2107 = vsel %vm1899, %v2039, 0.0
      %2108 = vadd.xlane.f32.xlu0 %v2107
      %v2109 = vpop.xlane.xlu0 %2108
      %v2110 = vsel %vm1899, %v2041, 0.0
      %2111 = vadd.xlane.f32.xlu0 %v2110
      %v2112 = vpop.xlane.xlu0 %2111
      %v2113 = vsel %vm1899, %v2043, 0.0
      %2114 = vadd.xlane.f32.xlu0 %v2113
      %v2115 = vpop.xlane.xlu0 %2114
      %v2116 = vsel %vm1899, %v2045, 0.0
      %2117 = vadd.xlane.f32.xlu0 %v2116
      %v2118 = vpop.xlane.xlu0 %2117
      %v2119 = vsel %vm1899, %v2047, 0.0
      %2120 = vadd.xlane.f32.xlu0 %v2119
      %v2121 = vpop.xlane.xlu0 %2120
      %v2122 = vsel %vm1899, %v2049, 0.0
      %2123 = vadd.xlane.f32.xlu0 %v2122
      %v2124 = vpop.xlane.xlu0 %2123
      %v2125 = vsel %vm1899, %v2051, 0.0
      %2126 = vadd.xlane.f32.xlu0 %v2125
      %v2127 = vpop.xlane.xlu0 %2126
      %v2128 = vsel %vm1899, %v2053, 0.0
      %2129 = vadd.xlane.f32.xlu0 %v2128
      %v2130 = vpop.xlane.xlu0 %2129
      %v2131 = vsel %vm1899, %v2055, 0.0
      %2132 = vadd.xlane.f32.xlu0 %v2131
      %v2133 = vpop.xlane.xlu0 %2132
      %v2134 = vsel %vm1899, %v2057, 0.0
      %2135 = vadd.xlane.f32.xlu0 %v2134
      %v2136 = vpop.xlane.xlu0 %2135
      %v2137 = vsel %vm1899, %v2059, 0.0
      %2138 = vadd.xlane.f32.xlu0 %v2137
      %v2139 = vpop.xlane.xlu0 %2138
      %v2140 = vsel %vm1899, %v2061, 0.0
      %2141 = vadd.xlane.f32.xlu0 %v2140
      %v2142 = vpop.xlane.xlu0 %2141
      %v2143 = vsel %vm1899, %v2063, 0.0
      %2144 = vadd.xlane.f32.xlu0 %v2143
      %v2145 = vpop.xlane.xlu0 %2144
      %v2146 = vsel %vm1899, %v2065, 0.0
      %2147 = vadd.xlane.f32.xlu0 %v2146
      %v2148 = vpop.xlane.xlu0 %2147
      %v2149 = vsel %vm1899, %v2067, 0.0
      %2150 = vadd.xlane.f32.xlu0 %v2149
      %v2151 = vpop.xlane.xlu0 %2150
      %v2152 = vsel %vm1899, %v2069, 0.0
      %2153 = vadd.xlane.f32.xlu0 %v2152
      %v2154 = vpop.xlane.xlu0 %2153
      %v2155 = vsel %vm1899, %v2071, 0.0
      %2156 = vadd.xlane.f32.xlu0 %v2155
      %v2157 = vpop.xlane.xlu0 %2156
      %v2158 = vsel %vm1899, %v2073, 0.0
      %2159 = vadd.xlane.f32.xlu0 %v2158
      %v2160 = vpop.xlane.xlu0 %2159
      %v2161 = vsel %vm1899, %v2075, 0.0
      %2162 = vadd.xlane.f32.xlu0 %v2161
      %v2163 = vpop.xlane.xlu0 %2162
      %v2164 = vsel %vm1899, %v2077, 0.0
      %2165 = vadd.xlane.f32.xlu0 %v2164
      %v2166 = vpop.xlane.xlu0 %2165
      %v2167 = vsel %vm1899, %v2079, 0.0
      %2168 = vadd.xlane.f32.xlu0 %v2167
      %v2169 = vpop.xlane.xlu0 %2168
      %v2170 = vsel %vm1899, %v2081, 0.0
      %2171 = vadd.xlane.f32.xlu0 %v2170
      %v2172 = vpop.xlane.xlu0 %2171
      %v2173 = vsel %vm1899, %v2083, 0.0
      %2174 = vadd.xlane.f32.xlu0 %v2173
      %v2175 = vpop.xlane.xlu0 %2174
      %v2176 = vsel %vm1899, %v2085, 0.0
      %2177 = vadd.xlane.f32.xlu0 %v2176
      %v2178 = vpop.xlane.xlu0 %2177
      %v2179 = vsel %vm1899, %v2087, 0.0
      %2180 = vadd.xlane.f32.xlu0 %v2179
      %v2181 = vpop.xlane.xlu0 %2180
      %v2182 = vsel %vm1899, %v2089, 0.0
      %2183 = vadd.xlane.f32.xlu0 %v2182
      %v2184 = vpop.xlane.xlu0 %2183
      %v2185 = vsel %vm1899, %v2091, 0.0
      %2186 = vadd.xlane.f32.xlu0 %v2185
      %v2187 = vpop.xlane.xlu0 %2186
      %v2188 = vrcp.pop %v2094
      %v2189 = vmul.f32 %v2094, %v2188
      %v2190 = vsub.f32 1.0, %v2189
      %v2191 = vmul.f32 %v2188, %v2190
      %v2192 = vadd.f32 %v2188, %v2191
      %vm2193 = vweird.f32 %v2094
      %vm2194 = vweird.f32 %v2188
      %vm2195 = vmor %vm2193, %vm2194
      %v2196 = vsel %vm2195, %v2188, %v2192
      %v2197 = vand.u32 2147483647, %v2094
      %vm2198 = vcmp.eq.f32.partialorder %v2197, 8.507059e+37
      %v2199 = vand.u32 %v2094, 2147483648
      %v2200 = vor.u32 1.1754944e-38, %v2199
      %v2201 = vsel %vm2198, %v2200, %v2196
      %v2202 = vmul.f32 %v2029, %v2201
      %v2203 = vrcp.pop %v2097
      %v2204 = vmul.f32 %v2097, %v2203
      %v2205 = vsub.f32 1.0, %v2204
      %v2206 = vmul.f32 %v2203, %v2205
      %v2207 = vadd.f32 %v2203, %v2206
      %vm2208 = vweird.f32 %v2097
      %vm2209 = vweird.f32 %v2203
      %vm2210 = vmor %vm2208, %vm2209
      %v2211 = vsel %vm2210, %v2203, %v2207
      %v2212 = vand.u32 2147483647, %v2097
      %vm2213 = vcmp.eq.f32.partialorder %v2212, 8.507059e+37
      %v2214 = vand.u32 %v2097, 2147483648
      %v2215 = vor.u32 1.1754944e-38, %v2214
      %v2216 = vsel %vm2213, %v2215, %v2211
      %v2217 = vmul.f32 %v2031, %v2216
      %v2218 = vrcp.pop %v2100
      %v2219 = vmul.f32 %v2100, %v2218
      %v2220 = vsub.f32 1.0, %v2219
      %v2221 = vmul.f32 %v2218, %v2220
      %v2222 = vadd.f32 %v2218, %v2221
      %vm2223 = vweird.f32 %v2100
      %vm2224 = vweird.f32 %v2218
      %vm2225 = vmor %vm2223, %vm2224
      %v2226 = vsel %vm2225, %v2218, %v2222
      %v2227 = vand.u32 2147483647, %v2100
      %vm2228 = vcmp.eq.f32.partialorder %v2227, 8.507059e+37
      %v2229 = vand.u32 %v2100, 2147483648
      %v2230 = vor.u32 1.1754944e-38, %v2229
      %v2231 = vsel %vm2228, %v2230, %v2226
      %v2232 = vmul.f32 %v2033, %v2231
      %v2233 = vrcp.pop %v2103
      %v2234 = vmul.f32 %v2103, %v2233
      %v2235 = vsub.f32 1.0, %v2234
      %v2236 = vmul.f32 %v2233, %v2235
      %v2237 = vadd.f32 %v2233, %v2236
      %vm2238 = vweird.f32 %v2103
      %vm2239 = vweird.f32 %v2233
      %vm2240 = vmor %vm2238, %vm2239
      %v2241 = vsel %vm2240, %v2233, %v2237
      %v2242 = vand.u32 2147483647, %v2103
      %vm2243 = vcmp.eq.f32.partialorder %v2242, 8.507059e+37
      %v2244 = vand.u32 %v2103, 2147483648
      %v2245 = vor.u32 1.1754944e-38, %v2244
      %v2246 = vsel %vm2243, %v2245, %v2241
      %v2247 = vmul.f32 %v2035, %v2246
      %v2248 = vrcp.pop %v2106
      %v2249 = vmul.f32 %v2106, %v2248
      %v2250 = vsub.f32 1.0, %v2249
      %v2251 = vmul.f32 %v2248, %v2250
      %v2252 = vadd.f32 %v2248, %v2251
      %vm2253 = vweird.f32 %v2106
      %vm2254 = vweird.f32 %v2248
      %vm2255 = vmor %vm2253, %vm2254
      %v2256 = vsel %vm2255, %v2248, %v2252
      %v2257 = vand.u32 2147483647, %v2106
      %vm2258 = vcmp.eq.f32.partialorder %v2257, 8.507059e+37
      %v2259 = vand.u32 %v2106, 2147483648
      %v2260 = vor.u32 1.1754944e-38, %v2259
      %v2261 = vsel %vm2258, %v2260, %v2256
      %v2262 = vmul.f32 %v2037, %v2261
      %v2263 = vrcp.pop %v2109
      %v2264 = vmul.f32 %v2109, %v2263
      %v2265 = vsub.f32 1.0, %v2264
      %v2266 = vmul.f32 %v2263, %v2265
      %v2267 = vadd.f32 %v2263, %v2266
      %vm2268 = vweird.f32 %v2109
      %vm2269 = vweird.f32 %v2263
      %vm2270 = vmor %vm2268, %vm2269
      %v2271 = vsel %vm2270, %v2263, %v2267
      %v2272 = vand.u32 2147483647, %v2109
      %vm2273 = vcmp.eq.f32.partialorder %v2272, 8.507059e+37
      %v2274 = vand.u32 %v2109, 2147483648
      %v2275 = vor.u32 1.1754944e-38, %v2274
      %v2276 = vsel %vm2273, %v2275, %v2271
      %v2277 = vmul.f32 %v2039, %v2276
      %v2278 = vrcp.pop %v2112
      %v2279 = vmul.f32 %v2112, %v2278
      %v2280 = vsub.f32 1.0, %v2279
      %v2281 = vmul.f32 %v2278, %v2280
      %v2282 = vadd.f32 %v2278, %v2281
      %vm2283 = vweird.f32 %v2112
      %vm2284 = vweird.f32 %v2278
      %vm2285 = vmor %vm2283, %vm2284
      %v2286 = vsel %vm2285, %v2278, %v2282
      %v2287 = vand.u32 2147483647, %v2112
      %vm2288 = vcmp.eq.f32.partialorder %v2287, 8.507059e+37
      %v2289 = vand.u32 %v2112, 2147483648
      %v2290 = vor.u32 1.1754944e-38, %v2289
      %v2291 = vsel %vm2288, %v2290, %v2286
      %v2292 = vmul.f32 %v2041, %v2291
      %v2293 = vrcp.pop %v2115
      %v2294 = vmul.f32 %v2115, %v2293
      %v2295 = vsub.f32 1.0, %v2294
      %v2296 = vmul.f32 %v2293, %v2295
      %v2297 = vadd.f32 %v2293, %v2296
      %vm2298 = vweird.f32 %v2115
      %vm2299 = vweird.f32 %v2293
      %vm2300 = vmor %vm2298, %vm2299
      %v2301 = vsel %vm2300, %v2293, %v2297
      %v2302 = vand.u32 2147483647, %v2115
      %vm2303 = vcmp.eq.f32.partialorder %v2302, 8.507059e+37
      %v2304 = vand.u32 %v2115, 2147483648
      %v2305 = vor.u32 1.1754944e-38, %v2304
      %v2306 = vsel %vm2303, %v2305, %v2301
      %v2307 = vmul.f32 %v2043, %v2306
      %v2308 = vrcp.pop %v2118
      %v2309 = vmul.f32 %v2118, %v2308
      %v2310 = vsub.f32 1.0, %v2309
      %v2311 = vmul.f32 %v2308, %v2310
      %v2312 = vadd.f32 %v2308, %v2311
      %vm2313 = vweird.f32 %v2118
      %vm2314 = vweird.f32 %v2308
      %vm2315 = vmor %vm2313, %vm2314
      %v2316 = vsel %vm2315, %v2308, %v2312
      %v2317 = vand.u32 2147483647, %v2118
      %vm2318 = vcmp.eq.f32.partialorder %v2317, 8.507059e+37
      %v2319 = vand.u32 %v2118, 2147483648
      %v2320 = vor.u32 1.1754944e-38, %v2319
      %v2321 = vsel %vm2318, %v2320, %v2316
      %v2322 = vmul.f32 %v2045, %v2321
      %v2323 = vrcp.pop %v2121
      %v2324 = vmul.f32 %v2121, %v2323
      %v2325 = vsub.f32 1.0, %v2324
      %v2326 = vmul.f32 %v2323, %v2325
      %v2327 = vadd.f32 %v2323, %v2326
      %vm2328 = vweird.f32 %v2121
      %vm2329 = vweird.f32 %v2323
      %vm2330 = vmor %vm2328, %vm2329
      %v2331 = vsel %vm2330, %v2323, %v2327
      %v2332 = vand.u32 2147483647, %v2121
      %vm2333 = vcmp.eq.f32.partialorder %v2332, 8.507059e+37
      %v2334 = vand.u32 %v2121, 2147483648
      %v2335 = vor.u32 1.1754944e-38, %v2334
      %v2336 = vsel %vm2333, %v2335, %v2331
      %v2337 = vmul.f32 %v2047, %v2336
      %v2338 = vrcp.pop %v2124
      %v2339 = vmul.f32 %v2124, %v2338
      %v2340 = vsub.f32 1.0, %v2339
      %v2341 = vmul.f32 %v2338, %v2340
      %v2342 = vadd.f32 %v2338, %v2341
      %vm2343 = vweird.f32 %v2124
      %vm2344 = vweird.f32 %v2338
      %vm2345 = vmor %vm2343, %vm2344
      %v2346 = vsel %vm2345, %v2338, %v2342
      %v2347 = vand.u32 2147483647, %v2124
      %vm2348 = vcmp.eq.f32.partialorder %v2347, 8.507059e+37
      %v2349 = vand.u32 %v2124, 2147483648
      %v2350 = vor.u32 1.1754944e-38, %v2349
      %v2351 = vsel %vm2348, %v2350, %v2346
      %v2352 = vmul.f32 %v2049, %v2351
      %v2353 = vrcp.pop %v2127
      %v2354 = vmul.f32 %v2127, %v2353
      %v2355 = vsub.f32 1.0, %v2354
      %v2356 = vmul.f32 %v2353, %v2355
      %v2357 = vadd.f32 %v2353, %v2356
      %vm2358 = vweird.f32 %v2127
      %vm2359 = vweird.f32 %v2353
      %vm2360 = vmor %vm2358, %vm2359
      %v2361 = vsel %vm2360, %v2353, %v2357
      %v2362 = vand.u32 2147483647, %v2127
      %vm2363 = vcmp.eq.f32.partialorder %v2362, 8.507059e+37
      %v2364 = vand.u32 %v2127, 2147483648
      %v2365 = vor.u32 1.1754944e-38, %v2364
      %v2366 = vsel %vm2363, %v2365, %v2361
      %v2367 = vmul.f32 %v2051, %v2366
      %v2368 = vrcp.pop %v2130
      %v2369 = vmul.f32 %v2130, %v2368
      %v2370 = vsub.f32 1.0, %v2369
      %v2371 = vmul.f32 %v2368, %v2370
      %v2372 = vadd.f32 %v2368, %v2371
      %vm2373 = vweird.f32 %v2130
      %vm2374 = vweird.f32 %v2368
      %vm2375 = vmor %vm2373, %vm2374
      %v2376 = vsel %vm2375, %v2368, %v2372
      %v2377 = vand.u32 2147483647, %v2130
      %vm2378 = vcmp.eq.f32.partialorder %v2377, 8.507059e+37
      %v2379 = vand.u32 %v2130, 2147483648
      %v2380 = vor.u32 1.1754944e-38, %v2379
      %v2381 = vsel %vm2378, %v2380, %v2376
      %v2382 = vmul.f32 %v2053, %v2381
      %v2383 = vrcp.pop %v2133
      %v2384 = vmul.f32 %v2133, %v2383
      %v2385 = vsub.f32 1.0, %v2384
      %v2386 = vmul.f32 %v2383, %v2385
      %v2387 = vadd.f32 %v2383, %v2386
      %vm2388 = vweird.f32 %v2133
      %vm2389 = vweird.f32 %v2383
      %vm2390 = vmor %vm2388, %vm2389
      %v2391 = vsel %vm2390, %v2383, %v2387
      %v2392 = vand.u32 2147483647, %v2133
      %vm2393 = vcmp.eq.f32.partialorder %v2392, 8.507059e+37
      %v2394 = vand.u32 %v2133, 2147483648
      %v2395 = vor.u32 1.1754944e-38, %v2394
      %v2396 = vsel %vm2393, %v2395, %v2391
      %v2397 = vmul.f32 %v2055, %v2396
      %v2398 = vrcp.pop %v2136
      %v2399 = vmul.f32 %v2136, %v2398
      %v2400 = vsub.f32 1.0, %v2399
      %v2401 = vmul.f32 %v2398, %v2400
      %v2402 = vadd.f32 %v2398, %v2401
      %vm2403 = vweird.f32 %v2136
      %vm2404 = vweird.f32 %v2398
      %vm2405 = vmor %vm2403, %vm2404
      %v2406 = vsel %vm2405, %v2398, %v2402
      %v2407 = vand.u32 2147483647, %v2136
      %vm2408 = vcmp.eq.f32.partialorder %v2407, 8.507059e+37
      %v2409 = vand.u32 %v2136, 2147483648
      %v2410 = vor.u32 1.1754944e-38, %v2409
      %v2411 = vsel %vm2408, %v2410, %v2406
      %v2412 = vmul.f32 %v2057, %v2411
      %v2413 = vrcp.pop %v2139
      %v2414 = vmul.f32 %v2139, %v2413
      %v2415 = vsub.f32 1.0, %v2414
      %v2416 = vmul.f32 %v2413, %v2415
      %v2417 = vadd.f32 %v2413, %v2416
      %vm2418 = vweird.f32 %v2139
      %vm2419 = vweird.f32 %v2413
      %vm2420 = vmor %vm2418, %vm2419
      %v2421 = vsel %vm2420, %v2413, %v2417
      %v2422 = vand.u32 2147483647, %v2139
      %vm2423 = vcmp.eq.f32.partialorder %v2422, 8.507059e+37
      %v2424 = vand.u32 %v2139, 2147483648
      %v2425 = vor.u32 1.1754944e-38, %v2424
      %v2426 = vsel %vm2423, %v2425, %v2421
      %v2427 = vmul.f32 %v2059, %v2426
      %v2428 = vrcp.pop %v2142
      %v2429 = vmul.f32 %v2142, %v2428
      %v2430 = vsub.f32 1.0, %v2429
      %v2431 = vmul.f32 %v2428, %v2430
      %v2432 = vadd.f32 %v2428, %v2431
      %vm2433 = vweird.f32 %v2142
      %vm2434 = vweird.f32 %v2428
      %vm2435 = vmor %vm2433, %vm2434
      %v2436 = vsel %vm2435, %v2428, %v2432
      %v2437 = vand.u32 2147483647, %v2142
      %vm2438 = vcmp.eq.f32.partialorder %v2437, 8.507059e+37
      %v2439 = vand.u32 %v2142, 2147483648
      %v2440 = vor.u32 1.1754944e-38, %v2439
      %v2441 = vsel %vm2438, %v2440, %v2436
      %v2442 = vmul.f32 %v2061, %v2441
      %v2443 = vrcp.pop %v2145
      %v2444 = vmul.f32 %v2145, %v2443
      %v2445 = vsub.f32 1.0, %v2444
      %v2446 = vmul.f32 %v2443, %v2445
      %v2447 = vadd.f32 %v2443, %v2446
      %vm2448 = vweird.f32 %v2145
      %vm2449 = vweird.f32 %v2443
      %vm2450 = vmor %vm2448, %vm2449
      %v2451 = vsel %vm2450, %v2443, %v2447
      %v2452 = vand.u32 2147483647, %v2145
      %vm2453 = vcmp.eq.f32.partialorder %v2452, 8.507059e+37
      %v2454 = vand.u32 %v2145, 2147483648
      %v2455 = vor.u32 1.1754944e-38, %v2454
      %v2456 = vsel %vm2453, %v2455, %v2451
      %v2457 = vmul.f32 %v2063, %v2456
      %v2458 = vrcp.pop %v2148
      %v2459 = vmul.f32 %v2148, %v2458
      %v2460 = vsub.f32 1.0, %v2459
      %v2461 = vmul.f32 %v2458, %v2460
      %v2462 = vadd.f32 %v2458, %v2461
      %vm2463 = vweird.f32 %v2148
      %vm2464 = vweird.f32 %v2458
      %vm2465 = vmor %vm2463, %vm2464
      %v2466 = vsel %vm2465, %v2458, %v2462
      %v2467 = vand.u32 2147483647, %v2148
      %vm2468 = vcmp.eq.f32.partialorder %v2467, 8.507059e+37
      %v2469 = vand.u32 %v2148, 2147483648
      %v2470 = vor.u32 1.1754944e-38, %v2469
      %v2471 = vsel %vm2468, %v2470, %v2466
      %v2472 = vmul.f32 %v2065, %v2471
      %v2473 = vrcp.pop %v2151
      %v2474 = vmul.f32 %v2151, %v2473
      %v2475 = vsub.f32 1.0, %v2474
      %v2476 = vmul.f32 %v2473, %v2475
      %v2477 = vadd.f32 %v2473, %v2476
      %vm2478 = vweird.f32 %v2151
      %vm2479 = vweird.f32 %v2473
      %vm2480 = vmor %vm2478, %vm2479
      %v2481 = vsel %vm2480, %v2473, %v2477
      %v2482 = vand.u32 2147483647, %v2151
      %vm2483 = vcmp.eq.f32.partialorder %v2482, 8.507059e+37
      %v2484 = vand.u32 %v2151, 2147483648
      %v2485 = vor.u32 1.1754944e-38, %v2484
      %v2486 = vsel %vm2483, %v2485, %v2481
      %v2487 = vmul.f32 %v2067, %v2486
      %v2488 = vrcp.pop %v2154
      %v2489 = vmul.f32 %v2154, %v2488
      %v2490 = vsub.f32 1.0, %v2489
      %v2491 = vmul.f32 %v2488, %v2490
      %v2492 = vadd.f32 %v2488, %v2491
      %vm2493 = vweird.f32 %v2154
      %vm2494 = vweird.f32 %v2488
      %vm2495 = vmor %vm2493, %vm2494
      %v2496 = vsel %vm2495, %v2488, %v2492
      %v2497 = vand.u32 2147483647, %v2154
      %vm2498 = vcmp.eq.f32.partialorder %v2497, 8.507059e+37
      %v2499 = vand.u32 %v2154, 2147483648
      %v2500 = vor.u32 1.1754944e-38, %v2499
      %v2501 = vsel %vm2498, %v2500, %v2496
      %v2502 = vmul.f32 %v2069, %v2501
      %v2503 = vrcp.pop %v2157
      %v2504 = vmul.f32 %v2157, %v2503
      %v2505 = vsub.f32 1.0, %v2504
      %v2506 = vmul.f32 %v2503, %v2505
      %v2507 = vadd.f32 %v2503, %v2506
      %vm2508 = vweird.f32 %v2157
      %vm2509 = vweird.f32 %v2503
      %vm2510 = vmor %vm2508, %vm2509
      %v2511 = vsel %vm2510, %v2503, %v2507
      %v2512 = vand.u32 2147483647, %v2157
      %vm2513 = vcmp.eq.f32.partialorder %v2512, 8.507059e+37
      %v2514 = vand.u32 %v2157, 2147483648
      %v2515 = vor.u32 1.1754944e-38, %v2514
      %v2516 = vsel %vm2513, %v2515, %v2511
      %v2517 = vmul.f32 %v2071, %v2516
      %v2518 = vrcp.pop %v2160
      %v2519 = vmul.f32 %v2160, %v2518
      %v2520 = vsub.f32 1.0, %v2519
      %v2521 = vmul.f32 %v2518, %v2520
      %v2522 = vadd.f32 %v2518, %v2521
      %vm2523 = vweird.f32 %v2160
      %vm2524 = vweird.f32 %v2518
      %vm2525 = vmor %vm2523, %vm2524
      %v2526 = vsel %vm2525, %v2518, %v2522
      %v2527 = vand.u32 2147483647, %v2160
      %vm2528 = vcmp.eq.f32.partialorder %v2527, 8.507059e+37
      %v2529 = vand.u32 %v2160, 2147483648
      %v2530 = vor.u32 1.1754944e-38, %v2529
      %v2531 = vsel %vm2528, %v2530, %v2526
      %v2532 = vmul.f32 %v2073, %v2531
      %v2533 = vrcp.pop %v2163
      %v2534 = vmul.f32 %v2163, %v2533
      %v2535 = vsub.f32 1.0, %v2534
      %v2536 = vmul.f32 %v2533, %v2535
      %v2537 = vadd.f32 %v2533, %v2536
      %vm2538 = vweird.f32 %v2163
      %vm2539 = vweird.f32 %v2533
      %vm2540 = vmor %vm2538, %vm2539
      %v2541 = vsel %vm2540, %v2533, %v2537
      %v2542 = vand.u32 2147483647, %v2163
      %vm2543 = vcmp.eq.f32.partialorder %v2542, 8.507059e+37
      %v2544 = vand.u32 %v2163, 2147483648
      %v2545 = vor.u32 1.1754944e-38, %v2544
      %v2546 = vsel %vm2543, %v2545, %v2541
      %v2547 = vmul.f32 %v2075, %v2546
      %v2548 = vrcp.pop %v2166
      %v2549 = vmul.f32 %v2166, %v2548
      %v2550 = vsub.f32 1.0, %v2549
      %v2551 = vmul.f32 %v2548, %v2550
      %v2552 = vadd.f32 %v2548, %v2551
      %vm2553 = vweird.f32 %v2166
      %vm2554 = vweird.f32 %v2548
      %vm2555 = vmor %vm2553, %vm2554
      %v2556 = vsel %vm2555, %v2548, %v2552
      %v2557 = vand.u32 2147483647, %v2166
      %vm2558 = vcmp.eq.f32.partialorder %v2557, 8.507059e+37
      %v2559 = vand.u32 %v2166, 2147483648
      %v2560 = vor.u32 1.1754944e-38, %v2559
      %v2561 = vsel %vm2558, %v2560, %v2556
      %v2562 = vmul.f32 %v2077, %v2561
      %v2563 = vrcp.pop %v2169
      %v2564 = vmul.f32 %v2169, %v2563
      %v2565 = vsub.f32 1.0, %v2564
      %v2566 = vmul.f32 %v2563, %v2565
      %v2567 = vadd.f32 %v2563, %v2566
      %vm2568 = vweird.f32 %v2169
      %vm2569 = vweird.f32 %v2563
      %vm2570 = vmor %vm2568, %vm2569
      %v2571 = vsel %vm2570, %v2563, %v2567
      %v2572 = vand.u32 2147483647, %v2169
      %vm2573 = vcmp.eq.f32.partialorder %v2572, 8.507059e+37
      %v2574 = vand.u32 %v2169, 2147483648
      %v2575 = vor.u32 1.1754944e-38, %v2574
      %v2576 = vsel %vm2573, %v2575, %v2571
      %v2577 = vmul.f32 %v2079, %v2576
      %v2578 = vrcp.pop %v2172
      %v2579 = vmul.f32 %v2172, %v2578
      %v2580 = vsub.f32 1.0, %v2579
      %v2581 = vmul.f32 %v2578, %v2580
      %v2582 = vadd.f32 %v2578, %v2581
      %vm2583 = vweird.f32 %v2172
      %vm2584 = vweird.f32 %v2578
      %vm2585 = vmor %vm2583, %vm2584
      %v2586 = vsel %vm2585, %v2578, %v2582
      %v2587 = vand.u32 2147483647, %v2172
      %vm2588 = vcmp.eq.f32.partialorder %v2587, 8.507059e+37
      %v2589 = vand.u32 %v2172, 2147483648
      %v2590 = vor.u32 1.1754944e-38, %v2589
      %v2591 = vsel %vm2588, %v2590, %v2586
      %v2592 = vmul.f32 %v2081, %v2591
      %v2593 = vrcp.pop %v2175
      %v2594 = vmul.f32 %v2175, %v2593
      %v2595 = vsub.f32 1.0, %v2594
      %v2596 = vmul.f32 %v2593, %v2595
      %v2597 = vadd.f32 %v2593, %v2596
      %vm2598 = vweird.f32 %v2175
      %vm2599 = vweird.f32 %v2593
      %vm2600 = vmor %vm2598, %vm2599
      %v2601 = vsel %vm2600, %v2593, %v2597
      %v2602 = vand.u32 2147483647, %v2175
      %vm2603 = vcmp.eq.f32.partialorder %v2602, 8.507059e+37
      %v2604 = vand.u32 %v2175, 2147483648
      %v2605 = vor.u32 1.1754944e-38, %v2604
      %v2606 = vsel %vm2603, %v2605, %v2601
      %v2607 = vmul.f32 %v2083, %v2606
      %v2608 = vrcp.pop %v2178
      %v2609 = vmul.f32 %v2178, %v2608
      %v2610 = vsub.f32 1.0, %v2609
      %v2611 = vmul.f32 %v2608, %v2610
      %v2612 = vadd.f32 %v2608, %v2611
      %vm2613 = vweird.f32 %v2178
      %vm2614 = vweird.f32 %v2608
      %vm2615 = vmor %vm2613, %vm2614
      %v2616 = vsel %vm2615, %v2608, %v2612
      %v2617 = vand.u32 2147483647, %v2178
      %vm2618 = vcmp.eq.f32.partialorder %v2617, 8.507059e+37
      %v2619 = vand.u32 %v2178, 2147483648
      %v2620 = vor.u32 1.1754944e-38, %v2619
      %v2621 = vsel %vm2618, %v2620, %v2616
      %v2622 = vmul.f32 %v2085, %v2621
      %v2623 = vrcp.pop %v2181
      %v2624 = vmul.f32 %v2181, %v2623
      %v2625 = vsub.f32 1.0, %v2624
      %v2626 = vmul.f32 %v2623, %v2625
      %v2627 = vadd.f32 %v2623, %v2626
      %vm2628 = vweird.f32 %v2181
      %vm2629 = vweird.f32 %v2623
      %vm2630 = vmor %vm2628, %vm2629
      %v2631 = vsel %vm2630, %v2623, %v2627
      %v2632 = vand.u32 2147483647, %v2181
      %vm2633 = vcmp.eq.f32.partialorder %v2632, 8.507059e+37
      %v2634 = vand.u32 %v2181, 2147483648
      %v2635 = vor.u32 1.1754944e-38, %v2634
      %v2636 = vsel %vm2633, %v2635, %v2631
      %v2637 = vmul.f32 %v2087, %v2636
      %v2638 = vrcp.pop %v2184
      %v2639 = vmul.f32 %v2184, %v2638
      %v2640 = vsub.f32 1.0, %v2639
      %v2641 = vmul.f32 %v2638, %v2640
      %v2642 = vadd.f32 %v2638, %v2641
      %vm2643 = vweird.f32 %v2184
      %vm2644 = vweird.f32 %v2638
      %vm2645 = vmor %vm2643, %vm2644
      %v2646 = vsel %vm2645, %v2638, %v2642
      %v2647 = vand.u32 2147483647, %v2184
      %vm2648 = vcmp.eq.f32.partialorder %v2647, 8.507059e+37
      %v2649 = vand.u32 %v2184, 2147483648
      %v2650 = vor.u32 1.1754944e-38, %v2649
      %v2651 = vsel %vm2648, %v2650, %v2646
      %v2652 = vmul.f32 %v2089, %v2651
      %v2653 = vrcp.pop %v2187
      %v2654 = vmul.f32 %v2187, %v2653
      %v2655 = vsub.f32 1.0, %v2654
      %v2656 = vmul.f32 %v2653, %v2655
      %v2657 = vadd.f32 %v2653, %v2656
      %vm2658 = vweird.f32 %v2187
      %vm2659 = vweird.f32 %v2653
      %vm2660 = vmor %vm2658, %vm2659
      %v2661 = vsel %vm2660, %v2653, %v2657
      %v2662 = vand.u32 2147483647, %v2187
      %vm2663 = vcmp.eq.f32.partialorder %v2662, 8.507059e+37
      %v2664 = vand.u32 %v2187, 2147483648
      %v2665 = vor.u32 1.1754944e-38, %v2664
      %v2666 = vsel %vm2663, %v2665, %v2661
      %v2667 = vmul.f32 %v2091, %v2666
      %2668 = vrot.lane.b32.xlu0 %v1279, 64
      %v2669 = vpop.permute.xlu0 %2668
      %2670 = vrot.lane.b32.xlu0 %v1282, 64
      %v2671 = vpop.permute.xlu0 %2670
      %2672 = vrot.lane.b32.xlu0 %v1285, 64
      %v2673 = vpop.permute.xlu0 %2672
      %2674 = vrot.lane.b32.xlu0 %v1288, 64
      %v2675 = vpop.permute.xlu0 %2674
      %2676 = vrot.lane.b32.xlu0 %v1291, 64
      %v2677 = vpop.permute.xlu0 %2676
      %2678 = vrot.lane.b32.xlu0 %v1294, 64
      %v2679 = vpop.permute.xlu0 %2678
      %2680 = vrot.lane.b32.xlu0 %v1297, 64
      %v2681 = vpop.permute.xlu0 %2680
      %2682 = vrot.lane.b32.xlu0 %v1300, 64
      %v2683 = vpop.permute.xlu0 %2682
      %v2693 = vsel %vm1899, %v2202, 0
      %v2696 = vsel %vm1899, %v2217, 0
      %v2699 = vsel %vm1899, %v2232, 0
      %v2702 = vsel %vm1899, %v2247, 0
      %v2705 = vsel %vm1899, %v2262, 0
      %v2708 = vsel %vm1899, %v2277, 0
      %v2711 = vsel %vm1899, %v2292, 0
      %v2714 = vsel %vm1899, %v2307, 0
      %2716 = vmatpush.msra.mxu0 0.0
      %2717 = vmatpush.msra.mxu0 0.0
      %2718 = vmatpush.msra.mxu0 0.0
      %2719 = vmatpush.msra.mxu0 0.0
      %2720 = vmatpush.msra.mxu0 0.0
      %2721 = vmatpush.msra.mxu0 0.0
      %2722 = vmatpush.msra.mxu0 0.0
      %2723 = vmatpush.msra.mxu0 0.0
      %2724 = vmatpush.msra.mxu0 %v2683
      %2725 = vmatpush.msra.mxu0 %v2681
      %2726 = vmatpush.msra.mxu0 %v2679
      %2727 = vmatpush.msra.mxu0 %v2677
      %2728 = vmatpush.msra.mxu0 %v2675
      %2729 = vmatpush.msra.mxu0 %v2673
      %2730 = vmatpush.msra.mxu0 %v2671
      %2731 = vmatpush.msra.mxu0 %v2669
      %2732 = vmatmul.f32.gmra.mxu0 %v2693
      %v2733 = vpop.f32.mrf.mxu0
      %v2734 = vadd.f32 0.0, %v2733
      %2735 = vmatmul.f32.gmra.mxu0 %v2696
      %v2736 = vpop.f32.mrf.mxu0
      %v2737 = vadd.f32 0.0, %v2736
      %2738 = vmatmul.f32.gmra.mxu0 %v2699
      %v2739 = vpop.f32.mrf.mxu0
      %v2740 = vadd.f32 0.0, %v2739
      %2741 = vmatmul.f32.gmra.mxu0 %v2702
      %v2742 = vpop.f32.mrf.mxu0
      %v2743 = vadd.f32 0.0, %v2742
      %2744 = vmatmul.f32.gmra.mxu0 %v2705
      %v2745 = vpop.f32.mrf.mxu0
      %v2746 = vadd.f32 0.0, %v2745
      %2747 = vmatmul.f32.gmra.mxu0 %v2708
      %v2748 = vpop.f32.mrf.mxu0
      %v2749 = vadd.f32 0.0, %v2748
      %2750 = vmatmul.f32.gmra.mxu0 %v2711
      %v2751 = vpop.f32.mrf.mxu0
      %v2752 = vadd.f32 0.0, %v2751
      %2753 = vmatmul.f32.gmra.mxu0 %v2714
      %v2754 = vpop.f32.mrf.mxu0
      %v2755 = vadd.f32 0.0, %v2754
      %2756 = vdwg.mxu0
      %2757 = vrot.lane.b32.xlu0 %v1303, 64
      %v2758 = vpop.permute.xlu0 %2757
      %2759 = vrot.lane.b32.xlu0 %v1306, 64
      %v2760 = vpop.permute.xlu0 %2759
      %2761 = vrot.lane.b32.xlu0 %v1309, 64
      %v2762 = vpop.permute.xlu0 %2761
      %2763 = vrot.lane.b32.xlu0 %v1312, 64
      %v2764 = vpop.permute.xlu0 %2763
      %2765 = vrot.lane.b32.xlu0 %v1315, 64
      %v2766 = vpop.permute.xlu0 %2765
      %2767 = vrot.lane.b32.xlu0 %v1318, 64
      %v2768 = vpop.permute.xlu0 %2767
      %2769 = vrot.lane.b32.xlu0 %v1321, 64
      %v2770 = vpop.permute.xlu0 %2769
      %2771 = vrot.lane.b32.xlu0 %v1324, 64
      %v2772 = vpop.permute.xlu0 %2771
      %v2782 = vsel %vm1899, %v2322, 0
      %v2785 = vsel %vm1899, %v2337, 0
      %v2788 = vsel %vm1899, %v2352, 0
      %v2791 = vsel %vm1899, %v2367, 0
      %v2794 = vsel %vm1899, %v2382, 0
      %v2797 = vsel %vm1899, %v2397, 0
      %v2800 = vsel %vm1899, %v2412, 0
      %v2803 = vsel %vm1899, %v2427, 0
      %2805 = vmatpush.msra.mxu0 0.0
      %2806 = vmatpush.msra.mxu0 0.0
      %2807 = vmatpush.msra.mxu0 0.0
      %2808 = vmatpush.msra.mxu0 0.0
      %2809 = vmatpush.msra.mxu0 0.0
      %2810 = vmatpush.msra.mxu0 0.0
      %2811 = vmatpush.msra.mxu0 0.0
      %2812 = vmatpush.msra.mxu0 0.0
      %2813 = vmatpush.msra.mxu0 %v2772
      %2814 = vmatpush.msra.mxu0 %v2770
      %2815 = vmatpush.msra.mxu0 %v2768
      %2816 = vmatpush.msra.mxu0 %v2766
      %2817 = vmatpush.msra.mxu0 %v2764
      %2818 = vmatpush.msra.mxu0 %v2762
      %2819 = vmatpush.msra.mxu0 %v2760
      %2820 = vmatpush.msra.mxu0 %v2758
      %2821 = vmatmul.f32.gmra.mxu0 %v2782
      %v2822 = vpop.f32.mrf.mxu0
      %v2823 = vadd.f32 0.0, %v2822
      %2824 = vmatmul.f32.gmra.mxu0 %v2785
      %v2825 = vpop.f32.mrf.mxu0
      %v2826 = vadd.f32 0.0, %v2825
      %2827 = vmatmul.f32.gmra.mxu0 %v2788
      %v2828 = vpop.f32.mrf.mxu0
      %v2829 = vadd.f32 0.0, %v2828
      %2830 = vmatmul.f32.gmra.mxu0 %v2791
      %v2831 = vpop.f32.mrf.mxu0
      %v2832 = vadd.f32 0.0, %v2831
      %2833 = vmatmul.f32.gmra.mxu0 %v2794
      %v2834 = vpop.f32.mrf.mxu0
      %v2835 = vadd.f32 0.0, %v2834
      %2836 = vmatmul.f32.gmra.mxu0 %v2797
      %v2837 = vpop.f32.mrf.mxu0
      %v2838 = vadd.f32 0.0, %v2837
      %2839 = vmatmul.f32.gmra.mxu0 %v2800
      %v2840 = vpop.f32.mrf.mxu0
      %v2841 = vadd.f32 0.0, %v2840
      %2842 = vmatmul.f32.gmra.mxu0 %v2803
      %v2843 = vpop.f32.mrf.mxu0
      %v2844 = vadd.f32 0.0, %v2843
      %2845 = vdwg.mxu0
      %2846 = vrot.lane.b32.xlu0 %v1327, 64
      %v2847 = vpop.permute.xlu0 %2846
      %2848 = vrot.lane.b32.xlu0 %v1330, 64
      %v2849 = vpop.permute.xlu0 %2848
      %2850 = vrot.lane.b32.xlu0 %v1333, 64
      %v2851 = vpop.permute.xlu0 %2850
      %2852 = vrot.lane.b32.xlu0 %v1336, 64
      %v2853 = vpop.permute.xlu0 %2852
      %2854 = vrot.lane.b32.xlu0 %v1339, 64
      %v2855 = vpop.permute.xlu0 %2854
      %2856 = vrot.lane.b32.xlu0 %v1342, 64
      %v2857 = vpop.permute.xlu0 %2856
      %2858 = vrot.lane.b32.xlu0 %v1345, 64
      %v2859 = vpop.permute.xlu0 %2858
      %2860 = vrot.lane.b32.xlu0 %v1348, 64
      %v2861 = vpop.permute.xlu0 %2860
      %v2871 = vsel %vm1899, %v2442, 0
      %v2874 = vsel %vm1899, %v2457, 0
      %v2877 = vsel %vm1899, %v2472, 0
      %v2880 = vsel %vm1899, %v2487, 0
      %v2883 = vsel %vm1899, %v2502, 0
      %v2886 = vsel %vm1899, %v2517, 0
      %v2889 = vsel %vm1899, %v2532, 0
      %v2892 = vsel %vm1899, %v2547, 0
      %2894 = vmatpush.msra.mxu0 0.0
      %2895 = vmatpush.msra.mxu0 0.0
      %2896 = vmatpush.msra.mxu0 0.0
      %2897 = vmatpush.msra.mxu0 0.0
      %2898 = vmatpush.msra.mxu0 0.0
      %2899 = vmatpush.msra.mxu0 0.0
      %2900 = vmatpush.msra.mxu0 0.0
      %2901 = vmatpush.msra.mxu0 0.0
      %2902 = vmatpush.msra.mxu0 %v2861
      %2903 = vmatpush.msra.mxu0 %v2859
      %2904 = vmatpush.msra.mxu0 %v2857
      %2905 = vmatpush.msra.mxu0 %v2855
      %2906 = vmatpush.msra.mxu0 %v2853
      %2907 = vmatpush.msra.mxu0 %v2851
      %2908 = vmatpush.msra.mxu0 %v2849
      %2909 = vmatpush.msra.mxu0 %v2847
      %2910 = vmatmul.f32.gmra.mxu0 %v2871
      %v2911 = vpop.f32.mrf.mxu0
      %v2912 = vadd.f32 0.0, %v2911
      %2913 = vmatmul.f32.gmra.mxu0 %v2874
      %v2914 = vpop.f32.mrf.mxu0
      %v2915 = vadd.f32 0.0, %v2914
      %2916 = vmatmul.f32.gmra.mxu0 %v2877
      %v2917 = vpop.f32.mrf.mxu0
      %v2918 = vadd.f32 0.0, %v2917
      %2919 = vmatmul.f32.gmra.mxu0 %v2880
      %v2920 = vpop.f32.mrf.mxu0
      %v2921 = vadd.f32 0.0, %v2920
      %2922 = vmatmul.f32.gmra.mxu0 %v2883
      %v2923 = vpop.f32.mrf.mxu0
      %v2924 = vadd.f32 0.0, %v2923
      %2925 = vmatmul.f32.gmra.mxu0 %v2886
      %v2926 = vpop.f32.mrf.mxu0
      %v2927 = vadd.f32 0.0, %v2926
      %2928 = vmatmul.f32.gmra.mxu0 %v2889
      %v2929 = vpop.f32.mrf.mxu0
      %v2930 = vadd.f32 0.0, %v2929
      %2931 = vmatmul.f32.gmra.mxu0 %v2892
      %v2932 = vpop.f32.mrf.mxu0
      %v2933 = vadd.f32 0.0, %v2932
      %2934 = vdwg.mxu0
      %2935 = vrot.lane.b32.xlu0 %v1351, 64
      %v2936 = vpop.permute.xlu0 %2935
      %2937 = vrot.lane.b32.xlu0 %v1354, 64
      %v2938 = vpop.permute.xlu0 %2937
      %2939 = vrot.lane.b32.xlu0 %v1357, 64
      %v2940 = vpop.permute.xlu0 %2939
      %2941 = vrot.lane.b32.xlu0 %v1360, 64
      %v2942 = vpop.permute.xlu0 %2941
      %2943 = vrot.lane.b32.xlu0 %v1363, 64
      %v2944 = vpop.permute.xlu0 %2943
      %2945 = vrot.lane.b32.xlu0 %v1366, 64
      %v2946 = vpop.permute.xlu0 %2945
      %2947 = vrot.lane.b32.xlu0 %v1369, 64
      %v2948 = vpop.permute.xlu0 %2947
      %2949 = vrot.lane.b32.xlu0 %v1372, 64
      %v2950 = vpop.permute.xlu0 %2949
      %v2960 = vsel %vm1899, %v2562, 0
      %v2963 = vsel %vm1899, %v2577, 0
      %v2966 = vsel %vm1899, %v2592, 0
      %v2969 = vsel %vm1899, %v2607, 0
      %v2972 = vsel %vm1899, %v2622, 0
      %v2975 = vsel %vm1899, %v2637, 0
      %v2978 = vsel %vm1899, %v2652, 0
      %v2981 = vsel %vm1899, %v2667, 0
      %2983 = vmatpush.msra.mxu0 0.0
      %2984 = vmatpush.msra.mxu0 0.0
      %2985 = vmatpush.msra.mxu0 0.0
      %2986 = vmatpush.msra.mxu0 0.0
      %2987 = vmatpush.msra.mxu0 0.0
      %2988 = vmatpush.msra.mxu0 0.0
      %2989 = vmatpush.msra.mxu0 0.0
      %2990 = vmatpush.msra.mxu0 0.0
      %2991 = vmatpush.msra.mxu0 %v2950
      %2992 = vmatpush.msra.mxu0 %v2948
      %2993 = vmatpush.msra.mxu0 %v2946
      %2994 = vmatpush.msra.mxu0 %v2944
      %2995 = vmatpush.msra.mxu0 %v2942
      %2996 = vmatpush.msra.mxu0 %v2940
      %2997 = vmatpush.msra.mxu0 %v2938
      %2998 = vmatpush.msra.mxu0 %v2936
      %2999 = vmatmul.f32.gmra.mxu0 %v2960
      %v3000 = vpop.f32.mrf.mxu0
      %v3001 = vadd.f32 0.0, %v3000
      %3002 = vmatmul.f32.gmra.mxu0 %v2963
      %v3003 = vpop.f32.mrf.mxu0
      %v3004 = vadd.f32 0.0, %v3003
      %3005 = vmatmul.f32.gmra.mxu0 %v2966
      %v3006 = vpop.f32.mrf.mxu0
      %v3007 = vadd.f32 0.0, %v3006
      %3008 = vmatmul.f32.gmra.mxu0 %v2969
      %v3009 = vpop.f32.mrf.mxu0
      %v3010 = vadd.f32 0.0, %v3009
      %3011 = vmatmul.f32.gmra.mxu0 %v2972
      %v3012 = vpop.f32.mrf.mxu0
      %v3013 = vadd.f32 0.0, %v3012
      %3014 = vmatmul.f32.gmra.mxu0 %v2975
      %v3015 = vpop.f32.mrf.mxu0
      %v3016 = vadd.f32 0.0, %v3015
      %3017 = vmatmul.f32.gmra.mxu0 %v2978
      %v3018 = vpop.f32.mrf.mxu0
      %v3019 = vadd.f32 0.0, %v3018
      %3020 = vmatmul.f32.gmra.mxu0 %v2981
      %v3021 = vpop.f32.mrf.mxu0
      %v3022 = vadd.f32 0.0, %v3021
      %3023 = vdwg.mxu0
      %s3024 = scalar_lea.vmem %s5, 64
      %v3025 = vld [vmem:[%s3024] sm:$0xff]
      %v3026 = vld [vmem:[%s3024 + $0x8] sm:$0xff]
      %v3027 = vld [vmem:[%s3024 + $0x10] sm:$0xff]
      %v3028 = vld [vmem:[%s3024 + $0x18] sm:$0xff]
      %v3029 = vld [vmem:[%s3024 + $0x20] sm:$0xff]
      %v3030 = vld [vmem:[%s3024 + $0x28] sm:$0xff]
      %v3031 = vld [vmem:[%s3024 + $0x30] sm:$0xff]
      %v3032 = vld [vmem:[%s3024 + $0x38] sm:$0xff]
      %3033 = vrot.lane.b32.xlu0 %v1406, 120
      %v3034 = vpop.permute.xlu0 %3033
      %3035 = vrot.lane.b32.xlu0 %v1407, 120
      %v3036 = vpop.permute.xlu0 %3035
      %3037 = vrot.lane.b32.xlu0 %v1408, 120
      %v3038 = vpop.permute.xlu0 %3037
      %3039 = vrot.lane.b32.xlu0 %v1409, 120
      %v3040 = vpop.permute.xlu0 %3039
      %3041 = vrot.lane.b32.xlu0 %v1410, 120
      %v3042 = vpop.permute.xlu0 %3041
      %3043 = vrot.lane.b32.xlu0 %v1411, 120
      %v3044 = vpop.permute.xlu0 %3043
      %3045 = vrot.lane.b32.xlu0 %v1412, 120
      %v3046 = vpop.permute.xlu0 %3045
      %3047 = vrot.lane.b32.xlu0 %v1413, 120
      %v3048 = vpop.permute.xlu0 %3047
      %3049 = vrot.lane.b32.xlu0 %v1279, 88
      %v3050 = vpop.permute.xlu0 %3049
      %3051 = vrot.lane.b32.xlu0 %v1282, 88
      %v3052 = vpop.permute.xlu0 %3051
      %3053 = vrot.lane.b32.xlu0 %v1285, 88
      %v3054 = vpop.permute.xlu0 %3053
      %3055 = vrot.lane.b32.xlu0 %v1288, 88
      %v3056 = vpop.permute.xlu0 %3055
      %3057 = vrot.lane.b32.xlu0 %v1291, 88
      %v3058 = vpop.permute.xlu0 %3057
      %3059 = vrot.lane.b32.xlu0 %v1294, 88
      %v3060 = vpop.permute.xlu0 %3059
      %3061 = vrot.lane.b32.xlu0 %v1297, 88
      %v3062 = vpop.permute.xlu0 %3061
      %3063 = vrot.lane.b32.xlu0 %v1300, 88
      %v3064 = vpop.permute.xlu0 %3063
      %v3065 = vsel %vm1470, %v3034, 0
      %v3067 = vsel %vm1470, %v3036, 0
      %v3069 = vsel %vm1470, %v3038, 0
      %v3071 = vsel %vm1470, %v3040, 0
      %v3073 = vsel %vm1470, %v3042, 0
      %v3075 = vsel %vm1470, %v3044, 0
      %v3077 = vsel %vm1470, %v3046, 0
      %v3079 = vsel %vm1470, %v3048, 0
      %v3081 = vsel %vm1470, %v3050, 0
      %v3083 = vsel %vm1470, %v3052, 0
      %v3085 = vsel %vm1470, %v3054, 0
      %v3087 = vsel %vm1470, %v3056, 0
      %v3089 = vsel %vm1470, %v3058, 0
      %v3091 = vsel %vm1470, %v3060, 0
      %v3093 = vsel %vm1470, %v3062, 0
      %v3095 = vsel %vm1470, %v3064, 0
      %3097 = vmatpush.xpose.msra.mxu0 0.0
      %3098 = vmatpush.xpose.msra.mxu0 0.0
      %3099 = vmatpush.xpose.msra.mxu0 0.0
      %3100 = vmatpush.xpose.msra.mxu0 0.0
      %3101 = vmatpush.xpose.msra.mxu0 0.0
      %3102 = vmatpush.xpose.msra.mxu0 0.0
      %3103 = vmatpush.xpose.msra.mxu0 0.0
      %3104 = vmatpush.xpose.msra.mxu0 0.0
      %3105 = vmatpush.xpose.msra.mxu0 %v3095
      %3106 = vmatpush.xpose.msra.mxu0 %v3093
      %3107 = vmatpush.xpose.msra.mxu0 %v3091
      %3108 = vmatpush.xpose.msra.mxu0 %v3089
      %3109 = vmatpush.xpose.msra.mxu0 %v3087
      %3110 = vmatpush.xpose.msra.mxu0 %v3085
      %3111 = vmatpush.xpose.msra.mxu0 %v3083
      %3112 = vmatpush.xpose.msra.mxu0 %v3081
      %3113 = vmatmul.f32.gmra.mxu0 %v3065
      %v3114 = vpop.f32.mrf.mxu0
      %v3115 = vadd.f32 %v3025, %v3114
      %3116 = vmatmul.f32.gmra.mxu0 %v3067
      %v3117 = vpop.f32.mrf.mxu0
      %v3118 = vadd.f32 %v3026, %v3117
      %3119 = vmatmul.f32.gmra.mxu0 %v3069
      %v3120 = vpop.f32.mrf.mxu0
      %v3121 = vadd.f32 %v3027, %v3120
      %3122 = vmatmul.f32.gmra.mxu0 %v3071
      %v3123 = vpop.f32.mrf.mxu0
      %v3124 = vadd.f32 %v3028, %v3123
      %3125 = vmatmul.f32.gmra.mxu0 %v3073
      %v3126 = vpop.f32.mrf.mxu0
      %v3127 = vadd.f32 %v3029, %v3126
      %3128 = vmatmul.f32.gmra.mxu0 %v3075
      %v3129 = vpop.f32.mrf.mxu0
      %v3130 = vadd.f32 %v3030, %v3129
      %3131 = vmatmul.f32.gmra.mxu0 %v3077
      %v3132 = vpop.f32.mrf.mxu0
      %v3133 = vadd.f32 %v3031, %v3132
      %3134 = vmatmul.f32.gmra.mxu0 %v3079
      %v3135 = vpop.f32.mrf.mxu0
      %v3136 = vadd.f32 %v3032, %v3135
      %3137 = vdwg.mxu0
      %3138 = vrot.lane.b32.xlu0 %v1414, 120
      %v3139 = vpop.permute.xlu0 %3138
      %3140 = vrot.lane.b32.xlu0 %v1415, 120
      %v3141 = vpop.permute.xlu0 %3140
      %3142 = vrot.lane.b32.xlu0 %v1416, 120
      %v3143 = vpop.permute.xlu0 %3142
      %3144 = vrot.lane.b32.xlu0 %v1417, 120
      %v3145 = vpop.permute.xlu0 %3144
      %3146 = vrot.lane.b32.xlu0 %v1418, 120
      %v3147 = vpop.permute.xlu0 %3146
      %3148 = vrot.lane.b32.xlu0 %v1419, 120
      %v3149 = vpop.permute.xlu0 %3148
      %3150 = vrot.lane.b32.xlu0 %v1420, 120
      %v3151 = vpop.permute.xlu0 %3150
      %3152 = vrot.lane.b32.xlu0 %v1421, 120
      %v3153 = vpop.permute.xlu0 %3152
      %3154 = vrot.lane.b32.xlu0 %v1303, 88
      %v3155 = vpop.permute.xlu0 %3154
      %3156 = vrot.lane.b32.xlu0 %v1306, 88
      %v3157 = vpop.permute.xlu0 %3156
      %3158 = vrot.lane.b32.xlu0 %v1309, 88
      %v3159 = vpop.permute.xlu0 %3158
      %3160 = vrot.lane.b32.xlu0 %v1312, 88
      %v3161 = vpop.permute.xlu0 %3160
      %3162 = vrot.lane.b32.xlu0 %v1315, 88
      %v3163 = vpop.permute.xlu0 %3162
      %3164 = vrot.lane.b32.xlu0 %v1318, 88
      %v3165 = vpop.permute.xlu0 %3164
      %3166 = vrot.lane.b32.xlu0 %v1321, 88
      %v3167 = vpop.permute.xlu0 %3166
      %3168 = vrot.lane.b32.xlu0 %v1324, 88
      %v3169 = vpop.permute.xlu0 %3168
      %v3170 = vsel %vm1470, %v3139, 0
      %v3172 = vsel %vm1470, %v3141, 0
      %v3174 = vsel %vm1470, %v3143, 0
      %v3176 = vsel %vm1470, %v3145, 0
      %v3178 = vsel %vm1470, %v3147, 0
      %v3180 = vsel %vm1470, %v3149, 0
      %v3182 = vsel %vm1470, %v3151, 0
      %v3184 = vsel %vm1470, %v3153, 0
      %v3186 = vsel %vm1470, %v3155, 0
      %v3188 = vsel %vm1470, %v3157, 0
      %v3190 = vsel %vm1470, %v3159, 0
      %v3192 = vsel %vm1470, %v3161, 0
      %v3194 = vsel %vm1470, %v3163, 0
      %v3196 = vsel %vm1470, %v3165, 0
      %v3198 = vsel %vm1470, %v3167, 0
      %v3200 = vsel %vm1470, %v3169, 0
      %3202 = vmatpush.xpose.msra.mxu0 0.0
      %3203 = vmatpush.xpose.msra.mxu0 0.0
      %3204 = vmatpush.xpose.msra.mxu0 0.0
      %3205 = vmatpush.xpose.msra.mxu0 0.0
      %3206 = vmatpush.xpose.msra.mxu0 0.0
      %3207 = vmatpush.xpose.msra.mxu0 0.0
      %3208 = vmatpush.xpose.msra.mxu0 0.0
      %3209 = vmatpush.xpose.msra.mxu0 0.0
      %3210 = vmatpush.xpose.msra.mxu0 %v3200
      %3211 = vmatpush.xpose.msra.mxu0 %v3198
      %3212 = vmatpush.xpose.msra.mxu0 %v3196
      %3213 = vmatpush.xpose.msra.mxu0 %v3194
      %3214 = vmatpush.xpose.msra.mxu0 %v3192
      %3215 = vmatpush.xpose.msra.mxu0 %v3190
      %3216 = vmatpush.xpose.msra.mxu0 %v3188
      %3217 = vmatpush.xpose.msra.mxu0 %v3186
      %3218 = vmatmul.f32.gmra.mxu0 %v3170
      %v3219 = vpop.f32.mrf.mxu0
      %v3220 = vadd.f32 %v3025, %v3219
      %3221 = vmatmul.f32.gmra.mxu0 %v3172
      %v3222 = vpop.f32.mrf.mxu0
      %v3223 = vadd.f32 %v3026, %v3222
      %3224 = vmatmul.f32.gmra.mxu0 %v3174
      %v3225 = vpop.f32.mrf.mxu0
      %v3226 = vadd.f32 %v3027, %v3225
      %3227 = vmatmul.f32.gmra.mxu0 %v3176
      %v3228 = vpop.f32.mrf.mxu0
      %v3229 = vadd.f32 %v3028, %v3228
      %3230 = vmatmul.f32.gmra.mxu0 %v3178
      %v3231 = vpop.f32.mrf.mxu0
      %v3232 = vadd.f32 %v3029, %v3231
      %3233 = vmatmul.f32.gmra.mxu0 %v3180
      %v3234 = vpop.f32.mrf.mxu0
      %v3235 = vadd.f32 %v3030, %v3234
      %3236 = vmatmul.f32.gmra.mxu0 %v3182
      %v3237 = vpop.f32.mrf.mxu0
      %v3238 = vadd.f32 %v3031, %v3237
      %3239 = vmatmul.f32.gmra.mxu0 %v3184
      %v3240 = vpop.f32.mrf.mxu0
      %v3241 = vadd.f32 %v3032, %v3240
      %3242 = vdwg.mxu0
      %3243 = vrot.lane.b32.xlu0 %v1422, 120
      %v3244 = vpop.permute.xlu0 %3243
      %3245 = vrot.lane.b32.xlu0 %v1423, 120
      %v3246 = vpop.permute.xlu0 %3245
      %3247 = vrot.lane.b32.xlu0 %v1424, 120
      %v3248 = vpop.permute.xlu0 %3247
      %3249 = vrot.lane.b32.xlu0 %v1425, 120
      %v3250 = vpop.permute.xlu0 %3249
      %3251 = vrot.lane.b32.xlu0 %v1426, 120
      %v3252 = vpop.permute.xlu0 %3251
      %3253 = vrot.lane.b32.xlu0 %v1427, 120
      %v3254 = vpop.permute.xlu0 %3253
      %3255 = vrot.lane.b32.xlu0 %v1428, 120
      %v3256 = vpop.permute.xlu0 %3255
      %3257 = vrot.lane.b32.xlu0 %v1429, 120
      %v3258 = vpop.permute.xlu0 %3257
      %3259 = vrot.lane.b32.xlu0 %v1327, 88
      %v3260 = vpop.permute.xlu0 %3259
      %3261 = vrot.lane.b32.xlu0 %v1330, 88
      %v3262 = vpop.permute.xlu0 %3261
      %3263 = vrot.lane.b32.xlu0 %v1333, 88
      %v3264 = vpop.permute.xlu0 %3263
      %3265 = vrot.lane.b32.xlu0 %v1336, 88
      %v3266 = vpop.permute.xlu0 %3265
      %3267 = vrot.lane.b32.xlu0 %v1339, 88
      %v3268 = vpop.permute.xlu0 %3267
      %3269 = vrot.lane.b32.xlu0 %v1342, 88
      %v3270 = vpop.permute.xlu0 %3269
      %3271 = vrot.lane.b32.xlu0 %v1345, 88
      %v3272 = vpop.permute.xlu0 %3271
      %3273 = vrot.lane.b32.xlu0 %v1348, 88
      %v3274 = vpop.permute.xlu0 %3273
      %v3275 = vsel %vm1470, %v3244, 0
      %v3277 = vsel %vm1470, %v3246, 0
      %v3279 = vsel %vm1470, %v3248, 0
      %v3281 = vsel %vm1470, %v3250, 0
      %v3283 = vsel %vm1470, %v3252, 0
      %v3285 = vsel %vm1470, %v3254, 0
      %v3287 = vsel %vm1470, %v3256, 0
      %v3289 = vsel %vm1470, %v3258, 0
      %v3291 = vsel %vm1470, %v3260, 0
      %v3293 = vsel %vm1470, %v3262, 0
      %v3295 = vsel %vm1470, %v3264, 0
      %v3297 = vsel %vm1470, %v3266, 0
      %v3299 = vsel %vm1470, %v3268, 0
      %v3301 = vsel %vm1470, %v3270, 0
      %v3303 = vsel %vm1470, %v3272, 0
      %v3305 = vsel %vm1470, %v3274, 0
      %3307 = vmatpush.xpose.msra.mxu0 0.0
      %3308 = vmatpush.xpose.msra.mxu0 0.0
      %3309 = vmatpush.xpose.msra.mxu0 0.0
      %3310 = vmatpush.xpose.msra.mxu0 0.0
      %3311 = vmatpush.xpose.msra.mxu0 0.0
      %3312 = vmatpush.xpose.msra.mxu0 0.0
      %3313 = vmatpush.xpose.msra.mxu0 0.0
      %3314 = vmatpush.xpose.msra.mxu0 0.0
      %3315 = vmatpush.xpose.msra.mxu0 %v3305
      %3316 = vmatpush.xpose.msra.mxu0 %v3303
      %3317 = vmatpush.xpose.msra.mxu0 %v3301
      %3318 = vmatpush.xpose.msra.mxu0 %v3299
      %3319 = vmatpush.xpose.msra.mxu0 %v3297
      %3320 = vmatpush.xpose.msra.mxu0 %v3295
      %3321 = vmatpush.xpose.msra.mxu0 %v3293
      %3322 = vmatpush.xpose.msra.mxu0 %v3291
      %3323 = vmatmul.f32.gmra.mxu0 %v3275
      %v3324 = vpop.f32.mrf.mxu0
      %v3325 = vadd.f32 %v3025, %v3324
      %3326 = vmatmul.f32.gmra.mxu0 %v3277
      %v3327 = vpop.f32.mrf.mxu0
      %v3328 = vadd.f32 %v3026, %v3327
      %3329 = vmatmul.f32.gmra.mxu0 %v3279
      %v3330 = vpop.f32.mrf.mxu0
      %v3331 = vadd.f32 %v3027, %v3330
      %3332 = vmatmul.f32.gmra.mxu0 %v3281
      %v3333 = vpop.f32.mrf.mxu0
      %v3334 = vadd.f32 %v3028, %v3333
      %3335 = vmatmul.f32.gmra.mxu0 %v3283
      %v3336 = vpop.f32.mrf.mxu0
      %v3337 = vadd.f32 %v3029, %v3336
      %3338 = vmatmul.f32.gmra.mxu0 %v3285
      %v3339 = vpop.f32.mrf.mxu0
      %v3340 = vadd.f32 %v3030, %v3339
      %3341 = vmatmul.f32.gmra.mxu0 %v3287
      %v3342 = vpop.f32.mrf.mxu0
      %v3343 = vadd.f32 %v3031, %v3342
      %3344 = vmatmul.f32.gmra.mxu0 %v3289
      %v3345 = vpop.f32.mrf.mxu0
      %v3346 = vadd.f32 %v3032, %v3345
      %3347 = vdwg.mxu0
      %3348 = vrot.lane.b32.xlu0 %v1430, 120
      %v3349 = vpop.permute.xlu0 %3348
      %3350 = vrot.lane.b32.xlu0 %v1431, 120
      %v3351 = vpop.permute.xlu0 %3350
      %3352 = vrot.lane.b32.xlu0 %v1432, 120
      %v3353 = vpop.permute.xlu0 %3352
      %3354 = vrot.lane.b32.xlu0 %v1433, 120
      %v3355 = vpop.permute.xlu0 %3354
      %3356 = vrot.lane.b32.xlu0 %v1434, 120
      %v3357 = vpop.permute.xlu0 %3356
      %3358 = vrot.lane.b32.xlu0 %v1435, 120
      %v3359 = vpop.permute.xlu0 %3358
      %3360 = vrot.lane.b32.xlu0 %v1436, 120
      %v3361 = vpop.permute.xlu0 %3360
      %3362 = vrot.lane.b32.xlu0 %v1437, 120
      %v3363 = vpop.permute.xlu0 %3362
      %3364 = vrot.lane.b32.xlu0 %v1351, 88
      %v3365 = vpop.permute.xlu0 %3364
      %3366 = vrot.lane.b32.xlu0 %v1354, 88
      %v3367 = vpop.permute.xlu0 %3366
      %3368 = vrot.lane.b32.xlu0 %v1357, 88
      %v3369 = vpop.permute.xlu0 %3368
      %3370 = vrot.lane.b32.xlu0 %v1360, 88
      %v3371 = vpop.permute.xlu0 %3370
      %3372 = vrot.lane.b32.xlu0 %v1363, 88
      %v3373 = vpop.permute.xlu0 %3372
      %3374 = vrot.lane.b32.xlu0 %v1366, 88
      %v3375 = vpop.permute.xlu0 %3374
      %3376 = vrot.lane.b32.xlu0 %v1369, 88
      %v3377 = vpop.permute.xlu0 %3376
      %3378 = vrot.lane.b32.xlu0 %v1372, 88
      %v3379 = vpop.permute.xlu0 %3378
      %v3380 = vsel %vm1470, %v3349, 0
      %v3382 = vsel %vm1470, %v3351, 0
      %v3384 = vsel %vm1470, %v3353, 0
      %v3386 = vsel %vm1470, %v3355, 0
      %v3388 = vsel %vm1470, %v3357, 0
      %v3390 = vsel %vm1470, %v3359, 0
      %v3392 = vsel %vm1470, %v3361, 0
      %v3394 = vsel %vm1470, %v3363, 0
      %v3396 = vsel %vm1470, %v3365, 0
      %v3398 = vsel %vm1470, %v3367, 0
      %v3400 = vsel %vm1470, %v3369, 0
      %v3402 = vsel %vm1470, %v3371, 0
      %v3404 = vsel %vm1470, %v3373, 0
      %v3406 = vsel %vm1470, %v3375, 0
      %v3408 = vsel %vm1470, %v3377, 0
      %v3410 = vsel %vm1470, %v3379, 0
      %3412 = vmatpush.xpose.msra.mxu0 0.0
      %3413 = vmatpush.xpose.msra.mxu0 0.0
      %3414 = vmatpush.xpose.msra.mxu0 0.0
      %3415 = vmatpush.xpose.msra.mxu0 0.0
      %3416 = vmatpush.xpose.msra.mxu0 0.0
      %3417 = vmatpush.xpose.msra.mxu0 0.0
      %3418 = vmatpush.xpose.msra.mxu0 0.0
      %3419 = vmatpush.xpose.msra.mxu0 0.0
      %3420 = vmatpush.xpose.msra.mxu0 %v3410
      %3421 = vmatpush.xpose.msra.mxu0 %v3408
      %3422 = vmatpush.xpose.msra.mxu0 %v3406
      %3423 = vmatpush.xpose.msra.mxu0 %v3404
      %3424 = vmatpush.xpose.msra.mxu0 %v3402
      %3425 = vmatpush.xpose.msra.mxu0 %v3400
      %3426 = vmatpush.xpose.msra.mxu0 %v3398
      %3427 = vmatpush.xpose.msra.mxu0 %v3396
      %3428 = vmatmul.f32.gmra.mxu0 %v3380
      %v3429 = vpop.f32.mrf.mxu0
      %v3430 = vadd.f32 %v3025, %v3429
      %3431 = vmatmul.f32.gmra.mxu0 %v3382
      %v3432 = vpop.f32.mrf.mxu0
      %v3433 = vadd.f32 %v3026, %v3432
      %3434 = vmatmul.f32.gmra.mxu0 %v3384
      %v3435 = vpop.f32.mrf.mxu0
      %v3436 = vadd.f32 %v3027, %v3435
      %3437 = vmatmul.f32.gmra.mxu0 %v3386
      %v3438 = vpop.f32.mrf.mxu0
      %v3439 = vadd.f32 %v3028, %v3438
      %3440 = vmatmul.f32.gmra.mxu0 %v3388
      %v3441 = vpop.f32.mrf.mxu0
      %v3442 = vadd.f32 %v3029, %v3441
      %3443 = vmatmul.f32.gmra.mxu0 %v3390
      %v3444 = vpop.f32.mrf.mxu0
      %v3445 = vadd.f32 %v3030, %v3444
      %3446 = vmatmul.f32.gmra.mxu0 %v3392
      %v3447 = vpop.f32.mrf.mxu0
      %v3448 = vadd.f32 %v3031, %v3447
      %3449 = vmatmul.f32.gmra.mxu0 %v3394
      %v3450 = vpop.f32.mrf.mxu0
      %v3451 = vadd.f32 %v3032, %v3450
      %3452 = vdwg.mxu0
      %v3453 = vadd.f32 %v3115, %v1374
      %v3454 = vadd.f32 %v3118, %v1375
      %v3455 = vadd.f32 %v3121, %v1376
      %v3456 = vadd.f32 %v3124, %v1377
      %v3457 = vadd.f32 %v3127, %v1378
      %v3458 = vadd.f32 %v3130, %v1379
      %v3459 = vadd.f32 %v3133, %v1380
      %v3460 = vadd.f32 %v3136, %v1381
      %v3461 = vadd.f32 %v3220, %v1382
      %v3462 = vadd.f32 %v3223, %v1383
      %v3463 = vadd.f32 %v3226, %v1384
      %v3464 = vadd.f32 %v3229, %v1385
      %v3465 = vadd.f32 %v3232, %v1386
      %v3466 = vadd.f32 %v3235, %v1387
      %v3467 = vadd.f32 %v3238, %v1388
      %v3468 = vadd.f32 %v3241, %v1389
      %v3469 = vadd.f32 %v3325, %v1390
      %v3470 = vadd.f32 %v3328, %v1391
      %v3471 = vadd.f32 %v3331, %v1392
      %v3472 = vadd.f32 %v3334, %v1393
      %v3473 = vadd.f32 %v3337, %v1394
      %v3474 = vadd.f32 %v3340, %v1395
      %v3475 = vadd.f32 %v3343, %v1396
      %v3476 = vadd.f32 %v3346, %v1397
      %v3477 = vadd.f32 %v3430, %v1398
      %v3478 = vadd.f32 %v3433, %v1399
      %v3479 = vadd.f32 %v3436, %v1400
      %v3480 = vadd.f32 %v3439, %v1401
      %v3481 = vadd.f32 %v3442, %v1402
      %v3482 = vadd.f32 %v3445, %v1403
      %v3483 = vadd.f32 %v3448, %v1404
      %v3484 = vadd.f32 %v3451, %v1405
      %v3485 = vsel %vm1899, %v3453, -inf
      %3486 = vmax.xlane.f32.xlu0 %v3485
      %v3487 = vpop.xlane.xlu0 %3486
      %v3488 = vsel %vm1899, %v3454, -inf
      %3489 = vmax.xlane.f32.xlu0 %v3488
      %v3490 = vpop.xlane.xlu0 %3489
      %v3491 = vsel %vm1899, %v3455, -inf
      %3492 = vmax.xlane.f32.xlu0 %v3491
      %v3493 = vpop.xlane.xlu0 %3492
      %v3494 = vsel %vm1899, %v3456, -inf
      %3495 = vmax.xlane.f32.xlu0 %v3494
      %v3496 = vpop.xlane.xlu0 %3495
      %v3497 = vsel %vm1899, %v3457, -inf
      %3498 = vmax.xlane.f32.xlu0 %v3497
      %v3499 = vpop.xlane.xlu0 %3498
      %v3500 = vsel %vm1899, %v3458, -inf
      %3501 = vmax.xlane.f32.xlu0 %v3500
      %v3502 = vpop.xlane.xlu0 %3501
      %v3503 = vsel %vm1899, %v3459, -inf
      %3504 = vmax.xlane.f32.xlu0 %v3503
      %v3505 = vpop.xlane.xlu0 %3504
      %v3506 = vsel %vm1899, %v3460, -inf
      %3507 = vmax.xlane.f32.xlu0 %v3506
      %v3508 = vpop.xlane.xlu0 %3507
      %v3509 = vsel %vm1899, %v3461, -inf
      %3510 = vmax.xlane.f32.xlu0 %v3509
      %v3511 = vpop.xlane.xlu0 %3510
      %v3512 = vsel %vm1899, %v3462, -inf
      %3513 = vmax.xlane.f32.xlu0 %v3512
      %v3514 = vpop.xlane.xlu0 %3513
      %v3515 = vsel %vm1899, %v3463, -inf
      %3516 = vmax.xlane.f32.xlu0 %v3515
      %v3517 = vpop.xlane.xlu0 %3516
      %v3518 = vsel %vm1899, %v3464, -inf
      %3519 = vmax.xlane.f32.xlu0 %v3518
      %v3520 = vpop.xlane.xlu0 %3519
      %v3521 = vsel %vm1899, %v3465, -inf
      %3522 = vmax.xlane.f32.xlu0 %v3521
      %v3523 = vpop.xlane.xlu0 %3522
      %v3524 = vsel %vm1899, %v3466, -inf
      %3525 = vmax.xlane.f32.xlu0 %v3524
      %v3526 = vpop.xlane.xlu0 %3525
      %v3527 = vsel %vm1899, %v3467, -inf
      %3528 = vmax.xlane.f32.xlu0 %v3527
      %v3529 = vpop.xlane.xlu0 %3528
      %v3530 = vsel %vm1899, %v3468, -inf
      %3531 = vmax.xlane.f32.xlu0 %v3530
      %v3532 = vpop.xlane.xlu0 %3531
      %v3533 = vsel %vm1899, %v3469, -inf
      %3534 = vmax.xlane.f32.xlu0 %v3533
      %v3535 = vpop.xlane.xlu0 %3534
      %v3536 = vsel %vm1899, %v3470, -inf
      %3537 = vmax.xlane.f32.xlu0 %v3536
      %v3538 = vpop.xlane.xlu0 %3537
      %v3539 = vsel %vm1899, %v3471, -inf
      %3540 = vmax.xlane.f32.xlu0 %v3539
      %v3541 = vpop.xlane.xlu0 %3540
      %v3542 = vsel %vm1899, %v3472, -inf
      %3543 = vmax.xlane.f32.xlu0 %v3542
      %v3544 = vpop.xlane.xlu0 %3543
      %v3545 = vsel %vm1899, %v3473, -inf
      %3546 = vmax.xlane.f32.xlu0 %v3545
      %v3547 = vpop.xlane.xlu0 %3546
      %v3548 = vsel %vm1899, %v3474, -inf
      %3549 = vmax.xlane.f32.xlu0 %v3548
      %v3550 = vpop.xlane.xlu0 %3549
      %v3551 = vsel %vm1899, %v3475, -inf
      %3552 = vmax.xlane.f32.xlu0 %v3551
      %v3553 = vpop.xlane.xlu0 %3552
      %v3554 = vsel %vm1899, %v3476, -inf
      %3555 = vmax.xlane.f32.xlu0 %v3554
      %v3556 = vpop.xlane.xlu0 %3555
      %v3557 = vsel %vm1899, %v3477, -inf
      %3558 = vmax.xlane.f32.xlu0 %v3557
      %v3559 = vpop.xlane.xlu0 %3558
      %v3560 = vsel %vm1899, %v3478, -inf
      %3561 = vmax.xlane.f32.xlu0 %v3560
      %v3562 = vpop.xlane.xlu0 %3561
      %v3563 = vsel %vm1899, %v3479, -inf
      %3564 = vmax.xlane.f32.xlu0 %v3563
      %v3565 = vpop.xlane.xlu0 %3564
      %v3566 = vsel %vm1899, %v3480, -inf
      %3567 = vmax.xlane.f32.xlu0 %v3566
      %v3568 = vpop.xlane.xlu0 %3567
      %v3569 = vsel %vm1899, %v3481, -inf
      %3570 = vmax.xlane.f32.xlu0 %v3569
      %v3571 = vpop.xlane.xlu0 %3570
      %v3572 = vsel %vm1899, %v3482, -inf
      %3573 = vmax.xlane.f32.xlu0 %v3572
      %v3574 = vpop.xlane.xlu0 %3573
      %v3575 = vsel %vm1899, %v3483, -inf
      %3576 = vmax.xlane.f32.xlu0 %v3575
      %v3577 = vpop.xlane.xlu0 %3576
      %v3578 = vsel %vm1899, %v3484, -inf
      %3579 = vmax.xlane.f32.xlu0 %v3578
      %v3580 = vpop.xlane.xlu0 %3579
      %v3581 = vsub.f32 %v3453, %v3487
      %v3582 = vsub.f32 %v3454, %v3490
      %v3583 = vsub.f32 %v3455, %v3493
      %v3584 = vsub.f32 %v3456, %v3496
      %v3585 = vsub.f32 %v3457, %v3499
      %v3586 = vsub.f32 %v3458, %v3502
      %v3587 = vsub.f32 %v3459, %v3505
      %v3588 = vsub.f32 %v3460, %v3508
      %v3589 = vsub.f32 %v3461, %v3511
      %v3590 = vsub.f32 %v3462, %v3514
      %v3591 = vsub.f32 %v3463, %v3517
      %v3592 = vsub.f32 %v3464, %v3520
      %v3593 = vsub.f32 %v3465, %v3523
      %v3594 = vsub.f32 %v3466, %v3526
      %v3595 = vsub.f32 %v3467, %v3529
      %v3596 = vsub.f32 %v3468, %v3532
      %v3597 = vsub.f32 %v3469, %v3535
      %v3598 = vsub.f32 %v3470, %v3538
      %v3599 = vsub.f32 %v3471, %v3541
      %v3600 = vsub.f32 %v3472, %v3544
      %v3601 = vsub.f32 %v3473, %v3547
      %v3602 = vsub.f32 %v3474, %v3550
      %v3603 = vsub.f32 %v3475, %v3553
      %v3604 = vsub.f32 %v3476, %v3556
      %v3605 = vsub.f32 %v3477, %v3559
      %v3606 = vsub.f32 %v3478, %v3562
      %v3607 = vsub.f32 %v3479, %v3565
      %v3608 = vsub.f32 %v3480, %v3568
      %v3609 = vsub.f32 %v3481, %v3571
      %v3610 = vsub.f32 %v3482, %v3574
      %v3611 = vsub.f32 %v3483, %v3577
      %v3612 = vsub.f32 %v3484, %v3580
      %v3613 = vmul.f32 %v3581, 1.442695
      %v3614 = vpow.pop %v3613
      %v3615 = vmul.f32 %v3582, 1.442695
      %v3616 = vpow.pop %v3615
      %v3617 = vmul.f32 %v3583, 1.442695
      %v3618 = vpow.pop %v3617
      %v3619 = vmul.f32 %v3584, 1.442695
      %v3620 = vpow.pop %v3619
      %v3621 = vmul.f32 %v3585, 1.442695
      %v3622 = vpow.pop %v3621
      %v3623 = vmul.f32 %v3586, 1.442695
      %v3624 = vpow.pop %v3623
      %v3625 = vmul.f32 %v3587, 1.442695
      %v3626 = vpow.pop %v3625
      %v3627 = vmul.f32 %v3588, 1.442695
      %v3628 = vpow.pop %v3627
      %v3629 = vmul.f32 %v3589, 1.442695
      %v3630 = vpow.pop %v3629
      %v3631 = vmul.f32 %v3590, 1.442695
      %v3632 = vpow.pop %v3631
      %v3633 = vmul.f32 %v3591, 1.442695
      %v3634 = vpow.pop %v3633
      %v3635 = vmul.f32 %v3592, 1.442695
      %v3636 = vpow.pop %v3635
      %v3637 = vmul.f32 %v3593, 1.442695
      %v3638 = vpow.pop %v3637
      %v3639 = vmul.f32 %v3594, 1.442695
      %v3640 = vpow.pop %v3639
      %v3641 = vmul.f32 %v3595, 1.442695
      %v3642 = vpow.pop %v3641
      %v3643 = vmul.f32 %v3596, 1.442695
      %v3644 = vpow.pop %v3643
      %v3645 = vmul.f32 %v3597, 1.442695
      %v3646 = vpow.pop %v3645
      %v3647 = vmul.f32 %v3598, 1.442695
      %v3648 = vpow.pop %v3647
      %v3649 = vmul.f32 %v3599, 1.442695
      %v3650 = vpow.pop %v3649
      %v3651 = vmul.f32 %v3600, 1.442695
      %v3652 = vpow.pop %v3651
      %v3653 = vmul.f32 %v3601, 1.442695
      %v3654 = vpow.pop %v3653
      %v3655 = vmul.f32 %v3602, 1.442695
      %v3656 = vpow.pop %v3655
      %v3657 = vmul.f32 %v3603, 1.442695
      %v3658 = vpow.pop %v3657
      %v3659 = vmul.f32 %v3604, 1.442695
      %v3660 = vpow.pop %v3659
      %v3661 = vmul.f32 %v3605, 1.442695
      %v3662 = vpow.pop %v3661
      %v3663 = vmul.f32 %v3606, 1.442695
      %v3664 = vpow.pop %v3663
      %v3665 = vmul.f32 %v3607, 1.442695
      %v3666 = vpow.pop %v3665
      %v3667 = vmul.f32 %v3608, 1.442695
      %v3668 = vpow.pop %v3667
      %v3669 = vmul.f32 %v3609, 1.442695
      %v3670 = vpow.pop %v3669
      %v3671 = vmul.f32 %v3610, 1.442695
      %v3672 = vpow.pop %v3671
      %v3673 = vmul.f32 %v3611, 1.442695
      %v3674 = vpow.pop %v3673
      %v3675 = vmul.f32 %v3612, 1.442695
      %v3676 = vpow.pop %v3675
      %v3677 = vsel %vm1899, %v3614, 0.0
      %3678 = vadd.xlane.f32.xlu0 %v3677
      %v3679 = vpop.xlane.xlu0 %3678
      %v3680 = vsel %vm1899, %v3616, 0.0
      %3681 = vadd.xlane.f32.xlu0 %v3680
      %v3682 = vpop.xlane.xlu0 %3681
      %v3683 = vsel %vm1899, %v3618, 0.0
      %3684 = vadd.xlane.f32.xlu0 %v3683
      %v3685 = vpop.xlane.xlu0 %3684
      %v3686 = vsel %vm1899, %v3620, 0.0
      %3687 = vadd.xlane.f32.xlu0 %v3686
      %v3688 = vpop.xlane.xlu0 %3687
      %v3689 = vsel %vm1899, %v3622, 0.0
      %3690 = vadd.xlane.f32.xlu0 %v3689
      %v3691 = vpop.xlane.xlu0 %3690
      %v3692 = vsel %vm1899, %v3624, 0.0
      %3693 = vadd.xlane.f32.xlu0 %v3692
      %v3694 = vpop.xlane.xlu0 %3693
      %v3695 = vsel %vm1899, %v3626, 0.0
      %3696 = vadd.xlane.f32.xlu0 %v3695
      %v3697 = vpop.xlane.xlu0 %3696
      %v3698 = vsel %vm1899, %v3628, 0.0
      %3699 = vadd.xlane.f32.xlu0 %v3698
      %v3700 = vpop.xlane.xlu0 %3699
      %v3701 = vsel %vm1899, %v3630, 0.0
      %3702 = vadd.xlane.f32.xlu0 %v3701
      %v3703 = vpop.xlane.xlu0 %3702
      %v3704 = vsel %vm1899, %v3632, 0.0
      %3705 = vadd.xlane.f32.xlu0 %v3704
      %v3706 = vpop.xlane.xlu0 %3705
      %v3707 = vsel %vm1899, %v3634, 0.0
      %3708 = vadd.xlane.f32.xlu0 %v3707
      %v3709 = vpop.xlane.xlu0 %3708
      %v3710 = vsel %vm1899, %v3636, 0.0
      %3711 = vadd.xlane.f32.xlu0 %v3710
      %v3712 = vpop.xlane.xlu0 %3711
      %v3713 = vsel %vm1899, %v3638, 0.0
      %3714 = vadd.xlane.f32.xlu0 %v3713
      %v3715 = vpop.xlane.xlu0 %3714
      %v3716 = vsel %vm1899, %v3640, 0.0
      %3717 = vadd.xlane.f32.xlu0 %v3716
      %v3718 = vpop.xlane.xlu0 %3717
      %v3719 = vsel %vm1899, %v3642, 0.0
      %3720 = vadd.xlane.f32.xlu0 %v3719
      %v3721 = vpop.xlane.xlu0 %3720
      %v3722 = vsel %vm1899, %v3644, 0.0
      %3723 = vadd.xlane.f32.xlu0 %v3722
      %v3724 = vpop.xlane.xlu0 %3723
      %v3725 = vsel %vm1899, %v3646, 0.0
      %3726 = vadd.xlane.f32.xlu0 %v3725
      %v3727 = vpop.xlane.xlu0 %3726
      %v3728 = vsel %vm1899, %v3648, 0.0
      %3729 = vadd.xlane.f32.xlu0 %v3728
      %v3730 = vpop.xlane.xlu0 %3729
      %v3731 = vsel %vm1899, %v3650, 0.0
      %3732 = vadd.xlane.f32.xlu0 %v3731
      %v3733 = vpop.xlane.xlu0 %3732
      %v3734 = vsel %vm1899, %v3652, 0.0
      %3735 = vadd.xlane.f32.xlu0 %v3734
      %v3736 = vpop.xlane.xlu0 %3735
      %v3737 = vsel %vm1899, %v3654, 0.0
      %3738 = vadd.xlane.f32.xlu0 %v3737
      %v3739 = vpop.xlane.xlu0 %3738
      %v3740 = vsel %vm1899, %v3656, 0.0
      %3741 = vadd.xlane.f32.xlu0 %v3740
      %v3742 = vpop.xlane.xlu0 %3741
      %v3743 = vsel %vm1899, %v3658, 0.0
      %3744 = vadd.xlane.f32.xlu0 %v3743
      %v3745 = vpop.xlane.xlu0 %3744
      %v3746 = vsel %vm1899, %v3660, 0.0
      %3747 = vadd.xlane.f32.xlu0 %v3746
      %v3748 = vpop.xlane.xlu0 %3747
      %v3749 = vsel %vm1899, %v3662, 0.0
      %3750 = vadd.xlane.f32.xlu0 %v3749
      %v3751 = vpop.xlane.xlu0 %3750
      %v3752 = vsel %vm1899, %v3664, 0.0
      %3753 = vadd.xlane.f32.xlu0 %v3752
      %v3754 = vpop.xlane.xlu0 %3753
      %v3755 = vsel %vm1899, %v3666, 0.0
      %3756 = vadd.xlane.f32.xlu0 %v3755
      %v3757 = vpop.xlane.xlu0 %3756
      %v3758 = vsel %vm1899, %v3668, 0.0
      %3759 = vadd.xlane.f32.xlu0 %v3758
      %v3760 = vpop.xlane.xlu0 %3759
      %v3761 = vsel %vm1899, %v3670, 0.0
      %3762 = vadd.xlane.f32.xlu0 %v3761
      %v3763 = vpop.xlane.xlu0 %3762
      %v3764 = vsel %vm1899, %v3672, 0.0
      %3765 = vadd.xlane.f32.xlu0 %v3764
      %v3766 = vpop.xlane.xlu0 %3765
      %v3767 = vsel %vm1899, %v3674, 0.0
      %3768 = vadd.xlane.f32.xlu0 %v3767
      %v3769 = vpop.xlane.xlu0 %3768
      %v3770 = vsel %vm1899, %v3676, 0.0
      %3771 = vadd.xlane.f32.xlu0 %v3770
      %v3772 = vpop.xlane.xlu0 %3771
      %v3773 = vrcp.pop %v3679
      %v3774 = vmul.f32 %v3679, %v3773
      %v3775 = vsub.f32 1.0, %v3774
      %v3776 = vmul.f32 %v3773, %v3775
      %v3777 = vadd.f32 %v3773, %v3776
      %vm3778 = vweird.f32 %v3679
      %vm3779 = vweird.f32 %v3773
      %vm3780 = vmor %vm3778, %vm3779
      %v3781 = vsel %vm3780, %v3773, %v3777
      %v3782 = vand.u32 2147483647, %v3679
      %vm3783 = vcmp.eq.f32.partialorder %v3782, 8.507059e+37
      %v3784 = vand.u32 %v3679, 2147483648
      %v3785 = vor.u32 1.1754944e-38, %v3784
      %v3786 = vsel %vm3783, %v3785, %v3781
      %v3787 = vmul.f32 %v3614, %v3786
      %v3788 = vrcp.pop %v3682
      %v3789 = vmul.f32 %v3682, %v3788
      %v3790 = vsub.f32 1.0, %v3789
      %v3791 = vmul.f32 %v3788, %v3790
      %v3792 = vadd.f32 %v3788, %v3791
      %vm3793 = vweird.f32 %v3682
      %vm3794 = vweird.f32 %v3788
      %vm3795 = vmor %vm3793, %vm3794
      %v3796 = vsel %vm3795, %v3788, %v3792
      %v3797 = vand.u32 2147483647, %v3682
      %vm3798 = vcmp.eq.f32.partialorder %v3797, 8.507059e+37
      %v3799 = vand.u32 %v3682, 2147483648
      %v3800 = vor.u32 1.1754944e-38, %v3799
      %v3801 = vsel %vm3798, %v3800, %v3796
      %v3802 = vmul.f32 %v3616, %v3801
      %v3803 = vrcp.pop %v3685
      %v3804 = vmul.f32 %v3685, %v3803
      %v3805 = vsub.f32 1.0, %v3804
      %v3806 = vmul.f32 %v3803, %v3805
      %v3807 = vadd.f32 %v3803, %v3806
      %vm3808 = vweird.f32 %v3685
      %vm3809 = vweird.f32 %v3803
      %vm3810 = vmor %vm3808, %vm3809
      %v3811 = vsel %vm3810, %v3803, %v3807
      %v3812 = vand.u32 2147483647, %v3685
      %vm3813 = vcmp.eq.f32.partialorder %v3812, 8.507059e+37
      %v3814 = vand.u32 %v3685, 2147483648
      %v3815 = vor.u32 1.1754944e-38, %v3814
      %v3816 = vsel %vm3813, %v3815, %v3811
      %v3817 = vmul.f32 %v3618, %v3816
      %v3818 = vrcp.pop %v3688
      %v3819 = vmul.f32 %v3688, %v3818
      %v3820 = vsub.f32 1.0, %v3819
      %v3821 = vmul.f32 %v3818, %v3820
      %v3822 = vadd.f32 %v3818, %v3821
      %vm3823 = vweird.f32 %v3688
      %vm3824 = vweird.f32 %v3818
      %vm3825 = vmor %vm3823, %vm3824
      %v3826 = vsel %vm3825, %v3818, %v3822
      %v3827 = vand.u32 2147483647, %v3688
      %vm3828 = vcmp.eq.f32.partialorder %v3827, 8.507059e+37
      %v3829 = vand.u32 %v3688, 2147483648
      %v3830 = vor.u32 1.1754944e-38, %v3829
      %v3831 = vsel %vm3828, %v3830, %v3826
      %v3832 = vmul.f32 %v3620, %v3831
      %v3833 = vrcp.pop %v3691
      %v3834 = vmul.f32 %v3691, %v3833
      %v3835 = vsub.f32 1.0, %v3834
      %v3836 = vmul.f32 %v3833, %v3835
      %v3837 = vadd.f32 %v3833, %v3836
      %vm3838 = vweird.f32 %v3691
      %vm3839 = vweird.f32 %v3833
      %vm3840 = vmor %vm3838, %vm3839
      %v3841 = vsel %vm3840, %v3833, %v3837
      %v3842 = vand.u32 2147483647, %v3691
      %vm3843 = vcmp.eq.f32.partialorder %v3842, 8.507059e+37
      %v3844 = vand.u32 %v3691, 2147483648
      %v3845 = vor.u32 1.1754944e-38, %v3844
      %v3846 = vsel %vm3843, %v3845, %v3841
      %v3847 = vmul.f32 %v3622, %v3846
      %v3848 = vrcp.pop %v3694
      %v3849 = vmul.f32 %v3694, %v3848
      %v3850 = vsub.f32 1.0, %v3849
      %v3851 = vmul.f32 %v3848, %v3850
      %v3852 = vadd.f32 %v3848, %v3851
      %vm3853 = vweird.f32 %v3694
      %vm3854 = vweird.f32 %v3848
      %vm3855 = vmor %vm3853, %vm3854
      %v3856 = vsel %vm3855, %v3848, %v3852
      %v3857 = vand.u32 2147483647, %v3694
      %vm3858 = vcmp.eq.f32.partialorder %v3857, 8.507059e+37
      %v3859 = vand.u32 %v3694, 2147483648
      %v3860 = vor.u32 1.1754944e-38, %v3859
      %v3861 = vsel %vm3858, %v3860, %v3856
      %v3862 = vmul.f32 %v3624, %v3861
      %v3863 = vrcp.pop %v3697
      %v3864 = vmul.f32 %v3697, %v3863
      %v3865 = vsub.f32 1.0, %v3864
      %v3866 = vmul.f32 %v3863, %v3865
      %v3867 = vadd.f32 %v3863, %v3866
      %vm3868 = vweird.f32 %v3697
      %vm3869 = vweird.f32 %v3863
      %vm3870 = vmor %vm3868, %vm3869
      %v3871 = vsel %vm3870, %v3863, %v3867
      %v3872 = vand.u32 2147483647, %v3697
      %vm3873 = vcmp.eq.f32.partialorder %v3872, 8.507059e+37
      %v3874 = vand.u32 %v3697, 2147483648
      %v3875 = vor.u32 1.1754944e-38, %v3874
      %v3876 = vsel %vm3873, %v3875, %v3871
      %v3877 = vmul.f32 %v3626, %v3876
      %v3878 = vrcp.pop %v3700
      %v3879 = vmul.f32 %v3700, %v3878
      %v3880 = vsub.f32 1.0, %v3879
      %v3881 = vmul.f32 %v3878, %v3880
      %v3882 = vadd.f32 %v3878, %v3881
      %vm3883 = vweird.f32 %v3700
      %vm3884 = vweird.f32 %v3878
      %vm3885 = vmor %vm3883, %vm3884
      %v3886 = vsel %vm3885, %v3878, %v3882
      %v3887 = vand.u32 2147483647, %v3700
      %vm3888 = vcmp.eq.f32.partialorder %v3887, 8.507059e+37
      %v3889 = vand.u32 %v3700, 2147483648
      %v3890 = vor.u32 1.1754944e-38, %v3889
      %v3891 = vsel %vm3888, %v3890, %v3886
      %v3892 = vmul.f32 %v3628, %v3891
      %v3893 = vrcp.pop %v3703
      %v3894 = vmul.f32 %v3703, %v3893
      %v3895 = vsub.f32 1.0, %v3894
      %v3896 = vmul.f32 %v3893, %v3895
      %v3897 = vadd.f32 %v3893, %v3896
      %vm3898 = vweird.f32 %v3703
      %vm3899 = vweird.f32 %v3893
      %vm3900 = vmor %vm3898, %vm3899
      %v3901 = vsel %vm3900, %v3893, %v3897
      %v3902 = vand.u32 2147483647, %v3703
      %vm3903 = vcmp.eq.f32.partialorder %v3902, 8.507059e+37
      %v3904 = vand.u32 %v3703, 2147483648
      %v3905 = vor.u32 1.1754944e-38, %v3904
      %v3906 = vsel %vm3903, %v3905, %v3901
      %v3907 = vmul.f32 %v3630, %v3906
      %v3908 = vrcp.pop %v3706
      %v3909 = vmul.f32 %v3706, %v3908
      %v3910 = vsub.f32 1.0, %v3909
      %v3911 = vmul.f32 %v3908, %v3910
      %v3912 = vadd.f32 %v3908, %v3911
      %vm3913 = vweird.f32 %v3706
      %vm3914 = vweird.f32 %v3908
      %vm3915 = vmor %vm3913, %vm3914
      %v3916 = vsel %vm3915, %v3908, %v3912
      %v3917 = vand.u32 2147483647, %v3706
      %vm3918 = vcmp.eq.f32.partialorder %v3917, 8.507059e+37
      %v3919 = vand.u32 %v3706, 2147483648
      %v3920 = vor.u32 1.1754944e-38, %v3919
      %v3921 = vsel %vm3918, %v3920, %v3916
      %v3922 = vmul.f32 %v3632, %v3921
      %v3923 = vrcp.pop %v3709
      %v3924 = vmul.f32 %v3709, %v3923
      %v3925 = vsub.f32 1.0, %v3924
      %v3926 = vmul.f32 %v3923, %v3925
      %v3927 = vadd.f32 %v3923, %v3926
      %vm3928 = vweird.f32 %v3709
      %vm3929 = vweird.f32 %v3923
      %vm3930 = vmor %vm3928, %vm3929
      %v3931 = vsel %vm3930, %v3923, %v3927
      %v3932 = vand.u32 2147483647, %v3709
      %vm3933 = vcmp.eq.f32.partialorder %v3932, 8.507059e+37
      %v3934 = vand.u32 %v3709, 2147483648
      %v3935 = vor.u32 1.1754944e-38, %v3934
      %v3936 = vsel %vm3933, %v3935, %v3931
      %v3937 = vmul.f32 %v3634, %v3936
      %v3938 = vrcp.pop %v3712
      %v3939 = vmul.f32 %v3712, %v3938
      %v3940 = vsub.f32 1.0, %v3939
      %v3941 = vmul.f32 %v3938, %v3940
      %v3942 = vadd.f32 %v3938, %v3941
      %vm3943 = vweird.f32 %v3712
      %vm3944 = vweird.f32 %v3938
      %vm3945 = vmor %vm3943, %vm3944
      %v3946 = vsel %vm3945, %v3938, %v3942
      %v3947 = vand.u32 2147483647, %v3712
      %vm3948 = vcmp.eq.f32.partialorder %v3947, 8.507059e+37
      %v3949 = vand.u32 %v3712, 2147483648
      %v3950 = vor.u32 1.1754944e-38, %v3949
      %v3951 = vsel %vm3948, %v3950, %v3946
      %v3952 = vmul.f32 %v3636, %v3951
      %v3953 = vrcp.pop %v3715
      %v3954 = vmul.f32 %v3715, %v3953
      %v3955 = vsub.f32 1.0, %v3954
      %v3956 = vmul.f32 %v3953, %v3955
      %v3957 = vadd.f32 %v3953, %v3956
      %vm3958 = vweird.f32 %v3715
      %vm3959 = vweird.f32 %v3953
      %vm3960 = vmor %vm3958, %vm3959
      %v3961 = vsel %vm3960, %v3953, %v3957
      %v3962 = vand.u32 2147483647, %v3715
      %vm3963 = vcmp.eq.f32.partialorder %v3962, 8.507059e+37
      %v3964 = vand.u32 %v3715, 2147483648
      %v3965 = vor.u32 1.1754944e-38, %v3964
      %v3966 = vsel %vm3963, %v3965, %v3961
      %v3967 = vmul.f32 %v3638, %v3966
      %v3968 = vrcp.pop %v3718
      %v3969 = vmul.f32 %v3718, %v3968
      %v3970 = vsub.f32 1.0, %v3969
      %v3971 = vmul.f32 %v3968, %v3970
      %v3972 = vadd.f32 %v3968, %v3971
      %vm3973 = vweird.f32 %v3718
      %vm3974 = vweird.f32 %v3968
      %vm3975 = vmor %vm3973, %vm3974
      %v3976 = vsel %vm3975, %v3968, %v3972
      %v3977 = vand.u32 2147483647, %v3718
      %vm3978 = vcmp.eq.f32.partialorder %v3977, 8.507059e+37
      %v3979 = vand.u32 %v3718, 2147483648
      %v3980 = vor.u32 1.1754944e-38, %v3979
      %v3981 = vsel %vm3978, %v3980, %v3976
      %v3982 = vmul.f32 %v3640, %v3981
      %v3983 = vrcp.pop %v3721
      %v3984 = vmul.f32 %v3721, %v3983
      %v3985 = vsub.f32 1.0, %v3984
      %v3986 = vmul.f32 %v3983, %v3985
      %v3987 = vadd.f32 %v3983, %v3986
      %vm3988 = vweird.f32 %v3721
      %vm3989 = vweird.f32 %v3983
      %vm3990 = vmor %vm3988, %vm3989
      %v3991 = vsel %vm3990, %v3983, %v3987
      %v3992 = vand.u32 2147483647, %v3721
      %vm3993 = vcmp.eq.f32.partialorder %v3992, 8.507059e+37
      %v3994 = vand.u32 %v3721, 2147483648
      %v3995 = vor.u32 1.1754944e-38, %v3994
      %v3996 = vsel %vm3993, %v3995, %v3991
      %v3997 = vmul.f32 %v3642, %v3996
      %v3998 = vrcp.pop %v3724
      %v3999 = vmul.f32 %v3724, %v3998
      %v4000 = vsub.f32 1.0, %v3999
      %v4001 = vmul.f32 %v3998, %v4000
      %v4002 = vadd.f32 %v3998, %v4001
      %vm4003 = vweird.f32 %v3724
      %vm4004 = vweird.f32 %v3998
      %vm4005 = vmor %vm4003, %vm4004
      %v4006 = vsel %vm4005, %v3998, %v4002
      %v4007 = vand.u32 2147483647, %v3724
      %vm4008 = vcmp.eq.f32.partialorder %v4007, 8.507059e+37
      %v4009 = vand.u32 %v3724, 2147483648
      %v4010 = vor.u32 1.1754944e-38, %v4009
      %v4011 = vsel %vm4008, %v4010, %v4006
      %v4012 = vmul.f32 %v3644, %v4011
      %v4013 = vrcp.pop %v3727
      %v4014 = vmul.f32 %v3727, %v4013
      %v4015 = vsub.f32 1.0, %v4014
      %v4016 = vmul.f32 %v4013, %v4015
      %v4017 = vadd.f32 %v4013, %v4016
      %vm4018 = vweird.f32 %v3727
      %vm4019 = vweird.f32 %v4013
      %vm4020 = vmor %vm4018, %vm4019
      %v4021 = vsel %vm4020, %v4013, %v4017
      %v4022 = vand.u32 2147483647, %v3727
      %vm4023 = vcmp.eq.f32.partialorder %v4022, 8.507059e+37
      %v4024 = vand.u32 %v3727, 2147483648
      %v4025 = vor.u32 1.1754944e-38, %v4024
      %v4026 = vsel %vm4023, %v4025, %v4021
      %v4027 = vmul.f32 %v3646, %v4026
      %v4028 = vrcp.pop %v3730
      %v4029 = vmul.f32 %v3730, %v4028
      %v4030 = vsub.f32 1.0, %v4029
      %v4031 = vmul.f32 %v4028, %v4030
      %v4032 = vadd.f32 %v4028, %v4031
      %vm4033 = vweird.f32 %v3730
      %vm4034 = vweird.f32 %v4028
      %vm4035 = vmor %vm4033, %vm4034
      %v4036 = vsel %vm4035, %v4028, %v4032
      %v4037 = vand.u32 2147483647, %v3730
      %vm4038 = vcmp.eq.f32.partialorder %v4037, 8.507059e+37
      %v4039 = vand.u32 %v3730, 2147483648
      %v4040 = vor.u32 1.1754944e-38, %v4039
      %v4041 = vsel %vm4038, %v4040, %v4036
      %v4042 = vmul.f32 %v3648, %v4041
      %v4043 = vrcp.pop %v3733
      %v4044 = vmul.f32 %v3733, %v4043
      %v4045 = vsub.f32 1.0, %v4044
      %v4046 = vmul.f32 %v4043, %v4045
      %v4047 = vadd.f32 %v4043, %v4046
      %vm4048 = vweird.f32 %v3733
      %vm4049 = vweird.f32 %v4043
      %vm4050 = vmor %vm4048, %vm4049
      %v4051 = vsel %vm4050, %v4043, %v4047
      %v4052 = vand.u32 2147483647, %v3733
      %vm4053 = vcmp.eq.f32.partialorder %v4052, 8.507059e+37
      %v4054 = vand.u32 %v3733, 2147483648
      %v4055 = vor.u32 1.1754944e-38, %v4054
      %v4056 = vsel %vm4053, %v4055, %v4051
      %v4057 = vmul.f32 %v3650, %v4056
      %v4058 = vrcp.pop %v3736
      %v4059 = vmul.f32 %v3736, %v4058
      %v4060 = vsub.f32 1.0, %v4059
      %v4061 = vmul.f32 %v4058, %v4060
      %v4062 = vadd.f32 %v4058, %v4061
      %vm4063 = vweird.f32 %v3736
      %vm4064 = vweird.f32 %v4058
      %vm4065 = vmor %vm4063, %vm4064
      %v4066 = vsel %vm4065, %v4058, %v4062
      %v4067 = vand.u32 2147483647, %v3736
      %vm4068 = vcmp.eq.f32.partialorder %v4067, 8.507059e+37
      %v4069 = vand.u32 %v3736, 2147483648
      %v4070 = vor.u32 1.1754944e-38, %v4069
      %v4071 = vsel %vm4068, %v4070, %v4066
      %v4072 = vmul.f32 %v3652, %v4071
      %v4073 = vrcp.pop %v3739
      %v4074 = vmul.f32 %v3739, %v4073
      %v4075 = vsub.f32 1.0, %v4074
      %v4076 = vmul.f32 %v4073, %v4075
      %v4077 = vadd.f32 %v4073, %v4076
      %vm4078 = vweird.f32 %v3739
      %vm4079 = vweird.f32 %v4073
      %vm4080 = vmor %vm4078, %vm4079
      %v4081 = vsel %vm4080, %v4073, %v4077
      %v4082 = vand.u32 2147483647, %v3739
      %vm4083 = vcmp.eq.f32.partialorder %v4082, 8.507059e+37
      %v4084 = vand.u32 %v3739, 2147483648
      %v4085 = vor.u32 1.1754944e-38, %v4084
      %v4086 = vsel %vm4083, %v4085, %v4081
      %v4087 = vmul.f32 %v3654, %v4086
      %v4088 = vrcp.pop %v3742
      %v4089 = vmul.f32 %v3742, %v4088
      %v4090 = vsub.f32 1.0, %v4089
      %v4091 = vmul.f32 %v4088, %v4090
      %v4092 = vadd.f32 %v4088, %v4091
      %vm4093 = vweird.f32 %v3742
      %vm4094 = vweird.f32 %v4088
      %vm4095 = vmor %vm4093, %vm4094
      %v4096 = vsel %vm4095, %v4088, %v4092
      %v4097 = vand.u32 2147483647, %v3742
      %vm4098 = vcmp.eq.f32.partialorder %v4097, 8.507059e+37
      %v4099 = vand.u32 %v3742, 2147483648
      %v4100 = vor.u32 1.1754944e-38, %v4099
      %v4101 = vsel %vm4098, %v4100, %v4096
      %v4102 = vmul.f32 %v3656, %v4101
      %v4103 = vrcp.pop %v3745
      %v4104 = vmul.f32 %v3745, %v4103
      %v4105 = vsub.f32 1.0, %v4104
      %v4106 = vmul.f32 %v4103, %v4105
      %v4107 = vadd.f32 %v4103, %v4106
      %vm4108 = vweird.f32 %v3745
      %vm4109 = vweird.f32 %v4103
      %vm4110 = vmor %vm4108, %vm4109
      %v4111 = vsel %vm4110, %v4103, %v4107
      %v4112 = vand.u32 2147483647, %v3745
      %vm4113 = vcmp.eq.f32.partialorder %v4112, 8.507059e+37
      %v4114 = vand.u32 %v3745, 2147483648
      %v4115 = vor.u32 1.1754944e-38, %v4114
      %v4116 = vsel %vm4113, %v4115, %v4111
      %v4117 = vmul.f32 %v3658, %v4116
      %v4118 = vrcp.pop %v3748
      %v4119 = vmul.f32 %v3748, %v4118
      %v4120 = vsub.f32 1.0, %v4119
      %v4121 = vmul.f32 %v4118, %v4120
      %v4122 = vadd.f32 %v4118, %v4121
      %vm4123 = vweird.f32 %v3748
      %vm4124 = vweird.f32 %v4118
      %vm4125 = vmor %vm4123, %vm4124
      %v4126 = vsel %vm4125, %v4118, %v4122
      %v4127 = vand.u32 2147483647, %v3748
      %vm4128 = vcmp.eq.f32.partialorder %v4127, 8.507059e+37
      %v4129 = vand.u32 %v3748, 2147483648
      %v4130 = vor.u32 1.1754944e-38, %v4129
      %v4131 = vsel %vm4128, %v4130, %v4126
      %v4132 = vmul.f32 %v3660, %v4131
      %v4133 = vrcp.pop %v3751
      %v4134 = vmul.f32 %v3751, %v4133
      %v4135 = vsub.f32 1.0, %v4134
      %v4136 = vmul.f32 %v4133, %v4135
      %v4137 = vadd.f32 %v4133, %v4136
      %vm4138 = vweird.f32 %v3751
      %vm4139 = vweird.f32 %v4133
      %vm4140 = vmor %vm4138, %vm4139
      %v4141 = vsel %vm4140, %v4133, %v4137
      %v4142 = vand.u32 2147483647, %v3751
      %vm4143 = vcmp.eq.f32.partialorder %v4142, 8.507059e+37
      %v4144 = vand.u32 %v3751, 2147483648
      %v4145 = vor.u32 1.1754944e-38, %v4144
      %v4146 = vsel %vm4143, %v4145, %v4141
      %v4147 = vmul.f32 %v3662, %v4146
      %v4148 = vrcp.pop %v3754
      %v4149 = vmul.f32 %v3754, %v4148
      %v4150 = vsub.f32 1.0, %v4149
      %v4151 = vmul.f32 %v4148, %v4150
      %v4152 = vadd.f32 %v4148, %v4151
      %vm4153 = vweird.f32 %v3754
      %vm4154 = vweird.f32 %v4148
      %vm4155 = vmor %vm4153, %vm4154
      %v4156 = vsel %vm4155, %v4148, %v4152
      %v4157 = vand.u32 2147483647, %v3754
      %vm4158 = vcmp.eq.f32.partialorder %v4157, 8.507059e+37
      %v4159 = vand.u32 %v3754, 2147483648
      %v4160 = vor.u32 1.1754944e-38, %v4159
      %v4161 = vsel %vm4158, %v4160, %v4156
      %v4162 = vmul.f32 %v3664, %v4161
      %v4163 = vrcp.pop %v3757
      %v4164 = vmul.f32 %v3757, %v4163
      %v4165 = vsub.f32 1.0, %v4164
      %v4166 = vmul.f32 %v4163, %v4165
      %v4167 = vadd.f32 %v4163, %v4166
      %vm4168 = vweird.f32 %v3757
      %vm4169 = vweird.f32 %v4163
      %vm4170 = vmor %vm4168, %vm4169
      %v4171 = vsel %vm4170, %v4163, %v4167
      %v4172 = vand.u32 2147483647, %v3757
      %vm4173 = vcmp.eq.f32.partialorder %v4172, 8.507059e+37
      %v4174 = vand.u32 %v3757, 2147483648
      %v4175 = vor.u32 1.1754944e-38, %v4174
      %v4176 = vsel %vm4173, %v4175, %v4171
      %v4177 = vmul.f32 %v3666, %v4176
      %v4178 = vrcp.pop %v3760
      %v4179 = vmul.f32 %v3760, %v4178
      %v4180 = vsub.f32 1.0, %v4179
      %v4181 = vmul.f32 %v4178, %v4180
      %v4182 = vadd.f32 %v4178, %v4181
      %vm4183 = vweird.f32 %v3760
      %vm4184 = vweird.f32 %v4178
      %vm4185 = vmor %vm4183, %vm4184
      %v4186 = vsel %vm4185, %v4178, %v4182
      %v4187 = vand.u32 2147483647, %v3760
      %vm4188 = vcmp.eq.f32.partialorder %v4187, 8.507059e+37
      %v4189 = vand.u32 %v3760, 2147483648
      %v4190 = vor.u32 1.1754944e-38, %v4189
      %v4191 = vsel %vm4188, %v4190, %v4186
      %v4192 = vmul.f32 %v3668, %v4191
      %v4193 = vrcp.pop %v3763
      %v4194 = vmul.f32 %v3763, %v4193
      %v4195 = vsub.f32 1.0, %v4194
      %v4196 = vmul.f32 %v4193, %v4195
      %v4197 = vadd.f32 %v4193, %v4196
      %vm4198 = vweird.f32 %v3763
      %vm4199 = vweird.f32 %v4193
      %vm4200 = vmor %vm4198, %vm4199
      %v4201 = vsel %vm4200, %v4193, %v4197
      %v4202 = vand.u32 2147483647, %v3763
      %vm4203 = vcmp.eq.f32.partialorder %v4202, 8.507059e+37
      %v4204 = vand.u32 %v3763, 2147483648
      %v4205 = vor.u32 1.1754944e-38, %v4204
      %v4206 = vsel %vm4203, %v4205, %v4201
      %v4207 = vmul.f32 %v3670, %v4206
      %v4208 = vrcp.pop %v3766
      %v4209 = vmul.f32 %v3766, %v4208
      %v4210 = vsub.f32 1.0, %v4209
      %v4211 = vmul.f32 %v4208, %v4210
      %v4212 = vadd.f32 %v4208, %v4211
      %vm4213 = vweird.f32 %v3766
      %vm4214 = vweird.f32 %v4208
      %vm4215 = vmor %vm4213, %vm4214
      %v4216 = vsel %vm4215, %v4208, %v4212
      %v4217 = vand.u32 2147483647, %v3766
      %vm4218 = vcmp.eq.f32.partialorder %v4217, 8.507059e+37
      %v4219 = vand.u32 %v3766, 2147483648
      %v4220 = vor.u32 1.1754944e-38, %v4219
      %v4221 = vsel %vm4218, %v4220, %v4216
      %v4222 = vmul.f32 %v3672, %v4221
      %v4223 = vrcp.pop %v3769
      %v4224 = vmul.f32 %v3769, %v4223
      %v4225 = vsub.f32 1.0, %v4224
      %v4226 = vmul.f32 %v4223, %v4225
      %v4227 = vadd.f32 %v4223, %v4226
      %vm4228 = vweird.f32 %v3769
      %vm4229 = vweird.f32 %v4223
      %vm4230 = vmor %vm4228, %vm4229
      %v4231 = vsel %vm4230, %v4223, %v4227
      %v4232 = vand.u32 2147483647, %v3769
      %vm4233 = vcmp.eq.f32.partialorder %v4232, 8.507059e+37
      %v4234 = vand.u32 %v3769, 2147483648
      %v4235 = vor.u32 1.1754944e-38, %v4234
      %v4236 = vsel %vm4233, %v4235, %v4231
      %v4237 = vmul.f32 %v3674, %v4236
      %v4238 = vrcp.pop %v3772
      %v4239 = vmul.f32 %v3772, %v4238
      %v4240 = vsub.f32 1.0, %v4239
      %v4241 = vmul.f32 %v4238, %v4240
      %v4242 = vadd.f32 %v4238, %v4241
      %vm4243 = vweird.f32 %v3772
      %vm4244 = vweird.f32 %v4238
      %vm4245 = vmor %vm4243, %vm4244
      %v4246 = vsel %vm4245, %v4238, %v4242
      %v4247 = vand.u32 2147483647, %v3772
      %vm4248 = vcmp.eq.f32.partialorder %v4247, 8.507059e+37
      %v4249 = vand.u32 %v3772, 2147483648
      %v4250 = vor.u32 1.1754944e-38, %v4249
      %v4251 = vsel %vm4248, %v4250, %v4246
      %v4252 = vmul.f32 %v3676, %v4251
      %4253 = vrot.lane.b32.xlu0 %v1279, 56
      %v4254 = vpop.permute.xlu0 %4253
      %4255 = vrot.lane.b32.xlu0 %v1282, 56
      %v4256 = vpop.permute.xlu0 %4255
      %4257 = vrot.lane.b32.xlu0 %v1285, 56
      %v4258 = vpop.permute.xlu0 %4257
      %4259 = vrot.lane.b32.xlu0 %v1288, 56
      %v4260 = vpop.permute.xlu0 %4259
      %4261 = vrot.lane.b32.xlu0 %v1291, 56
      %v4262 = vpop.permute.xlu0 %4261
      %4263 = vrot.lane.b32.xlu0 %v1294, 56
      %v4264 = vpop.permute.xlu0 %4263
      %4265 = vrot.lane.b32.xlu0 %v1297, 56
      %v4266 = vpop.permute.xlu0 %4265
      %4267 = vrot.lane.b32.xlu0 %v1300, 56
      %v4268 = vpop.permute.xlu0 %4267
      %v4278 = vsel %vm1899, %v3787, 0
      %v4281 = vsel %vm1899, %v3802, 0
      %v4284 = vsel %vm1899, %v3817, 0
      %v4287 = vsel %vm1899, %v3832, 0
      %v4290 = vsel %vm1899, %v3847, 0
      %v4293 = vsel %vm1899, %v3862, 0
      %v4296 = vsel %vm1899, %v3877, 0
      %v4299 = vsel %vm1899, %v3892, 0
      %4301 = vmatpush.msra.mxu0 0.0
      %4302 = vmatpush.msra.mxu0 0.0
      %4303 = vmatpush.msra.mxu0 0.0
      %4304 = vmatpush.msra.mxu0 0.0
      %4305 = vmatpush.msra.mxu0 0.0
      %4306 = vmatpush.msra.mxu0 0.0
      %4307 = vmatpush.msra.mxu0 0.0
      %4308 = vmatpush.msra.mxu0 0.0
      %4309 = vmatpush.msra.mxu0 %v4268
      %4310 = vmatpush.msra.mxu0 %v4266
      %4311 = vmatpush.msra.mxu0 %v4264
      %4312 = vmatpush.msra.mxu0 %v4262
      %4313 = vmatpush.msra.mxu0 %v4260
      %4314 = vmatpush.msra.mxu0 %v4258
      %4315 = vmatpush.msra.mxu0 %v4256
      %4316 = vmatpush.msra.mxu0 %v4254
      %4317 = vmatmul.f32.gmra.mxu0 %v4278
      %v4318 = vpop.f32.mrf.mxu0
      %v4319 = vadd.f32 0.0, %v4318
      %4320 = vmatmul.f32.gmra.mxu0 %v4281
      %v4321 = vpop.f32.mrf.mxu0
      %v4322 = vadd.f32 0.0, %v4321
      %4323 = vmatmul.f32.gmra.mxu0 %v4284
      %v4324 = vpop.f32.mrf.mxu0
      %v4325 = vadd.f32 0.0, %v4324
      %4326 = vmatmul.f32.gmra.mxu0 %v4287
      %v4327 = vpop.f32.mrf.mxu0
      %v4328 = vadd.f32 0.0, %v4327
      %4329 = vmatmul.f32.gmra.mxu0 %v4290
      %v4330 = vpop.f32.mrf.mxu0
      %v4331 = vadd.f32 0.0, %v4330
      %4332 = vmatmul.f32.gmra.mxu0 %v4293
      %v4333 = vpop.f32.mrf.mxu0
      %v4334 = vadd.f32 0.0, %v4333
      %4335 = vmatmul.f32.gmra.mxu0 %v4296
      %v4336 = vpop.f32.mrf.mxu0
      %v4337 = vadd.f32 0.0, %v4336
      %4338 = vmatmul.f32.gmra.mxu0 %v4299
      %v4339 = vpop.f32.mrf.mxu0
      %v4340 = vadd.f32 0.0, %v4339
      %4341 = vdwg.mxu0
      %4342 = vrot.lane.b32.xlu0 %v1303, 56
      %v4343 = vpop.permute.xlu0 %4342
      %4344 = vrot.lane.b32.xlu0 %v1306, 56
      %v4345 = vpop.permute.xlu0 %4344
      %4346 = vrot.lane.b32.xlu0 %v1309, 56
      %v4347 = vpop.permute.xlu0 %4346
      %4348 = vrot.lane.b32.xlu0 %v1312, 56
      %v4349 = vpop.permute.xlu0 %4348
      %4350 = vrot.lane.b32.xlu0 %v1315, 56
      %v4351 = vpop.permute.xlu0 %4350
      %4352 = vrot.lane.b32.xlu0 %v1318, 56
      %v4353 = vpop.permute.xlu0 %4352
      %4354 = vrot.lane.b32.xlu0 %v1321, 56
      %v4355 = vpop.permute.xlu0 %4354
      %4356 = vrot.lane.b32.xlu0 %v1324, 56
      %v4357 = vpop.permute.xlu0 %4356
      %v4367 = vsel %vm1899, %v3907, 0
      %v4370 = vsel %vm1899, %v3922, 0
      %v4373 = vsel %vm1899, %v3937, 0
      %v4376 = vsel %vm1899, %v3952, 0
      %v4379 = vsel %vm1899, %v3967, 0
      %v4382 = vsel %vm1899, %v3982, 0
      %v4385 = vsel %vm1899, %v3997, 0
      %v4388 = vsel %vm1899, %v4012, 0
      %4390 = vmatpush.msra.mxu0 0.0
      %4391 = vmatpush.msra.mxu0 0.0
      %4392 = vmatpush.msra.mxu0 0.0
      %4393 = vmatpush.msra.mxu0 0.0
      %4394 = vmatpush.msra.mxu0 0.0
      %4395 = vmatpush.msra.mxu0 0.0
      %4396 = vmatpush.msra.mxu0 0.0
      %4397 = vmatpush.msra.mxu0 0.0
      %4398 = vmatpush.msra.mxu0 %v4357
      %4399 = vmatpush.msra.mxu0 %v4355
      %4400 = vmatpush.msra.mxu0 %v4353
      %4401 = vmatpush.msra.mxu0 %v4351
      %4402 = vmatpush.msra.mxu0 %v4349
      %4403 = vmatpush.msra.mxu0 %v4347
      %4404 = vmatpush.msra.mxu0 %v4345
      %4405 = vmatpush.msra.mxu0 %v4343
      %4406 = vmatmul.f32.gmra.mxu0 %v4367
      %v4407 = vpop.f32.mrf.mxu0
      %v4408 = vadd.f32 0.0, %v4407
      %4409 = vmatmul.f32.gmra.mxu0 %v4370
      %v4410 = vpop.f32.mrf.mxu0
      %v4411 = vadd.f32 0.0, %v4410
      %4412 = vmatmul.f32.gmra.mxu0 %v4373
      %v4413 = vpop.f32.mrf.mxu0
      %v4414 = vadd.f32 0.0, %v4413
      %4415 = vmatmul.f32.gmra.mxu0 %v4376
      %v4416 = vpop.f32.mrf.mxu0
      %v4417 = vadd.f32 0.0, %v4416
      %4418 = vmatmul.f32.gmra.mxu0 %v4379
      %v4419 = vpop.f32.mrf.mxu0
      %v4420 = vadd.f32 0.0, %v4419
      %4421 = vmatmul.f32.gmra.mxu0 %v4382
      %v4422 = vpop.f32.mrf.mxu0
      %v4423 = vadd.f32 0.0, %v4422
      %4424 = vmatmul.f32.gmra.mxu0 %v4385
      %v4425 = vpop.f32.mrf.mxu0
      %v4426 = vadd.f32 0.0, %v4425
      %4427 = vmatmul.f32.gmra.mxu0 %v4388
      %v4428 = vpop.f32.mrf.mxu0
      %v4429 = vadd.f32 0.0, %v4428
      %4430 = vdwg.mxu0
      %4431 = vrot.lane.b32.xlu0 %v1327, 56
      %v4432 = vpop.permute.xlu0 %4431
      %4433 = vrot.lane.b32.xlu0 %v1330, 56
      %v4434 = vpop.permute.xlu0 %4433
      %4435 = vrot.lane.b32.xlu0 %v1333, 56
      %v4436 = vpop.permute.xlu0 %4435
      %4437 = vrot.lane.b32.xlu0 %v1336, 56
      %v4438 = vpop.permute.xlu0 %4437
      %4439 = vrot.lane.b32.xlu0 %v1339, 56
      %v4440 = vpop.permute.xlu0 %4439
      %4441 = vrot.lane.b32.xlu0 %v1342, 56
      %v4442 = vpop.permute.xlu0 %4441
      %4443 = vrot.lane.b32.xlu0 %v1345, 56
      %v4444 = vpop.permute.xlu0 %4443
      %4445 = vrot.lane.b32.xlu0 %v1348, 56
      %v4446 = vpop.permute.xlu0 %4445
      %v4456 = vsel %vm1899, %v4027, 0
      %v4459 = vsel %vm1899, %v4042, 0
      %v4462 = vsel %vm1899, %v4057, 0
      %v4465 = vsel %vm1899, %v4072, 0
      %v4468 = vsel %vm1899, %v4087, 0
      %v4471 = vsel %vm1899, %v4102, 0
      %v4474 = vsel %vm1899, %v4117, 0
      %v4477 = vsel %vm1899, %v4132, 0
      %4479 = vmatpush.msra.mxu0 0.0
      %4480 = vmatpush.msra.mxu0 0.0
      %4481 = vmatpush.msra.mxu0 0.0
      %4482 = vmatpush.msra.mxu0 0.0
      %4483 = vmatpush.msra.mxu0 0.0
      %4484 = vmatpush.msra.mxu0 0.0
      %4485 = vmatpush.msra.mxu0 0.0
      %4486 = vmatpush.msra.mxu0 0.0
      %4487 = vmatpush.msra.mxu0 %v4446
      %4488 = vmatpush.msra.mxu0 %v4444
      %4489 = vmatpush.msra.mxu0 %v4442
      %4490 = vmatpush.msra.mxu0 %v4440
      %4491 = vmatpush.msra.mxu0 %v4438
      %4492 = vmatpush.msra.mxu0 %v4436
      %4493 = vmatpush.msra.mxu0 %v4434
      %4494 = vmatpush.msra.mxu0 %v4432
      %4495 = vmatmul.f32.gmra.mxu0 %v4456
      %v4496 = vpop.f32.mrf.mxu0
      %v4497 = vadd.f32 0.0, %v4496
      %4498 = vmatmul.f32.gmra.mxu0 %v4459
      %v4499 = vpop.f32.mrf.mxu0
      %v4500 = vadd.f32 0.0, %v4499
      %4501 = vmatmul.f32.gmra.mxu0 %v4462
      %v4502 = vpop.f32.mrf.mxu0
      %v4503 = vadd.f32 0.0, %v4502
      %4504 = vmatmul.f32.gmra.mxu0 %v4465
      %v4505 = vpop.f32.mrf.mxu0
      %v4506 = vadd.f32 0.0, %v4505
      %4507 = vmatmul.f32.gmra.mxu0 %v4468
      %v4508 = vpop.f32.mrf.mxu0
      %v4509 = vadd.f32 0.0, %v4508
      %4510 = vmatmul.f32.gmra.mxu0 %v4471
      %v4511 = vpop.f32.mrf.mxu0
      %v4512 = vadd.f32 0.0, %v4511
      %4513 = vmatmul.f32.gmra.mxu0 %v4474
      %v4514 = vpop.f32.mrf.mxu0
      %v4515 = vadd.f32 0.0, %v4514
      %4516 = vmatmul.f32.gmra.mxu0 %v4477
      %v4517 = vpop.f32.mrf.mxu0
      %v4518 = vadd.f32 0.0, %v4517
      %4519 = vdwg.mxu0
      %4520 = vrot.lane.b32.xlu0 %v1351, 56
      %v4521 = vpop.permute.xlu0 %4520
      %4522 = vrot.lane.b32.xlu0 %v1354, 56
      %v4523 = vpop.permute.xlu0 %4522
      %4524 = vrot.lane.b32.xlu0 %v1357, 56
      %v4525 = vpop.permute.xlu0 %4524
      %4526 = vrot.lane.b32.xlu0 %v1360, 56
      %v4527 = vpop.permute.xlu0 %4526
      %4528 = vrot.lane.b32.xlu0 %v1363, 56
      %v4529 = vpop.permute.xlu0 %4528
      %4530 = vrot.lane.b32.xlu0 %v1366, 56
      %v4531 = vpop.permute.xlu0 %4530
      %4532 = vrot.lane.b32.xlu0 %v1369, 56
      %v4533 = vpop.permute.xlu0 %4532
      %4534 = vrot.lane.b32.xlu0 %v1372, 56
      %v4535 = vpop.permute.xlu0 %4534
      %v4545 = vsel %vm1899, %v4147, 0
      %v4548 = vsel %vm1899, %v4162, 0
      %v4551 = vsel %vm1899, %v4177, 0
      %v4554 = vsel %vm1899, %v4192, 0
      %v4557 = vsel %vm1899, %v4207, 0
      %v4560 = vsel %vm1899, %v4222, 0
      %v4563 = vsel %vm1899, %v4237, 0
      %v4566 = vsel %vm1899, %v4252, 0
      %4568 = vmatpush.msra.mxu0 0.0
      %4569 = vmatpush.msra.mxu0 0.0
      %4570 = vmatpush.msra.mxu0 0.0
      %4571 = vmatpush.msra.mxu0 0.0
      %4572 = vmatpush.msra.mxu0 0.0
      %4573 = vmatpush.msra.mxu0 0.0
      %4574 = vmatpush.msra.mxu0 0.0
      %4575 = vmatpush.msra.mxu0 0.0
      %4576 = vmatpush.msra.mxu0 %v4535
      %4577 = vmatpush.msra.mxu0 %v4533
      %4578 = vmatpush.msra.mxu0 %v4531
      %4579 = vmatpush.msra.mxu0 %v4529
      %4580 = vmatpush.msra.mxu0 %v4527
      %4581 = vmatpush.msra.mxu0 %v4525
      %4582 = vmatpush.msra.mxu0 %v4523
      %4583 = vmatpush.msra.mxu0 %v4521
      %4584 = vmatmul.f32.gmra.mxu0 %v4545
      %v4585 = vpop.f32.mrf.mxu0
      %v4586 = vadd.f32 0.0, %v4585
      %4587 = vmatmul.f32.gmra.mxu0 %v4548
      %v4588 = vpop.f32.mrf.mxu0
      %v4589 = vadd.f32 0.0, %v4588
      %4590 = vmatmul.f32.gmra.mxu0 %v4551
      %v4591 = vpop.f32.mrf.mxu0
      %v4592 = vadd.f32 0.0, %v4591
      %4593 = vmatmul.f32.gmra.mxu0 %v4554
      %v4594 = vpop.f32.mrf.mxu0
      %v4595 = vadd.f32 0.0, %v4594
      %4596 = vmatmul.f32.gmra.mxu0 %v4557
      %v4597 = vpop.f32.mrf.mxu0
      %v4598 = vadd.f32 0.0, %v4597
      %4599 = vmatmul.f32.gmra.mxu0 %v4560
      %v4600 = vpop.f32.mrf.mxu0
      %v4601 = vadd.f32 0.0, %v4600
      %4602 = vmatmul.f32.gmra.mxu0 %v4563
      %v4603 = vpop.f32.mrf.mxu0
      %v4604 = vadd.f32 0.0, %v4603
      %4605 = vmatmul.f32.gmra.mxu0 %v4566
      %v4606 = vpop.f32.mrf.mxu0
      %v4607 = vadd.f32 0.0, %v4606
      %4608 = vdwg.mxu0
      %s4609 = scalar_lea.vmem %s5, 128
      %v4610 = vld [vmem:[%s4609] sm:$0xff]
      %v4611 = vld [vmem:[%s4609 + $0x8] sm:$0xff]
      %v4612 = vld [vmem:[%s4609 + $0x10] sm:$0xff]
      %v4613 = vld [vmem:[%s4609 + $0x18] sm:$0xff]
      %v4614 = vld [vmem:[%s4609 + $0x20] sm:$0xff]
      %v4615 = vld [vmem:[%s4609 + $0x28] sm:$0xff]
      %v4616 = vld [vmem:[%s4609 + $0x30] sm:$0xff]
      %v4617 = vld [vmem:[%s4609 + $0x38] sm:$0xff]
      %4618 = vrot.lane.b32.xlu0 %v1406, 112
      %v4619 = vpop.permute.xlu0 %4618
      %4620 = vrot.lane.b32.xlu0 %v1407, 112
      %v4621 = vpop.permute.xlu0 %4620
      %4622 = vrot.lane.b32.xlu0 %v1408, 112
      %v4623 = vpop.permute.xlu0 %4622
      %4624 = vrot.lane.b32.xlu0 %v1409, 112
      %v4625 = vpop.permute.xlu0 %4624
      %4626 = vrot.lane.b32.xlu0 %v1410, 112
      %v4627 = vpop.permute.xlu0 %4626
      %4628 = vrot.lane.b32.xlu0 %v1411, 112
      %v4629 = vpop.permute.xlu0 %4628
      %4630 = vrot.lane.b32.xlu0 %v1412, 112
      %v4631 = vpop.permute.xlu0 %4630
      %4632 = vrot.lane.b32.xlu0 %v1413, 112
      %v4633 = vpop.permute.xlu0 %4632
      %4634 = vrot.lane.b32.xlu0 %v1279, 80
      %v4635 = vpop.permute.xlu0 %4634
      %4636 = vrot.lane.b32.xlu0 %v1282, 80
      %v4637 = vpop.permute.xlu0 %4636
      %4638 = vrot.lane.b32.xlu0 %v1285, 80
      %v4639 = vpop.permute.xlu0 %4638
      %4640 = vrot.lane.b32.xlu0 %v1288, 80
      %v4641 = vpop.permute.xlu0 %4640
      %4642 = vrot.lane.b32.xlu0 %v1291, 80
      %v4643 = vpop.permute.xlu0 %4642
      %4644 = vrot.lane.b32.xlu0 %v1294, 80
      %v4645 = vpop.permute.xlu0 %4644
      %4646 = vrot.lane.b32.xlu0 %v1297, 80
      %v4647 = vpop.permute.xlu0 %4646
      %4648 = vrot.lane.b32.xlu0 %v1300, 80
      %v4649 = vpop.permute.xlu0 %4648
      %v4650 = vsel %vm1470, %v4619, 0
      %v4652 = vsel %vm1470, %v4621, 0
      %v4654 = vsel %vm1470, %v4623, 0
      %v4656 = vsel %vm1470, %v4625, 0
      %v4658 = vsel %vm1470, %v4627, 0
      %v4660 = vsel %vm1470, %v4629, 0
      %v4662 = vsel %vm1470, %v4631, 0
      %v4664 = vsel %vm1470, %v4633, 0
      %v4666 = vsel %vm1470, %v4635, 0
      %v4668 = vsel %vm1470, %v4637, 0
      %v4670 = vsel %vm1470, %v4639, 0
      %v4672 = vsel %vm1470, %v4641, 0
      %v4674 = vsel %vm1470, %v4643, 0
      %v4676 = vsel %vm1470, %v4645, 0
      %v4678 = vsel %vm1470, %v4647, 0
      %v4680 = vsel %vm1470, %v4649, 0
      %4682 = vmatpush.xpose.msra.mxu0 0.0
      %4683 = vmatpush.xpose.msra.mxu0 0.0
      %4684 = vmatpush.xpose.msra.mxu0 0.0
      %4685 = vmatpush.xpose.msra.mxu0 0.0
      %4686 = vmatpush.xpose.msra.mxu0 0.0
      %4687 = vmatpush.xpose.msra.mxu0 0.0
      %4688 = vmatpush.xpose.msra.mxu0 0.0
      %4689 = vmatpush.xpose.msra.mxu0 0.0
      %4690 = vmatpush.xpose.msra.mxu0 %v4680
      %4691 = vmatpush.xpose.msra.mxu0 %v4678
      %4692 = vmatpush.xpose.msra.mxu0 %v4676
      %4693 = vmatpush.xpose.msra.mxu0 %v4674
      %4694 = vmatpush.xpose.msra.mxu0 %v4672
      %4695 = vmatpush.xpose.msra.mxu0 %v4670
      %4696 = vmatpush.xpose.msra.mxu0 %v4668
      %4697 = vmatpush.xpose.msra.mxu0 %v4666
      %4698 = vmatmul.f32.gmra.mxu0 %v4650
      %v4699 = vpop.f32.mrf.mxu0
      %v4700 = vadd.f32 %v4610, %v4699
      %4701 = vmatmul.f32.gmra.mxu0 %v4652
      %v4702 = vpop.f32.mrf.mxu0
      %v4703 = vadd.f32 %v4611, %v4702
      %4704 = vmatmul.f32.gmra.mxu0 %v4654
      %v4705 = vpop.f32.mrf.mxu0
      %v4706 = vadd.f32 %v4612, %v4705
      %4707 = vmatmul.f32.gmra.mxu0 %v4656
      %v4708 = vpop.f32.mrf.mxu0
      %v4709 = vadd.f32 %v4613, %v4708
      %4710 = vmatmul.f32.gmra.mxu0 %v4658
      %v4711 = vpop.f32.mrf.mxu0
      %v4712 = vadd.f32 %v4614, %v4711
      %4713 = vmatmul.f32.gmra.mxu0 %v4660
      %v4714 = vpop.f32.mrf.mxu0
      %v4715 = vadd.f32 %v4615, %v4714
      %4716 = vmatmul.f32.gmra.mxu0 %v4662
      %v4717 = vpop.f32.mrf.mxu0
      %v4718 = vadd.f32 %v4616, %v4717
      %4719 = vmatmul.f32.gmra.mxu0 %v4664
      %v4720 = vpop.f32.mrf.mxu0
      %v4721 = vadd.f32 %v4617, %v4720
      %4722 = vdwg.mxu0
      %4723 = vrot.lane.b32.xlu0 %v1414, 112
      %v4724 = vpop.permute.xlu0 %4723
      %4725 = vrot.lane.b32.xlu0 %v1415, 112
      %v4726 = vpop.permute.xlu0 %4725
      %4727 = vrot.lane.b32.xlu0 %v1416, 112
      %v4728 = vpop.permute.xlu0 %4727
      %4729 = vrot.lane.b32.xlu0 %v1417, 112
      %v4730 = vpop.permute.xlu0 %4729
      %4731 = vrot.lane.b32.xlu0 %v1418, 112
      %v4732 = vpop.permute.xlu0 %4731
      %4733 = vrot.lane.b32.xlu0 %v1419, 112
      %v4734 = vpop.permute.xlu0 %4733
      %4735 = vrot.lane.b32.xlu0 %v1420, 112
      %v4736 = vpop.permute.xlu0 %4735
      %4737 = vrot.lane.b32.xlu0 %v1421, 112
      %v4738 = vpop.permute.xlu0 %4737
      %4739 = vrot.lane.b32.xlu0 %v1303, 80
      %v4740 = vpop.permute.xlu0 %4739
      %4741 = vrot.lane.b32.xlu0 %v1306, 80
      %v4742 = vpop.permute.xlu0 %4741
      %4743 = vrot.lane.b32.xlu0 %v1309, 80
      %v4744 = vpop.permute.xlu0 %4743
      %4745 = vrot.lane.b32.xlu0 %v1312, 80
      %v4746 = vpop.permute.xlu0 %4745
      %4747 = vrot.lane.b32.xlu0 %v1315, 80
      %v4748 = vpop.permute.xlu0 %4747
      %4749 = vrot.lane.b32.xlu0 %v1318, 80
      %v4750 = vpop.permute.xlu0 %4749
      %4751 = vrot.lane.b32.xlu0 %v1321, 80
      %v4752 = vpop.permute.xlu0 %4751
      %4753 = vrot.lane.b32.xlu0 %v1324, 80
      %v4754 = vpop.permute.xlu0 %4753
      %v4755 = vsel %vm1470, %v4724, 0
      %v4757 = vsel %vm1470, %v4726, 0
      %v4759 = vsel %vm1470, %v4728, 0
      %v4761 = vsel %vm1470, %v4730, 0
      %v4763 = vsel %vm1470, %v4732, 0
      %v4765 = vsel %vm1470, %v4734, 0
      %v4767 = vsel %vm1470, %v4736, 0
      %v4769 = vsel %vm1470, %v4738, 0
      %v4771 = vsel %vm1470, %v4740, 0
      %v4773 = vsel %vm1470, %v4742, 0
      %v4775 = vsel %vm1470, %v4744, 0
      %v4777 = vsel %vm1470, %v4746, 0
      %v4779 = vsel %vm1470, %v4748, 0
      %v4781 = vsel %vm1470, %v4750, 0
      %v4783 = vsel %vm1470, %v4752, 0
      %v4785 = vsel %vm1470, %v4754, 0
      %4787 = vmatpush.xpose.msra.mxu0 0.0
      %4788 = vmatpush.xpose.msra.mxu0 0.0
      %4789 = vmatpush.xpose.msra.mxu0 0.0
      %4790 = vmatpush.xpose.msra.mxu0 0.0
      %4791 = vmatpush.xpose.msra.mxu0 0.0
      %4792 = vmatpush.xpose.msra.mxu0 0.0
      %4793 = vmatpush.xpose.msra.mxu0 0.0
      %4794 = vmatpush.xpose.msra.mxu0 0.0
      %4795 = vmatpush.xpose.msra.mxu0 %v4785
      %4796 = vmatpush.xpose.msra.mxu0 %v4783
      %4797 = vmatpush.xpose.msra.mxu0 %v4781
      %4798 = vmatpush.xpose.msra.mxu0 %v4779
      %4799 = vmatpush.xpose.msra.mxu0 %v4777
      %4800 = vmatpush.xpose.msra.mxu0 %v4775
      %4801 = vmatpush.xpose.msra.mxu0 %v4773
      %4802 = vmatpush.xpose.msra.mxu0 %v4771
      %4803 = vmatmul.f32.gmra.mxu0 %v4755
      %v4804 = vpop.f32.mrf.mxu0
      %v4805 = vadd.f32 %v4610, %v4804
      %4806 = vmatmul.f32.gmra.mxu0 %v4757
      %v4807 = vpop.f32.mrf.mxu0
      %v4808 = vadd.f32 %v4611, %v4807
      %4809 = vmatmul.f32.gmra.mxu0 %v4759
      %v4810 = vpop.f32.mrf.mxu0
      %v4811 = vadd.f32 %v4612, %v4810
      %4812 = vmatmul.f32.gmra.mxu0 %v4761
      %v4813 = vpop.f32.mrf.mxu0
      %v4814 = vadd.f32 %v4613, %v4813
      %4815 = vmatmul.f32.gmra.mxu0 %v4763
      %v4816 = vpop.f32.mrf.mxu0
      %v4817 = vadd.f32 %v4614, %v4816
      %4818 = vmatmul.f32.gmra.mxu0 %v4765
      %v4819 = vpop.f32.mrf.mxu0
      %v4820 = vadd.f32 %v4615, %v4819
      %4821 = vmatmul.f32.gmra.mxu0 %v4767
      %v4822 = vpop.f32.mrf.mxu0
      %v4823 = vadd.f32 %v4616, %v4822
      %4824 = vmatmul.f32.gmra.mxu0 %v4769
      %v4825 = vpop.f32.mrf.mxu0
      %v4826 = vadd.f32 %v4617, %v4825
      %4827 = vdwg.mxu0
      %4828 = vrot.lane.b32.xlu0 %v1422, 112
      %v4829 = vpop.permute.xlu0 %4828
      %4830 = vrot.lane.b32.xlu0 %v1423, 112
      %v4831 = vpop.permute.xlu0 %4830
      %4832 = vrot.lane.b32.xlu0 %v1424, 112
      %v4833 = vpop.permute.xlu0 %4832
      %4834 = vrot.lane.b32.xlu0 %v1425, 112
      %v4835 = vpop.permute.xlu0 %4834
      %4836 = vrot.lane.b32.xlu0 %v1426, 112
      %v4837 = vpop.permute.xlu0 %4836
      %4838 = vrot.lane.b32.xlu0 %v1427, 112
      %v4839 = vpop.permute.xlu0 %4838
      %4840 = vrot.lane.b32.xlu0 %v1428, 112
      %v4841 = vpop.permute.xlu0 %4840
      %4842 = vrot.lane.b32.xlu0 %v1429, 112
      %v4843 = vpop.permute.xlu0 %4842
      %4844 = vrot.lane.b32.xlu0 %v1327, 80
      %v4845 = vpop.permute.xlu0 %4844
      %4846 = vrot.lane.b32.xlu0 %v1330, 80
      %v4847 = vpop.permute.xlu0 %4846
      %4848 = vrot.lane.b32.xlu0 %v1333, 80
      %v4849 = vpop.permute.xlu0 %4848
      %4850 = vrot.lane.b32.xlu0 %v1336, 80
      %v4851 = vpop.permute.xlu0 %4850
      %4852 = vrot.lane.b32.xlu0 %v1339, 80
      %v4853 = vpop.permute.xlu0 %4852
      %4854 = vrot.lane.b32.xlu0 %v1342, 80
      %v4855 = vpop.permute.xlu0 %4854
      %4856 = vrot.lane.b32.xlu0 %v1345, 80
      %v4857 = vpop.permute.xlu0 %4856
      %4858 = vrot.lane.b32.xlu0 %v1348, 80
      %v4859 = vpop.permute.xlu0 %4858
      %v4860 = vsel %vm1470, %v4829, 0
      %v4862 = vsel %vm1470, %v4831, 0
      %v4864 = vsel %vm1470, %v4833, 0
      %v4866 = vsel %vm1470, %v4835, 0
      %v4868 = vsel %vm1470, %v4837, 0
      %v4870 = vsel %vm1470, %v4839, 0
      %v4872 = vsel %vm1470, %v4841, 0
      %v4874 = vsel %vm1470, %v4843, 0
      %v4876 = vsel %vm1470, %v4845, 0
      %v4878 = vsel %vm1470, %v4847, 0
      %v4880 = vsel %vm1470, %v4849, 0
      %v4882 = vsel %vm1470, %v4851, 0
      %v4884 = vsel %vm1470, %v4853, 0
      %v4886 = vsel %vm1470, %v4855, 0
      %v4888 = vsel %vm1470, %v4857, 0
      %v4890 = vsel %vm1470, %v4859, 0
      %4892 = vmatpush.xpose.msra.mxu0 0.0
      %4893 = vmatpush.xpose.msra.mxu0 0.0
      %4894 = vmatpush.xpose.msra.mxu0 0.0
      %4895 = vmatpush.xpose.msra.mxu0 0.0
      %4896 = vmatpush.xpose.msra.mxu0 0.0
      %4897 = vmatpush.xpose.msra.mxu0 0.0
      %4898 = vmatpush.xpose.msra.mxu0 0.0
      %4899 = vmatpush.xpose.msra.mxu0 0.0
      %4900 = vmatpush.xpose.msra.mxu0 %v4890
      %4901 = vmatpush.xpose.msra.mxu0 %v4888
      %4902 = vmatpush.xpose.msra.mxu0 %v4886
      %4903 = vmatpush.xpose.msra.mxu0 %v4884
      %4904 = vmatpush.xpose.msra.mxu0 %v4882
      %4905 = vmatpush.xpose.msra.mxu0 %v4880
      %4906 = vmatpush.xpose.msra.mxu0 %v4878
      %4907 = vmatpush.xpose.msra.mxu0 %v4876
      %4908 = vmatmul.f32.gmra.mxu0 %v4860
      %v4909 = vpop.f32.mrf.mxu0
      %v4910 = vadd.f32 %v4610, %v4909
      %4911 = vmatmul.f32.gmra.mxu0 %v4862
      %v4912 = vpop.f32.mrf.mxu0
      %v4913 = vadd.f32 %v4611, %v4912
      %4914 = vmatmul.f32.gmra.mxu0 %v4864
      %v4915 = vpop.f32.mrf.mxu0
      %v4916 = vadd.f32 %v4612, %v4915
      %4917 = vmatmul.f32.gmra.mxu0 %v4866
      %v4918 = vpop.f32.mrf.mxu0
      %v4919 = vadd.f32 %v4613, %v4918
      %4920 = vmatmul.f32.gmra.mxu0 %v4868
      %v4921 = vpop.f32.mrf.mxu0
      %v4922 = vadd.f32 %v4614, %v4921
      %4923 = vmatmul.f32.gmra.mxu0 %v4870
      %v4924 = vpop.f32.mrf.mxu0
      %v4925 = vadd.f32 %v4615, %v4924
      %4926 = vmatmul.f32.gmra.mxu0 %v4872
      %v4927 = vpop.f32.mrf.mxu0
      %v4928 = vadd.f32 %v4616, %v4927
      %4929 = vmatmul.f32.gmra.mxu0 %v4874
      %v4930 = vpop.f32.mrf.mxu0
      %v4931 = vadd.f32 %v4617, %v4930
      %4932 = vdwg.mxu0
      %4933 = vrot.lane.b32.xlu0 %v1430, 112
      %v4934 = vpop.permute.xlu0 %4933
      %4935 = vrot.lane.b32.xlu0 %v1431, 112
      %v4936 = vpop.permute.xlu0 %4935
      %4937 = vrot.lane.b32.xlu0 %v1432, 112
      %v4938 = vpop.permute.xlu0 %4937
      %4939 = vrot.lane.b32.xlu0 %v1433, 112
      %v4940 = vpop.permute.xlu0 %4939
      %4941 = vrot.lane.b32.xlu0 %v1434, 112
      %v4942 = vpop.permute.xlu0 %4941
      %4943 = vrot.lane.b32.xlu0 %v1435, 112
      %v4944 = vpop.permute.xlu0 %4943
      %4945 = vrot.lane.b32.xlu0 %v1436, 112
      %v4946 = vpop.permute.xlu0 %4945
      %4947 = vrot.lane.b32.xlu0 %v1437, 112
      %v4948 = vpop.permute.xlu0 %4947
      %4949 = vrot.lane.b32.xlu0 %v1351, 80
      %v4950 = vpop.permute.xlu0 %4949
      %4951 = vrot.lane.b32.xlu0 %v1354, 80
      %v4952 = vpop.permute.xlu0 %4951
      %4953 = vrot.lane.b32.xlu0 %v1357, 80
      %v4954 = vpop.permute.xlu0 %4953
      %4955 = vrot.lane.b32.xlu0 %v1360, 80
      %v4956 = vpop.permute.xlu0 %4955
      %4957 = vrot.lane.b32.xlu0 %v1363, 80
      %v4958 = vpop.permute.xlu0 %4957
      %4959 = vrot.lane.b32.xlu0 %v1366, 80
      %v4960 = vpop.permute.xlu0 %4959
      %4961 = vrot.lane.b32.xlu0 %v1369, 80
      %v4962 = vpop.permute.xlu0 %4961
      %4963 = vrot.lane.b32.xlu0 %v1372, 80
      %v4964 = vpop.permute.xlu0 %4963
      %v4965 = vsel %vm1470, %v4934, 0
      %v4967 = vsel %vm1470, %v4936, 0
      %v4969 = vsel %vm1470, %v4938, 0
      %v4971 = vsel %vm1470, %v4940, 0
      %v4973 = vsel %vm1470, %v4942, 0
      %v4975 = vsel %vm1470, %v4944, 0
      %v4977 = vsel %vm1470, %v4946, 0
      %v4979 = vsel %vm1470, %v4948, 0
      %v4981 = vsel %vm1470, %v4950, 0
      %v4983 = vsel %vm1470, %v4952, 0
      %v4985 = vsel %vm1470, %v4954, 0
      %v4987 = vsel %vm1470, %v4956, 0
      %v4989 = vsel %vm1470, %v4958, 0
      %v4991 = vsel %vm1470, %v4960, 0
      %v4993 = vsel %vm1470, %v4962, 0
      %v4995 = vsel %vm1470, %v4964, 0
      %4997 = vmatpush.xpose.msra.mxu0 0.0
      %4998 = vmatpush.xpose.msra.mxu0 0.0
      %4999 = vmatpush.xpose.msra.mxu0 0.0
      %5000 = vmatpush.xpose.msra.mxu0 0.0
      %5001 = vmatpush.xpose.msra.mxu0 0.0
      %5002 = vmatpush.xpose.msra.mxu0 0.0
      %5003 = vmatpush.xpose.msra.mxu0 0.0
      %5004 = vmatpush.xpose.msra.mxu0 0.0
      %5005 = vmatpush.xpose.msra.mxu0 %v4995
      %5006 = vmatpush.xpose.msra.mxu0 %v4993
      %5007 = vmatpush.xpose.msra.mxu0 %v4991
      %5008 = vmatpush.xpose.msra.mxu0 %v4989
      %5009 = vmatpush.xpose.msra.mxu0 %v4987
      %5010 = vmatpush.xpose.msra.mxu0 %v4985
      %5011 = vmatpush.xpose.msra.mxu0 %v4983
      %5012 = vmatpush.xpose.msra.mxu0 %v4981
      %5013 = vmatmul.f32.gmra.mxu0 %v4965
      %v5014 = vpop.f32.mrf.mxu0
      %v5015 = vadd.f32 %v4610, %v5014
      %5016 = vmatmul.f32.gmra.mxu0 %v4967
      %v5017 = vpop.f32.mrf.mxu0
      %v5018 = vadd.f32 %v4611, %v5017
      %5019 = vmatmul.f32.gmra.mxu0 %v4969
      %v5020 = vpop.f32.mrf.mxu0
      %v5021 = vadd.f32 %v4612, %v5020
      %5022 = vmatmul.f32.gmra.mxu0 %v4971
      %v5023 = vpop.f32.mrf.mxu0
      %v5024 = vadd.f32 %v4613, %v5023
      %5025 = vmatmul.f32.gmra.mxu0 %v4973
      %v5026 = vpop.f32.mrf.mxu0
      %v5027 = vadd.f32 %v4614, %v5026
      %5028 = vmatmul.f32.gmra.mxu0 %v4975
      %v5029 = vpop.f32.mrf.mxu0
      %v5030 = vadd.f32 %v4615, %v5029
      %5031 = vmatmul.f32.gmra.mxu0 %v4977
      %v5032 = vpop.f32.mrf.mxu0
      %v5033 = vadd.f32 %v4616, %v5032
      %5034 = vmatmul.f32.gmra.mxu0 %v4979
      %v5035 = vpop.f32.mrf.mxu0
      %v5036 = vadd.f32 %v4617, %v5035
      %5037 = vdwg.mxu0
      %v5038 = vadd.f32 %v4700, %v1374
      %v5039 = vadd.f32 %v4703, %v1375
      %v5040 = vadd.f32 %v4706, %v1376
      %v5041 = vadd.f32 %v4709, %v1377
      %v5042 = vadd.f32 %v4712, %v1378
      %v5043 = vadd.f32 %v4715, %v1379
      %v5044 = vadd.f32 %v4718, %v1380
      %v5045 = vadd.f32 %v4721, %v1381
      %v5046 = vadd.f32 %v4805, %v1382
      %v5047 = vadd.f32 %v4808, %v1383
      %v5048 = vadd.f32 %v4811, %v1384
      %v5049 = vadd.f32 %v4814, %v1385
      %v5050 = vadd.f32 %v4817, %v1386
      %v5051 = vadd.f32 %v4820, %v1387
      %v5052 = vadd.f32 %v4823, %v1388
      %v5053 = vadd.f32 %v4826, %v1389
      %v5054 = vadd.f32 %v4910, %v1390
      %v5055 = vadd.f32 %v4913, %v1391
      %v5056 = vadd.f32 %v4916, %v1392
      %v5057 = vadd.f32 %v4919, %v1393
      %v5058 = vadd.f32 %v4922, %v1394
      %v5059 = vadd.f32 %v4925, %v1395
      %v5060 = vadd.f32 %v4928, %v1396
      %v5061 = vadd.f32 %v4931, %v1397
      %v5062 = vadd.f32 %v5015, %v1398
      %v5063 = vadd.f32 %v5018, %v1399
      %v5064 = vadd.f32 %v5021, %v1400
      %v5065 = vadd.f32 %v5024, %v1401
      %v5066 = vadd.f32 %v5027, %v1402
      %v5067 = vadd.f32 %v5030, %v1403
      %v5068 = vadd.f32 %v5033, %v1404
      %v5069 = vadd.f32 %v5036, %v1405
      %v5070 = vsel %vm1899, %v5038, -inf
      %5071 = vmax.xlane.f32.xlu0 %v5070
      %v5072 = vpop.xlane.xlu0 %5071
      %v5073 = vsel %vm1899, %v5039, -inf
      %5074 = vmax.xlane.f32.xlu0 %v5073
      %v5075 = vpop.xlane.xlu0 %5074
      %v5076 = vsel %vm1899, %v5040, -inf
      %5077 = vmax.xlane.f32.xlu0 %v5076
      %v5078 = vpop.xlane.xlu0 %5077
      %v5079 = vsel %vm1899, %v5041, -inf
      %5080 = vmax.xlane.f32.xlu0 %v5079
      %v5081 = vpop.xlane.xlu0 %5080
      %v5082 = vsel %vm1899, %v5042, -inf
      %5083 = vmax.xlane.f32.xlu0 %v5082
      %v5084 = vpop.xlane.xlu0 %5083
      %v5085 = vsel %vm1899, %v5043, -inf
      %5086 = vmax.xlane.f32.xlu0 %v5085
      %v5087 = vpop.xlane.xlu0 %5086
      %v5088 = vsel %vm1899, %v5044, -inf
      %5089 = vmax.xlane.f32.xlu0 %v5088
      %v5090 = vpop.xlane.xlu0 %5089
      %v5091 = vsel %vm1899, %v5045, -inf
      %5092 = vmax.xlane.f32.xlu0 %v5091
      %v5093 = vpop.xlane.xlu0 %5092
      %v5094 = vsel %vm1899, %v5046, -inf
      %5095 = vmax.xlane.f32.xlu0 %v5094
      %v5096 = vpop.xlane.xlu0 %5095
      %v5097 = vsel %vm1899, %v5047, -inf
      %5098 = vmax.xlane.f32.xlu0 %v5097
      %v5099 = vpop.xlane.xlu0 %5098
      %v5100 = vsel %vm1899, %v5048, -inf
      %5101 = vmax.xlane.f32.xlu0 %v5100
      %v5102 = vpop.xlane.xlu0 %5101
      %v5103 = vsel %vm1899, %v5049, -inf
      %5104 = vmax.xlane.f32.xlu0 %v5103
      %v5105 = vpop.xlane.xlu0 %5104
      %v5106 = vsel %vm1899, %v5050, -inf
      %5107 = vmax.xlane.f32.xlu0 %v5106
      %v5108 = vpop.xlane.xlu0 %5107
      %v5109 = vsel %vm1899, %v5051, -inf
      %5110 = vmax.xlane.f32.xlu0 %v5109
      %v5111 = vpop.xlane.xlu0 %5110
      %v5112 = vsel %vm1899, %v5052, -inf
      %5113 = vmax.xlane.f32.xlu0 %v5112
      %v5114 = vpop.xlane.xlu0 %5113
      %v5115 = vsel %vm1899, %v5053, -inf
      %5116 = vmax.xlane.f32.xlu0 %v5115
      %v5117 = vpop.xlane.xlu0 %5116
      %v5118 = vsel %vm1899, %v5054, -inf
      %5119 = vmax.xlane.f32.xlu0 %v5118
      %v5120 = vpop.xlane.xlu0 %5119
      %v5121 = vsel %vm1899, %v5055, -inf
      %5122 = vmax.xlane.f32.xlu0 %v5121
      %v5123 = vpop.xlane.xlu0 %5122
      %v5124 = vsel %vm1899, %v5056, -inf
      %5125 = vmax.xlane.f32.xlu0 %v5124
      %v5126 = vpop.xlane.xlu0 %5125
      %v5127 = vsel %vm1899, %v5057, -inf
      %5128 = vmax.xlane.f32.xlu0 %v5127
      %v5129 = vpop.xlane.xlu0 %5128
      %v5130 = vsel %vm1899, %v5058, -inf
      %5131 = vmax.xlane.f32.xlu0 %v5130
      %v5132 = vpop.xlane.xlu0 %5131
      %v5133 = vsel %vm1899, %v5059, -inf
      %5134 = vmax.xlane.f32.xlu0 %v5133
      %v5135 = vpop.xlane.xlu0 %5134
      %v5136 = vsel %vm1899, %v5060, -inf
      %5137 = vmax.xlane.f32.xlu0 %v5136
      %v5138 = vpop.xlane.xlu0 %5137
      %v5139 = vsel %vm1899, %v5061, -inf
      %5140 = vmax.xlane.f32.xlu0 %v5139
      %v5141 = vpop.xlane.xlu0 %5140
      %v5142 = vsel %vm1899, %v5062, -inf
      %5143 = vmax.xlane.f32.xlu0 %v5142
      %v5144 = vpop.xlane.xlu0 %5143
      %v5145 = vsel %vm1899, %v5063, -inf
      %5146 = vmax.xlane.f32.xlu0 %v5145
      %v5147 = vpop.xlane.xlu0 %5146
      %v5148 = vsel %vm1899, %v5064, -inf
      %5149 = vmax.xlane.f32.xlu0 %v5148
      %v5150 = vpop.xlane.xlu0 %5149
      %v5151 = vsel %vm1899, %v5065, -inf
      %5152 = vmax.xlane.f32.xlu0 %v5151
      %v5153 = vpop.xlane.xlu0 %5152
      %v5154 = vsel %vm1899, %v5066, -inf
      %5155 = vmax.xlane.f32.xlu0 %v5154
      %v5156 = vpop.xlane.xlu0 %5155
      %v5157 = vsel %vm1899, %v5067, -inf
      %5158 = vmax.xlane.f32.xlu0 %v5157
      %v5159 = vpop.xlane.xlu0 %5158
      %v5160 = vsel %vm1899, %v5068, -inf
      %5161 = vmax.xlane.f32.xlu0 %v5160
      %v5162 = vpop.xlane.xlu0 %5161
      %v5163 = vsel %vm1899, %v5069, -inf
      %5164 = vmax.xlane.f32.xlu0 %v5163
      %v5165 = vpop.xlane.xlu0 %5164
      %v5166 = vsub.f32 %v5038, %v5072
      %v5167 = vsub.f32 %v5039, %v5075
      %v5168 = vsub.f32 %v5040, %v5078
      %v5169 = vsub.f32 %v5041, %v5081
      %v5170 = vsub.f32 %v5042, %v5084
      %v5171 = vsub.f32 %v5043, %v5087
      %v5172 = vsub.f32 %v5044, %v5090
      %v5173 = vsub.f32 %v5045, %v5093
      %v5174 = vsub.f32 %v5046, %v5096
      %v5175 = vsub.f32 %v5047, %v5099
      %v5176 = vsub.f32 %v5048, %v5102
      %v5177 = vsub.f32 %v5049, %v5105
      %v5178 = vsub.f32 %v5050, %v5108
      %v5179 = vsub.f32 %v5051, %v5111
      %v5180 = vsub.f32 %v5052, %v5114
      %v5181 = vsub.f32 %v5053, %v5117
      %v5182 = vsub.f32 %v5054, %v5120
      %v5183 = vsub.f32 %v5055, %v5123
      %v5184 = vsub.f32 %v5056, %v5126
      %v5185 = vsub.f32 %v5057, %v5129
      %v5186 = vsub.f32 %v5058, %v5132
      %v5187 = vsub.f32 %v5059, %v5135
      %v5188 = vsub.f32 %v5060, %v5138
      %v5189 = vsub.f32 %v5061, %v5141
      %v5190 = vsub.f32 %v5062, %v5144
      %v5191 = vsub.f32 %v5063, %v5147
      %v5192 = vsub.f32 %v5064, %v5150
      %v5193 = vsub.f32 %v5065, %v5153
      %v5194 = vsub.f32 %v5066, %v5156
      %v5195 = vsub.f32 %v5067, %v5159
      %v5196 = vsub.f32 %v5068, %v5162
      %v5197 = vsub.f32 %v5069, %v5165
      %v5198 = vmul.f32 %v5166, 1.442695
      %v5199 = vpow.pop %v5198
      %v5200 = vmul.f32 %v5167, 1.442695
      %v5201 = vpow.pop %v5200
      %v5202 = vmul.f32 %v5168, 1.442695
      %v5203 = vpow.pop %v5202
      %v5204 = vmul.f32 %v5169, 1.442695
      %v5205 = vpow.pop %v5204
      %v5206 = vmul.f32 %v5170, 1.442695
      %v5207 = vpow.pop %v5206
      %v5208 = vmul.f32 %v5171, 1.442695
      %v5209 = vpow.pop %v5208
      %v5210 = vmul.f32 %v5172, 1.442695
      %v5211 = vpow.pop %v5210
      %v5212 = vmul.f32 %v5173, 1.442695
      %v5213 = vpow.pop %v5212
      %v5214 = vmul.f32 %v5174, 1.442695
      %v5215 = vpow.pop %v5214
      %v5216 = vmul.f32 %v5175, 1.442695
      %v5217 = vpow.pop %v5216
      %v5218 = vmul.f32 %v5176, 1.442695
      %v5219 = vpow.pop %v5218
      %v5220 = vmul.f32 %v5177, 1.442695
      %v5221 = vpow.pop %v5220
      %v5222 = vmul.f32 %v5178, 1.442695
      %v5223 = vpow.pop %v5222
      %v5224 = vmul.f32 %v5179, 1.442695
      %v5225 = vpow.pop %v5224
      %v5226 = vmul.f32 %v5180, 1.442695
      %v5227 = vpow.pop %v5226
      %v5228 = vmul.f32 %v5181, 1.442695
      %v5229 = vpow.pop %v5228
      %v5230 = vmul.f32 %v5182, 1.442695
      %v5231 = vpow.pop %v5230
      %v5232 = vmul.f32 %v5183, 1.442695
      %v5233 = vpow.pop %v5232
      %v5234 = vmul.f32 %v5184, 1.442695
      %v5235 = vpow.pop %v5234
      %v5236 = vmul.f32 %v5185, 1.442695
      %v5237 = vpow.pop %v5236
      %v5238 = vmul.f32 %v5186, 1.442695
      %v5239 = vpow.pop %v5238
      %v5240 = vmul.f32 %v5187, 1.442695
      %v5241 = vpow.pop %v5240
      %v5242 = vmul.f32 %v5188, 1.442695
      %v5243 = vpow.pop %v5242
      %v5244 = vmul.f32 %v5189, 1.442695
      %v5245 = vpow.pop %v5244
      %v5246 = vmul.f32 %v5190, 1.442695
      %v5247 = vpow.pop %v5246
      %v5248 = vmul.f32 %v5191, 1.442695
      %v5249 = vpow.pop %v5248
      %v5250 = vmul.f32 %v5192, 1.442695
      %v5251 = vpow.pop %v5250
      %v5252 = vmul.f32 %v5193, 1.442695
      %v5253 = vpow.pop %v5252
      %v5254 = vmul.f32 %v5194, 1.442695
      %v5255 = vpow.pop %v5254
      %v5256 = vmul.f32 %v5195, 1.442695
      %v5257 = vpow.pop %v5256
      %v5258 = vmul.f32 %v5196, 1.442695
      %v5259 = vpow.pop %v5258
      %v5260 = vmul.f32 %v5197, 1.442695
      %v5261 = vpow.pop %v5260
      %v5262 = vsel %vm1899, %v5199, 0.0
      %5263 = vadd.xlane.f32.xlu0 %v5262
      %v5264 = vpop.xlane.xlu0 %5263
      %v5265 = vsel %vm1899, %v5201, 0.0
      %5266 = vadd.xlane.f32.xlu0 %v5265
      %v5267 = vpop.xlane.xlu0 %5266
      %v5268 = vsel %vm1899, %v5203, 0.0
      %5269 = vadd.xlane.f32.xlu0 %v5268
      %v5270 = vpop.xlane.xlu0 %5269
      %v5271 = vsel %vm1899, %v5205, 0.0
      %5272 = vadd.xlane.f32.xlu0 %v5271
      %v5273 = vpop.xlane.xlu0 %5272
      %v5274 = vsel %vm1899, %v5207, 0.0
      %5275 = vadd.xlane.f32.xlu0 %v5274
      %v5276 = vpop.xlane.xlu0 %5275
      %v5277 = vsel %vm1899, %v5209, 0.0
      %5278 = vadd.xlane.f32.xlu0 %v5277
      %v5279 = vpop.xlane.xlu0 %5278
      %v5280 = vsel %vm1899, %v5211, 0.0
      %5281 = vadd.xlane.f32.xlu0 %v5280
      %v5282 = vpop.xlane.xlu0 %5281
      %v5283 = vsel %vm1899, %v5213, 0.0
      %5284 = vadd.xlane.f32.xlu0 %v5283
      %v5285 = vpop.xlane.xlu0 %5284
      %v5286 = vsel %vm1899, %v5215, 0.0
      %5287 = vadd.xlane.f32.xlu0 %v5286
      %v5288 = vpop.xlane.xlu0 %5287
      %v5289 = vsel %vm1899, %v5217, 0.0
      %5290 = vadd.xlane.f32.xlu0 %v5289
      %v5291 = vpop.xlane.xlu0 %5290
      %v5292 = vsel %vm1899, %v5219, 0.0
      %5293 = vadd.xlane.f32.xlu0 %v5292
      %v5294 = vpop.xlane.xlu0 %5293
      %v5295 = vsel %vm1899, %v5221, 0.0
      %5296 = vadd.xlane.f32.xlu0 %v5295
      %v5297 = vpop.xlane.xlu0 %5296
      %v5298 = vsel %vm1899, %v5223, 0.0
      %5299 = vadd.xlane.f32.xlu0 %v5298
      %v5300 = vpop.xlane.xlu0 %5299
      %v5301 = vsel %vm1899, %v5225, 0.0
      %5302 = vadd.xlane.f32.xlu0 %v5301
      %v5303 = vpop.xlane.xlu0 %5302
      %v5304 = vsel %vm1899, %v5227, 0.0
      %5305 = vadd.xlane.f32.xlu0 %v5304
      %v5306 = vpop.xlane.xlu0 %5305
      %v5307 = vsel %vm1899, %v5229, 0.0
      %5308 = vadd.xlane.f32.xlu0 %v5307
      %v5309 = vpop.xlane.xlu0 %5308
      %v5310 = vsel %vm1899, %v5231, 0.0
      %5311 = vadd.xlane.f32.xlu0 %v5310
      %v5312 = vpop.xlane.xlu0 %5311
      %v5313 = vsel %vm1899, %v5233, 0.0
      %5314 = vadd.xlane.f32.xlu0 %v5313
      %v5315 = vpop.xlane.xlu0 %5314
      %v5316 = vsel %vm1899, %v5235, 0.0
      %5317 = vadd.xlane.f32.xlu0 %v5316
      %v5318 = vpop.xlane.xlu0 %5317
      %v5319 = vsel %vm1899, %v5237, 0.0
      %5320 = vadd.xlane.f32.xlu0 %v5319
      %v5321 = vpop.xlane.xlu0 %5320
      %v5322 = vsel %vm1899, %v5239, 0.0
      %5323 = vadd.xlane.f32.xlu0 %v5322
      %v5324 = vpop.xlane.xlu0 %5323
      %v5325 = vsel %vm1899, %v5241, 0.0
      %5326 = vadd.xlane.f32.xlu0 %v5325
      %v5327 = vpop.xlane.xlu0 %5326
      %v5328 = vsel %vm1899, %v5243, 0.0
      %5329 = vadd.xlane.f32.xlu0 %v5328
      %v5330 = vpop.xlane.xlu0 %5329
      %v5331 = vsel %vm1899, %v5245, 0.0
      %5332 = vadd.xlane.f32.xlu0 %v5331
      %v5333 = vpop.xlane.xlu0 %5332
      %v5334 = vsel %vm1899, %v5247, 0.0
      %5335 = vadd.xlane.f32.xlu0 %v5334
      %v5336 = vpop.xlane.xlu0 %5335
      %v5337 = vsel %vm1899, %v5249, 0.0
      %5338 = vadd.xlane.f32.xlu0 %v5337
      %v5339 = vpop.xlane.xlu0 %5338
      %v5340 = vsel %vm1899, %v5251, 0.0
      %5341 = vadd.xlane.f32.xlu0 %v5340
      %v5342 = vpop.xlane.xlu0 %5341
      %v5343 = vsel %vm1899, %v5253, 0.0
      %5344 = vadd.xlane.f32.xlu0 %v5343
      %v5345 = vpop.xlane.xlu0 %5344
      %v5346 = vsel %vm1899, %v5255, 0.0
      %5347 = vadd.xlane.f32.xlu0 %v5346
      %v5348 = vpop.xlane.xlu0 %5347
      %v5349 = vsel %vm1899, %v5257, 0.0
      %5350 = vadd.xlane.f32.xlu0 %v5349
      %v5351 = vpop.xlane.xlu0 %5350
      %v5352 = vsel %vm1899, %v5259, 0.0
      %5353 = vadd.xlane.f32.xlu0 %v5352
      %v5354 = vpop.xlane.xlu0 %5353
      %v5355 = vsel %vm1899, %v5261, 0.0
      %5356 = vadd.xlane.f32.xlu0 %v5355
      %v5357 = vpop.xlane.xlu0 %5356
      %v5358 = vrcp.pop %v5264
      %v5359 = vmul.f32 %v5264, %v5358
      %v5360 = vsub.f32 1.0, %v5359
      %v5361 = vmul.f32 %v5358, %v5360
      %v5362 = vadd.f32 %v5358, %v5361
      %vm5363 = vweird.f32 %v5264
      %vm5364 = vweird.f32 %v5358
      %vm5365 = vmor %vm5363, %vm5364
      %v5366 = vsel %vm5365, %v5358, %v5362
      %v5367 = vand.u32 2147483647, %v5264
      %vm5368 = vcmp.eq.f32.partialorder %v5367, 8.507059e+37
      %v5369 = vand.u32 %v5264, 2147483648
      %v5370 = vor.u32 1.1754944e-38, %v5369
      %v5371 = vsel %vm5368, %v5370, %v5366
      %v5372 = vmul.f32 %v5199, %v5371
      %v5373 = vrcp.pop %v5267
      %v5374 = vmul.f32 %v5267, %v5373
      %v5375 = vsub.f32 1.0, %v5374
      %v5376 = vmul.f32 %v5373, %v5375
      %v5377 = vadd.f32 %v5373, %v5376
      %vm5378 = vweird.f32 %v5267
      %vm5379 = vweird.f32 %v5373
      %vm5380 = vmor %vm5378, %vm5379
      %v5381 = vsel %vm5380, %v5373, %v5377
      %v5382 = vand.u32 2147483647, %v5267
      %vm5383 = vcmp.eq.f32.partialorder %v5382, 8.507059e+37
      %v5384 = vand.u32 %v5267, 2147483648
      %v5385 = vor.u32 1.1754944e-38, %v5384
      %v5386 = vsel %vm5383, %v5385, %v5381
      %v5387 = vmul.f32 %v5201, %v5386
      %v5388 = vrcp.pop %v5270
      %v5389 = vmul.f32 %v5270, %v5388
      %v5390 = vsub.f32 1.0, %v5389
      %v5391 = vmul.f32 %v5388, %v5390
      %v5392 = vadd.f32 %v5388, %v5391
      %vm5393 = vweird.f32 %v5270
      %vm5394 = vweird.f32 %v5388
      %vm5395 = vmor %vm5393, %vm5394
      %v5396 = vsel %vm5395, %v5388, %v5392
      %v5397 = vand.u32 2147483647, %v5270
      %vm5398 = vcmp.eq.f32.partialorder %v5397, 8.507059e+37
      %v5399 = vand.u32 %v5270, 2147483648
      %v5400 = vor.u32 1.1754944e-38, %v5399
      %v5401 = vsel %vm5398, %v5400, %v5396
      %v5402 = vmul.f32 %v5203, %v5401
      %v5403 = vrcp.pop %v5273
      %v5404 = vmul.f32 %v5273, %v5403
      %v5405 = vsub.f32 1.0, %v5404
      %v5406 = vmul.f32 %v5403, %v5405
      %v5407 = vadd.f32 %v5403, %v5406
      %vm5408 = vweird.f32 %v5273
      %vm5409 = vweird.f32 %v5403
      %vm5410 = vmor %vm5408, %vm5409
      %v5411 = vsel %vm5410, %v5403, %v5407
      %v5412 = vand.u32 2147483647, %v5273
      %vm5413 = vcmp.eq.f32.partialorder %v5412, 8.507059e+37
      %v5414 = vand.u32 %v5273, 2147483648
      %v5415 = vor.u32 1.1754944e-38, %v5414
      %v5416 = vsel %vm5413, %v5415, %v5411
      %v5417 = vmul.f32 %v5205, %v5416
      %v5418 = vrcp.pop %v5276
      %v5419 = vmul.f32 %v5276, %v5418
      %v5420 = vsub.f32 1.0, %v5419
      %v5421 = vmul.f32 %v5418, %v5420
      %v5422 = vadd.f32 %v5418, %v5421
      %vm5423 = vweird.f32 %v5276
      %vm5424 = vweird.f32 %v5418
      %vm5425 = vmor %vm5423, %vm5424
      %v5426 = vsel %vm5425, %v5418, %v5422
      %v5427 = vand.u32 2147483647, %v5276
      %vm5428 = vcmp.eq.f32.partialorder %v5427, 8.507059e+37
      %v5429 = vand.u32 %v5276, 2147483648
      %v5430 = vor.u32 1.1754944e-38, %v5429
      %v5431 = vsel %vm5428, %v5430, %v5426
      %v5432 = vmul.f32 %v5207, %v5431
      %v5433 = vrcp.pop %v5279
      %v5434 = vmul.f32 %v5279, %v5433
      %v5435 = vsub.f32 1.0, %v5434
      %v5436 = vmul.f32 %v5433, %v5435
      %v5437 = vadd.f32 %v5433, %v5436
      %vm5438 = vweird.f32 %v5279
      %vm5439 = vweird.f32 %v5433
      %vm5440 = vmor %vm5438, %vm5439
      %v5441 = vsel %vm5440, %v5433, %v5437
      %v5442 = vand.u32 2147483647, %v5279
      %vm5443 = vcmp.eq.f32.partialorder %v5442, 8.507059e+37
      %v5444 = vand.u32 %v5279, 2147483648
      %v5445 = vor.u32 1.1754944e-38, %v5444
      %v5446 = vsel %vm5443, %v5445, %v5441
      %v5447 = vmul.f32 %v5209, %v5446
      %v5448 = vrcp.pop %v5282
      %v5449 = vmul.f32 %v5282, %v5448
      %v5450 = vsub.f32 1.0, %v5449
      %v5451 = vmul.f32 %v5448, %v5450
      %v5452 = vadd.f32 %v5448, %v5451
      %vm5453 = vweird.f32 %v5282
      %vm5454 = vweird.f32 %v5448
      %vm5455 = vmor %vm5453, %vm5454
      %v5456 = vsel %vm5455, %v5448, %v5452
      %v5457 = vand.u32 2147483647, %v5282
      %vm5458 = vcmp.eq.f32.partialorder %v5457, 8.507059e+37
      %v5459 = vand.u32 %v5282, 2147483648
      %v5460 = vor.u32 1.1754944e-38, %v5459
      %v5461 = vsel %vm5458, %v5460, %v5456
      %v5462 = vmul.f32 %v5211, %v5461
      %v5463 = vrcp.pop %v5285
      %v5464 = vmul.f32 %v5285, %v5463
      %v5465 = vsub.f32 1.0, %v5464
      %v5466 = vmul.f32 %v5463, %v5465
      %v5467 = vadd.f32 %v5463, %v5466
      %vm5468 = vweird.f32 %v5285
      %vm5469 = vweird.f32 %v5463
      %vm5470 = vmor %vm5468, %vm5469
      %v5471 = vsel %vm5470, %v5463, %v5467
      %v5472 = vand.u32 2147483647, %v5285
      %vm5473 = vcmp.eq.f32.partialorder %v5472, 8.507059e+37
      %v5474 = vand.u32 %v5285, 2147483648
      %v5475 = vor.u32 1.1754944e-38, %v5474
      %v5476 = vsel %vm5473, %v5475, %v5471
      %v5477 = vmul.f32 %v5213, %v5476
      %v5478 = vrcp.pop %v5288
      %v5479 = vmul.f32 %v5288, %v5478
      %v5480 = vsub.f32 1.0, %v5479
      %v5481 = vmul.f32 %v5478, %v5480
      %v5482 = vadd.f32 %v5478, %v5481
      %vm5483 = vweird.f32 %v5288
      %vm5484 = vweird.f32 %v5478
      %vm5485 = vmor %vm5483, %vm5484
      %v5486 = vsel %vm5485, %v5478, %v5482
      %v5487 = vand.u32 2147483647, %v5288
      %vm5488 = vcmp.eq.f32.partialorder %v5487, 8.507059e+37
      %v5489 = vand.u32 %v5288, 2147483648
      %v5490 = vor.u32 1.1754944e-38, %v5489
      %v5491 = vsel %vm5488, %v5490, %v5486
      %v5492 = vmul.f32 %v5215, %v5491
      %v5493 = vrcp.pop %v5291
      %v5494 = vmul.f32 %v5291, %v5493
      %v5495 = vsub.f32 1.0, %v5494
      %v5496 = vmul.f32 %v5493, %v5495
      %v5497 = vadd.f32 %v5493, %v5496
      %vm5498 = vweird.f32 %v5291
      %vm5499 = vweird.f32 %v5493
      %vm5500 = vmor %vm5498, %vm5499
      %v5501 = vsel %vm5500, %v5493, %v5497
      %v5502 = vand.u32 2147483647, %v5291
      %vm5503 = vcmp.eq.f32.partialorder %v5502, 8.507059e+37
      %v5504 = vand.u32 %v5291, 2147483648
      %v5505 = vor.u32 1.1754944e-38, %v5504
      %v5506 = vsel %vm5503, %v5505, %v5501
      %v5507 = vmul.f32 %v5217, %v5506
      %v5508 = vrcp.pop %v5294
      %v5509 = vmul.f32 %v5294, %v5508
      %v5510 = vsub.f32 1.0, %v5509
      %v5511 = vmul.f32 %v5508, %v5510
      %v5512 = vadd.f32 %v5508, %v5511
      %vm5513 = vweird.f32 %v5294
      %vm5514 = vweird.f32 %v5508
      %vm5515 = vmor %vm5513, %vm5514
      %v5516 = vsel %vm5515, %v5508, %v5512
      %v5517 = vand.u32 2147483647, %v5294
      %vm5518 = vcmp.eq.f32.partialorder %v5517, 8.507059e+37
      %v5519 = vand.u32 %v5294, 2147483648
      %v5520 = vor.u32 1.1754944e-38, %v5519
      %v5521 = vsel %vm5518, %v5520, %v5516
      %v5522 = vmul.f32 %v5219, %v5521
      %v5523 = vrcp.pop %v5297
      %v5524 = vmul.f32 %v5297, %v5523
      %v5525 = vsub.f32 1.0, %v5524
      %v5526 = vmul.f32 %v5523, %v5525
      %v5527 = vadd.f32 %v5523, %v5526
      %vm5528 = vweird.f32 %v5297
      %vm5529 = vweird.f32 %v5523
      %vm5530 = vmor %vm5528, %vm5529
      %v5531 = vsel %vm5530, %v5523, %v5527
      %v5532 = vand.u32 2147483647, %v5297
      %vm5533 = vcmp.eq.f32.partialorder %v5532, 8.507059e+37
      %v5534 = vand.u32 %v5297, 2147483648
      %v5535 = vor.u32 1.1754944e-38, %v5534
      %v5536 = vsel %vm5533, %v5535, %v5531
      %v5537 = vmul.f32 %v5221, %v5536
      %v5538 = vrcp.pop %v5300
      %v5539 = vmul.f32 %v5300, %v5538
      %v5540 = vsub.f32 1.0, %v5539
      %v5541 = vmul.f32 %v5538, %v5540
      %v5542 = vadd.f32 %v5538, %v5541
      %vm5543 = vweird.f32 %v5300
      %vm5544 = vweird.f32 %v5538
      %vm5545 = vmor %vm5543, %vm5544
      %v5546 = vsel %vm5545, %v5538, %v5542
      %v5547 = vand.u32 2147483647, %v5300
      %vm5548 = vcmp.eq.f32.partialorder %v5547, 8.507059e+37
      %v5549 = vand.u32 %v5300, 2147483648
      %v5550 = vor.u32 1.1754944e-38, %v5549
      %v5551 = vsel %vm5548, %v5550, %v5546
      %v5552 = vmul.f32 %v5223, %v5551
      %v5553 = vrcp.pop %v5303
      %v5554 = vmul.f32 %v5303, %v5553
      %v5555 = vsub.f32 1.0, %v5554
      %v5556 = vmul.f32 %v5553, %v5555
      %v5557 = vadd.f32 %v5553, %v5556
      %vm5558 = vweird.f32 %v5303
      %vm5559 = vweird.f32 %v5553
      %vm5560 = vmor %vm5558, %vm5559
      %v5561 = vsel %vm5560, %v5553, %v5557
      %v5562 = vand.u32 2147483647, %v5303
      %vm5563 = vcmp.eq.f32.partialorder %v5562, 8.507059e+37
      %v5564 = vand.u32 %v5303, 2147483648
      %v5565 = vor.u32 1.1754944e-38, %v5564
      %v5566 = vsel %vm5563, %v5565, %v5561
      %v5567 = vmul.f32 %v5225, %v5566
      %v5568 = vrcp.pop %v5306
      %v5569 = vmul.f32 %v5306, %v5568
      %v5570 = vsub.f32 1.0, %v5569
      %v5571 = vmul.f32 %v5568, %v5570
      %v5572 = vadd.f32 %v5568, %v5571
      %vm5573 = vweird.f32 %v5306
      %vm5574 = vweird.f32 %v5568
      %vm5575 = vmor %vm5573, %vm5574
      %v5576 = vsel %vm5575, %v5568, %v5572
      %v5577 = vand.u32 2147483647, %v5306
      %vm5578 = vcmp.eq.f32.partialorder %v5577, 8.507059e+37
      %v5579 = vand.u32 %v5306, 2147483648
      %v5580 = vor.u32 1.1754944e-38, %v5579
      %v5581 = vsel %vm5578, %v5580, %v5576
      %v5582 = vmul.f32 %v5227, %v5581
      %v5583 = vrcp.pop %v5309
      %v5584 = vmul.f32 %v5309, %v5583
      %v5585 = vsub.f32 1.0, %v5584
      %v5586 = vmul.f32 %v5583, %v5585
      %v5587 = vadd.f32 %v5583, %v5586
      %vm5588 = vweird.f32 %v5309
      %vm5589 = vweird.f32 %v5583
      %vm5590 = vmor %vm5588, %vm5589
      %v5591 = vsel %vm5590, %v5583, %v5587
      %v5592 = vand.u32 2147483647, %v5309
      %vm5593 = vcmp.eq.f32.partialorder %v5592, 8.507059e+37
      %v5594 = vand.u32 %v5309, 2147483648
      %v5595 = vor.u32 1.1754944e-38, %v5594
      %v5596 = vsel %vm5593, %v5595, %v5591
      %v5597 = vmul.f32 %v5229, %v5596
      %v5598 = vrcp.pop %v5312
      %v5599 = vmul.f32 %v5312, %v5598
      %v5600 = vsub.f32 1.0, %v5599
      %v5601 = vmul.f32 %v5598, %v5600
      %v5602 = vadd.f32 %v5598, %v5601
      %vm5603 = vweird.f32 %v5312
      %vm5604 = vweird.f32 %v5598
      %vm5605 = vmor %vm5603, %vm5604
      %v5606 = vsel %vm5605, %v5598, %v5602
      %v5607 = vand.u32 2147483647, %v5312
      %vm5608 = vcmp.eq.f32.partialorder %v5607, 8.507059e+37
      %v5609 = vand.u32 %v5312, 2147483648
      %v5610 = vor.u32 1.1754944e-38, %v5609
      %v5611 = vsel %vm5608, %v5610, %v5606
      %v5612 = vmul.f32 %v5231, %v5611
      %v5613 = vrcp.pop %v5315
      %v5614 = vmul.f32 %v5315, %v5613
      %v5615 = vsub.f32 1.0, %v5614
      %v5616 = vmul.f32 %v5613, %v5615
      %v5617 = vadd.f32 %v5613, %v5616
      %vm5618 = vweird.f32 %v5315
      %vm5619 = vweird.f32 %v5613
      %vm5620 = vmor %vm5618, %vm5619
      %v5621 = vsel %vm5620, %v5613, %v5617
      %v5622 = vand.u32 2147483647, %v5315
      %vm5623 = vcmp.eq.f32.partialorder %v5622, 8.507059e+37
      %v5624 = vand.u32 %v5315, 2147483648
      %v5625 = vor.u32 1.1754944e-38, %v5624
      %v5626 = vsel %vm5623, %v5625, %v5621
      %v5627 = vmul.f32 %v5233, %v5626
      %v5628 = vrcp.pop %v5318
      %v5629 = vmul.f32 %v5318, %v5628
      %v5630 = vsub.f32 1.0, %v5629
      %v5631 = vmul.f32 %v5628, %v5630
      %v5632 = vadd.f32 %v5628, %v5631
      %vm5633 = vweird.f32 %v5318
      %vm5634 = vweird.f32 %v5628
      %vm5635 = vmor %vm5633, %vm5634
      %v5636 = vsel %vm5635, %v5628, %v5632
      %v5637 = vand.u32 2147483647, %v5318
      %vm5638 = vcmp.eq.f32.partialorder %v5637, 8.507059e+37
      %v5639 = vand.u32 %v5318, 2147483648
      %v5640 = vor.u32 1.1754944e-38, %v5639
      %v5641 = vsel %vm5638, %v5640, %v5636
      %v5642 = vmul.f32 %v5235, %v5641
      %v5643 = vrcp.pop %v5321
      %v5644 = vmul.f32 %v5321, %v5643
      %v5645 = vsub.f32 1.0, %v5644
      %v5646 = vmul.f32 %v5643, %v5645
      %v5647 = vadd.f32 %v5643, %v5646
      %vm5648 = vweird.f32 %v5321
      %vm5649 = vweird.f32 %v5643
      %vm5650 = vmor %vm5648, %vm5649
      %v5651 = vsel %vm5650, %v5643, %v5647
      %v5652 = vand.u32 2147483647, %v5321
      %vm5653 = vcmp.eq.f32.partialorder %v5652, 8.507059e+37
      %v5654 = vand.u32 %v5321, 2147483648
      %v5655 = vor.u32 1.1754944e-38, %v5654
      %v5656 = vsel %vm5653, %v5655, %v5651
      %v5657 = vmul.f32 %v5237, %v5656
      %v5658 = vrcp.pop %v5324
      %v5659 = vmul.f32 %v5324, %v5658
      %v5660 = vsub.f32 1.0, %v5659
      %v5661 = vmul.f32 %v5658, %v5660
      %v5662 = vadd.f32 %v5658, %v5661
      %vm5663 = vweird.f32 %v5324
      %vm5664 = vweird.f32 %v5658
      %vm5665 = vmor %vm5663, %vm5664
      %v5666 = vsel %vm5665, %v5658, %v5662
      %v5667 = vand.u32 2147483647, %v5324
      %vm5668 = vcmp.eq.f32.partialorder %v5667, 8.507059e+37
      %v5669 = vand.u32 %v5324, 2147483648
      %v5670 = vor.u32 1.1754944e-38, %v5669
      %v5671 = vsel %vm5668, %v5670, %v5666
      %v5672 = vmul.f32 %v5239, %v5671
      %v5673 = vrcp.pop %v5327
      %v5674 = vmul.f32 %v5327, %v5673
      %v5675 = vsub.f32 1.0, %v5674
      %v5676 = vmul.f32 %v5673, %v5675
      %v5677 = vadd.f32 %v5673, %v5676
      %vm5678 = vweird.f32 %v5327
      %vm5679 = vweird.f32 %v5673
      %vm5680 = vmor %vm5678, %vm5679
      %v5681 = vsel %vm5680, %v5673, %v5677
      %v5682 = vand.u32 2147483647, %v5327
      %vm5683 = vcmp.eq.f32.partialorder %v5682, 8.507059e+37
      %v5684 = vand.u32 %v5327, 2147483648
      %v5685 = vor.u32 1.1754944e-38, %v5684
      %v5686 = vsel %vm5683, %v5685, %v5681
      %v5687 = vmul.f32 %v5241, %v5686
      %v5688 = vrcp.pop %v5330
      %v5689 = vmul.f32 %v5330, %v5688
      %v5690 = vsub.f32 1.0, %v5689
      %v5691 = vmul.f32 %v5688, %v5690
      %v5692 = vadd.f32 %v5688, %v5691
      %vm5693 = vweird.f32 %v5330
      %vm5694 = vweird.f32 %v5688
      %vm5695 = vmor %vm5693, %vm5694
      %v5696 = vsel %vm5695, %v5688, %v5692
      %v5697 = vand.u32 2147483647, %v5330
      %vm5698 = vcmp.eq.f32.partialorder %v5697, 8.507059e+37
      %v5699 = vand.u32 %v5330, 2147483648
      %v5700 = vor.u32 1.1754944e-38, %v5699
      %v5701 = vsel %vm5698, %v5700, %v5696
      %v5702 = vmul.f32 %v5243, %v5701
      %v5703 = vrcp.pop %v5333
      %v5704 = vmul.f32 %v5333, %v5703
      %v5705 = vsub.f32 1.0, %v5704
      %v5706 = vmul.f32 %v5703, %v5705
      %v5707 = vadd.f32 %v5703, %v5706
      %vm5708 = vweird.f32 %v5333
      %vm5709 = vweird.f32 %v5703
      %vm5710 = vmor %vm5708, %vm5709
      %v5711 = vsel %vm5710, %v5703, %v5707
      %v5712 = vand.u32 2147483647, %v5333
      %vm5713 = vcmp.eq.f32.partialorder %v5712, 8.507059e+37
      %v5714 = vand.u32 %v5333, 2147483648
      %v5715 = vor.u32 1.1754944e-38, %v5714
      %v5716 = vsel %vm5713, %v5715, %v5711
      %v5717 = vmul.f32 %v5245, %v5716
      %v5718 = vrcp.pop %v5336
      %v5719 = vmul.f32 %v5336, %v5718
      %v5720 = vsub.f32 1.0, %v5719
      %v5721 = vmul.f32 %v5718, %v5720
      %v5722 = vadd.f32 %v5718, %v5721
      %vm5723 = vweird.f32 %v5336
      %vm5724 = vweird.f32 %v5718
      %vm5725 = vmor %vm5723, %vm5724
      %v5726 = vsel %vm5725, %v5718, %v5722
      %v5727 = vand.u32 2147483647, %v5336
      %vm5728 = vcmp.eq.f32.partialorder %v5727, 8.507059e+37
      %v5729 = vand.u32 %v5336, 2147483648
      %v5730 = vor.u32 1.1754944e-38, %v5729
      %v5731 = vsel %vm5728, %v5730, %v5726
      %v5732 = vmul.f32 %v5247, %v5731
      %v5733 = vrcp.pop %v5339
      %v5734 = vmul.f32 %v5339, %v5733
      %v5735 = vsub.f32 1.0, %v5734
      %v5736 = vmul.f32 %v5733, %v5735
      %v5737 = vadd.f32 %v5733, %v5736
      %vm5738 = vweird.f32 %v5339
      %vm5739 = vweird.f32 %v5733
      %vm5740 = vmor %vm5738, %vm5739
      %v5741 = vsel %vm5740, %v5733, %v5737
      %v5742 = vand.u32 2147483647, %v5339
      %vm5743 = vcmp.eq.f32.partialorder %v5742, 8.507059e+37
      %v5744 = vand.u32 %v5339, 2147483648
      %v5745 = vor.u32 1.1754944e-38, %v5744
      %v5746 = vsel %vm5743, %v5745, %v5741
      %v5747 = vmul.f32 %v5249, %v5746
      %v5748 = vrcp.pop %v5342
      %v5749 = vmul.f32 %v5342, %v5748
      %v5750 = vsub.f32 1.0, %v5749
      %v5751 = vmul.f32 %v5748, %v5750
      %v5752 = vadd.f32 %v5748, %v5751
      %vm5753 = vweird.f32 %v5342
      %vm5754 = vweird.f32 %v5748
      %vm5755 = vmor %vm5753, %vm5754
      %v5756 = vsel %vm5755, %v5748, %v5752
      %v5757 = vand.u32 2147483647, %v5342
      %vm5758 = vcmp.eq.f32.partialorder %v5757, 8.507059e+37
      %v5759 = vand.u32 %v5342, 2147483648
      %v5760 = vor.u32 1.1754944e-38, %v5759
      %v5761 = vsel %vm5758, %v5760, %v5756
      %v5762 = vmul.f32 %v5251, %v5761
      %v5763 = vrcp.pop %v5345
      %v5764 = vmul.f32 %v5345, %v5763
      %v5765 = vsub.f32 1.0, %v5764
      %v5766 = vmul.f32 %v5763, %v5765
      %v5767 = vadd.f32 %v5763, %v5766
      %vm5768 = vweird.f32 %v5345
      %vm5769 = vweird.f32 %v5763
      %vm5770 = vmor %vm5768, %vm5769
      %v5771 = vsel %vm5770, %v5763, %v5767
      %v5772 = vand.u32 2147483647, %v5345
      %vm5773 = vcmp.eq.f32.partialorder %v5772, 8.507059e+37
      %v5774 = vand.u32 %v5345, 2147483648
      %v5775 = vor.u32 1.1754944e-38, %v5774
      %v5776 = vsel %vm5773, %v5775, %v5771
      %v5777 = vmul.f32 %v5253, %v5776
      %v5778 = vrcp.pop %v5348
      %v5779 = vmul.f32 %v5348, %v5778
      %v5780 = vsub.f32 1.0, %v5779
      %v5781 = vmul.f32 %v5778, %v5780
      %v5782 = vadd.f32 %v5778, %v5781
      %vm5783 = vweird.f32 %v5348
      %vm5784 = vweird.f32 %v5778
      %vm5785 = vmor %vm5783, %vm5784
      %v5786 = vsel %vm5785, %v5778, %v5782
      %v5787 = vand.u32 2147483647, %v5348
      %vm5788 = vcmp.eq.f32.partialorder %v5787, 8.507059e+37
      %v5789 = vand.u32 %v5348, 2147483648
      %v5790 = vor.u32 1.1754944e-38, %v5789
      %v5791 = vsel %vm5788, %v5790, %v5786
      %v5792 = vmul.f32 %v5255, %v5791
      %v5793 = vrcp.pop %v5351
      %v5794 = vmul.f32 %v5351, %v5793
      %v5795 = vsub.f32 1.0, %v5794
      %v5796 = vmul.f32 %v5793, %v5795
      %v5797 = vadd.f32 %v5793, %v5796
      %vm5798 = vweird.f32 %v5351
      %vm5799 = vweird.f32 %v5793
      %vm5800 = vmor %vm5798, %vm5799
      %v5801 = vsel %vm5800, %v5793, %v5797
      %v5802 = vand.u32 2147483647, %v5351
      %vm5803 = vcmp.eq.f32.partialorder %v5802, 8.507059e+37
      %v5804 = vand.u32 %v5351, 2147483648
      %v5805 = vor.u32 1.1754944e-38, %v5804
      %v5806 = vsel %vm5803, %v5805, %v5801
      %v5807 = vmul.f32 %v5257, %v5806
      %v5808 = vrcp.pop %v5354
      %v5809 = vmul.f32 %v5354, %v5808
      %v5810 = vsub.f32 1.0, %v5809
      %v5811 = vmul.f32 %v5808, %v5810
      %v5812 = vadd.f32 %v5808, %v5811
      %vm5813 = vweird.f32 %v5354
      %vm5814 = vweird.f32 %v5808
      %vm5815 = vmor %vm5813, %vm5814
      %v5816 = vsel %vm5815, %v5808, %v5812
      %v5817 = vand.u32 2147483647, %v5354
      %vm5818 = vcmp.eq.f32.partialorder %v5817, 8.507059e+37
      %v5819 = vand.u32 %v5354, 2147483648
      %v5820 = vor.u32 1.1754944e-38, %v5819
      %v5821 = vsel %vm5818, %v5820, %v5816
      %v5822 = vmul.f32 %v5259, %v5821
      %v5823 = vrcp.pop %v5357
      %v5824 = vmul.f32 %v5357, %v5823
      %v5825 = vsub.f32 1.0, %v5824
      %v5826 = vmul.f32 %v5823, %v5825
      %v5827 = vadd.f32 %v5823, %v5826
      %vm5828 = vweird.f32 %v5357
      %vm5829 = vweird.f32 %v5823
      %vm5830 = vmor %vm5828, %vm5829
      %v5831 = vsel %vm5830, %v5823, %v5827
      %v5832 = vand.u32 2147483647, %v5357
      %vm5833 = vcmp.eq.f32.partialorder %v5832, 8.507059e+37
      %v5834 = vand.u32 %v5357, 2147483648
      %v5835 = vor.u32 1.1754944e-38, %v5834
      %v5836 = vsel %vm5833, %v5835, %v5831
      %v5837 = vmul.f32 %v5261, %v5836
      %5838 = vrot.lane.b32.xlu0 %v1279, 48
      %v5839 = vpop.permute.xlu0 %5838
      %5840 = vrot.lane.b32.xlu0 %v1282, 48
      %v5841 = vpop.permute.xlu0 %5840
      %5842 = vrot.lane.b32.xlu0 %v1285, 48
      %v5843 = vpop.permute.xlu0 %5842
      %5844 = vrot.lane.b32.xlu0 %v1288, 48
      %v5845 = vpop.permute.xlu0 %5844
      %5846 = vrot.lane.b32.xlu0 %v1291, 48
      %v5847 = vpop.permute.xlu0 %5846
      %5848 = vrot.lane.b32.xlu0 %v1294, 48
      %v5849 = vpop.permute.xlu0 %5848
      %5850 = vrot.lane.b32.xlu0 %v1297, 48
      %v5851 = vpop.permute.xlu0 %5850
      %5852 = vrot.lane.b32.xlu0 %v1300, 48
      %v5853 = vpop.permute.xlu0 %5852
      %v5863 = vsel %vm1899, %v5372, 0
      %v5866 = vsel %vm1899, %v5387, 0
      %v5869 = vsel %vm1899, %v5402, 0
      %v5872 = vsel %vm1899, %v5417, 0
      %v5875 = vsel %vm1899, %v5432, 0
      %v5878 = vsel %vm1899, %v5447, 0
      %v5881 = vsel %vm1899, %v5462, 0
      %v5884 = vsel %vm1899, %v5477, 0
      %5886 = vmatpush.msra.mxu0 0.0
      %5887 = vmatpush.msra.mxu0 0.0
      %5888 = vmatpush.msra.mxu0 0.0
      %5889 = vmatpush.msra.mxu0 0.0
      %5890 = vmatpush.msra.mxu0 0.0
      %5891 = vmatpush.msra.mxu0 0.0
      %5892 = vmatpush.msra.mxu0 0.0
      %5893 = vmatpush.msra.mxu0 0.0
      %5894 = vmatpush.msra.mxu0 %v5853
      %5895 = vmatpush.msra.mxu0 %v5851
      %5896 = vmatpush.msra.mxu0 %v5849
      %5897 = vmatpush.msra.mxu0 %v5847
      %5898 = vmatpush.msra.mxu0 %v5845
      %5899 = vmatpush.msra.mxu0 %v5843
      %5900 = vmatpush.msra.mxu0 %v5841
      %5901 = vmatpush.msra.mxu0 %v5839
      %5902 = vmatmul.f32.gmra.mxu0 %v5863
      %v5903 = vpop.f32.mrf.mxu0
      %v5904 = vadd.f32 0.0, %v5903
      %5905 = vmatmul.f32.gmra.mxu0 %v5866
      %v5906 = vpop.f32.mrf.mxu0
      %v5907 = vadd.f32 0.0, %v5906
      %5908 = vmatmul.f32.gmra.mxu0 %v5869
      %v5909 = vpop.f32.mrf.mxu0
      %v5910 = vadd.f32 0.0, %v5909
      %5911 = vmatmul.f32.gmra.mxu0 %v5872
      %v5912 = vpop.f32.mrf.mxu0
      %v5913 = vadd.f32 0.0, %v5912
      %5914 = vmatmul.f32.gmra.mxu0 %v5875
      %v5915 = vpop.f32.mrf.mxu0
      %v5916 = vadd.f32 0.0, %v5915
      %5917 = vmatmul.f32.gmra.mxu0 %v5878
      %v5918 = vpop.f32.mrf.mxu0
      %v5919 = vadd.f32 0.0, %v5918
      %5920 = vmatmul.f32.gmra.mxu0 %v5881
      %v5921 = vpop.f32.mrf.mxu0
      %v5922 = vadd.f32 0.0, %v5921
      %5923 = vmatmul.f32.gmra.mxu0 %v5884
      %v5924 = vpop.f32.mrf.mxu0
      %v5925 = vadd.f32 0.0, %v5924
      %5926 = vdwg.mxu0
      %5927 = vrot.lane.b32.xlu0 %v1303, 48
      %v5928 = vpop.permute.xlu0 %5927
      %5929 = vrot.lane.b32.xlu0 %v1306, 48
      %v5930 = vpop.permute.xlu0 %5929
      %5931 = vrot.lane.b32.xlu0 %v1309, 48
      %v5932 = vpop.permute.xlu0 %5931
      %5933 = vrot.lane.b32.xlu0 %v1312, 48
      %v5934 = vpop.permute.xlu0 %5933
      %5935 = vrot.lane.b32.xlu0 %v1315, 48
      %v5936 = vpop.permute.xlu0 %5935
      %5937 = vrot.lane.b32.xlu0 %v1318, 48
      %v5938 = vpop.permute.xlu0 %5937
      %5939 = vrot.lane.b32.xlu0 %v1321, 48
      %v5940 = vpop.permute.xlu0 %5939
      %5941 = vrot.lane.b32.xlu0 %v1324, 48
      %v5942 = vpop.permute.xlu0 %5941
      %v5952 = vsel %vm1899, %v5492, 0
      %v5955 = vsel %vm1899, %v5507, 0
      %v5958 = vsel %vm1899, %v5522, 0
      %v5961 = vsel %vm1899, %v5537, 0
      %v5964 = vsel %vm1899, %v5552, 0
      %v5967 = vsel %vm1899, %v5567, 0
      %v5970 = vsel %vm1899, %v5582, 0
      %v5973 = vsel %vm1899, %v5597, 0
      %5975 = vmatpush.msra.mxu0 0.0
      %5976 = vmatpush.msra.mxu0 0.0
      %5977 = vmatpush.msra.mxu0 0.0
      %5978 = vmatpush.msra.mxu0 0.0
      %5979 = vmatpush.msra.mxu0 0.0
      %5980 = vmatpush.msra.mxu0 0.0
      %5981 = vmatpush.msra.mxu0 0.0
      %5982 = vmatpush.msra.mxu0 0.0
      %5983 = vmatpush.msra.mxu0 %v5942
      %5984 = vmatpush.msra.mxu0 %v5940
      %5985 = vmatpush.msra.mxu0 %v5938
      %5986 = vmatpush.msra.mxu0 %v5936
      %5987 = vmatpush.msra.mxu0 %v5934
      %5988 = vmatpush.msra.mxu0 %v5932
      %5989 = vmatpush.msra.mxu0 %v5930
      %5990 = vmatpush.msra.mxu0 %v5928
      %5991 = vmatmul.f32.gmra.mxu0 %v5952
      %v5992 = vpop.f32.mrf.mxu0
      %v5993 = vadd.f32 0.0, %v5992
      %5994 = vmatmul.f32.gmra.mxu0 %v5955
      %v5995 = vpop.f32.mrf.mxu0
      %v5996 = vadd.f32 0.0, %v5995
      %5997 = vmatmul.f32.gmra.mxu0 %v5958
      %v5998 = vpop.f32.mrf.mxu0
      %v5999 = vadd.f32 0.0, %v5998
      %6000 = vmatmul.f32.gmra.mxu0 %v5961
      %v6001 = vpop.f32.mrf.mxu0
      %v6002 = vadd.f32 0.0, %v6001
      %6003 = vmatmul.f32.gmra.mxu0 %v5964
      %v6004 = vpop.f32.mrf.mxu0
      %v6005 = vadd.f32 0.0, %v6004
      %6006 = vmatmul.f32.gmra.mxu0 %v5967
      %v6007 = vpop.f32.mrf.mxu0
      %v6008 = vadd.f32 0.0, %v6007
      %6009 = vmatmul.f32.gmra.mxu0 %v5970
      %v6010 = vpop.f32.mrf.mxu0
      %v6011 = vadd.f32 0.0, %v6010
      %6012 = vmatmul.f32.gmra.mxu0 %v5973
      %v6013 = vpop.f32.mrf.mxu0
      %v6014 = vadd.f32 0.0, %v6013
      %6015 = vdwg.mxu0
      %6016 = vrot.lane.b32.xlu0 %v1327, 48
      %v6017 = vpop.permute.xlu0 %6016
      %6018 = vrot.lane.b32.xlu0 %v1330, 48
      %v6019 = vpop.permute.xlu0 %6018
      %6020 = vrot.lane.b32.xlu0 %v1333, 48
      %v6021 = vpop.permute.xlu0 %6020
      %6022 = vrot.lane.b32.xlu0 %v1336, 48
      %v6023 = vpop.permute.xlu0 %6022
      %6024 = vrot.lane.b32.xlu0 %v1339, 48
      %v6025 = vpop.permute.xlu0 %6024
      %6026 = vrot.lane.b32.xlu0 %v1342, 48
      %v6027 = vpop.permute.xlu0 %6026
      %6028 = vrot.lane.b32.xlu0 %v1345, 48
      %v6029 = vpop.permute.xlu0 %6028
      %6030 = vrot.lane.b32.xlu0 %v1348, 48
      %v6031 = vpop.permute.xlu0 %6030
      %v6041 = vsel %vm1899, %v5612, 0
      %v6044 = vsel %vm1899, %v5627, 0
      %v6047 = vsel %vm1899, %v5642, 0
      %v6050 = vsel %vm1899, %v5657, 0
      %v6053 = vsel %vm1899, %v5672, 0
      %v6056 = vsel %vm1899, %v5687, 0
      %v6059 = vsel %vm1899, %v5702, 0
      %v6062 = vsel %vm1899, %v5717, 0
      %6064 = vmatpush.msra.mxu0 0.0
      %6065 = vmatpush.msra.mxu0 0.0
      %6066 = vmatpush.msra.mxu0 0.0
      %6067 = vmatpush.msra.mxu0 0.0
      %6068 = vmatpush.msra.mxu0 0.0
      %6069 = vmatpush.msra.mxu0 0.0
      %6070 = vmatpush.msra.mxu0 0.0
      %6071 = vmatpush.msra.mxu0 0.0
      %6072 = vmatpush.msra.mxu0 %v6031
      %6073 = vmatpush.msra.mxu0 %v6029
      %6074 = vmatpush.msra.mxu0 %v6027
      %6075 = vmatpush.msra.mxu0 %v6025
      %6076 = vmatpush.msra.mxu0 %v6023
      %6077 = vmatpush.msra.mxu0 %v6021
      %6078 = vmatpush.msra.mxu0 %v6019
      %6079 = vmatpush.msra.mxu0 %v6017
      %6080 = vmatmul.f32.gmra.mxu0 %v6041
      %v6081 = vpop.f32.mrf.mxu0
      %v6082 = vadd.f32 0.0, %v6081
      %6083 = vmatmul.f32.gmra.mxu0 %v6044
      %v6084 = vpop.f32.mrf.mxu0
      %v6085 = vadd.f32 0.0, %v6084
      %6086 = vmatmul.f32.gmra.mxu0 %v6047
      %v6087 = vpop.f32.mrf.mxu0
      %v6088 = vadd.f32 0.0, %v6087
      %6089 = vmatmul.f32.gmra.mxu0 %v6050
      %v6090 = vpop.f32.mrf.mxu0
      %v6091 = vadd.f32 0.0, %v6090
      %6092 = vmatmul.f32.gmra.mxu0 %v6053
      %v6093 = vpop.f32.mrf.mxu0
      %v6094 = vadd.f32 0.0, %v6093
      %6095 = vmatmul.f32.gmra.mxu0 %v6056
      %v6096 = vpop.f32.mrf.mxu0
      %v6097 = vadd.f32 0.0, %v6096
      %6098 = vmatmul.f32.gmra.mxu0 %v6059
      %v6099 = vpop.f32.mrf.mxu0
      %v6100 = vadd.f32 0.0, %v6099
      %6101 = vmatmul.f32.gmra.mxu0 %v6062
      %v6102 = vpop.f32.mrf.mxu0
      %v6103 = vadd.f32 0.0, %v6102
      %6104 = vdwg.mxu0
      %6105 = vrot.lane.b32.xlu0 %v1351, 48
      %v6106 = vpop.permute.xlu0 %6105
      %6107 = vrot.lane.b32.xlu0 %v1354, 48
      %v6108 = vpop.permute.xlu0 %6107
      %6109 = vrot.lane.b32.xlu0 %v1357, 48
      %v6110 = vpop.permute.xlu0 %6109
      %6111 = vrot.lane.b32.xlu0 %v1360, 48
      %v6112 = vpop.permute.xlu0 %6111
      %6113 = vrot.lane.b32.xlu0 %v1363, 48
      %v6114 = vpop.permute.xlu0 %6113
      %6115 = vrot.lane.b32.xlu0 %v1366, 48
      %v6116 = vpop.permute.xlu0 %6115
      %6117 = vrot.lane.b32.xlu0 %v1369, 48
      %v6118 = vpop.permute.xlu0 %6117
      %6119 = vrot.lane.b32.xlu0 %v1372, 48
      %v6120 = vpop.permute.xlu0 %6119
      %v6130 = vsel %vm1899, %v5732, 0
      %v6133 = vsel %vm1899, %v5747, 0
      %v6136 = vsel %vm1899, %v5762, 0
      %v6139 = vsel %vm1899, %v5777, 0
      %v6142 = vsel %vm1899, %v5792, 0
      %v6145 = vsel %vm1899, %v5807, 0
      %v6148 = vsel %vm1899, %v5822, 0
      %v6151 = vsel %vm1899, %v5837, 0
      %6153 = vmatpush.msra.mxu0 0.0
      %6154 = vmatpush.msra.mxu0 0.0
      %6155 = vmatpush.msra.mxu0 0.0
      %6156 = vmatpush.msra.mxu0 0.0
      %6157 = vmatpush.msra.mxu0 0.0
      %6158 = vmatpush.msra.mxu0 0.0
      %6159 = vmatpush.msra.mxu0 0.0
      %6160 = vmatpush.msra.mxu0 0.0
      %6161 = vmatpush.msra.mxu0 %v6120
      %6162 = vmatpush.msra.mxu0 %v6118
      %6163 = vmatpush.msra.mxu0 %v6116
      %6164 = vmatpush.msra.mxu0 %v6114
      %6165 = vmatpush.msra.mxu0 %v6112
      %6166 = vmatpush.msra.mxu0 %v6110
      %6167 = vmatpush.msra.mxu0 %v6108
      %6168 = vmatpush.msra.mxu0 %v6106
      %6169 = vmatmul.f32.gmra.mxu0 %v6130
      %v6170 = vpop.f32.mrf.mxu0
      %v6171 = vadd.f32 0.0, %v6170
      %6172 = vmatmul.f32.gmra.mxu0 %v6133
      %v6173 = vpop.f32.mrf.mxu0
      %v6174 = vadd.f32 0.0, %v6173
      %6175 = vmatmul.f32.gmra.mxu0 %v6136
      %v6176 = vpop.f32.mrf.mxu0
      %v6177 = vadd.f32 0.0, %v6176
      %6178 = vmatmul.f32.gmra.mxu0 %v6139
      %v6179 = vpop.f32.mrf.mxu0
      %v6180 = vadd.f32 0.0, %v6179
      %6181 = vmatmul.f32.gmra.mxu0 %v6142
      %v6182 = vpop.f32.mrf.mxu0
      %v6183 = vadd.f32 0.0, %v6182
      %6184 = vmatmul.f32.gmra.mxu0 %v6145
      %v6185 = vpop.f32.mrf.mxu0
      %v6186 = vadd.f32 0.0, %v6185
      %6187 = vmatmul.f32.gmra.mxu0 %v6148
      %v6188 = vpop.f32.mrf.mxu0
      %v6189 = vadd.f32 0.0, %v6188
      %6190 = vmatmul.f32.gmra.mxu0 %v6151
      %v6191 = vpop.f32.mrf.mxu0
      %v6192 = vadd.f32 0.0, %v6191
      %6193 = vdwg.mxu0
      %s6194 = scalar_lea.vmem %s5, 192
      %v6195 = vld [vmem:[%s6194] sm:$0xff]
      %v6196 = vld [vmem:[%s6194 + $0x8] sm:$0xff]
      %v6197 = vld [vmem:[%s6194 + $0x10] sm:$0xff]
      %v6198 = vld [vmem:[%s6194 + $0x18] sm:$0xff]
      %v6199 = vld [vmem:[%s6194 + $0x20] sm:$0xff]
      %v6200 = vld [vmem:[%s6194 + $0x28] sm:$0xff]
      %v6201 = vld [vmem:[%s6194 + $0x30] sm:$0xff]
      %v6202 = vld [vmem:[%s6194 + $0x38] sm:$0xff]
      %6203 = vrot.lane.b32.xlu0 %v1406, 104
      %v6204 = vpop.permute.xlu0 %6203
      %6205 = vrot.lane.b32.xlu0 %v1407, 104
      %v6206 = vpop.permute.xlu0 %6205
      %6207 = vrot.lane.b32.xlu0 %v1408, 104
      %v6208 = vpop.permute.xlu0 %6207
      %6209 = vrot.lane.b32.xlu0 %v1409, 104
      %v6210 = vpop.permute.xlu0 %6209
      %6211 = vrot.lane.b32.xlu0 %v1410, 104
      %v6212 = vpop.permute.xlu0 %6211
      %6213 = vrot.lane.b32.xlu0 %v1411, 104
      %v6214 = vpop.permute.xlu0 %6213
      %6215 = vrot.lane.b32.xlu0 %v1412, 104
      %v6216 = vpop.permute.xlu0 %6215
      %6217 = vrot.lane.b32.xlu0 %v1413, 104
      %v6218 = vpop.permute.xlu0 %6217
      %6219 = vrot.lane.b32.xlu0 %v1279, 72
      %v6220 = vpop.permute.xlu0 %6219
      %6221 = vrot.lane.b32.xlu0 %v1282, 72
      %v6222 = vpop.permute.xlu0 %6221
      %6223 = vrot.lane.b32.xlu0 %v1285, 72
      %v6224 = vpop.permute.xlu0 %6223
      %6225 = vrot.lane.b32.xlu0 %v1288, 72
      %v6226 = vpop.permute.xlu0 %6225
      %6227 = vrot.lane.b32.xlu0 %v1291, 72
      %v6228 = vpop.permute.xlu0 %6227
      %6229 = vrot.lane.b32.xlu0 %v1294, 72
      %v6230 = vpop.permute.xlu0 %6229
      %6231 = vrot.lane.b32.xlu0 %v1297, 72
      %v6232 = vpop.permute.xlu0 %6231
      %6233 = vrot.lane.b32.xlu0 %v1300, 72
      %v6234 = vpop.permute.xlu0 %6233
      %v6235 = vsel %vm1470, %v6204, 0
      %v6237 = vsel %vm1470, %v6206, 0
      %v6239 = vsel %vm1470, %v6208, 0
      %v6241 = vsel %vm1470, %v6210, 0
      %v6243 = vsel %vm1470, %v6212, 0
      %v6245 = vsel %vm1470, %v6214, 0
      %v6247 = vsel %vm1470, %v6216, 0
      %v6249 = vsel %vm1470, %v6218, 0
      %v6251 = vsel %vm1470, %v6220, 0
      %v6253 = vsel %vm1470, %v6222, 0
      %v6255 = vsel %vm1470, %v6224, 0
      %v6257 = vsel %vm1470, %v6226, 0
      %v6259 = vsel %vm1470, %v6228, 0
      %v6261 = vsel %vm1470, %v6230, 0
      %v6263 = vsel %vm1470, %v6232, 0
      %v6265 = vsel %vm1470, %v6234, 0
      %6267 = vmatpush.xpose.msra.mxu0 0.0
      %6268 = vmatpush.xpose.msra.mxu0 0.0
      %6269 = vmatpush.xpose.msra.mxu0 0.0
      %6270 = vmatpush.xpose.msra.mxu0 0.0
      %6271 = vmatpush.xpose.msra.mxu0 0.0
      %6272 = vmatpush.xpose.msra.mxu0 0.0
      %6273 = vmatpush.xpose.msra.mxu0 0.0
      %6274 = vmatpush.xpose.msra.mxu0 0.0
      %6275 = vmatpush.xpose.msra.mxu0 %v6265
      %6276 = vmatpush.xpose.msra.mxu0 %v6263
      %6277 = vmatpush.xpose.msra.mxu0 %v6261
      %6278 = vmatpush.xpose.msra.mxu0 %v6259
      %6279 = vmatpush.xpose.msra.mxu0 %v6257
      %6280 = vmatpush.xpose.msra.mxu0 %v6255
      %6281 = vmatpush.xpose.msra.mxu0 %v6253
      %6282 = vmatpush.xpose.msra.mxu0 %v6251
      %6283 = vmatmul.f32.gmra.mxu0 %v6235
      %v6284 = vpop.f32.mrf.mxu0
      %v6285 = vadd.f32 %v6195, %v6284
      %6286 = vmatmul.f32.gmra.mxu0 %v6237
      %v6287 = vpop.f32.mrf.mxu0
      %v6288 = vadd.f32 %v6196, %v6287
      %6289 = vmatmul.f32.gmra.mxu0 %v6239
      %v6290 = vpop.f32.mrf.mxu0
      %v6291 = vadd.f32 %v6197, %v6290
      %6292 = vmatmul.f32.gmra.mxu0 %v6241
      %v6293 = vpop.f32.mrf.mxu0
      %v6294 = vadd.f32 %v6198, %v6293
      %6295 = vmatmul.f32.gmra.mxu0 %v6243
      %v6296 = vpop.f32.mrf.mxu0
      %v6297 = vadd.f32 %v6199, %v6296
      %6298 = vmatmul.f32.gmra.mxu0 %v6245
      %v6299 = vpop.f32.mrf.mxu0
      %v6300 = vadd.f32 %v6200, %v6299
      %6301 = vmatmul.f32.gmra.mxu0 %v6247
      %v6302 = vpop.f32.mrf.mxu0
      %v6303 = vadd.f32 %v6201, %v6302
      %6304 = vmatmul.f32.gmra.mxu0 %v6249
      %v6305 = vpop.f32.mrf.mxu0
      %v6306 = vadd.f32 %v6202, %v6305
      %6307 = vdwg.mxu0
      %6308 = vrot.lane.b32.xlu0 %v1414, 104
      %v6309 = vpop.permute.xlu0 %6308
      %6310 = vrot.lane.b32.xlu0 %v1415, 104
      %v6311 = vpop.permute.xlu0 %6310
      %6312 = vrot.lane.b32.xlu0 %v1416, 104
      %v6313 = vpop.permute.xlu0 %6312
      %6314 = vrot.lane.b32.xlu0 %v1417, 104
      %v6315 = vpop.permute.xlu0 %6314
      %6316 = vrot.lane.b32.xlu0 %v1418, 104
      %v6317 = vpop.permute.xlu0 %6316
      %6318 = vrot.lane.b32.xlu0 %v1419, 104
      %v6319 = vpop.permute.xlu0 %6318
      %6320 = vrot.lane.b32.xlu0 %v1420, 104
      %v6321 = vpop.permute.xlu0 %6320
      %6322 = vrot.lane.b32.xlu0 %v1421, 104
      %v6323 = vpop.permute.xlu0 %6322
      %6324 = vrot.lane.b32.xlu0 %v1303, 72
      %v6325 = vpop.permute.xlu0 %6324
      %6326 = vrot.lane.b32.xlu0 %v1306, 72
      %v6327 = vpop.permute.xlu0 %6326
      %6328 = vrot.lane.b32.xlu0 %v1309, 72
      %v6329 = vpop.permute.xlu0 %6328
      %6330 = vrot.lane.b32.xlu0 %v1312, 72
      %v6331 = vpop.permute.xlu0 %6330
      %6332 = vrot.lane.b32.xlu0 %v1315, 72
      %v6333 = vpop.permute.xlu0 %6332
      %6334 = vrot.lane.b32.xlu0 %v1318, 72
      %v6335 = vpop.permute.xlu0 %6334
      %6336 = vrot.lane.b32.xlu0 %v1321, 72
      %v6337 = vpop.permute.xlu0 %6336
      %6338 = vrot.lane.b32.xlu0 %v1324, 72
      %v6339 = vpop.permute.xlu0 %6338
      %v6340 = vsel %vm1470, %v6309, 0
      %v6342 = vsel %vm1470, %v6311, 0
      %v6344 = vsel %vm1470, %v6313, 0
      %v6346 = vsel %vm1470, %v6315, 0
      %v6348 = vsel %vm1470, %v6317, 0
      %v6350 = vsel %vm1470, %v6319, 0
      %v6352 = vsel %vm1470, %v6321, 0
      %v6354 = vsel %vm1470, %v6323, 0
      %v6356 = vsel %vm1470, %v6325, 0
      %v6358 = vsel %vm1470, %v6327, 0
      %v6360 = vsel %vm1470, %v6329, 0
      %v6362 = vsel %vm1470, %v6331, 0
      %v6364 = vsel %vm1470, %v6333, 0
      %v6366 = vsel %vm1470, %v6335, 0
      %v6368 = vsel %vm1470, %v6337, 0
      %v6370 = vsel %vm1470, %v6339, 0
      %6372 = vmatpush.xpose.msra.mxu0 0.0
      %6373 = vmatpush.xpose.msra.mxu0 0.0
      %6374 = vmatpush.xpose.msra.mxu0 0.0
      %6375 = vmatpush.xpose.msra.mxu0 0.0
      %6376 = vmatpush.xpose.msra.mxu0 0.0
      %6377 = vmatpush.xpose.msra.mxu0 0.0
      %6378 = vmatpush.xpose.msra.mxu0 0.0
      %6379 = vmatpush.xpose.msra.mxu0 0.0
      %6380 = vmatpush.xpose.msra.mxu0 %v6370
      %6381 = vmatpush.xpose.msra.mxu0 %v6368
      %6382 = vmatpush.xpose.msra.mxu0 %v6366
      %6383 = vmatpush.xpose.msra.mxu0 %v6364
      %6384 = vmatpush.xpose.msra.mxu0 %v6362
      %6385 = vmatpush.xpose.msra.mxu0 %v6360
      %6386 = vmatpush.xpose.msra.mxu0 %v6358
      %6387 = vmatpush.xpose.msra.mxu0 %v6356
      %6388 = vmatmul.f32.gmra.mxu0 %v6340
      %v6389 = vpop.f32.mrf.mxu0
      %v6390 = vadd.f32 %v6195, %v6389
      %6391 = vmatmul.f32.gmra.mxu0 %v6342
      %v6392 = vpop.f32.mrf.mxu0
      %v6393 = vadd.f32 %v6196, %v6392
      %6394 = vmatmul.f32.gmra.mxu0 %v6344
      %v6395 = vpop.f32.mrf.mxu0
      %v6396 = vadd.f32 %v6197, %v6395
      %6397 = vmatmul.f32.gmra.mxu0 %v6346
      %v6398 = vpop.f32.mrf.mxu0
      %v6399 = vadd.f32 %v6198, %v6398
      %6400 = vmatmul.f32.gmra.mxu0 %v6348
      %v6401 = vpop.f32.mrf.mxu0
      %v6402 = vadd.f32 %v6199, %v6401
      %6403 = vmatmul.f32.gmra.mxu0 %v6350
      %v6404 = vpop.f32.mrf.mxu0
      %v6405 = vadd.f32 %v6200, %v6404
      %6406 = vmatmul.f32.gmra.mxu0 %v6352
      %v6407 = vpop.f32.mrf.mxu0
      %v6408 = vadd.f32 %v6201, %v6407
      %6409 = vmatmul.f32.gmra.mxu0 %v6354
      %v6410 = vpop.f32.mrf.mxu0
      %v6411 = vadd.f32 %v6202, %v6410
      %6412 = vdwg.mxu0
      %6413 = vrot.lane.b32.xlu0 %v1422, 104
      %v6414 = vpop.permute.xlu0 %6413
      %6415 = vrot.lane.b32.xlu0 %v1423, 104
      %v6416 = vpop.permute.xlu0 %6415
      %6417 = vrot.lane.b32.xlu0 %v1424, 104
      %v6418 = vpop.permute.xlu0 %6417
      %6419 = vrot.lane.b32.xlu0 %v1425, 104
      %v6420 = vpop.permute.xlu0 %6419
      %6421 = vrot.lane.b32.xlu0 %v1426, 104
      %v6422 = vpop.permute.xlu0 %6421
      %6423 = vrot.lane.b32.xlu0 %v1427, 104
      %v6424 = vpop.permute.xlu0 %6423
      %6425 = vrot.lane.b32.xlu0 %v1428, 104
      %v6426 = vpop.permute.xlu0 %6425
      %6427 = vrot.lane.b32.xlu0 %v1429, 104
      %v6428 = vpop.permute.xlu0 %6427
      %6429 = vrot.lane.b32.xlu0 %v1327, 72
      %v6430 = vpop.permute.xlu0 %6429
      %6431 = vrot.lane.b32.xlu0 %v1330, 72
      %v6432 = vpop.permute.xlu0 %6431
      %6433 = vrot.lane.b32.xlu0 %v1333, 72
      %v6434 = vpop.permute.xlu0 %6433
      %6435 = vrot.lane.b32.xlu0 %v1336, 72
      %v6436 = vpop.permute.xlu0 %6435
      %6437 = vrot.lane.b32.xlu0 %v1339, 72
      %v6438 = vpop.permute.xlu0 %6437
      %6439 = vrot.lane.b32.xlu0 %v1342, 72
      %v6440 = vpop.permute.xlu0 %6439
      %6441 = vrot.lane.b32.xlu0 %v1345, 72
      %v6442 = vpop.permute.xlu0 %6441
      %6443 = vrot.lane.b32.xlu0 %v1348, 72
      %v6444 = vpop.permute.xlu0 %6443
      %v6445 = vsel %vm1470, %v6414, 0
      %v6447 = vsel %vm1470, %v6416, 0
      %v6449 = vsel %vm1470, %v6418, 0
      %v6451 = vsel %vm1470, %v6420, 0
      %v6453 = vsel %vm1470, %v6422, 0
      %v6455 = vsel %vm1470, %v6424, 0
      %v6457 = vsel %vm1470, %v6426, 0
      %v6459 = vsel %vm1470, %v6428, 0
      %v6461 = vsel %vm1470, %v6430, 0
      %v6463 = vsel %vm1470, %v6432, 0
      %v6465 = vsel %vm1470, %v6434, 0
      %v6467 = vsel %vm1470, %v6436, 0
      %v6469 = vsel %vm1470, %v6438, 0
      %v6471 = vsel %vm1470, %v6440, 0
      %v6473 = vsel %vm1470, %v6442, 0
      %v6475 = vsel %vm1470, %v6444, 0
      %6477 = vmatpush.xpose.msra.mxu0 0.0
      %6478 = vmatpush.xpose.msra.mxu0 0.0
      %6479 = vmatpush.xpose.msra.mxu0 0.0
      %6480 = vmatpush.xpose.msra.mxu0 0.0
      %6481 = vmatpush.xpose.msra.mxu0 0.0
      %6482 = vmatpush.xpose.msra.mxu0 0.0
      %6483 = vmatpush.xpose.msra.mxu0 0.0
      %6484 = vmatpush.xpose.msra.mxu0 0.0
      %6485 = vmatpush.xpose.msra.mxu0 %v6475
      %6486 = vmatpush.xpose.msra.mxu0 %v6473
      %6487 = vmatpush.xpose.msra.mxu0 %v6471
      %6488 = vmatpush.xpose.msra.mxu0 %v6469
      %6489 = vmatpush.xpose.msra.mxu0 %v6467
      %6490 = vmatpush.xpose.msra.mxu0 %v6465
      %6491 = vmatpush.xpose.msra.mxu0 %v6463
      %6492 = vmatpush.xpose.msra.mxu0 %v6461
      %6493 = vmatmul.f32.gmra.mxu0 %v6445
      %v6494 = vpop.f32.mrf.mxu0
      %v6495 = vadd.f32 %v6195, %v6494
      %6496 = vmatmul.f32.gmra.mxu0 %v6447
      %v6497 = vpop.f32.mrf.mxu0
      %v6498 = vadd.f32 %v6196, %v6497
      %6499 = vmatmul.f32.gmra.mxu0 %v6449
      %v6500 = vpop.f32.mrf.mxu0
      %v6501 = vadd.f32 %v6197, %v6500
      %6502 = vmatmul.f32.gmra.mxu0 %v6451
      %v6503 = vpop.f32.mrf.mxu0
      %v6504 = vadd.f32 %v6198, %v6503
      %6505 = vmatmul.f32.gmra.mxu0 %v6453
      %v6506 = vpop.f32.mrf.mxu0
      %v6507 = vadd.f32 %v6199, %v6506
      %6508 = vmatmul.f32.gmra.mxu0 %v6455
      %v6509 = vpop.f32.mrf.mxu0
      %v6510 = vadd.f32 %v6200, %v6509
      %6511 = vmatmul.f32.gmra.mxu0 %v6457
      %v6512 = vpop.f32.mrf.mxu0
      %v6513 = vadd.f32 %v6201, %v6512
      %6514 = vmatmul.f32.gmra.mxu0 %v6459
      %v6515 = vpop.f32.mrf.mxu0
      %v6516 = vadd.f32 %v6202, %v6515
      %6517 = vdwg.mxu0
      %6518 = vrot.lane.b32.xlu0 %v1430, 104
      %v6519 = vpop.permute.xlu0 %6518
      %6520 = vrot.lane.b32.xlu0 %v1431, 104
      %v6521 = vpop.permute.xlu0 %6520
      %6522 = vrot.lane.b32.xlu0 %v1432, 104
      %v6523 = vpop.permute.xlu0 %6522
      %6524 = vrot.lane.b32.xlu0 %v1433, 104
      %v6525 = vpop.permute.xlu0 %6524
      %6526 = vrot.lane.b32.xlu0 %v1434, 104
      %v6527 = vpop.permute.xlu0 %6526
      %6528 = vrot.lane.b32.xlu0 %v1435, 104
      %v6529 = vpop.permute.xlu0 %6528
      %6530 = vrot.lane.b32.xlu0 %v1436, 104
      %v6531 = vpop.permute.xlu0 %6530
      %6532 = vrot.lane.b32.xlu0 %v1437, 104
      %v6533 = vpop.permute.xlu0 %6532
      %6534 = vrot.lane.b32.xlu0 %v1351, 72
      %v6535 = vpop.permute.xlu0 %6534
      %6536 = vrot.lane.b32.xlu0 %v1354, 72
      %v6537 = vpop.permute.xlu0 %6536
      %6538 = vrot.lane.b32.xlu0 %v1357, 72
      %v6539 = vpop.permute.xlu0 %6538
      %6540 = vrot.lane.b32.xlu0 %v1360, 72
      %v6541 = vpop.permute.xlu0 %6540
      %6542 = vrot.lane.b32.xlu0 %v1363, 72
      %v6543 = vpop.permute.xlu0 %6542
      %6544 = vrot.lane.b32.xlu0 %v1366, 72
      %v6545 = vpop.permute.xlu0 %6544
      %6546 = vrot.lane.b32.xlu0 %v1369, 72
      %v6547 = vpop.permute.xlu0 %6546
      %6548 = vrot.lane.b32.xlu0 %v1372, 72
      %v6549 = vpop.permute.xlu0 %6548
      %v6550 = vsel %vm1470, %v6519, 0
      %v6552 = vsel %vm1470, %v6521, 0
      %v6554 = vsel %vm1470, %v6523, 0
      %v6556 = vsel %vm1470, %v6525, 0
      %v6558 = vsel %vm1470, %v6527, 0
      %v6560 = vsel %vm1470, %v6529, 0
      %v6562 = vsel %vm1470, %v6531, 0
      %v6564 = vsel %vm1470, %v6533, 0
      %v6566 = vsel %vm1470, %v6535, 0
      %v6568 = vsel %vm1470, %v6537, 0
      %v6570 = vsel %vm1470, %v6539, 0
      %v6572 = vsel %vm1470, %v6541, 0
      %v6574 = vsel %vm1470, %v6543, 0
      %v6576 = vsel %vm1470, %v6545, 0
      %v6578 = vsel %vm1470, %v6547, 0
      %v6580 = vsel %vm1470, %v6549, 0
      %6582 = vmatpush.xpose.msra.mxu0 0.0
      %6583 = vmatpush.xpose.msra.mxu0 0.0
      %6584 = vmatpush.xpose.msra.mxu0 0.0
      %6585 = vmatpush.xpose.msra.mxu0 0.0
      %6586 = vmatpush.xpose.msra.mxu0 0.0
      %6587 = vmatpush.xpose.msra.mxu0 0.0
      %6588 = vmatpush.xpose.msra.mxu0 0.0
      %6589 = vmatpush.xpose.msra.mxu0 0.0
      %6590 = vmatpush.xpose.msra.mxu0 %v6580
      %6591 = vmatpush.xpose.msra.mxu0 %v6578
      %6592 = vmatpush.xpose.msra.mxu0 %v6576
      %6593 = vmatpush.xpose.msra.mxu0 %v6574
      %6594 = vmatpush.xpose.msra.mxu0 %v6572
      %6595 = vmatpush.xpose.msra.mxu0 %v6570
      %6596 = vmatpush.xpose.msra.mxu0 %v6568
      %6597 = vmatpush.xpose.msra.mxu0 %v6566
      %6598 = vmatmul.f32.gmra.mxu0 %v6550
      %v6599 = vpop.f32.mrf.mxu0
      %v6600 = vadd.f32 %v6195, %v6599
      %6601 = vmatmul.f32.gmra.mxu0 %v6552
      %v6602 = vpop.f32.mrf.mxu0
      %v6603 = vadd.f32 %v6196, %v6602
      %6604 = vmatmul.f32.gmra.mxu0 %v6554
      %v6605 = vpop.f32.mrf.mxu0
      %v6606 = vadd.f32 %v6197, %v6605
      %6607 = vmatmul.f32.gmra.mxu0 %v6556
      %v6608 = vpop.f32.mrf.mxu0
      %v6609 = vadd.f32 %v6198, %v6608
      %6610 = vmatmul.f32.gmra.mxu0 %v6558
      %v6611 = vpop.f32.mrf.mxu0
      %v6612 = vadd.f32 %v6199, %v6611
      %6613 = vmatmul.f32.gmra.mxu0 %v6560
      %v6614 = vpop.f32.mrf.mxu0
      %v6615 = vadd.f32 %v6200, %v6614
      %6616 = vmatmul.f32.gmra.mxu0 %v6562
      %v6617 = vpop.f32.mrf.mxu0
      %v6618 = vadd.f32 %v6201, %v6617
      %6619 = vmatmul.f32.gmra.mxu0 %v6564
      %v6620 = vpop.f32.mrf.mxu0
      %v6621 = vadd.f32 %v6202, %v6620
      %6622 = vdwg.mxu0
      %v6623 = vadd.f32 %v6285, %v1374
      %v6624 = vadd.f32 %v6288, %v1375
      %v6625 = vadd.f32 %v6291, %v1376
      %v6626 = vadd.f32 %v6294, %v1377
      %v6627 = vadd.f32 %v6297, %v1378
      %v6628 = vadd.f32 %v6300, %v1379
      %v6629 = vadd.f32 %v6303, %v1380
      %v6630 = vadd.f32 %v6306, %v1381
      %v6631 = vadd.f32 %v6390, %v1382
      %v6632 = vadd.f32 %v6393, %v1383
      %v6633 = vadd.f32 %v6396, %v1384
      %v6634 = vadd.f32 %v6399, %v1385
      %v6635 = vadd.f32 %v6402, %v1386
      %v6636 = vadd.f32 %v6405, %v1387
      %v6637 = vadd.f32 %v6408, %v1388
      %v6638 = vadd.f32 %v6411, %v1389
      %v6639 = vadd.f32 %v6495, %v1390
      %v6640 = vadd.f32 %v6498, %v1391
      %v6641 = vadd.f32 %v6501, %v1392
      %v6642 = vadd.f32 %v6504, %v1393
      %v6643 = vadd.f32 %v6507, %v1394
      %v6644 = vadd.f32 %v6510, %v1395
      %v6645 = vadd.f32 %v6513, %v1396
      %v6646 = vadd.f32 %v6516, %v1397
      %v6647 = vadd.f32 %v6600, %v1398
      %v6648 = vadd.f32 %v6603, %v1399
      %v6649 = vadd.f32 %v6606, %v1400
      %v6650 = vadd.f32 %v6609, %v1401
      %v6651 = vadd.f32 %v6612, %v1402
      %v6652 = vadd.f32 %v6615, %v1403
      %v6653 = vadd.f32 %v6618, %v1404
      %v6654 = vadd.f32 %v6621, %v1405
      %v6655 = vsel %vm1899, %v6623, -inf
      %6656 = vmax.xlane.f32.xlu0 %v6655
      %v6657 = vpop.xlane.xlu0 %6656
      %v6658 = vsel %vm1899, %v6624, -inf
      %6659 = vmax.xlane.f32.xlu0 %v6658
      %v6660 = vpop.xlane.xlu0 %6659
      %v6661 = vsel %vm1899, %v6625, -inf
      %6662 = vmax.xlane.f32.xlu0 %v6661
      %v6663 = vpop.xlane.xlu0 %6662
      %v6664 = vsel %vm1899, %v6626, -inf
      %6665 = vmax.xlane.f32.xlu0 %v6664
      %v6666 = vpop.xlane.xlu0 %6665
      %v6667 = vsel %vm1899, %v6627, -inf
      %6668 = vmax.xlane.f32.xlu0 %v6667
      %v6669 = vpop.xlane.xlu0 %6668
      %v6670 = vsel %vm1899, %v6628, -inf
      %6671 = vmax.xlane.f32.xlu0 %v6670
      %v6672 = vpop.xlane.xlu0 %6671
      %v6673 = vsel %vm1899, %v6629, -inf
      %6674 = vmax.xlane.f32.xlu0 %v6673
      %v6675 = vpop.xlane.xlu0 %6674
      %v6676 = vsel %vm1899, %v6630, -inf
      %6677 = vmax.xlane.f32.xlu0 %v6676
      %v6678 = vpop.xlane.xlu0 %6677
      %v6679 = vsel %vm1899, %v6631, -inf
      %6680 = vmax.xlane.f32.xlu0 %v6679
      %v6681 = vpop.xlane.xlu0 %6680
      %v6682 = vsel %vm1899, %v6632, -inf
      %6683 = vmax.xlane.f32.xlu0 %v6682
      %v6684 = vpop.xlane.xlu0 %6683
      %v6685 = vsel %vm1899, %v6633, -inf
      %6686 = vmax.xlane.f32.xlu0 %v6685
      %v6687 = vpop.xlane.xlu0 %6686
      %v6688 = vsel %vm1899, %v6634, -inf
      %6689 = vmax.xlane.f32.xlu0 %v6688
      %v6690 = vpop.xlane.xlu0 %6689
      %v6691 = vsel %vm1899, %v6635, -inf
      %6692 = vmax.xlane.f32.xlu0 %v6691
      %v6693 = vpop.xlane.xlu0 %6692
      %v6694 = vsel %vm1899, %v6636, -inf
      %6695 = vmax.xlane.f32.xlu0 %v6694
      %v6696 = vpop.xlane.xlu0 %6695
      %v6697 = vsel %vm1899, %v6637, -inf
      %6698 = vmax.xlane.f32.xlu0 %v6697
      %v6699 = vpop.xlane.xlu0 %6698
      %v6700 = vsel %vm1899, %v6638, -inf
      %6701 = vmax.xlane.f32.xlu0 %v6700
      %v6702 = vpop.xlane.xlu0 %6701
      %v6703 = vsel %vm1899, %v6639, -inf
      %6704 = vmax.xlane.f32.xlu0 %v6703
      %v6705 = vpop.xlane.xlu0 %6704
      %v6706 = vsel %vm1899, %v6640, -inf
      %6707 = vmax.xlane.f32.xlu0 %v6706
      %v6708 = vpop.xlane.xlu0 %6707
      %v6709 = vsel %vm1899, %v6641, -inf
      %6710 = vmax.xlane.f32.xlu0 %v6709
      %v6711 = vpop.xlane.xlu0 %6710
      %v6712 = vsel %vm1899, %v6642, -inf
      %6713 = vmax.xlane.f32.xlu0 %v6712
      %v6714 = vpop.xlane.xlu0 %6713
      %v6715 = vsel %vm1899, %v6643, -inf
      %6716 = vmax.xlane.f32.xlu0 %v6715
      %v6717 = vpop.xlane.xlu0 %6716
      %v6718 = vsel %vm1899, %v6644, -inf
      %6719 = vmax.xlane.f32.xlu0 %v6718
      %v6720 = vpop.xlane.xlu0 %6719
      %v6721 = vsel %vm1899, %v6645, -inf
      %6722 = vmax.xlane.f32.xlu0 %v6721
      %v6723 = vpop.xlane.xlu0 %6722
      %v6724 = vsel %vm1899, %v6646, -inf
      %6725 = vmax.xlane.f32.xlu0 %v6724
      %v6726 = vpop.xlane.xlu0 %6725
      %v6727 = vsel %vm1899, %v6647, -inf
      %6728 = vmax.xlane.f32.xlu0 %v6727
      %v6729 = vpop.xlane.xlu0 %6728
      %v6730 = vsel %vm1899, %v6648, -inf
      %6731 = vmax.xlane.f32.xlu0 %v6730
      %v6732 = vpop.xlane.xlu0 %6731
      %v6733 = vsel %vm1899, %v6649, -inf
      %6734 = vmax.xlane.f32.xlu0 %v6733
      %v6735 = vpop.xlane.xlu0 %6734
      %v6736 = vsel %vm1899, %v6650, -inf
      %6737 = vmax.xlane.f32.xlu0 %v6736
      %v6738 = vpop.xlane.xlu0 %6737
      %v6739 = vsel %vm1899, %v6651, -inf
      %6740 = vmax.xlane.f32.xlu0 %v6739
      %v6741 = vpop.xlane.xlu0 %6740
      %v6742 = vsel %vm1899, %v6652, -inf
      %6743 = vmax.xlane.f32.xlu0 %v6742
      %v6744 = vpop.xlane.xlu0 %6743
      %v6745 = vsel %vm1899, %v6653, -inf
      %6746 = vmax.xlane.f32.xlu0 %v6745
      %v6747 = vpop.xlane.xlu0 %6746
      %v6748 = vsel %vm1899, %v6654, -inf
      %6749 = vmax.xlane.f32.xlu0 %v6748
      %v6750 = vpop.xlane.xlu0 %6749
      %v6751 = vsub.f32 %v6623, %v6657
      %v6752 = vsub.f32 %v6624, %v6660
      %v6753 = vsub.f32 %v6625, %v6663
      %v6754 = vsub.f32 %v6626, %v6666
      %v6755 = vsub.f32 %v6627, %v6669
      %v6756 = vsub.f32 %v6628, %v6672
      %v6757 = vsub.f32 %v6629, %v6675
      %v6758 = vsub.f32 %v6630, %v6678
      %v6759 = vsub.f32 %v6631, %v6681
      %v6760 = vsub.f32 %v6632, %v6684
      %v6761 = vsub.f32 %v6633, %v6687
      %v6762 = vsub.f32 %v6634, %v6690
      %v6763 = vsub.f32 %v6635, %v6693
      %v6764 = vsub.f32 %v6636, %v6696
      %v6765 = vsub.f32 %v6637, %v6699
      %v6766 = vsub.f32 %v6638, %v6702
      %v6767 = vsub.f32 %v6639, %v6705
      %v6768 = vsub.f32 %v6640, %v6708
      %v6769 = vsub.f32 %v6641, %v6711
      %v6770 = vsub.f32 %v6642, %v6714
      %v6771 = vsub.f32 %v6643, %v6717
      %v6772 = vsub.f32 %v6644, %v6720
      %v6773 = vsub.f32 %v6645, %v6723
      %v6774 = vsub.f32 %v6646, %v6726
      %v6775 = vsub.f32 %v6647, %v6729
      %v6776 = vsub.f32 %v6648, %v6732
      %v6777 = vsub.f32 %v6649, %v6735
      %v6778 = vsub.f32 %v6650, %v6738
      %v6779 = vsub.f32 %v6651, %v6741
      %v6780 = vsub.f32 %v6652, %v6744
      %v6781 = vsub.f32 %v6653, %v6747
      %v6782 = vsub.f32 %v6654, %v6750
      %v6783 = vmul.f32 %v6751, 1.442695
      %v6784 = vpow.pop %v6783
      %v6785 = vmul.f32 %v6752, 1.442695
      %v6786 = vpow.pop %v6785
      %v6787 = vmul.f32 %v6753, 1.442695
      %v6788 = vpow.pop %v6787
      %v6789 = vmul.f32 %v6754, 1.442695
      %v6790 = vpow.pop %v6789
      %v6791 = vmul.f32 %v6755, 1.442695
      %v6792 = vpow.pop %v6791
      %v6793 = vmul.f32 %v6756, 1.442695
      %v6794 = vpow.pop %v6793
      %v6795 = vmul.f32 %v6757, 1.442695
      %v6796 = vpow.pop %v6795
      %v6797 = vmul.f32 %v6758, 1.442695
      %v6798 = vpow.pop %v6797
      %v6799 = vmul.f32 %v6759, 1.442695
      %v6800 = vpow.pop %v6799
      %v6801 = vmul.f32 %v6760, 1.442695
      %v6802 = vpow.pop %v6801
      %v6803 = vmul.f32 %v6761, 1.442695
      %v6804 = vpow.pop %v6803
      %v6805 = vmul.f32 %v6762, 1.442695
      %v6806 = vpow.pop %v6805
      %v6807 = vmul.f32 %v6763, 1.442695
      %v6808 = vpow.pop %v6807
      %v6809 = vmul.f32 %v6764, 1.442695
      %v6810 = vpow.pop %v6809
      %v6811 = vmul.f32 %v6765, 1.442695
      %v6812 = vpow.pop %v6811
      %v6813 = vmul.f32 %v6766, 1.442695
      %v6814 = vpow.pop %v6813
      %v6815 = vmul.f32 %v6767, 1.442695
      %v6816 = vpow.pop %v6815
      %v6817 = vmul.f32 %v6768, 1.442695
      %v6818 = vpow.pop %v6817
      %v6819 = vmul.f32 %v6769, 1.442695
      %v6820 = vpow.pop %v6819
      %v6821 = vmul.f32 %v6770, 1.442695
      %v6822 = vpow.pop %v6821
      %v6823 = vmul.f32 %v6771, 1.442695
      %v6824 = vpow.pop %v6823
      %v6825 = vmul.f32 %v6772, 1.442695
      %v6826 = vpow.pop %v6825
      %v6827 = vmul.f32 %v6773, 1.442695
      %v6828 = vpow.pop %v6827
      %v6829 = vmul.f32 %v6774, 1.442695
      %v6830 = vpow.pop %v6829
      %v6831 = vmul.f32 %v6775, 1.442695
      %v6832 = vpow.pop %v6831
      %v6833 = vmul.f32 %v6776, 1.442695
      %v6834 = vpow.pop %v6833
      %v6835 = vmul.f32 %v6777, 1.442695
      %v6836 = vpow.pop %v6835
      %v6837 = vmul.f32 %v6778, 1.442695
      %v6838 = vpow.pop %v6837
      %v6839 = vmul.f32 %v6779, 1.442695
      %v6840 = vpow.pop %v6839
      %v6841 = vmul.f32 %v6780, 1.442695
      %v6842 = vpow.pop %v6841
      %v6843 = vmul.f32 %v6781, 1.442695
      %v6844 = vpow.pop %v6843
      %v6845 = vmul.f32 %v6782, 1.442695
      %v6846 = vpow.pop %v6845
      %v6847 = vsel %vm1899, %v6784, 0.0
      %6848 = vadd.xlane.f32.xlu0 %v6847
      %v6849 = vpop.xlane.xlu0 %6848
      %v6850 = vsel %vm1899, %v6786, 0.0
      %6851 = vadd.xlane.f32.xlu0 %v6850
      %v6852 = vpop.xlane.xlu0 %6851
      %v6853 = vsel %vm1899, %v6788, 0.0
      %6854 = vadd.xlane.f32.xlu0 %v6853
      %v6855 = vpop.xlane.xlu0 %6854
      %v6856 = vsel %vm1899, %v6790, 0.0
      %6857 = vadd.xlane.f32.xlu0 %v6856
      %v6858 = vpop.xlane.xlu0 %6857
      %v6859 = vsel %vm1899, %v6792, 0.0
      %6860 = vadd.xlane.f32.xlu0 %v6859
      %v6861 = vpop.xlane.xlu0 %6860
      %v6862 = vsel %vm1899, %v6794, 0.0
      %6863 = vadd.xlane.f32.xlu0 %v6862
      %v6864 = vpop.xlane.xlu0 %6863
      %v6865 = vsel %vm1899, %v6796, 0.0
      %6866 = vadd.xlane.f32.xlu0 %v6865
      %v6867 = vpop.xlane.xlu0 %6866
      %v6868 = vsel %vm1899, %v6798, 0.0
      %6869 = vadd.xlane.f32.xlu0 %v6868
      %v6870 = vpop.xlane.xlu0 %6869
      %v6871 = vsel %vm1899, %v6800, 0.0
      %6872 = vadd.xlane.f32.xlu0 %v6871
      %v6873 = vpop.xlane.xlu0 %6872
      %v6874 = vsel %vm1899, %v6802, 0.0
      %6875 = vadd.xlane.f32.xlu0 %v6874
      %v6876 = vpop.xlane.xlu0 %6875
      %v6877 = vsel %vm1899, %v6804, 0.0
      %6878 = vadd.xlane.f32.xlu0 %v6877
      %v6879 = vpop.xlane.xlu0 %6878
      %v6880 = vsel %vm1899, %v6806, 0.0
      %6881 = vadd.xlane.f32.xlu0 %v6880
      %v6882 = vpop.xlane.xlu0 %6881
      %v6883 = vsel %vm1899, %v6808, 0.0
      %6884 = vadd.xlane.f32.xlu0 %v6883
      %v6885 = vpop.xlane.xlu0 %6884
      %v6886 = vsel %vm1899, %v6810, 0.0
      %6887 = vadd.xlane.f32.xlu0 %v6886
      %v6888 = vpop.xlane.xlu0 %6887
      %v6889 = vsel %vm1899, %v6812, 0.0
      %6890 = vadd.xlane.f32.xlu0 %v6889
      %v6891 = vpop.xlane.xlu0 %6890
      %v6892 = vsel %vm1899, %v6814, 0.0
      %6893 = vadd.xlane.f32.xlu0 %v6892
      %v6894 = vpop.xlane.xlu0 %6893
      %v6895 = vsel %vm1899, %v6816, 0.0
      %6896 = vadd.xlane.f32.xlu0 %v6895
      %v6897 = vpop.xlane.xlu0 %6896
      %v6898 = vsel %vm1899, %v6818, 0.0
      %6899 = vadd.xlane.f32.xlu0 %v6898
      %v6900 = vpop.xlane.xlu0 %6899
      %v6901 = vsel %vm1899, %v6820, 0.0
      %6902 = vadd.xlane.f32.xlu0 %v6901
      %v6903 = vpop.xlane.xlu0 %6902
      %v6904 = vsel %vm1899, %v6822, 0.0
      %6905 = vadd.xlane.f32.xlu0 %v6904
      %v6906 = vpop.xlane.xlu0 %6905
      %v6907 = vsel %vm1899, %v6824, 0.0
      %6908 = vadd.xlane.f32.xlu0 %v6907
      %v6909 = vpop.xlane.xlu0 %6908
      %v6910 = vsel %vm1899, %v6826, 0.0
      %6911 = vadd.xlane.f32.xlu0 %v6910
      %v6912 = vpop.xlane.xlu0 %6911
      %v6913 = vsel %vm1899, %v6828, 0.0
      %6914 = vadd.xlane.f32.xlu0 %v6913
      %v6915 = vpop.xlane.xlu0 %6914
      %v6916 = vsel %vm1899, %v6830, 0.0
      %6917 = vadd.xlane.f32.xlu0 %v6916
      %v6918 = vpop.xlane.xlu0 %6917
      %v6919 = vsel %vm1899, %v6832, 0.0
      %6920 = vadd.xlane.f32.xlu0 %v6919
      %v6921 = vpop.xlane.xlu0 %6920
      %v6922 = vsel %vm1899, %v6834, 0.0
      %6923 = vadd.xlane.f32.xlu0 %v6922
      %v6924 = vpop.xlane.xlu0 %6923
      %v6925 = vsel %vm1899, %v6836, 0.0
      %6926 = vadd.xlane.f32.xlu0 %v6925
      %v6927 = vpop.xlane.xlu0 %6926
      %v6928 = vsel %vm1899, %v6838, 0.0
      %6929 = vadd.xlane.f32.xlu0 %v6928
      %v6930 = vpop.xlane.xlu0 %6929
      %v6931 = vsel %vm1899, %v6840, 0.0
      %6932 = vadd.xlane.f32.xlu0 %v6931
      %v6933 = vpop.xlane.xlu0 %6932
      %v6934 = vsel %vm1899, %v6842, 0.0
      %6935 = vadd.xlane.f32.xlu0 %v6934
      %v6936 = vpop.xlane.xlu0 %6935
      %v6937 = vsel %vm1899, %v6844, 0.0
      %6938 = vadd.xlane.f32.xlu0 %v6937
      %v6939 = vpop.xlane.xlu0 %6938
      %v6940 = vsel %vm1899, %v6846, 0.0
      %6941 = vadd.xlane.f32.xlu0 %v6940
      %v6942 = vpop.xlane.xlu0 %6941
      %v6943 = vrcp.pop %v6849
      %v6944 = vmul.f32 %v6849, %v6943
      %v6945 = vsub.f32 1.0, %v6944
      %v6946 = vmul.f32 %v6943, %v6945
      %v6947 = vadd.f32 %v6943, %v6946
      %vm6948 = vweird.f32 %v6849
      %vm6949 = vweird.f32 %v6943
      %vm6950 = vmor %vm6948, %vm6949
      %v6951 = vsel %vm6950, %v6943, %v6947
      %v6952 = vand.u32 2147483647, %v6849
      %vm6953 = vcmp.eq.f32.partialorder %v6952, 8.507059e+37
      %v6954 = vand.u32 %v6849, 2147483648
      %v6955 = vor.u32 1.1754944e-38, %v6954
      %v6956 = vsel %vm6953, %v6955, %v6951
      %v6957 = vmul.f32 %v6784, %v6956
      %v6958 = vrcp.pop %v6852
      %v6959 = vmul.f32 %v6852, %v6958
      %v6960 = vsub.f32 1.0, %v6959
      %v6961 = vmul.f32 %v6958, %v6960
      %v6962 = vadd.f32 %v6958, %v6961
      %vm6963 = vweird.f32 %v6852
      %vm6964 = vweird.f32 %v6958
      %vm6965 = vmor %vm6963, %vm6964
      %v6966 = vsel %vm6965, %v6958, %v6962
      %v6967 = vand.u32 2147483647, %v6852
      %vm6968 = vcmp.eq.f32.partialorder %v6967, 8.507059e+37
      %v6969 = vand.u32 %v6852, 2147483648
      %v6970 = vor.u32 1.1754944e-38, %v6969
      %v6971 = vsel %vm6968, %v6970, %v6966
      %v6972 = vmul.f32 %v6786, %v6971
      %v6973 = vrcp.pop %v6855
      %v6974 = vmul.f32 %v6855, %v6973
      %v6975 = vsub.f32 1.0, %v6974
      %v6976 = vmul.f32 %v6973, %v6975
      %v6977 = vadd.f32 %v6973, %v6976
      %vm6978 = vweird.f32 %v6855
      %vm6979 = vweird.f32 %v6973
      %vm6980 = vmor %vm6978, %vm6979
      %v6981 = vsel %vm6980, %v6973, %v6977
      %v6982 = vand.u32 2147483647, %v6855
      %vm6983 = vcmp.eq.f32.partialorder %v6982, 8.507059e+37
      %v6984 = vand.u32 %v6855, 2147483648
      %v6985 = vor.u32 1.1754944e-38, %v6984
      %v6986 = vsel %vm6983, %v6985, %v6981
      %v6987 = vmul.f32 %v6788, %v6986
      %v6988 = vrcp.pop %v6858
      %v6989 = vmul.f32 %v6858, %v6988
      %v6990 = vsub.f32 1.0, %v6989
      %v6991 = vmul.f32 %v6988, %v6990
      %v6992 = vadd.f32 %v6988, %v6991
      %vm6993 = vweird.f32 %v6858
      %vm6994 = vweird.f32 %v6988
      %vm6995 = vmor %vm6993, %vm6994
      %v6996 = vsel %vm6995, %v6988, %v6992
      %v6997 = vand.u32 2147483647, %v6858
      %vm6998 = vcmp.eq.f32.partialorder %v6997, 8.507059e+37
      %v6999 = vand.u32 %v6858, 2147483648
      %v7000 = vor.u32 1.1754944e-38, %v6999
      %v7001 = vsel %vm6998, %v7000, %v6996
      %v7002 = vmul.f32 %v6790, %v7001
      %v7003 = vrcp.pop %v6861
      %v7004 = vmul.f32 %v6861, %v7003
      %v7005 = vsub.f32 1.0, %v7004
      %v7006 = vmul.f32 %v7003, %v7005
      %v7007 = vadd.f32 %v7003, %v7006
      %vm7008 = vweird.f32 %v6861
      %vm7009 = vweird.f32 %v7003
      %vm7010 = vmor %vm7008, %vm7009
      %v7011 = vsel %vm7010, %v7003, %v7007
      %v7012 = vand.u32 2147483647, %v6861
      %vm7013 = vcmp.eq.f32.partialorder %v7012, 8.507059e+37
      %v7014 = vand.u32 %v6861, 2147483648
      %v7015 = vor.u32 1.1754944e-38, %v7014
      %v7016 = vsel %vm7013, %v7015, %v7011
      %v7017 = vmul.f32 %v6792, %v7016
      %v7018 = vrcp.pop %v6864
      %v7019 = vmul.f32 %v6864, %v7018
      %v7020 = vsub.f32 1.0, %v7019
      %v7021 = vmul.f32 %v7018, %v7020
      %v7022 = vadd.f32 %v7018, %v7021
      %vm7023 = vweird.f32 %v6864
      %vm7024 = vweird.f32 %v7018
      %vm7025 = vmor %vm7023, %vm7024
      %v7026 = vsel %vm7025, %v7018, %v7022
      %v7027 = vand.u32 2147483647, %v6864
      %vm7028 = vcmp.eq.f32.partialorder %v7027, 8.507059e+37
      %v7029 = vand.u32 %v6864, 2147483648
      %v7030 = vor.u32 1.1754944e-38, %v7029
      %v7031 = vsel %vm7028, %v7030, %v7026
      %v7032 = vmul.f32 %v6794, %v7031
      %v7033 = vrcp.pop %v6867
      %v7034 = vmul.f32 %v6867, %v7033
      %v7035 = vsub.f32 1.0, %v7034
      %v7036 = vmul.f32 %v7033, %v7035
      %v7037 = vadd.f32 %v7033, %v7036
      %vm7038 = vweird.f32 %v6867
      %vm7039 = vweird.f32 %v7033
      %vm7040 = vmor %vm7038, %vm7039
      %v7041 = vsel %vm7040, %v7033, %v7037
      %v7042 = vand.u32 2147483647, %v6867
      %vm7043 = vcmp.eq.f32.partialorder %v7042, 8.507059e+37
      %v7044 = vand.u32 %v6867, 2147483648
      %v7045 = vor.u32 1.1754944e-38, %v7044
      %v7046 = vsel %vm7043, %v7045, %v7041
      %v7047 = vmul.f32 %v6796, %v7046
      %v7048 = vrcp.pop %v6870
      %v7049 = vmul.f32 %v6870, %v7048
      %v7050 = vsub.f32 1.0, %v7049
      %v7051 = vmul.f32 %v7048, %v7050
      %v7052 = vadd.f32 %v7048, %v7051
      %vm7053 = vweird.f32 %v6870
      %vm7054 = vweird.f32 %v7048
      %vm7055 = vmor %vm7053, %vm7054
      %v7056 = vsel %vm7055, %v7048, %v7052
      %v7057 = vand.u32 2147483647, %v6870
      %vm7058 = vcmp.eq.f32.partialorder %v7057, 8.507059e+37
      %v7059 = vand.u32 %v6870, 2147483648
      %v7060 = vor.u32 1.1754944e-38, %v7059
      %v7061 = vsel %vm7058, %v7060, %v7056
      %v7062 = vmul.f32 %v6798, %v7061
      %v7063 = vrcp.pop %v6873
      %v7064 = vmul.f32 %v6873, %v7063
      %v7065 = vsub.f32 1.0, %v7064
      %v7066 = vmul.f32 %v7063, %v7065
      %v7067 = vadd.f32 %v7063, %v7066
      %vm7068 = vweird.f32 %v6873
      %vm7069 = vweird.f32 %v7063
      %vm7070 = vmor %vm7068, %vm7069
      %v7071 = vsel %vm7070, %v7063, %v7067
      %v7072 = vand.u32 2147483647, %v6873
      %vm7073 = vcmp.eq.f32.partialorder %v7072, 8.507059e+37
      %v7074 = vand.u32 %v6873, 2147483648
      %v7075 = vor.u32 1.1754944e-38, %v7074
      %v7076 = vsel %vm7073, %v7075, %v7071
      %v7077 = vmul.f32 %v6800, %v7076
      %v7078 = vrcp.pop %v6876
      %v7079 = vmul.f32 %v6876, %v7078
      %v7080 = vsub.f32 1.0, %v7079
      %v7081 = vmul.f32 %v7078, %v7080
      %v7082 = vadd.f32 %v7078, %v7081
      %vm7083 = vweird.f32 %v6876
      %vm7084 = vweird.f32 %v7078
      %vm7085 = vmor %vm7083, %vm7084
      %v7086 = vsel %vm7085, %v7078, %v7082
      %v7087 = vand.u32 2147483647, %v6876
      %vm7088 = vcmp.eq.f32.partialorder %v7087, 8.507059e+37
      %v7089 = vand.u32 %v6876, 2147483648
      %v7090 = vor.u32 1.1754944e-38, %v7089
      %v7091 = vsel %vm7088, %v7090, %v7086
      %v7092 = vmul.f32 %v6802, %v7091
      %v7093 = vrcp.pop %v6879
      %v7094 = vmul.f32 %v6879, %v7093
      %v7095 = vsub.f32 1.0, %v7094
      %v7096 = vmul.f32 %v7093, %v7095
      %v7097 = vadd.f32 %v7093, %v7096
      %vm7098 = vweird.f32 %v6879
      %vm7099 = vweird.f32 %v7093
      %vm7100 = vmor %vm7098, %vm7099
      %v7101 = vsel %vm7100, %v7093, %v7097
      %v7102 = vand.u32 2147483647, %v6879
      %vm7103 = vcmp.eq.f32.partialorder %v7102, 8.507059e+37
      %v7104 = vand.u32 %v6879, 2147483648
      %v7105 = vor.u32 1.1754944e-38, %v7104
      %v7106 = vsel %vm7103, %v7105, %v7101
      %v7107 = vmul.f32 %v6804, %v7106
      %v7108 = vrcp.pop %v6882
      %v7109 = vmul.f32 %v6882, %v7108
      %v7110 = vsub.f32 1.0, %v7109
      %v7111 = vmul.f32 %v7108, %v7110
      %v7112 = vadd.f32 %v7108, %v7111
      %vm7113 = vweird.f32 %v6882
      %vm7114 = vweird.f32 %v7108
      %vm7115 = vmor %vm7113, %vm7114
      %v7116 = vsel %vm7115, %v7108, %v7112
      %v7117 = vand.u32 2147483647, %v6882
      %vm7118 = vcmp.eq.f32.partialorder %v7117, 8.507059e+37
      %v7119 = vand.u32 %v6882, 2147483648
      %v7120 = vor.u32 1.1754944e-38, %v7119
      %v7121 = vsel %vm7118, %v7120, %v7116
      %v7122 = vmul.f32 %v6806, %v7121
      %v7123 = vrcp.pop %v6885
      %v7124 = vmul.f32 %v6885, %v7123
      %v7125 = vsub.f32 1.0, %v7124
      %v7126 = vmul.f32 %v7123, %v7125
      %v7127 = vadd.f32 %v7123, %v7126
      %vm7128 = vweird.f32 %v6885
      %vm7129 = vweird.f32 %v7123
      %vm7130 = vmor %vm7128, %vm7129
      %v7131 = vsel %vm7130, %v7123, %v7127
      %v7132 = vand.u32 2147483647, %v6885
      %vm7133 = vcmp.eq.f32.partialorder %v7132, 8.507059e+37
      %v7134 = vand.u32 %v6885, 2147483648
      %v7135 = vor.u32 1.1754944e-38, %v7134
      %v7136 = vsel %vm7133, %v7135, %v7131
      %v7137 = vmul.f32 %v6808, %v7136
      %v7138 = vrcp.pop %v6888
      %v7139 = vmul.f32 %v6888, %v7138
      %v7140 = vsub.f32 1.0, %v7139
      %v7141 = vmul.f32 %v7138, %v7140
      %v7142 = vadd.f32 %v7138, %v7141
      %vm7143 = vweird.f32 %v6888
      %vm7144 = vweird.f32 %v7138
      %vm7145 = vmor %vm7143, %vm7144
      %v7146 = vsel %vm7145, %v7138, %v7142
      %v7147 = vand.u32 2147483647, %v6888
      %vm7148 = vcmp.eq.f32.partialorder %v7147, 8.507059e+37
      %v7149 = vand.u32 %v6888, 2147483648
      %v7150 = vor.u32 1.1754944e-38, %v7149
      %v7151 = vsel %vm7148, %v7150, %v7146
      %v7152 = vmul.f32 %v6810, %v7151
      %v7153 = vrcp.pop %v6891
      %v7154 = vmul.f32 %v6891, %v7153
      %v7155 = vsub.f32 1.0, %v7154
      %v7156 = vmul.f32 %v7153, %v7155
      %v7157 = vadd.f32 %v7153, %v7156
      %vm7158 = vweird.f32 %v6891
      %vm7159 = vweird.f32 %v7153
      %vm7160 = vmor %vm7158, %vm7159
      %v7161 = vsel %vm7160, %v7153, %v7157
      %v7162 = vand.u32 2147483647, %v6891
      %vm7163 = vcmp.eq.f32.partialorder %v7162, 8.507059e+37
      %v7164 = vand.u32 %v6891, 2147483648
      %v7165 = vor.u32 1.1754944e-38, %v7164
      %v7166 = vsel %vm7163, %v7165, %v7161
      %v7167 = vmul.f32 %v6812, %v7166
      %v7168 = vrcp.pop %v6894
      %v7169 = vmul.f32 %v6894, %v7168
      %v7170 = vsub.f32 1.0, %v7169
      %v7171 = vmul.f32 %v7168, %v7170
      %v7172 = vadd.f32 %v7168, %v7171
      %vm7173 = vweird.f32 %v6894
      %vm7174 = vweird.f32 %v7168
      %vm7175 = vmor %vm7173, %vm7174
      %v7176 = vsel %vm7175, %v7168, %v7172
      %v7177 = vand.u32 2147483647, %v6894
      %vm7178 = vcmp.eq.f32.partialorder %v7177, 8.507059e+37
      %v7179 = vand.u32 %v6894, 2147483648
      %v7180 = vor.u32 1.1754944e-38, %v7179
      %v7181 = vsel %vm7178, %v7180, %v7176
      %v7182 = vmul.f32 %v6814, %v7181
      %v7183 = vrcp.pop %v6897
      %v7184 = vmul.f32 %v6897, %v7183
      %v7185 = vsub.f32 1.0, %v7184
      %v7186 = vmul.f32 %v7183, %v7185
      %v7187 = vadd.f32 %v7183, %v7186
      %vm7188 = vweird.f32 %v6897
      %vm7189 = vweird.f32 %v7183
      %vm7190 = vmor %vm7188, %vm7189
      %v7191 = vsel %vm7190, %v7183, %v7187
      %v7192 = vand.u32 2147483647, %v6897
      %vm7193 = vcmp.eq.f32.partialorder %v7192, 8.507059e+37
      %v7194 = vand.u32 %v6897, 2147483648
      %v7195 = vor.u32 1.1754944e-38, %v7194
      %v7196 = vsel %vm7193, %v7195, %v7191
      %v7197 = vmul.f32 %v6816, %v7196
      %v7198 = vrcp.pop %v6900
      %v7199 = vmul.f32 %v6900, %v7198
      %v7200 = vsub.f32 1.0, %v7199
      %v7201 = vmul.f32 %v7198, %v7200
      %v7202 = vadd.f32 %v7198, %v7201
      %vm7203 = vweird.f32 %v6900
      %vm7204 = vweird.f32 %v7198
      %vm7205 = vmor %vm7203, %vm7204
      %v7206 = vsel %vm7205, %v7198, %v7202
      %v7207 = vand.u32 2147483647, %v6900
      %vm7208 = vcmp.eq.f32.partialorder %v7207, 8.507059e+37
      %v7209 = vand.u32 %v6900, 2147483648
      %v7210 = vor.u32 1.1754944e-38, %v7209
      %v7211 = vsel %vm7208, %v7210, %v7206
      %v7212 = vmul.f32 %v6818, %v7211
      %v7213 = vrcp.pop %v6903
      %v7214 = vmul.f32 %v6903, %v7213
      %v7215 = vsub.f32 1.0, %v7214
      %v7216 = vmul.f32 %v7213, %v7215
      %v7217 = vadd.f32 %v7213, %v7216
      %vm7218 = vweird.f32 %v6903
      %vm7219 = vweird.f32 %v7213
      %vm7220 = vmor %vm7218, %vm7219
      %v7221 = vsel %vm7220, %v7213, %v7217
      %v7222 = vand.u32 2147483647, %v6903
      %vm7223 = vcmp.eq.f32.partialorder %v7222, 8.507059e+37
      %v7224 = vand.u32 %v6903, 2147483648
      %v7225 = vor.u32 1.1754944e-38, %v7224
      %v7226 = vsel %vm7223, %v7225, %v7221
      %v7227 = vmul.f32 %v6820, %v7226
      %v7228 = vrcp.pop %v6906
      %v7229 = vmul.f32 %v6906, %v7228
      %v7230 = vsub.f32 1.0, %v7229
      %v7231 = vmul.f32 %v7228, %v7230
      %v7232 = vadd.f32 %v7228, %v7231
      %vm7233 = vweird.f32 %v6906
      %vm7234 = vweird.f32 %v7228
      %vm7235 = vmor %vm7233, %vm7234
      %v7236 = vsel %vm7235, %v7228, %v7232
      %v7237 = vand.u32 2147483647, %v6906
      %vm7238 = vcmp.eq.f32.partialorder %v7237, 8.507059e+37
      %v7239 = vand.u32 %v6906, 2147483648
      %v7240 = vor.u32 1.1754944e-38, %v7239
      %v7241 = vsel %vm7238, %v7240, %v7236
      %v7242 = vmul.f32 %v6822, %v7241
      %v7243 = vrcp.pop %v6909
      %v7244 = vmul.f32 %v6909, %v7243
      %v7245 = vsub.f32 1.0, %v7244
      %v7246 = vmul.f32 %v7243, %v7245
      %v7247 = vadd.f32 %v7243, %v7246
      %vm7248 = vweird.f32 %v6909
      %vm7249 = vweird.f32 %v7243
      %vm7250 = vmor %vm7248, %vm7249
      %v7251 = vsel %vm7250, %v7243, %v7247
      %v7252 = vand.u32 2147483647, %v6909
      %vm7253 = vcmp.eq.f32.partialorder %v7252, 8.507059e+37
      %v7254 = vand.u32 %v6909, 2147483648
      %v7255 = vor.u32 1.1754944e-38, %v7254
      %v7256 = vsel %vm7253, %v7255, %v7251
      %v7257 = vmul.f32 %v6824, %v7256
      %v7258 = vrcp.pop %v6912
      %v7259 = vmul.f32 %v6912, %v7258
      %v7260 = vsub.f32 1.0, %v7259
      %v7261 = vmul.f32 %v7258, %v7260
      %v7262 = vadd.f32 %v7258, %v7261
      %vm7263 = vweird.f32 %v6912
      %vm7264 = vweird.f32 %v7258
      %vm7265 = vmor %vm7263, %vm7264
      %v7266 = vsel %vm7265, %v7258, %v7262
      %v7267 = vand.u32 2147483647, %v6912
      %vm7268 = vcmp.eq.f32.partialorder %v7267, 8.507059e+37
      %v7269 = vand.u32 %v6912, 2147483648
      %v7270 = vor.u32 1.1754944e-38, %v7269
      %v7271 = vsel %vm7268, %v7270, %v7266
      %v7272 = vmul.f32 %v6826, %v7271
      %v7273 = vrcp.pop %v6915
      %v7274 = vmul.f32 %v6915, %v7273
      %v7275 = vsub.f32 1.0, %v7274
      %v7276 = vmul.f32 %v7273, %v7275
      %v7277 = vadd.f32 %v7273, %v7276
      %vm7278 = vweird.f32 %v6915
      %vm7279 = vweird.f32 %v7273
      %vm7280 = vmor %vm7278, %vm7279
      %v7281 = vsel %vm7280, %v7273, %v7277
      %v7282 = vand.u32 2147483647, %v6915
      %vm7283 = vcmp.eq.f32.partialorder %v7282, 8.507059e+37
      %v7284 = vand.u32 %v6915, 2147483648
      %v7285 = vor.u32 1.1754944e-38, %v7284
      %v7286 = vsel %vm7283, %v7285, %v7281
      %v7287 = vmul.f32 %v6828, %v7286
      %v7288 = vrcp.pop %v6918
      %v7289 = vmul.f32 %v6918, %v7288
      %v7290 = vsub.f32 1.0, %v7289
      %v7291 = vmul.f32 %v7288, %v7290
      %v7292 = vadd.f32 %v7288, %v7291
      %vm7293 = vweird.f32 %v6918
      %vm7294 = vweird.f32 %v7288
      %vm7295 = vmor %vm7293, %vm7294
      %v7296 = vsel %vm7295, %v7288, %v7292
      %v7297 = vand.u32 2147483647, %v6918
      %vm7298 = vcmp.eq.f32.partialorder %v7297, 8.507059e+37
      %v7299 = vand.u32 %v6918, 2147483648
      %v7300 = vor.u32 1.1754944e-38, %v7299
      %v7301 = vsel %vm7298, %v7300, %v7296
      %v7302 = vmul.f32 %v6830, %v7301
      %v7303 = vrcp.pop %v6921
      %v7304 = vmul.f32 %v6921, %v7303
      %v7305 = vsub.f32 1.0, %v7304
      %v7306 = vmul.f32 %v7303, %v7305
      %v7307 = vadd.f32 %v7303, %v7306
      %vm7308 = vweird.f32 %v6921
      %vm7309 = vweird.f32 %v7303
      %vm7310 = vmor %vm7308, %vm7309
      %v7311 = vsel %vm7310, %v7303, %v7307
      %v7312 = vand.u32 2147483647, %v6921
      %vm7313 = vcmp.eq.f32.partialorder %v7312, 8.507059e+37
      %v7314 = vand.u32 %v6921, 2147483648
      %v7315 = vor.u32 1.1754944e-38, %v7314
      %v7316 = vsel %vm7313, %v7315, %v7311
      %v7317 = vmul.f32 %v6832, %v7316
      %v7318 = vrcp.pop %v6924
      %v7319 = vmul.f32 %v6924, %v7318
      %v7320 = vsub.f32 1.0, %v7319
      %v7321 = vmul.f32 %v7318, %v7320
      %v7322 = vadd.f32 %v7318, %v7321
      %vm7323 = vweird.f32 %v6924
      %vm7324 = vweird.f32 %v7318
      %vm7325 = vmor %vm7323, %vm7324
      %v7326 = vsel %vm7325, %v7318, %v7322
      %v7327 = vand.u32 2147483647, %v6924
      %vm7328 = vcmp.eq.f32.partialorder %v7327, 8.507059e+37
      %v7329 = vand.u32 %v6924, 2147483648
      %v7330 = vor.u32 1.1754944e-38, %v7329
      %v7331 = vsel %vm7328, %v7330, %v7326
      %v7332 = vmul.f32 %v6834, %v7331
      %v7333 = vrcp.pop %v6927
      %v7334 = vmul.f32 %v6927, %v7333
      %v7335 = vsub.f32 1.0, %v7334
      %v7336 = vmul.f32 %v7333, %v7335
      %v7337 = vadd.f32 %v7333, %v7336
      %vm7338 = vweird.f32 %v6927
      %vm7339 = vweird.f32 %v7333
      %vm7340 = vmor %vm7338, %vm7339
      %v7341 = vsel %vm7340, %v7333, %v7337
      %v7342 = vand.u32 2147483647, %v6927
      %vm7343 = vcmp.eq.f32.partialorder %v7342, 8.507059e+37
      %v7344 = vand.u32 %v6927, 2147483648
      %v7345 = vor.u32 1.1754944e-38, %v7344
      %v7346 = vsel %vm7343, %v7345, %v7341
      %v7347 = vmul.f32 %v6836, %v7346
      %v7348 = vrcp.pop %v6930
      %v7349 = vmul.f32 %v6930, %v7348
      %v7350 = vsub.f32 1.0, %v7349
      %v7351 = vmul.f32 %v7348, %v7350
      %v7352 = vadd.f32 %v7348, %v7351
      %vm7353 = vweird.f32 %v6930
      %vm7354 = vweird.f32 %v7348
      %vm7355 = vmor %vm7353, %vm7354
      %v7356 = vsel %vm7355, %v7348, %v7352
      %v7357 = vand.u32 2147483647, %v6930
      %vm7358 = vcmp.eq.f32.partialorder %v7357, 8.507059e+37
      %v7359 = vand.u32 %v6930, 2147483648
      %v7360 = vor.u32 1.1754944e-38, %v7359
      %v7361 = vsel %vm7358, %v7360, %v7356
      %v7362 = vmul.f32 %v6838, %v7361
      %v7363 = vrcp.pop %v6933
      %v7364 = vmul.f32 %v6933, %v7363
      %v7365 = vsub.f32 1.0, %v7364
      %v7366 = vmul.f32 %v7363, %v7365
      %v7367 = vadd.f32 %v7363, %v7366
      %vm7368 = vweird.f32 %v6933
      %vm7369 = vweird.f32 %v7363
      %vm7370 = vmor %vm7368, %vm7369
      %v7371 = vsel %vm7370, %v7363, %v7367
      %v7372 = vand.u32 2147483647, %v6933
      %vm7373 = vcmp.eq.f32.partialorder %v7372, 8.507059e+37
      %v7374 = vand.u32 %v6933, 2147483648
      %v7375 = vor.u32 1.1754944e-38, %v7374
      %v7376 = vsel %vm7373, %v7375, %v7371
      %v7377 = vmul.f32 %v6840, %v7376
      %v7378 = vrcp.pop %v6936
      %v7379 = vmul.f32 %v6936, %v7378
      %v7380 = vsub.f32 1.0, %v7379
      %v7381 = vmul.f32 %v7378, %v7380
      %v7382 = vadd.f32 %v7378, %v7381
      %vm7383 = vweird.f32 %v6936
      %vm7384 = vweird.f32 %v7378
      %vm7385 = vmor %vm7383, %vm7384
      %v7386 = vsel %vm7385, %v7378, %v7382
      %v7387 = vand.u32 2147483647, %v6936
      %vm7388 = vcmp.eq.f32.partialorder %v7387, 8.507059e+37
      %v7389 = vand.u32 %v6936, 2147483648
      %v7390 = vor.u32 1.1754944e-38, %v7389
      %v7391 = vsel %vm7388, %v7390, %v7386
      %v7392 = vmul.f32 %v6842, %v7391
      %v7393 = vrcp.pop %v6939
      %v7394 = vmul.f32 %v6939, %v7393
      %v7395 = vsub.f32 1.0, %v7394
      %v7396 = vmul.f32 %v7393, %v7395
      %v7397 = vadd.f32 %v7393, %v7396
      %vm7398 = vweird.f32 %v6939
      %vm7399 = vweird.f32 %v7393
      %vm7400 = vmor %vm7398, %vm7399
      %v7401 = vsel %vm7400, %v7393, %v7397
      %v7402 = vand.u32 2147483647, %v6939
      %vm7403 = vcmp.eq.f32.partialorder %v7402, 8.507059e+37
      %v7404 = vand.u32 %v6939, 2147483648
      %v7405 = vor.u32 1.1754944e-38, %v7404
      %v7406 = vsel %vm7403, %v7405, %v7401
      %v7407 = vmul.f32 %v6844, %v7406
      %v7408 = vrcp.pop %v6942
      %v7409 = vmul.f32 %v6942, %v7408
      %v7410 = vsub.f32 1.0, %v7409
      %v7411 = vmul.f32 %v7408, %v7410
      %v7412 = vadd.f32 %v7408, %v7411
      %vm7413 = vweird.f32 %v6942
      %vm7414 = vweird.f32 %v7408
      %vm7415 = vmor %vm7413, %vm7414
      %v7416 = vsel %vm7415, %v7408, %v7412
      %v7417 = vand.u32 2147483647, %v6942
      %vm7418 = vcmp.eq.f32.partialorder %v7417, 8.507059e+37
      %v7419 = vand.u32 %v6942, 2147483648
      %v7420 = vor.u32 1.1754944e-38, %v7419
      %v7421 = vsel %vm7418, %v7420, %v7416
      %v7422 = vmul.f32 %v6846, %v7421
      %7423 = vrot.lane.b32.xlu0 %v1279, 40
      %v7424 = vpop.permute.xlu0 %7423
      %7425 = vrot.lane.b32.xlu0 %v1282, 40
      %v7426 = vpop.permute.xlu0 %7425
      %7427 = vrot.lane.b32.xlu0 %v1285, 40
      %v7428 = vpop.permute.xlu0 %7427
      %7429 = vrot.lane.b32.xlu0 %v1288, 40
      %v7430 = vpop.permute.xlu0 %7429
      %7431 = vrot.lane.b32.xlu0 %v1291, 40
      %v7432 = vpop.permute.xlu0 %7431
      %7433 = vrot.lane.b32.xlu0 %v1294, 40
      %v7434 = vpop.permute.xlu0 %7433
      %7435 = vrot.lane.b32.xlu0 %v1297, 40
      %v7436 = vpop.permute.xlu0 %7435
      %7437 = vrot.lane.b32.xlu0 %v1300, 40
      %v7438 = vpop.permute.xlu0 %7437
      %v7448 = vsel %vm1899, %v6957, 0
      %v7451 = vsel %vm1899, %v6972, 0
      %v7454 = vsel %vm1899, %v6987, 0
      %v7457 = vsel %vm1899, %v7002, 0
      %v7460 = vsel %vm1899, %v7017, 0
      %v7463 = vsel %vm1899, %v7032, 0
      %v7466 = vsel %vm1899, %v7047, 0
      %v7469 = vsel %vm1899, %v7062, 0
      %7471 = vmatpush.msra.mxu0 0.0
      %7472 = vmatpush.msra.mxu0 0.0
      %7473 = vmatpush.msra.mxu0 0.0
      %7474 = vmatpush.msra.mxu0 0.0
      %7475 = vmatpush.msra.mxu0 0.0
      %7476 = vmatpush.msra.mxu0 0.0
      %7477 = vmatpush.msra.mxu0 0.0
      %7478 = vmatpush.msra.mxu0 0.0
      %7479 = vmatpush.msra.mxu0 %v7438
      %7480 = vmatpush.msra.mxu0 %v7436
      %7481 = vmatpush.msra.mxu0 %v7434
      %7482 = vmatpush.msra.mxu0 %v7432
      %7483 = vmatpush.msra.mxu0 %v7430
      %7484 = vmatpush.msra.mxu0 %v7428
      %7485 = vmatpush.msra.mxu0 %v7426
      %7486 = vmatpush.msra.mxu0 %v7424
      %7487 = vmatmul.f32.gmra.mxu0 %v7448
      %v7488 = vpop.f32.mrf.mxu0
      %v7489 = vadd.f32 0.0, %v7488
      %7490 = vmatmul.f32.gmra.mxu0 %v7451
      %v7491 = vpop.f32.mrf.mxu0
      %v7492 = vadd.f32 0.0, %v7491
      %7493 = vmatmul.f32.gmra.mxu0 %v7454
      %v7494 = vpop.f32.mrf.mxu0
      %v7495 = vadd.f32 0.0, %v7494
      %7496 = vmatmul.f32.gmra.mxu0 %v7457
      %v7497 = vpop.f32.mrf.mxu0
      %v7498 = vadd.f32 0.0, %v7497
      %7499 = vmatmul.f32.gmra.mxu0 %v7460
      %v7500 = vpop.f32.mrf.mxu0
      %v7501 = vadd.f32 0.0, %v7500
      %7502 = vmatmul.f32.gmra.mxu0 %v7463
      %v7503 = vpop.f32.mrf.mxu0
      %v7504 = vadd.f32 0.0, %v7503
      %7505 = vmatmul.f32.gmra.mxu0 %v7466
      %v7506 = vpop.f32.mrf.mxu0
      %v7507 = vadd.f32 0.0, %v7506
      %7508 = vmatmul.f32.gmra.mxu0 %v7469
      %v7509 = vpop.f32.mrf.mxu0
      %v7510 = vadd.f32 0.0, %v7509
      %7511 = vdwg.mxu0
      %7512 = vrot.lane.b32.xlu0 %v1303, 40
      %v7513 = vpop.permute.xlu0 %7512
      %7514 = vrot.lane.b32.xlu0 %v1306, 40
      %v7515 = vpop.permute.xlu0 %7514
      %7516 = vrot.lane.b32.xlu0 %v1309, 40
      %v7517 = vpop.permute.xlu0 %7516
      %7518 = vrot.lane.b32.xlu0 %v1312, 40
      %v7519 = vpop.permute.xlu0 %7518
      %7520 = vrot.lane.b32.xlu0 %v1315, 40
      %v7521 = vpop.permute.xlu0 %7520
      %7522 = vrot.lane.b32.xlu0 %v1318, 40
      %v7523 = vpop.permute.xlu0 %7522
      %7524 = vrot.lane.b32.xlu0 %v1321, 40
      %v7525 = vpop.permute.xlu0 %7524
      %7526 = vrot.lane.b32.xlu0 %v1324, 40
      %v7527 = vpop.permute.xlu0 %7526
      %v7537 = vsel %vm1899, %v7077, 0
      %v7540 = vsel %vm1899, %v7092, 0
      %v7543 = vsel %vm1899, %v7107, 0
      %v7546 = vsel %vm1899, %v7122, 0
      %v7549 = vsel %vm1899, %v7137, 0
      %v7552 = vsel %vm1899, %v7152, 0
      %v7555 = vsel %vm1899, %v7167, 0
      %v7558 = vsel %vm1899, %v7182, 0
      %7560 = vmatpush.msra.mxu0 0.0
      %7561 = vmatpush.msra.mxu0 0.0
      %7562 = vmatpush.msra.mxu0 0.0
      %7563 = vmatpush.msra.mxu0 0.0
      %7564 = vmatpush.msra.mxu0 0.0
      %7565 = vmatpush.msra.mxu0 0.0
      %7566 = vmatpush.msra.mxu0 0.0
      %7567 = vmatpush.msra.mxu0 0.0
      %7568 = vmatpush.msra.mxu0 %v7527
      %7569 = vmatpush.msra.mxu0 %v7525
      %7570 = vmatpush.msra.mxu0 %v7523
      %7571 = vmatpush.msra.mxu0 %v7521
      %7572 = vmatpush.msra.mxu0 %v7519
      %7573 = vmatpush.msra.mxu0 %v7517
      %7574 = vmatpush.msra.mxu0 %v7515
      %7575 = vmatpush.msra.mxu0 %v7513
      %7576 = vmatmul.f32.gmra.mxu0 %v7537
      %v7577 = vpop.f32.mrf.mxu0
      %v7578 = vadd.f32 0.0, %v7577
      %7579 = vmatmul.f32.gmra.mxu0 %v7540
      %v7580 = vpop.f32.mrf.mxu0
      %v7581 = vadd.f32 0.0, %v7580
      %7582 = vmatmul.f32.gmra.mxu0 %v7543
      %v7583 = vpop.f32.mrf.mxu0
      %v7584 = vadd.f32 0.0, %v7583
      %7585 = vmatmul.f32.gmra.mxu0 %v7546
      %v7586 = vpop.f32.mrf.mxu0
      %v7587 = vadd.f32 0.0, %v7586
      %7588 = vmatmul.f32.gmra.mxu0 %v7549
      %v7589 = vpop.f32.mrf.mxu0
      %v7590 = vadd.f32 0.0, %v7589
      %7591 = vmatmul.f32.gmra.mxu0 %v7552
      %v7592 = vpop.f32.mrf.mxu0
      %v7593 = vadd.f32 0.0, %v7592
      %7594 = vmatmul.f32.gmra.mxu0 %v7555
      %v7595 = vpop.f32.mrf.mxu0
      %v7596 = vadd.f32 0.0, %v7595
      %7597 = vmatmul.f32.gmra.mxu0 %v7558
      %v7598 = vpop.f32.mrf.mxu0
      %v7599 = vadd.f32 0.0, %v7598
      %7600 = vdwg.mxu0
      %7601 = vrot.lane.b32.xlu0 %v1327, 40
      %v7602 = vpop.permute.xlu0 %7601
      %7603 = vrot.lane.b32.xlu0 %v1330, 40
      %v7604 = vpop.permute.xlu0 %7603
      %7605 = vrot.lane.b32.xlu0 %v1333, 40
      %v7606 = vpop.permute.xlu0 %7605
      %7607 = vrot.lane.b32.xlu0 %v1336, 40
      %v7608 = vpop.permute.xlu0 %7607
      %7609 = vrot.lane.b32.xlu0 %v1339, 40
      %v7610 = vpop.permute.xlu0 %7609
      %7611 = vrot.lane.b32.xlu0 %v1342, 40
      %v7612 = vpop.permute.xlu0 %7611
      %7613 = vrot.lane.b32.xlu0 %v1345, 40
      %v7614 = vpop.permute.xlu0 %7613
      %7615 = vrot.lane.b32.xlu0 %v1348, 40
      %v7616 = vpop.permute.xlu0 %7615
      %v7626 = vsel %vm1899, %v7197, 0
      %v7629 = vsel %vm1899, %v7212, 0
      %v7632 = vsel %vm1899, %v7227, 0
      %v7635 = vsel %vm1899, %v7242, 0
      %v7638 = vsel %vm1899, %v7257, 0
      %v7641 = vsel %vm1899, %v7272, 0
      %v7644 = vsel %vm1899, %v7287, 0
      %v7647 = vsel %vm1899, %v7302, 0
      %7649 = vmatpush.msra.mxu0 0.0
      %7650 = vmatpush.msra.mxu0 0.0
      %7651 = vmatpush.msra.mxu0 0.0
      %7652 = vmatpush.msra.mxu0 0.0
      %7653 = vmatpush.msra.mxu0 0.0
      %7654 = vmatpush.msra.mxu0 0.0
      %7655 = vmatpush.msra.mxu0 0.0
      %7656 = vmatpush.msra.mxu0 0.0
      %7657 = vmatpush.msra.mxu0 %v7616
      %7658 = vmatpush.msra.mxu0 %v7614
      %7659 = vmatpush.msra.mxu0 %v7612
      %7660 = vmatpush.msra.mxu0 %v7610
      %7661 = vmatpush.msra.mxu0 %v7608
      %7662 = vmatpush.msra.mxu0 %v7606
      %7663 = vmatpush.msra.mxu0 %v7604
      %7664 = vmatpush.msra.mxu0 %v7602
      %7665 = vmatmul.f32.gmra.mxu0 %v7626
      %v7666 = vpop.f32.mrf.mxu0
      %v7667 = vadd.f32 0.0, %v7666
      %7668 = vmatmul.f32.gmra.mxu0 %v7629
      %v7669 = vpop.f32.mrf.mxu0
      %v7670 = vadd.f32 0.0, %v7669
      %7671 = vmatmul.f32.gmra.mxu0 %v7632
      %v7672 = vpop.f32.mrf.mxu0
      %v7673 = vadd.f32 0.0, %v7672
      %7674 = vmatmul.f32.gmra.mxu0 %v7635
      %v7675 = vpop.f32.mrf.mxu0
      %v7676 = vadd.f32 0.0, %v7675
      %7677 = vmatmul.f32.gmra.mxu0 %v7638
      %v7678 = vpop.f32.mrf.mxu0
      %v7679 = vadd.f32 0.0, %v7678
      %7680 = vmatmul.f32.gmra.mxu0 %v7641
      %v7681 = vpop.f32.mrf.mxu0
      %v7682 = vadd.f32 0.0, %v7681
      %7683 = vmatmul.f32.gmra.mxu0 %v7644
      %v7684 = vpop.f32.mrf.mxu0
      %v7685 = vadd.f32 0.0, %v7684
      %7686 = vmatmul.f32.gmra.mxu0 %v7647
      %v7687 = vpop.f32.mrf.mxu0
      %v7688 = vadd.f32 0.0, %v7687
      %7689 = vdwg.mxu0
      %7690 = vrot.lane.b32.xlu0 %v1351, 40
      %v7691 = vpop.permute.xlu0 %7690
      %7692 = vrot.lane.b32.xlu0 %v1354, 40
      %v7693 = vpop.permute.xlu0 %7692
      %7694 = vrot.lane.b32.xlu0 %v1357, 40
      %v7695 = vpop.permute.xlu0 %7694
      %7696 = vrot.lane.b32.xlu0 %v1360, 40
      %v7697 = vpop.permute.xlu0 %7696
      %7698 = vrot.lane.b32.xlu0 %v1363, 40
      %v7699 = vpop.permute.xlu0 %7698
      %7700 = vrot.lane.b32.xlu0 %v1366, 40
      %v7701 = vpop.permute.xlu0 %7700
      %7702 = vrot.lane.b32.xlu0 %v1369, 40
      %v7703 = vpop.permute.xlu0 %7702
      %7704 = vrot.lane.b32.xlu0 %v1372, 40
      %v7705 = vpop.permute.xlu0 %7704
      %v7715 = vsel %vm1899, %v7317, 0
      %v7718 = vsel %vm1899, %v7332, 0
      %v7721 = vsel %vm1899, %v7347, 0
      %v7724 = vsel %vm1899, %v7362, 0
      %v7727 = vsel %vm1899, %v7377, 0
      %v7730 = vsel %vm1899, %v7392, 0
      %v7733 = vsel %vm1899, %v7407, 0
      %v7736 = vsel %vm1899, %v7422, 0
      %7738 = vmatpush.msra.mxu0 0.0
      %7739 = vmatpush.msra.mxu0 0.0
      %7740 = vmatpush.msra.mxu0 0.0
      %7741 = vmatpush.msra.mxu0 0.0
      %7742 = vmatpush.msra.mxu0 0.0
      %7743 = vmatpush.msra.mxu0 0.0
      %7744 = vmatpush.msra.mxu0 0.0
      %7745 = vmatpush.msra.mxu0 0.0
      %7746 = vmatpush.msra.mxu0 %v7705
      %7747 = vmatpush.msra.mxu0 %v7703
      %7748 = vmatpush.msra.mxu0 %v7701
      %7749 = vmatpush.msra.mxu0 %v7699
      %7750 = vmatpush.msra.mxu0 %v7697
      %7751 = vmatpush.msra.mxu0 %v7695
      %7752 = vmatpush.msra.mxu0 %v7693
      %7753 = vmatpush.msra.mxu0 %v7691
      %7754 = vmatmul.f32.gmra.mxu0 %v7715
      %v7755 = vpop.f32.mrf.mxu0
      %v7756 = vadd.f32 0.0, %v7755
      %7757 = vmatmul.f32.gmra.mxu0 %v7718
      %v7758 = vpop.f32.mrf.mxu0
      %v7759 = vadd.f32 0.0, %v7758
      %7760 = vmatmul.f32.gmra.mxu0 %v7721
      %v7761 = vpop.f32.mrf.mxu0
      %v7762 = vadd.f32 0.0, %v7761
      %7763 = vmatmul.f32.gmra.mxu0 %v7724
      %v7764 = vpop.f32.mrf.mxu0
      %v7765 = vadd.f32 0.0, %v7764
      %7766 = vmatmul.f32.gmra.mxu0 %v7727
      %v7767 = vpop.f32.mrf.mxu0
      %v7768 = vadd.f32 0.0, %v7767
      %7769 = vmatmul.f32.gmra.mxu0 %v7730
      %v7770 = vpop.f32.mrf.mxu0
      %v7771 = vadd.f32 0.0, %v7770
      %7772 = vmatmul.f32.gmra.mxu0 %v7733
      %v7773 = vpop.f32.mrf.mxu0
      %v7774 = vadd.f32 0.0, %v7773
      %7775 = vmatmul.f32.gmra.mxu0 %v7736
      %v7776 = vpop.f32.mrf.mxu0
      %v7777 = vadd.f32 0.0, %v7776
      %7778 = vdwg.mxu0
      %7811 = vrot.lane.b32.xlu0 %v4319, 8
      %v7812 = vpop.permute.xlu0 %7811
      %7813 = vrot.lane.b32.xlu0 %v4322, 8
      %v7814 = vpop.permute.xlu0 %7813
      %7815 = vrot.lane.b32.xlu0 %v4325, 8
      %v7816 = vpop.permute.xlu0 %7815
      %7817 = vrot.lane.b32.xlu0 %v4328, 8
      %v7818 = vpop.permute.xlu0 %7817
      %7819 = vrot.lane.b32.xlu0 %v4331, 8
      %v7820 = vpop.permute.xlu0 %7819
      %7821 = vrot.lane.b32.xlu0 %v4334, 8
      %v7822 = vpop.permute.xlu0 %7821
      %7823 = vrot.lane.b32.xlu0 %v4337, 8
      %v7824 = vpop.permute.xlu0 %7823
      %7825 = vrot.lane.b32.xlu0 %v4340, 8
      %v7826 = vpop.permute.xlu0 %7825
      %7827 = vrot.lane.b32.xlu0 %v4408, 8
      %v7828 = vpop.permute.xlu0 %7827
      %7829 = vrot.lane.b32.xlu0 %v4411, 8
      %v7830 = vpop.permute.xlu0 %7829
      %7831 = vrot.lane.b32.xlu0 %v4414, 8
      %v7832 = vpop.permute.xlu0 %7831
      %7833 = vrot.lane.b32.xlu0 %v4417, 8
      %v7834 = vpop.permute.xlu0 %7833
      %7835 = vrot.lane.b32.xlu0 %v4420, 8
      %v7836 = vpop.permute.xlu0 %7835
      %7837 = vrot.lane.b32.xlu0 %v4423, 8
      %v7838 = vpop.permute.xlu0 %7837
      %7839 = vrot.lane.b32.xlu0 %v4426, 8
      %v7840 = vpop.permute.xlu0 %7839
      %7841 = vrot.lane.b32.xlu0 %v4429, 8
      %v7842 = vpop.permute.xlu0 %7841
      %7843 = vrot.lane.b32.xlu0 %v4497, 8
      %v7844 = vpop.permute.xlu0 %7843
      %7845 = vrot.lane.b32.xlu0 %v4500, 8
      %v7846 = vpop.permute.xlu0 %7845
      %7847 = vrot.lane.b32.xlu0 %v4503, 8
      %v7848 = vpop.permute.xlu0 %7847
      %7849 = vrot.lane.b32.xlu0 %v4506, 8
      %v7850 = vpop.permute.xlu0 %7849
      %7851 = vrot.lane.b32.xlu0 %v4509, 8
      %v7852 = vpop.permute.xlu0 %7851
      %7853 = vrot.lane.b32.xlu0 %v4512, 8
      %v7854 = vpop.permute.xlu0 %7853
      %7855 = vrot.lane.b32.xlu0 %v4515, 8
      %v7856 = vpop.permute.xlu0 %7855
      %7857 = vrot.lane.b32.xlu0 %v4518, 8
      %v7858 = vpop.permute.xlu0 %7857
      %7859 = vrot.lane.b32.xlu0 %v4586, 8
      %v7860 = vpop.permute.xlu0 %7859
      %7861 = vrot.lane.b32.xlu0 %v4589, 8
      %v7862 = vpop.permute.xlu0 %7861
      %7863 = vrot.lane.b32.xlu0 %v4592, 8
      %v7864 = vpop.permute.xlu0 %7863
      %7865 = vrot.lane.b32.xlu0 %v4595, 8
      %v7866 = vpop.permute.xlu0 %7865
      %7867 = vrot.lane.b32.xlu0 %v4598, 8
      %v7868 = vpop.permute.xlu0 %7867
      %7869 = vrot.lane.b32.xlu0 %v4601, 8
      %v7870 = vpop.permute.xlu0 %7869
      %7871 = vrot.lane.b32.xlu0 %v4604, 8
      %v7872 = vpop.permute.xlu0 %7871
      %7873 = vrot.lane.b32.xlu0 %v4607, 8
      %v7874 = vpop.permute.xlu0 %7873
      %7939 = vrot.lane.b32.xlu0 %v5904, 16
      %v7940 = vpop.permute.xlu0 %7939
      %7941 = vrot.lane.b32.xlu0 %v5907, 16
      %v7942 = vpop.permute.xlu0 %7941
      %7943 = vrot.lane.b32.xlu0 %v5910, 16
      %v7944 = vpop.permute.xlu0 %7943
      %7945 = vrot.lane.b32.xlu0 %v5913, 16
      %v7946 = vpop.permute.xlu0 %7945
      %7947 = vrot.lane.b32.xlu0 %v5916, 16
      %v7948 = vpop.permute.xlu0 %7947
      %7949 = vrot.lane.b32.xlu0 %v5919, 16
      %v7950 = vpop.permute.xlu0 %7949
      %7951 = vrot.lane.b32.xlu0 %v5922, 16
      %v7952 = vpop.permute.xlu0 %7951
      %7953 = vrot.lane.b32.xlu0 %v5925, 16
      %v7954 = vpop.permute.xlu0 %7953
      %7955 = vrot.lane.b32.xlu0 %v5993, 16
      %v7956 = vpop.permute.xlu0 %7955
      %7957 = vrot.lane.b32.xlu0 %v5996, 16
      %v7958 = vpop.permute.xlu0 %7957
      %7959 = vrot.lane.b32.xlu0 %v5999, 16
      %v7960 = vpop.permute.xlu0 %7959
      %7961 = vrot.lane.b32.xlu0 %v6002, 16
      %v7962 = vpop.permute.xlu0 %7961
      %7963 = vrot.lane.b32.xlu0 %v6005, 16
      %v7964 = vpop.permute.xlu0 %7963
      %7965 = vrot.lane.b32.xlu0 %v6008, 16
      %v7966 = vpop.permute.xlu0 %7965
      %7967 = vrot.lane.b32.xlu0 %v6011, 16
      %v7968 = vpop.permute.xlu0 %7967
      %7969 = vrot.lane.b32.xlu0 %v6014, 16
      %v7970 = vpop.permute.xlu0 %7969
      %7971 = vrot.lane.b32.xlu0 %v6082, 16
      %v7972 = vpop.permute.xlu0 %7971
      %7973 = vrot.lane.b32.xlu0 %v6085, 16
      %v7974 = vpop.permute.xlu0 %7973
      %7975 = vrot.lane.b32.xlu0 %v6088, 16
      %v7976 = vpop.permute.xlu0 %7975
      %7977 = vrot.lane.b32.xlu0 %v6091, 16
      %v7978 = vpop.permute.xlu0 %7977
      %7979 = vrot.lane.b32.xlu0 %v6094, 16
      %v7980 = vpop.permute.xlu0 %7979
      %7981 = vrot.lane.b32.xlu0 %v6097, 16
      %v7982 = vpop.permute.xlu0 %7981
      %7983 = vrot.lane.b32.xlu0 %v6100, 16
      %v7984 = vpop.permute.xlu0 %7983
      %7985 = vrot.lane.b32.xlu0 %v6103, 16
      %v7986 = vpop.permute.xlu0 %7985
      %7987 = vrot.lane.b32.xlu0 %v6171, 16
      %v7988 = vpop.permute.xlu0 %7987
      %7989 = vrot.lane.b32.xlu0 %v6174, 16
      %v7990 = vpop.permute.xlu0 %7989
      %7991 = vrot.lane.b32.xlu0 %v6177, 16
      %v7992 = vpop.permute.xlu0 %7991
      %7993 = vrot.lane.b32.xlu0 %v6180, 16
      %v7994 = vpop.permute.xlu0 %7993
      %7995 = vrot.lane.b32.xlu0 %v6183, 16
      %v7996 = vpop.permute.xlu0 %7995
      %7997 = vrot.lane.b32.xlu0 %v6186, 16
      %v7998 = vpop.permute.xlu0 %7997
      %7999 = vrot.lane.b32.xlu0 %v6189, 16
      %v8000 = vpop.permute.xlu0 %7999
      %8001 = vrot.lane.b32.xlu0 %v6192, 16
      %v8002 = vpop.permute.xlu0 %8001
      %8067 = vrot.lane.b32.xlu0 %v7489, 24
      %v8068 = vpop.permute.xlu0 %8067
      %8069 = vrot.lane.b32.xlu0 %v7492, 24
      %v8070 = vpop.permute.xlu0 %8069
      %8071 = vrot.lane.b32.xlu0 %v7495, 24
      %v8072 = vpop.permute.xlu0 %8071
      %8073 = vrot.lane.b32.xlu0 %v7498, 24
      %v8074 = vpop.permute.xlu0 %8073
      %8075 = vrot.lane.b32.xlu0 %v7501, 24
      %v8076 = vpop.permute.xlu0 %8075
      %8077 = vrot.lane.b32.xlu0 %v7504, 24
      %v8078 = vpop.permute.xlu0 %8077
      %8079 = vrot.lane.b32.xlu0 %v7507, 24
      %v8080 = vpop.permute.xlu0 %8079
      %8081 = vrot.lane.b32.xlu0 %v7510, 24
      %v8082 = vpop.permute.xlu0 %8081
      %8083 = vrot.lane.b32.xlu0 %v7578, 24
      %v8084 = vpop.permute.xlu0 %8083
      %8085 = vrot.lane.b32.xlu0 %v7581, 24
      %v8086 = vpop.permute.xlu0 %8085
      %8087 = vrot.lane.b32.xlu0 %v7584, 24
      %v8088 = vpop.permute.xlu0 %8087
      %8089 = vrot.lane.b32.xlu0 %v7587, 24
      %v8090 = vpop.permute.xlu0 %8089
      %8091 = vrot.lane.b32.xlu0 %v7590, 24
      %v8092 = vpop.permute.xlu0 %8091
      %8093 = vrot.lane.b32.xlu0 %v7593, 24
      %v8094 = vpop.permute.xlu0 %8093
      %8095 = vrot.lane.b32.xlu0 %v7596, 24
      %v8096 = vpop.permute.xlu0 %8095
      %8097 = vrot.lane.b32.xlu0 %v7599, 24
      %v8098 = vpop.permute.xlu0 %8097
      %8099 = vrot.lane.b32.xlu0 %v7667, 24
      %v8100 = vpop.permute.xlu0 %8099
      %8101 = vrot.lane.b32.xlu0 %v7670, 24
      %v8102 = vpop.permute.xlu0 %8101
      %8103 = vrot.lane.b32.xlu0 %v7673, 24
      %v8104 = vpop.permute.xlu0 %8103
      %8105 = vrot.lane.b32.xlu0 %v7676, 24
      %v8106 = vpop.permute.xlu0 %8105
      %8107 = vrot.lane.b32.xlu0 %v7679, 24
      %v8108 = vpop.permute.xlu0 %8107
      %8109 = vrot.lane.b32.xlu0 %v7682, 24
      %v8110 = vpop.permute.xlu0 %8109
      %8111 = vrot.lane.b32.xlu0 %v7685, 24
      %v8112 = vpop.permute.xlu0 %8111
      %8113 = vrot.lane.b32.xlu0 %v7688, 24
      %v8114 = vpop.permute.xlu0 %8113
      %8115 = vrot.lane.b32.xlu0 %v7756, 24
      %v8116 = vpop.permute.xlu0 %8115
      %8117 = vrot.lane.b32.xlu0 %v7759, 24
      %v8118 = vpop.permute.xlu0 %8117
      %8119 = vrot.lane.b32.xlu0 %v7762, 24
      %v8120 = vpop.permute.xlu0 %8119
      %8121 = vrot.lane.b32.xlu0 %v7765, 24
      %v8122 = vpop.permute.xlu0 %8121
      %8123 = vrot.lane.b32.xlu0 %v7768, 24
      %v8124 = vpop.permute.xlu0 %8123
      %8125 = vrot.lane.b32.xlu0 %v7771, 24
      %v8126 = vpop.permute.xlu0 %8125
      %8127 = vrot.lane.b32.xlu0 %v7774, 24
      %v8128 = vpop.permute.xlu0 %8127
      %8129 = vrot.lane.b32.xlu0 %v7777, 24
      %v8130 = vpop.permute.xlu0 %8129
      %v8163 = vsel %vm1470, %v2734, %v7812
      %v8164 = vsel %vm1470, %v2737, %v7814
      %v8165 = vsel %vm1470, %v2740, %v7816
      %v8166 = vsel %vm1470, %v2743, %v7818
      %v8167 = vsel %vm1470, %v2746, %v7820
      %v8168 = vsel %vm1470, %v2749, %v7822
      %v8169 = vsel %vm1470, %v2752, %v7824
      %v8170 = vsel %vm1470, %v2755, %v7826
      %v8171 = vsel %vm1470, %v2823, %v7828
      %v8172 = vsel %vm1470, %v2826, %v7830
      %v8173 = vsel %vm1470, %v2829, %v7832
      %v8174 = vsel %vm1470, %v2832, %v7834
      %v8175 = vsel %vm1470, %v2835, %v7836
      %v8176 = vsel %vm1470, %v2838, %v7838
      %v8177 = vsel %vm1470, %v2841, %v7840
      %v8178 = vsel %vm1470, %v2844, %v7842
      %v8179 = vsel %vm1470, %v2912, %v7844
      %v8180 = vsel %vm1470, %v2915, %v7846
      %v8181 = vsel %vm1470, %v2918, %v7848
      %v8182 = vsel %vm1470, %v2921, %v7850
      %v8183 = vsel %vm1470, %v2924, %v7852
      %v8184 = vsel %vm1470, %v2927, %v7854
      %v8185 = vsel %vm1470, %v2930, %v7856
      %v8186 = vsel %vm1470, %v2933, %v7858
      %v8187 = vsel %vm1470, %v3001, %v7860
      %v8188 = vsel %vm1470, %v3004, %v7862
      %v8189 = vsel %vm1470, %v3007, %v7864
      %v8190 = vsel %vm1470, %v3010, %v7866
      %v8191 = vsel %vm1470, %v3013, %v7868
      %v8192 = vsel %vm1470, %v3016, %v7870
      %v8193 = vsel %vm1470, %v3019, %v7872
      %v8194 = vsel %vm1470, %v3022, %v7874
      %vm8195 = vcmask 130048
      %v8196 = vsel %vm8195, %v8163, %v7940
      %v8197 = vsel %vm8195, %v8164, %v7942
      %v8198 = vsel %vm8195, %v8165, %v7944
      %v8199 = vsel %vm8195, %v8166, %v7946
      %v8200 = vsel %vm8195, %v8167, %v7948
      %v8201 = vsel %vm8195, %v8168, %v7950
      %v8202 = vsel %vm8195, %v8169, %v7952
      %v8203 = vsel %vm8195, %v8170, %v7954
      %v8204 = vsel %vm8195, %v8171, %v7956
      %v8205 = vsel %vm8195, %v8172, %v7958
      %v8206 = vsel %vm8195, %v8173, %v7960
      %v8207 = vsel %vm8195, %v8174, %v7962
      %v8208 = vsel %vm8195, %v8175, %v7964
      %v8209 = vsel %vm8195, %v8176, %v7966
      %v8210 = vsel %vm8195, %v8177, %v7968
      %v8211 = vsel %vm8195, %v8178, %v7970
      %v8212 = vsel %vm8195, %v8179, %v7972
      %v8213 = vsel %vm8195, %v8180, %v7974
      %v8214 = vsel %vm8195, %v8181, %v7976
      %v8215 = vsel %vm8195, %v8182, %v7978
      %v8216 = vsel %vm8195, %v8183, %v7980
      %v8217 = vsel %vm8195, %v8184, %v7982
      %v8218 = vsel %vm8195, %v8185, %v7984
      %v8219 = vsel %vm8195, %v8186, %v7986
      %v8220 = vsel %vm8195, %v8187, %v7988
      %v8221 = vsel %vm8195, %v8188, %v7990
      %v8222 = vsel %vm8195, %v8189, %v7992
      %v8223 = vsel %vm8195, %v8190, %v7994
      %v8224 = vsel %vm8195, %v8191, %v7996
      %v8225 = vsel %vm8195, %v8192, %v7998
      %v8226 = vsel %vm8195, %v8193, %v8000
      %v8227 = vsel %vm8195, %v8194, %v8002
      %vm8228 = vcmask 195584
      %v8229 = vsel %vm8228, %v8196, %v8068
      %v8230 = vsel %vm8228, %v8197, %v8070
      %v8231 = vsel %vm8228, %v8198, %v8072
      %v8232 = vsel %vm8228, %v8199, %v8074
      %v8233 = vsel %vm8228, %v8200, %v8076
      %v8234 = vsel %vm8228, %v8201, %v8078
      %v8235 = vsel %vm8228, %v8202, %v8080
      %v8236 = vsel %vm8228, %v8203, %v8082
      %v8237 = vsel %vm8228, %v8204, %v8084
      %v8238 = vsel %vm8228, %v8205, %v8086
      %v8239 = vsel %vm8228, %v8206, %v8088
      %v8240 = vsel %vm8228, %v8207, %v8090
      %v8241 = vsel %vm8228, %v8208, %v8092
      %v8242 = vsel %vm8228, %v8209, %v8094
      %v8243 = vsel %vm8228, %v8210, %v8096
      %v8244 = vsel %vm8228, %v8211, %v8098
      %v8245 = vsel %vm8228, %v8212, %v8100
      %v8246 = vsel %vm8228, %v8213, %v8102
      %v8247 = vsel %vm8228, %v8214, %v8104
      %v8248 = vsel %vm8228, %v8215, %v8106
      %v8249 = vsel %vm8228, %v8216, %v8108
      %v8250 = vsel %vm8228, %v8217, %v8110
      %v8251 = vsel %vm8228, %v8218, %v8112
      %v8252 = vsel %vm8228, %v8219, %v8114
      %v8253 = vsel %vm8228, %v8220, %v8116
      %v8254 = vsel %vm8228, %v8221, %v8118
      %v8255 = vsel %vm8228, %v8222, %v8120
      %v8256 = vsel %vm8228, %v8223, %v8122
      %v8257 = vsel %vm8228, %v8224, %v8124
      %v8258 = vsel %vm8228, %v8225, %v8126
      %v8259 = vsel %vm8228, %v8226, %v8128
      %v8260 = vsel %vm8228, %v8227, %v8130
      %v8261 = vld [vmem:[%s7] sm:$0xff]
      %v8262 = vld [vmem:[%s7 + $0x8] sm:$0xff]
      %v8263 = vld [vmem:[%s7 + $0x10] sm:$0xff]
      %v8264 = vld [vmem:[%s7 + $0x18] sm:$0xff]
      %v8265 = vld [vmem:[%s8] sm:$0x1]
      %v8267 = vperm.slane %v8265, 0
      %v8270 = vsel %vm373, %v8229, 0
      %v8273 = vsel %vm373, %v8230, 0
      %v8276 = vsel %vm373, %v8231, 0
      %v8279 = vsel %vm373, %v8232, 0
      %v8282 = vsel %vm373, %v8233, 0
      %v8285 = vsel %vm373, %v8234, 0
      %v8288 = vsel %vm373, %v8235, 0
      %v8291 = vsel %vm373, %v8236, 0
      %v8294 = vsel %vm373, %v8237, 0
      %v8297 = vsel %vm373, %v8238, 0
      %v8300 = vsel %vm373, %v8239, 0
      %v8303 = vsel %vm373, %v8240, 0
      %v8306 = vsel %vm373, %v8241, 0
      %v8309 = vsel %vm373, %v8242, 0
      %v8312 = vsel %vm373, %v8243, 0
      %v8315 = vsel %vm373, %v8244, 0
      %v8318 = vsel %vm373, %v8245, 0
      %v8321 = vsel %vm373, %v8246, 0
      %v8324 = vsel %vm373, %v8247, 0
      %v8327 = vsel %vm373, %v8248, 0
      %v8330 = vsel %vm373, %v8249, 0
      %v8333 = vsel %vm373, %v8250, 0
      %v8336 = vsel %vm373, %v8251, 0
      %v8339 = vsel %vm373, %v8252, 0
      %v8342 = vsel %vm373, %v8253, 0
      %v8345 = vsel %vm373, %v8254, 0
      %v8348 = vsel %vm373, %v8255, 0
      %v8351 = vsel %vm373, %v8256, 0
      %v8354 = vsel %vm373, %v8257, 0
      %v8357 = vsel %vm373, %v8258, 0
      %v8360 = vsel %vm373, %v8259, 0
      %v8363 = vsel %vm373, %v8260, 0
      %8365 = vmatpush.msra.mxu0 0.0
      %8366 = vmatpush.msra.mxu0 0.0
      %8367 = vmatpush.msra.mxu0 0.0
      %8368 = vmatpush.msra.mxu0 0.0
      %8369 = vmatpush.msra.mxu0 0.0
      %8370 = vmatpush.msra.mxu0 0.0
      %8371 = vmatpush.msra.mxu0 0.0
      %8372 = vmatpush.msra.mxu0 0.0
      %8373 = vmatpush.msra.mxu0 0.0
      %8374 = vmatpush.msra.mxu0 0.0
      %8375 = vmatpush.msra.mxu0 0.0
      %8376 = vmatpush.msra.mxu0 0.0
      %8377 = vmatpush.msra.mxu0 %v8264
      %8378 = vmatpush.msra.mxu0 %v8263
      %8379 = vmatpush.msra.mxu0 %v8262
      %8380 = vmatpush.msra.mxu0 %v8261
      %8381 = vmatmul.f32.gmra.mxu0 %v8270
      %v8382 = vpop.f32.mrf.mxu0
      %v8383 = vadd.f32 %v8267, %v8382
      %8384 = vmatmul.f32.gmra.mxu0 %v8273
      %v8385 = vpop.f32.mrf.mxu0
      %v8386 = vadd.f32 %v8267, %v8385
      %8387 = vmatmul.f32.gmra.mxu0 %v8276
      %v8388 = vpop.f32.mrf.mxu0
      %v8389 = vadd.f32 %v8267, %v8388
      %8390 = vmatmul.f32.gmra.mxu0 %v8279
      %v8391 = vpop.f32.mrf.mxu0
      %v8392 = vadd.f32 %v8267, %v8391
      %8393 = vmatmul.f32.gmra.mxu0 %v8282
      %v8394 = vpop.f32.mrf.mxu0
      %v8395 = vadd.f32 %v8267, %v8394
      %8396 = vmatmul.f32.gmra.mxu0 %v8285
      %v8397 = vpop.f32.mrf.mxu0
      %v8398 = vadd.f32 %v8267, %v8397
      %8399 = vmatmul.f32.gmra.mxu0 %v8288
      %v8400 = vpop.f32.mrf.mxu0
      %v8401 = vadd.f32 %v8267, %v8400
      %8402 = vmatmul.f32.gmra.mxu0 %v8291
      %v8403 = vpop.f32.mrf.mxu0
      %v8404 = vadd.f32 %v8267, %v8403
      %8405 = vmatmul.f32.gmra.mxu0 %v8294
      %v8406 = vpop.f32.mrf.mxu0
      %v8407 = vadd.f32 %v8267, %v8406
      %8408 = vmatmul.f32.gmra.mxu0 %v8297
      %v8409 = vpop.f32.mrf.mxu0
      %v8410 = vadd.f32 %v8267, %v8409
      %8411 = vmatmul.f32.gmra.mxu0 %v8300
      %v8412 = vpop.f32.mrf.mxu0
      %v8413 = vadd.f32 %v8267, %v8412
      %8414 = vmatmul.f32.gmra.mxu0 %v8303
      %v8415 = vpop.f32.mrf.mxu0
      %v8416 = vadd.f32 %v8267, %v8415
      %8417 = vmatmul.f32.gmra.mxu0 %v8306
      %v8418 = vpop.f32.mrf.mxu0
      %v8419 = vadd.f32 %v8267, %v8418
      %8420 = vmatmul.f32.gmra.mxu0 %v8309
      %v8421 = vpop.f32.mrf.mxu0
      %v8422 = vadd.f32 %v8267, %v8421
      %8423 = vmatmul.f32.gmra.mxu0 %v8312
      %v8424 = vpop.f32.mrf.mxu0
      %v8425 = vadd.f32 %v8267, %v8424
      %8426 = vmatmul.f32.gmra.mxu0 %v8315
      %v8427 = vpop.f32.mrf.mxu0
      %v8428 = vadd.f32 %v8267, %v8427
      %8429 = vmatmul.f32.gmra.mxu0 %v8318
      %v8430 = vpop.f32.mrf.mxu0
      %v8431 = vadd.f32 %v8267, %v8430
      %8432 = vmatmul.f32.gmra.mxu0 %v8321
      %v8433 = vpop.f32.mrf.mxu0
      %v8434 = vadd.f32 %v8267, %v8433
      %8435 = vmatmul.f32.gmra.mxu0 %v8324
      %v8436 = vpop.f32.mrf.mxu0
      %v8437 = vadd.f32 %v8267, %v8436
      %8438 = vmatmul.f32.gmra.mxu0 %v8327
      %v8439 = vpop.f32.mrf.mxu0
      %v8440 = vadd.f32 %v8267, %v8439
      %8441 = vmatmul.f32.gmra.mxu0 %v8330
      %v8442 = vpop.f32.mrf.mxu0
      %v8443 = vadd.f32 %v8267, %v8442
      %8444 = vmatmul.f32.gmra.mxu0 %v8333
      %v8445 = vpop.f32.mrf.mxu0
      %v8446 = vadd.f32 %v8267, %v8445
      %8447 = vmatmul.f32.gmra.mxu0 %v8336
      %v8448 = vpop.f32.mrf.mxu0
      %v8449 = vadd.f32 %v8267, %v8448
      %8450 = vmatmul.f32.gmra.mxu0 %v8339
      %v8451 = vpop.f32.mrf.mxu0
      %v8452 = vadd.f32 %v8267, %v8451
      %8453 = vmatmul.f32.gmra.mxu0 %v8342
      %v8454 = vpop.f32.mrf.mxu0
      %v8455 = vadd.f32 %v8267, %v8454
      %8456 = vmatmul.f32.gmra.mxu0 %v8345
      %v8457 = vpop.f32.mrf.mxu0
      %v8458 = vadd.f32 %v8267, %v8457
      %8459 = vmatmul.f32.gmra.mxu0 %v8348
      %v8460 = vpop.f32.mrf.mxu0
      %v8461 = vadd.f32 %v8267, %v8460
      %8462 = vmatmul.f32.gmra.mxu0 %v8351
      %v8463 = vpop.f32.mrf.mxu0
      %v8464 = vadd.f32 %v8267, %v8463
      %8465 = vmatmul.f32.gmra.mxu0 %v8354
      %v8466 = vpop.f32.mrf.mxu0
      %v8467 = vadd.f32 %v8267, %v8466
      %8468 = vmatmul.f32.gmra.mxu0 %v8357
      %v8469 = vpop.f32.mrf.mxu0
      %v8470 = vadd.f32 %v8267, %v8469
      %8471 = vmatmul.f32.gmra.mxu0 %v8360
      %v8472 = vpop.f32.mrf.mxu0
      %v8473 = vadd.f32 %v8267, %v8472
      %8474 = vmatmul.f32.gmra.mxu0 %v8363
      %v8475 = vpop.f32.mrf.mxu0
      %v8476 = vadd.f32 %v8267, %v8475
      %8477 = vdwg.mxu0
      %8478 = vst.msk [vmem:[%s339] sm:$0xff] %vm373, %v8383
      %8479 = vst.msk [vmem:[%s339 + $0x8] sm:$0xff] %vm373, %v8386
      %8480 = vst.msk [vmem:[%s339 + $0x10] sm:$0xff] %vm373, %v8389
      %8481 = vst.msk [vmem:[%s339 + $0x18] sm:$0xff] %vm373, %v8392
      %8482 = vst.msk [vmem:[%s339 + $0x20] sm:$0xff] %vm373, %v8395
      %8483 = vst.msk [vmem:[%s339 + $0x28] sm:$0xff] %vm373, %v8398
      %8484 = vst.msk [vmem:[%s339 + $0x30] sm:$0xff] %vm373, %v8401
      %8485 = vst.msk [vmem:[%s339 + $0x38] sm:$0xff] %vm373, %v8404
      %8486 = vst.msk [vmem:[%s339 + $0x40] sm:$0xff] %vm373, %v8407
      %8487 = vst.msk [vmem:[%s339 + $0x48] sm:$0xff] %vm373, %v8410
      %8488 = vst.msk [vmem:[%s339 + $0x50] sm:$0xff] %vm373, %v8413
      %8489 = vst.msk [vmem:[%s339 + $0x58] sm:$0xff] %vm373, %v8416
      %8490 = vst.msk [vmem:[%s339 + $0x60] sm:$0xff] %vm373, %v8419
      %8491 = vst.msk [vmem:[%s339 + $0x68] sm:$0xff] %vm373, %v8422
      %8492 = vst.msk [vmem:[%s339 + $0x70] sm:$0xff] %vm373, %v8425
      %8493 = vst.msk [vmem:[%s339 + $0x78] sm:$0xff] %vm373, %v8428
      %8494 = vst.msk [vmem:[%s339 + $0x80] sm:$0xff] %vm373, %v8431
      %8495 = vst.msk [vmem:[%s339 + $0x88] sm:$0xff] %vm373, %v8434
      %8496 = vst.msk [vmem:[%s339 + $0x90] sm:$0xff] %vm373, %v8437
      %8497 = vst.msk [vmem:[%s339 + $0x98] sm:$0xff] %vm373, %v8440
      %8498 = vst.msk [vmem:[%s339 + $0xa0] sm:$0xff] %vm373, %v8443
      %8499 = vst.msk [vmem:[%s339 + $0xa8] sm:$0xff] %vm373, %v8446
      %8500 = vst.msk [vmem:[%s339 + $0xb0] sm:$0xff] %vm373, %v8449
      %8501 = vst.msk [vmem:[%s339 + $0xb8] sm:$0xff] %vm373, %v8452
      %8502 = vst.msk [vmem:[%s339 + $0xc0] sm:$0xff] %vm373, %v8455
      %8503 = vst.msk [vmem:[%s339 + $0xc8] sm:$0xff] %vm373, %v8458
      %8504 = vst.msk [vmem:[%s339 + $0xd0] sm:$0xff] %vm373, %v8461
      %8505 = vst.msk [vmem:[%s339 + $0xd8] sm:$0xff] %vm373, %v8464
      %8506 = vst.msk [vmem:[%s339 + $0xe0] sm:$0xff] %vm373, %v8467
      %8507 = vst.msk [vmem:[%s339 + $0xe8] sm:$0xff] %vm373, %v8470
      %8508 = vst.msk [vmem:[%s339 + $0xf0] sm:$0xff] %vm373, %v8473
      %8509 = vst.msk [vmem:[%s339 + $0xf8] sm:$0xff] %vm373, %v8476
      %s8510 = smul.u32 4, %s20
      %p8511 = scmp.lt.s32.totalorder %s8510, 7
      %s8512 = scalar_select %p8511, %s8510, 7
      %s8513 = smul.addr %s8512, 8
      %s8514 = smul.addr %s8513, 8
      %s8515 = scalar_lea.vmem %s9, %s8514
      // Predicated region
      $region57: #{swin_block_forward.2} parent=55 // pred_check
        %p8516 = pneg %p232
      $region58: #{swin_block_forward.2} parent=55 // pred_check_branch
        %8518 = sbr.rel (%p8516) target = $region60
      $region59: #{swin_block_forward.2} parent=55 // pred_region
        %s8519 = smul.u32 4, %s20
      $region60: #{swin_block_forward.2} parent=55 // pred_fallthru
        _
    $region56: #{swin_block_forward.2} parent=5 // pred_fallthru
      _
    %p8520 = scmp.le.s32.totalorder 2, %s15
    // Predicated region
    $region61: #{swin_block_forward.2} parent=5 // pred_check
      %p8521 = pneg %p8520
    $region62: #{swin_block_forward.2} parent=5 // pred_check_branch
      %8523 = sbr.rel (%p8521) target = $region64
    $region63: #{swin_block_forward.2} parent=5 // pred_region
      %s8524 = ssub.s32 %s15, 2
      // Predicated region
      $region65: #{swin_block_forward.2} parent=63 // pred_check
        %p8525 = pneg %p238
      $region66: #{swin_block_forward.2} parent=63 // pred_check_branch
        %8527 = sbr.rel (%p8525) target = $region68
      $region67: #{swin_block_forward.2} parent=63 // pred_region
        %s8528 = smul.u32 4, %s21
        %p8529 = scmp.lt.s32.totalorder %s8528, 7
        %s8530 = scalar_select %p8529, %s8528, 7
        %s8531 = smul.addr %s8530, 8
        %s8532 = smul.addr %s8531, 8
        %s8533 = scalar_lea.vmem %s9, %s8532
      $region68: #{swin_block_forward.2} parent=63 // pred_fallthru
        _
    $region64: #{swin_block_forward.2} parent=5 // pred_fallthru
      _
  $region6: #{swin_block_forward.2} parent=0 // loop_footer
    %s19 = sadd.s32 1, %s15
  $region7: #{swin_block_forward.2} parent=0 // loop_footer_branch
    %14 = sbr.rel target = $region3
  $region8: #{swin_block_forward.2} parent=0 // loop_exit
    _

</llo_original>
